<compile_context>
chip_gen: v7x
topology: tpu7x:2x2x1
jax: 0.10.0
libtpu: 0.0.40
codegen_flags: <defaults>
</compile_context>

<pallas_src>
import functools
import math

import jax
import jax.numpy as jnp
from jax.experimental import pallas as pl
from jax.experimental.pallas import tpu as pltpu


# -----------------------------------------------------------------------------
# In-kernel helpers
# -----------------------------------------------------------------------------
def _instance_norm(y):
    """InstanceNorm over the row (spatial) axis per channel lane: eps=1e-5, biased
    variance, no affine (nn.InstanceNorm1d/2d defaults)."""
    mean = jnp.mean(y, axis=0, keepdims=True)
    var = jnp.mean(jnp.square(y - mean), axis=0, keepdims=True)
    return (y - mean) * jax.lax.rsqrt(var + 1e-5)


def _leaky(y):  # negative_slope = 0.2
    return jnp.where(y >= 0.0, y, 0.2 * y)


# -----------------------------------------------------------------------------
# conv(1x1, no bias) + InstanceNorm + leaky-ReLU + max over neighbour groups (old path)
# -----------------------------------------------------------------------------
def _conv_block_kernel(x_ref, w_ref, o_ref, *, max_groups, m_out):
    y = jnp.dot(x_ref[0], w_ref[...], preferred_element_type=jnp.float32)
    y = _leaky(_instance_norm(y))                 # IN over all group*n rows (matches IN2d)
    m = y[0:m_out]
    for g in range(1, max_groups):                # rows ordered (group, n): g*m_out + n
        m = jnp.maximum(m, y[g * m_out:(g + 1) * m_out])
    o_ref[0] = m.astype(o_ref.dtype)


def conv_in_leaky_max(x, w, *, max_groups, out_dtype=jnp.bfloat16):
    """x: [B, M, K] bf16 (neighbour-major rows), w: [K, Cout] bf16.
    leaky(IN(x @ w)) then max over `max_groups` contiguous row blocks — fuses
    Conv2d(1x1, bias=False) + InstanceNorm2d + leaky_relu + .max(dim=-1)."""
    B, M, K = x.shape
    Cout = w.shape[1]
    m_out = M // max_groups
    kernel = functools.partial(_conv_block_kernel, max_groups=max_groups, m_out=m_out)
    return pl.pallas_call(
        kernel,
        out_shape=jax.ShapeDtypeStruct((B, m_out, Cout), out_dtype),
        grid=(B,),
        in_specs=[pl.BlockSpec((1, M, K), lambda b: (b, 0, 0)),
                  pl.BlockSpec((K, Cout), lambda b: (0, 0))],
        out_specs=pl.BlockSpec((1, m_out, Cout), lambda b: (b, 0, 0)),
        compiler_params=pltpu.CompilerParams(dimension_semantics=("parallel",)),
    )(x, w)


# -----------------------------------------------------------------------------
# Fused annuconv / angle_enc kernel: conv(1,3)/s3 + IN + ReLU + conv(1,3) + IN + ReLU
# -----------------------------------------------------------------------------
def _annuconv_kernel(xa_ref, wa_ref, ba_ref, wb_ref, bb_ref, o_ref, *, n):
    ya = jnp.dot(xa_ref[0], wa_ref[...], preferred_element_type=jnp.float32) + ba_ref[...]
    ya = jnp.maximum(_instance_norm(ya), 0.0)                 # IN over 3N positions + ReLU
    yb = jnp.dot(ya[0:n].astype(jnp.bfloat16), wb_ref[0],
                 preferred_element_type=jnp.float32)
    yb = yb + jnp.dot(ya[n:2 * n].astype(jnp.bfloat16), wb_ref[1],
                      preferred_element_type=jnp.float32)
    yb = yb + jnp.dot(ya[2 * n:3 * n].astype(jnp.bfloat16), wb_ref[2],
                      preferred_element_type=jnp.float32)
    yb = yb + bb_ref[...]
    # TODO(synk): stage-B could run as one K=3*cm contraction by re-laying ya as (N, 3cm)
    # after the IN statistics; modest win, skipped to keep lowering simple.
    o_ref[0] = jnp.maximum(_instance_norm(yb), 0.0).astype(o_ref.dtype)   # IN over N + ReLU


def annuconv_block(xa, wa, ba, wb, bb, *, out_dtype=jnp.bfloat16):
    """Fused [Conv2d(Cin,Cm,(1,3),s=(1,3)) + IN + ReLU + Conv2d(Cm,Co,(1,3)) + IN + ReLU].

    xa: [B, 3N, KA] window-folded input (row = j*N + n, col = w*Cin + ci) in bf16,
    wa: [KA, Cm] bf16, wb: [3, Cm, Co] bf16 (wb[w] multiplies the stage-A slice j == w).
    Both stages run in one kernel; the (3N, Cm) intermediate stays in VMEM.
    """
    B, m3, ka = xa.shape
    n = m3 // 3
    cm = wa.shape[1]
    co = wb.shape[2]
    xa = xa.astype(jnp.bfloat16)
    pad = (-ka) % 16                               # bf16 sublane tile for the weight rows
    if pad:                                        # zero-pad contraction dim (no-op math)
        xa = jnp.pad(xa, ((0, 0), (0, 0), (0, pad)))
        wa = jnp.pad(wa, ((0, pad), (0, 0)))
    ka_p = ka + pad
    return pl.pallas_call(
        functools.partial(_annuconv_kernel, n=n),
        out_shape=jax.ShapeDtypeStruct((B, n, co), out_dtype),
        grid=(B,),
        in_specs=[
            pl.BlockSpec((1, m3, ka_p), lambda b: (b, 0, 0)),
            pl.BlockSpec((ka_p, cm), lambda b: (0, 0)),
            pl.BlockSpec((1, cm), lambda b: (0, 0)),
            pl.BlockSpec((3, cm, co), lambda b: (0, 0, 0)),
            pl.BlockSpec((1, co), lambda b: (0, 0)),
        ],
        out_specs=pl.BlockSpec((1, n, co), lambda b: (b, 0, 0)),
        compiler_params=pltpu.CompilerParams(dimension_semantics=("parallel",)),
    )(xa, wa, ba.astype(jnp.float32).reshape(1, cm),
      wb, bb.astype(jnp.float32).reshape(1, co))


# -----------------------------------------------------------------------------
# Merged conv3 (new path) + conv3_old (old path): two accumulators, emits x3 + x3o
# -----------------------------------------------------------------------------
def _conv3_sum_kernel(feats_ref, x1_ref, x2_ref, fang_ref, x1o_ref, x2o_ref,
                      waf_ref, wa1_ref, wa2_ref, wang_ref,
                      wbf_ref, wb1_ref, wb2_ref, o_ref):
    feats = feats_ref[0]
    # new path: conv3 on cat(x0, x1 + f_ang, x2 + f_ang) via weight splits;
    # f_ang's two contributions use the pre-summed weight slice wang = w3[C:2C]+w3[2C:3C].
    acc_a = jnp.dot(feats, waf_ref[...], preferred_element_type=jnp.float32)
    acc_a = acc_a + jnp.dot(x1_ref[0], wa1_ref[...], preferred_element_type=jnp.float32)
    acc_a = acc_a + jnp.dot(x2_ref[0], wa2_ref[...], preferred_element_type=jnp.float32)
    acc_a = acc_a + jnp.dot(fang_ref[0], wang_ref[...], preferred_element_type=jnp.float32)
    # old path: conv3_old on cat(x0, x1_old, x2_old) via weight splits
    acc_b = jnp.dot(feats, wbf_ref[...], preferred_element_type=jnp.float32)
    acc_b = acc_b + jnp.dot(x1o_ref[0], wb1_ref[...], preferred_element_type=jnp.float32)
    acc_b = acc_b + jnp.dot(x2o_ref[0], wb2_ref[...], preferred_element_type=jnp.float32)
    o_ref[0] = _leaky(_instance_norm(acc_a)) + _leaky(_instance_norm(acc_b))


def conv3_sum(feats, x1, x2, f_ang, x1o, x2o, w3, w3o):
    """Emits leaky(IN(conv3(cat(x0, x1+f_ang, x2+f_ang)))) +
              leaky(IN(conv3_old(cat(x0, x1_old, x2_old)))) in one kernel.  Output f32."""
    B, N, C = feats.shape
    waf, wa1, wa2 = w3[0:C], w3[C:2 * C], w3[2 * C:3 * C]
    wang = (wa1.astype(jnp.float32) + wa2.astype(jnp.float32)).astype(jnp.bfloat16)
    wbf, wb1, wb2 = w3o[0:C], w3o[C:2 * C], w3o[2 * C:4 * C]
    bmap = lambda shape: pl.BlockSpec(shape, lambda b: (b, 0, 0))
    full = lambda shape: pl.BlockSpec(shape, lambda b: (0, 0))
    return pl.pallas_call(
        _conv3_sum_kernel,
        out_shape=jax.ShapeDtypeStruct((B, N, C), jnp.float32),
        grid=(B,),
        in_specs=[bmap((1, N, C)), bmap((1, N, C)), bmap((1, N, C)), bmap((1, N, C)),
                  bmap((1, N, C)), bmap((1, N, 2 * C)),
                  full((C, C)), full((C, C)), full((C, C)), full((C, C)),
                  full((C, C)), full((C, C)), full((2 * C, C))],
        out_specs=bmap((1, N, C)),
        compiler_params=pltpu.CompilerParams(dimension_semantics=("parallel",)),
    )(feats, x1, x2, f_ang, x1o, x2o, waf, wa1, wa2, wang, wbf, wb1, wb2)


# -----------------------------------------------------------------------------
# Fused AttentionalPropagation: fused Q / K|V proj + per-head softmax + merge + MLP
# + outer residual, grid = (B,) only
# -----------------------------------------------------------------------------
def _attn_prop_kernel(x_ref, s_ref, wq_ref, bq_ref, wkv_ref, bkv_ref,
                      wm_ref, bm_ref, w1x_ref, w1m_ref, b1_ref, w2_ref, b2_ref,
                      o_ref, *, num_heads):
    x = x_ref[0]                                              # (N, D) f32 (residual base)
    xb = x.astype(jnp.bfloat16)
    sb = s_ref[0].astype(jnp.bfloat16)
    D = x.shape[-1]
    dh = D // num_heads

    # lane-dense fused projections: q (N, D), k|v (N, 2D); 1/sqrt(dh) folded into wq/bq
    q_all = jnp.dot(xb, wq_ref[...], preferred_element_type=jnp.float32) + bq_ref[...]
    kv_all = jnp.dot(sb, wkv_ref[...], preferred_element_type=jnp.float32) + bkv_ref[...]
    wm = wm_ref[...]                                          # (D, D) bf16, head-major rows

    msg = bm_ref[...]                                         # (1, D), broadcasts below
    for h in range(num_heads):                                # static H=4 head loop
        qh = q_all[:, h * dh:(h + 1) * dh].astype(jnp.bfloat16)
        kh = kv_all[:, h * dh:(h + 1) * dh].astype(jnp.bfloat16)
        vh = kv_all[:, D + h * dh:D + (h + 1) * dh].astype(jnp.bfloat16)
        sc = jax.lax.dot_general(qh, kh, (((1,), (1,)), ((), ())),
                                 preferred_element_type=jnp.float32)       # (N, N)
        sc = sc - jnp.max(sc, axis=-1, keepdims=True)
        pr = jnp.exp(sc)
        pr = pr * pl.reciprocal(jnp.sum(pr, axis=-1, keepdims=True), approx=True)
        oh = jnp.dot(pr.astype(jnp.bfloat16), vh, preferred_element_type=jnp.float32)
        msg = msg + jnp.dot(oh.astype(jnp.bfloat16), wm[h * dh:(h + 1) * dh, :],
                            preferred_element_type=jnp.float32)            # merge slice

    # mlp on cat([x, message], channel) via weight split, then IN + ReLU, then mlp2;
    # the outer residual (d = x + mlp(...)) is fused here.
    h1 = (jnp.dot(xb, w1x_ref[...], preferred_element_type=jnp.float32)
          + jnp.dot(msg.astype(jnp.bfloat16), w1m_ref[...],
                    preferred_element_type=jnp.float32)
          + b1_ref[...])
    h1 = jnp.maximum(_instance_norm(h1), 0.0)
    o_ref[0] = x + (jnp.dot(h1.astype(jnp.bfloat16), w2_ref[...],
                            preferred_element_type=jnp.float32) + b2_ref[...])


def attentional_propagation_fwd(p, x_cl, src_cl, *, num_heads=4):
    """x + AttentionalPropagation(x, source), fully fused.  x_cl, src_cl: [B, N, D] f32."""
    B, N, D = x_cl.shape
    bmap = lambda b: (b, 0, 0)
    c2 = lambda b: (0, 0)
    kernel = functools.partial(_attn_prop_kernel, num_heads=num_heads)
    return pl.pallas_call(
        kernel,
        out_shape=jax.ShapeDtypeStruct((B, N, D), jnp.float32),
        grid=(B,),
        in_specs=[
            pl.BlockSpec((1, N, D), bmap),          # x (query source + residual)
            pl.BlockSpec((1, N, D), bmap),          # source (key/value source)
            pl.BlockSpec((D, D), c2),               # fused wq (pre-scaled by 1/sqrt(dh))
            pl.BlockSpec((1, D), c2),               # fused bq (pre-scaled)
            pl.BlockSpec((D, 2 * D), c2),           # fused wk|wv
            pl.BlockSpec((1, 2 * D), c2),           # fused bk|bv
            pl.BlockSpec((D, D), c2),               # merge weight (head-major rows)
            pl.BlockSpec((1, D), c2),               # merge bias
            pl.BlockSpec((D, 2 * D), c2),           # mlp1 weight (x half)
            pl.BlockSpec((D, 2 * D), c2),           # mlp1 weight (message half)
            pl.BlockSpec((1, 2 * D), c2),           # mlp1 bias
            pl.BlockSpec((2 * D, D), c2),           # mlp2 weight
            pl.BlockSpec((1, D), c2),               # mlp2 bias (zero-init per module)
        ],
        out_specs=pl.BlockSpec((1, N, D), bmap),
        compiler_params=pltpu.CompilerParams(dimension_semantics=("parallel",)),
    )(x_cl, src_cl, p["wq"], p["bq"], p["wkv"], p["bkv"], p["wm"], p["bm"],
      p["w1x"], p["w1m"], p["b1"], p["w2"], p["b2"])


# -----------------------------------------------------------------------------
# SelfAttention / SCAttention forward (channels-last glue: gathers, folds)
# -----------------------------------------------------------------------------
def self_attention_fwd(p, coords_cl, feats_cl, k=9):
    """SelfAttention.forward.  coords_cl: [B, N, 2], feats_cl: [B, N, C] -> [B, N, C]."""
    B, N, C = feats_cl.shape
    kk = min(k, N - 1)
    assert kk == 9, "annuconv/angle_enc require a neighbourhood width of 9"

    # --- KNN on coords (identical for every get_graph_feature call: coords are fixed) ---
    # Pairwise distances in plain XLA: at N=16 a pallas (N,N) store is lane-sparse and
    # the launch overhead exceeds the compute.
    xc = coords_cl.astype(jnp.float32)
    ssq = jnp.sum(xc * xc, axis=-1)
    dist = ssq[:, :, None] - 2.0 * jnp.einsum("bnc,bmc->bnm", xc, xc) + ssq[:, None, :]
    dist = jnp.maximum(dist, 1e-12)                           # clamp matches torch helper
    # TODO(synk): top-k + row gather stay in plain JAX; a PrefetchScalarGridSpec/pl.Element
    # gather feeding the conv DMAs only pays off once N grows far beyond 16.
    _, idx_full = jax.lax.top_k(-dist, kk + 1)                # ascending distance
    idx = idx_full[:, :, 1:]                                  # drop self -> [B, N, kk]
    # NOTE: exactly duplicated points can tie with the self-distance; tie ordering is
    # implementation-defined both here and in torch.topk.
    idx_t = jnp.swapaxes(idx, 1, 2)                           # [B, kk, N] neighbour-major

    def gather_rows(f):                                       # [B, N, Cf] -> [B, kk, N, Cf]
        return jax.vmap(lambda fb, ib: jnp.take(fb, ib, axis=0, mode="clip"))(f, idx_t)

    def graph_feature(f):                                     # [B, N, Cf] -> [B, kk, N, 2Cf]
        nb = gather_rows(f)
        ctr = jnp.broadcast_to(f[:, None, :, :], nb.shape)
        return jnp.concatenate([ctr, nb - ctr], axis=-1)

    def fold_windows(g):                                      # [B, 9, N, Cf] -> [B, 3N, 3Cf]
        Bg, _, Ng, Cf = g.shape
        return (g.reshape(Bg, 3, 3, Ng, Cf)                   # (j, w, n, c)
                 .transpose(0, 1, 3, 2, 4)                    # (j, n, w, c)
                 .reshape(Bg, 3 * Ng, 3 * Cf)
                 .astype(jnp.bfloat16))                       # matmul-only -> half the DMA

    feats_b = feats_cl.astype(jnp.bfloat16)                   # matmul-only inside this layer

    # --- angle branch (idx is identical for both stages -> f_ang1 == f_ang2, reused) ---
    nei = gather_rows(xc)                                     # [B, kk, N, 2]
    ctr = jnp.broadcast_to(xc[:, None, :, :], nei.shape)
    dots = jnp.sum(ctr * nei, axis=-1)
    nrm = jnp.sqrt(jnp.sum(ctr * ctr, axis=-1)) * jnp.sqrt(jnp.sum(nei * nei, axis=-1))
    # NOTE: the original helper divides with no eps; the 1e-8 guard only changes behaviour
    # for degenerate zero-norm coordinates (prevents Inf/NaN propagation).
    ang = dots / jnp.maximum(nrm, 1e-8)                       # [B, kk, N]
    f_ang = annuconv_block(fold_windows(ang[..., None]),
                           p["ang_aw"], p["ang_ab"], p["ang_bw"], p["ang_bb"])

    # --- new path ---
    gf1 = graph_feature(feats_b)                              # [B, 9, N, 2C] bf16
    x1 = annuconv_block(fold_windows(gf1),
                        p["annu1_aw"], p["annu1_ab"], p["annu1_bw"], p["annu1_bb"])
    gf2 = graph_feature(x1)                                   # [B, 9, N, 2C] bf16
    x2 = annuconv_block(fold_windows(gf2),
                        p["annu2_aw"], p["annu2_ab"], p["annu2_bw"], p["annu2_bb"])

    # --- old path (conv + IN + leaky + max over neighbours fused per call) ---
    x1o = conv_in_leaky_max(gf1.reshape(B, kk * N, 2 * C), p["conv1_w"],
                            max_groups=kk)                    # [B, N, C] bf16
    gf2o = graph_feature(x1o)
    x2o = conv_in_leaky_max(gf2o.reshape(B, kk * N, 2 * C), p["conv2_w"],
                            max_groups=kk)                    # [B, N, 2C] bf16

    # --- merged conv3/conv3_old + (x1+f_ang, x2+f_ang, x3+x3o) adds, one kernel ---
    return conv3_sum(feats_b, x1, x2, f_ang, x1o, x2o, p["conv3_w"], p["conv3_old_w"])


def sc_attention_fwd(params, names, desc0, desc1, coords0, coords1):
    """SCAttention.forward.  desc*: [B, C, N], coords*: [B, 2, N] -> two [B, C, N]."""
    d0 = jnp.transpose(desc0, (0, 2, 1)).astype(jnp.float32)   # channels-last [B, N, C]
    d1 = jnp.transpose(desc1, (0, 2, 1)).astype(jnp.float32)
    c0 = jnp.transpose(coords0, (0, 2, 1)).astype(jnp.float32) # [B, N, 2]
    c1 = jnp.transpose(coords1, (0, 2, 1)).astype(jnp.float32)
    for p, name in zip(params, names):
        if name == "cross":
            # residual is fused inside the attention kernel epilogue
            d0 = attentional_propagation_fwd(p, d0, d1)
            d1 = attentional_propagation_fwd(p, d1, d0)
        elif name == "self":
            d0 = self_attention_fwd(p, c0, d0)
            d1 = self_attention_fwd(p, c1, d1)
    return jnp.transpose(d0, (0, 2, 1)), jnp.transpose(d1, (0, 2, 1))


# -----------------------------------------------------------------------------
# Deterministic synthetic parameters (shapes from the module __init__; matmul weights bf16)
# -----------------------------------------------------------------------------
def _init_self_params(key, C=128):
    ks = iter(jax.random.split(key, 24))

    def w(shape):                                # matmul weights stored bf16 (MXU fast path)
        return (0.05 * jax.random.normal(next(ks), shape, jnp.float32)).astype(jnp.bfloat16)

    def bias(n):
        return 0.05 * jax.random.normal(next(ks), (n,), jnp.float32)

    return {
        "conv1_w": w((2 * C, C)),                # Conv2d(2C, C, 1, bias=False)
        "conv2_w": w((2 * C, 2 * C)),            # Conv2d(2C, 2C, 1, bias=False)
        "conv3_w": w((3 * C, C)),                # Conv2d(3C, C, 1, bias=False)
        "conv3_old_w": w((4 * C, C)),            # Conv2d(4C, C, 1, bias=False)
        "annu1_aw": w((3 * 2 * C, C)), "annu1_ab": bias(C),
        "annu1_bw": w((3, C, C)),      "annu1_bb": bias(C),
        "annu2_aw": w((3 * 2 * C, C)), "annu2_ab": bias(C),
        "annu2_bw": w((3, C, C)),      "annu2_bb": bias(C),
        "ang_aw": w((3 * 1, C)),       "ang_ab": bias(C),
        "ang_bw": w((3, C, C)),        "ang_bb": bias(C),
    }


def _init_cross_params(key, D=128, H=4):
    dh = D // H
    ks = iter(jax.random.split(key, 16))

    def wf(shape):
        return 0.05 * jax.random.normal(next(ks), shape, jnp.float32)

    scale = 1.0 / math.sqrt(dh)                  # 1/sqrt(d_head) folded into q proj
    return {
        "wq": (wf((D, D)) * scale).astype(jnp.bfloat16),        # fused q, head-major cols
        "bq": wf((1, D)) * scale,
        "wkv": wf((D, 2 * D)).astype(jnp.bfloat16),             # fused [k | v]
        "bkv": wf((1, 2 * D)),
        "wm": wf((D, D)).astype(jnp.bfloat16),                  # merge, head-major rows
        "bm": wf((1, D)),
        "w1x": wf((D, 2 * D)).astype(jnp.bfloat16),
        "w1m": wf((D, 2 * D)).astype(jnp.bfloat16),
        "b1": wf((1, 2 * D)),
        "w2": wf((2 * D, D)).astype(jnp.bfloat16),
        "b2": jnp.zeros((1, D), jnp.float32),    # nn.init.constant_(mlp[-1].bias, 0.0)
    }


# -----------------------------------------------------------------------------
# Main
# -----------------------------------------------------------------------------
if __name__ == "__main__":
    B, C, N = 2, 128, 16          # feature_dim must equal in_channel=128 for SelfAttention
    names = ("self", "cross")

    key = jax.random.PRNGKey(0)
    kd0, kd1, kc0, kc1, kp0, kp1 = jax.random.split(key, 6)
    desc0 = jax.random.normal(kd0, (B, C, N), jnp.float32)
    desc1 = jax.random.normal(kd1, (B, C, N), jnp.float32)
    coords0 = jax.random.normal(kc0, (B, 2, N), jnp.float32)
    coords1 = jax.random.normal(kc1, (B, 2, N), jnp.float32)

    params = [_init_self_params(kp0, C), _init_cross_params(kp1, C)]

    fwd = jax.jit(lambda prm, a, b, c, d: sc_attention_fwd(prm, names, a, b, c, d))
    out0, out1 = fwd(params, desc0, desc1, coords0, coords1)
    jax.block_until_ready((out0, out1))

    assert out0.shape == (B, C, N) and out1.shape == (B, C, N)
    assert bool(jnp.all(jnp.isfinite(out0))) and bool(jnp.all(jnp.isfinite(out1)))
    print("KERNEL_OK")
</pallas_src>

<mosaic_0001>
module attributes {stable_mosaic.version = 11 : i64} {
  func.func @_conv_block_kernel(%arg0: i32, %arg1: memref<1x144x256xbf16, #tpu.memory_space<vmem>>, %arg2: memref<256x128xbf16, #tpu.memory_space<vmem>>, %arg3: memref<1x16x128xbf16, #tpu.memory_space<vmem>>) attributes {dimension_semantics = [#tpu.dimension_semantics<parallel>], iteration_bounds = array<i64: 2>, scalar_prefetch = 0 : i64, scratch_operands = 0 : i64, tpu.core_type = #tpu.core_type<tc>, window_params = [{transform_indices = @transform_0, window_bounds = array<i64: 1, 144, 256>}, {pipeline_mode = #tpu.pipeline_mode<synchronous>, transform_indices = @transform_1, window_bounds = array<i64: 256, 128>}, {transform_indices = @transform_2, window_bounds = array<i64: 1, 16, 128>}]} {
    %c0 = arith.constant 0 : index
    %c0_0 = arith.constant 0 : index
    %c0_1 = arith.constant 0 : index
    %0 = vector.load %arg1[%c0, %c0_0, %c0_1] : memref<1x144x256xbf16, #tpu.memory_space<vmem>>, vector<1x144x256xbf16>
    %1 = vector.shape_cast %0 : vector<1x144x256xbf16> to vector<144x256xbf16>
    %c0_2 = arith.constant 0 : index
    %c0_3 = arith.constant 0 : index
    %2 = vector.load %arg2[%c0_2, %c0_3] : memref<256x128xbf16, #tpu.memory_space<vmem>>, vector<256x128xbf16>
    %cst = arith.constant dense<0.000000e+00> : vector<144x128xf32>
    %3 = tpu.matmul %1, %2, %cst {dimension_numbers = #tpu.dot_dimension_numbers<[1], [0], [0], [1], [0, 0, 1, 1], [], []>} : vector<144x256xbf16>, vector<256x128xbf16>, vector<144x128xf32> -> vector<144x128xf32>
    %cst_4 = arith.constant dense<0.000000e+00> : vector<128xf32>
    %4 = vector.multi_reduction <add>, %3, %cst_4 [0] : vector<144x128xf32> to vector<128xf32>
    %5 = vector.shape_cast %4 : vector<128xf32> to vector<1x128xf32>
    %cst_5 = arith.constant 1.440000e+02 : f32
    %6 = vector.broadcast %cst_5 : f32 to vector<1x128xf32>
    %7 = arith.divf %5, %6 : vector<1x128xf32>
    %8 = vector.broadcast %7 : vector<1x128xf32> to vector<144x128xf32>
    %9 = arith.subf %3, %8 : vector<144x128xf32>
    %10 = arith.mulf %9, %9 : vector<144x128xf32>
    %cst_6 = arith.constant dense<0.000000e+00> : vector<128xf32>
    %11 = vector.multi_reduction <add>, %10, %cst_6 [0] : vector<144x128xf32> to vector<128xf32>
    %12 = vector.shape_cast %11 : vector<128xf32> to vector<1x128xf32>
    %cst_7 = arith.constant 1.440000e+02 : f32
    %13 = vector.broadcast %cst_7 : f32 to vector<1x128xf32>
    %14 = arith.divf %12, %13 : vector<1x128xf32>
    %15 = vector.broadcast %7 : vector<1x128xf32> to vector<144x128xf32>
    %16 = arith.subf %3, %15 : vector<144x128xf32>
    %cst_8 = arith.constant 9.99999974E-6 : f32
    %17 = vector.broadcast %cst_8 : f32 to vector<1x128xf32>
    %18 = arith.addf %14, %17 : vector<1x128xf32>
    %19 = math.rsqrt %18 : vector<1x128xf32>
    %20 = vector.broadcast %19 : vector<1x128xf32> to vector<144x128xf32>
    %21 = arith.mulf %16, %20 : vector<144x128xf32>
    %cst_9 = arith.constant 0.000000e+00 : f32
    %22 = vector.broadcast %cst_9 : f32 to vector<144x128xf32>
    %23 = arith.cmpf oge, %21, %22 : vector<144x128xf32>
    %cst_10 = arith.constant 2.000000e-01 : f32
    %24 = vector.broadcast %cst_10 : f32 to vector<144x128xf32>
    %25 = arith.mulf %24, %21 : vector<144x128xf32>
    %26 = arith.select %23, %21, %25 : vector<144x128xi1>, vector<144x128xf32>
    %27 = vector.extract_strided_slice %26 {offsets = [0, 0], sizes = [16, 128], strides = [1, 1]} : vector<144x128xf32> to vector<16x128xf32>
    %28 = vector.extract_strided_slice %26 {offsets = [16, 0], sizes = [16, 128], strides = [1, 1]} : vector<144x128xf32> to vector<16x128xf32>
    %29 = arith.maximumf %27, %28 : vector<16x128xf32>
    %30 = vector.extract_strided_slice %26 {offsets = [32, 0], sizes = [16, 128], strides = [1, 1]} : vector<144x128xf32> to vector<16x128xf32>
    %31 = arith.maximumf %29, %30 : vector<16x128xf32>
    %32 = vector.extract_strided_slice %26 {offsets = [48, 0], sizes = [16, 128], strides = [1, 1]} : vector<144x128xf32> to vector<16x128xf32>
    %33 = arith.maximumf %31, %32 : vector<16x128xf32>
    %34 = vector.extract_strided_slice %26 {offsets = [64, 0], sizes = [16, 128], strides = [1, 1]} : vector<144x128xf32> to vector<16x128xf32>
    %35 = arith.maximumf %33, %34 : vector<16x128xf32>
    %36 = vector.extract_strided_slice %26 {offsets = [80, 0], sizes = [16, 128], strides = [1, 1]} : vector<144x128xf32> to vector<16x128xf32>
    %37 = arith.maximumf %35, %36 : vector<16x128xf32>
    %38 = vector.extract_strided_slice %26 {offsets = [96, 0], sizes = [16, 128], strides = [1, 1]} : vector<144x128xf32> to vector<16x128xf32>
    %39 = arith.maximumf %37, %38 : vector<16x128xf32>
    %40 = vector.extract_strided_slice %26 {offsets = [112, 0], sizes = [16, 128], strides = [1, 1]} : vector<144x128xf32> to vector<16x128xf32>
    %41 = arith.maximumf %39, %40 : vector<16x128xf32>
    %42 = vector.extract_strided_slice %26 {offsets = [128, 0], sizes = [16, 128], strides = [1, 1]} : vector<144x128xf32> to vector<16x128xf32>
    %43 = arith.maximumf %41, %42 : vector<16x128xf32>
    %44 = arith.truncf %43 : vector<16x128xf32> to vector<16x128xbf16>
    %c0_11 = arith.constant 0 : index
    %c0_12 = arith.constant 0 : index
    %c0_13 = arith.constant 0 : index
    %45 = vector.load %arg3[%c0_11, %c0_12, %c0_13] : memref<1x16x128xbf16, #tpu.memory_space<vmem>>, vector<1x16x128xbf16>
    %46 = vector.shape_cast %45 : vector<1x16x128xbf16> to vector<16x128xbf16>
    %47 = vector.shape_cast %44 : vector<16x128xbf16> to vector<1x16x128xbf16>
    tpu.vector_store %arg3[%c0_11, %c0_12, %c0_13], %47 {strides = array<i32>} : memref<1x16x128xbf16, #tpu.memory_space<vmem>>, vector<1x16x128xbf16>,
    return
  }
  func.func @transform_0(%arg0: i32) -> (i32, i32, i32) {
    %c0_i32 = arith.constant 0 : i32
    %c0_i32_0 = arith.constant 0 : i32
    %c0_i32_1 = arith.constant 0 : i32
    return %arg0, %c0_i32, %c0_i32_0 : i32, i32, i32
  }
  func.func @transform_1(%arg0: i32) -> (i32, i32) {
    %c0_i32 = arith.constant 0 : i32
    %c0_i32_0 = arith.constant 0 : i32
    %c0_i32_1 = arith.constant 0 : i32
    return %c0_i32, %c0_i32_0 : i32, i32
  }
  func.func @transform_2(%arg0: i32) -> (i32, i32, i32) {
    %c0_i32 = arith.constant 0 : i32
    %c0_i32_0 = arith.constant 0 : i32
    %c0_i32_1 = arith.constant 0 : i32
    return %arg0, %c0_i32, %c0_i32_0 : i32, i32, i32
  }
}

module attributes {stable_mosaic.version = 11 : i64} {
  func.func @_conv_block_kernel(%arg0: i32, %arg1: memref<1x144x256xbf16, #tpu.memory_space<vmem>>, %arg2: memref<256x256xbf16, #tpu.memory_space<vmem>>, %arg3: memref<1x16x256xbf16, #tpu.memory_space<vmem>>) attributes {dimension_semantics = [#tpu.dimension_semantics<parallel>], iteration_bounds = array<i64: 2>, scalar_prefetch = 0 : i64, scratch_operands = 0 : i64, tpu.core_type = #tpu.core_type<tc>, window_params = [{transform_indices = @transform_0, window_bounds = array<i64: 1, 144, 256>}, {pipeline_mode = #tpu.pipeline_mode<synchronous>, transform_indices = @transform_1, window_bounds = array<i64: 256, 256>}, {transform_indices = @transform_2, window_bounds = array<i64: 1, 16, 256>}]} {
    %c0 = arith.constant 0 : index
    %c0_0 = arith.constant 0 : index
    %c0_1 = arith.constant 0 : index
    %0 = vector.load %arg1[%c0, %c0_0, %c0_1] : memref<1x144x256xbf16, #tpu.memory_space<vmem>>, vector<1x144x256xbf16>
    %1 = vector.shape_cast %0 : vector<1x144x256xbf16> to vector<144x256xbf16>
    %c0_2 = arith.constant 0 : index
    %c0_3 = arith.constant 0 : index
    %2 = vector.load %arg2[%c0_2, %c0_3] : memref<256x256xbf16, #tpu.memory_space<vmem>>, vector<256x256xbf16>
    %cst = arith.constant dense<0.000000e+00> : vector<144x256xf32>
    %3 = tpu.matmul %1, %2, %cst {dimension_numbers = #tpu.dot_dimension_numbers<[1], [0], [0], [1], [0, 0, 1, 1], [], []>} : vector<144x256xbf16>, vector<256x256xbf16>, vector<144x256xf32> -> vector<144x256xf32>
    %cst_4 = arith.constant dense<0.000000e+00> : vector<256xf32>
    %4 = vector.multi_reduction <add>, %3, %cst_4 [0] : vector<144x256xf32> to vector<256xf32>
    %5 = vector.shape_cast %4 : vector<256xf32> to vector<1x256xf32>
    %cst_5 = arith.constant 1.440000e+02 : f32
    %6 = vector.broadcast %cst_5 : f32 to vector<1x256xf32>
    %7 = arith.divf %5, %6 : vector<1x256xf32>
    %8 = vector.broadcast %7 : vector<1x256xf32> to vector<144x256xf32>
    %9 = arith.subf %3, %8 : vector<144x256xf32>
    %10 = arith.mulf %9, %9 : vector<144x256xf32>
    %cst_6 = arith.constant dense<0.000000e+00> : vector<256xf32>
    %11 = vector.multi_reduction <add>, %10, %cst_6 [0] : vector<144x256xf32> to vector<256xf32>
    %12 = vector.shape_cast %11 : vector<256xf32> to vector<1x256xf32>
    %cst_7 = arith.constant 1.440000e+02 : f32
    %13 = vector.broadcast %cst_7 : f32 to vector<1x256xf32>
    %14 = arith.divf %12, %13 : vector<1x256xf32>
    %15 = vector.broadcast %7 : vector<1x256xf32> to vector<144x256xf32>
    %16 = arith.subf %3, %15 : vector<144x256xf32>
    %cst_8 = arith.constant 9.99999974E-6 : f32
    %17 = vector.broadcast %cst_8 : f32 to vector<1x256xf32>
    %18 = arith.addf %14, %17 : vector<1x256xf32>
    %19 = math.rsqrt %18 : vector<1x256xf32>
    %20 = vector.broadcast %19 : vector<1x256xf32> to vector<144x256xf32>
    %21 = arith.mulf %16, %20 : vector<144x256xf32>
    %cst_9 = arith.constant 0.000000e+00 : f32
    %22 = vector.broadcast %cst_9 : f32 to vector<144x256xf32>
    %23 = arith.cmpf oge, %21, %22 : vector<144x256xf32>
    %cst_10 = arith.constant 2.000000e-01 : f32
    %24 = vector.broadcast %cst_10 : f32 to vector<144x256xf32>
    %25 = arith.mulf %24, %21 : vector<144x256xf32>
    %26 = arith.select %23, %21, %25 : vector<144x256xi1>, vector<144x256xf32>
    %27 = vector.extract_strided_slice %26 {offsets = [0, 0], sizes = [16, 256], strides = [1, 1]} : vector<144x256xf32> to vector<16x256xf32>
    %28 = vector.extract_strided_slice %26 {offsets = [16, 0], sizes = [16, 256], strides = [1, 1]} : vector<144x256xf32> to vector<16x256xf32>
    %29 = arith.maximumf %27, %28 : vector<16x256xf32>
    %30 = vector.extract_strided_slice %26 {offsets = [32, 0], sizes = [16, 256], strides = [1, 1]} : vector<144x256xf32> to vector<16x256xf32>
    %31 = arith.maximumf %29, %30 : vector<16x256xf32>
    %32 = vector.extract_strided_slice %26 {offsets = [48, 0], sizes = [16, 256], strides = [1, 1]} : vector<144x256xf32> to vector<16x256xf32>
    %33 = arith.maximumf %31, %32 : vector<16x256xf32>
    %34 = vector.extract_strided_slice %26 {offsets = [64, 0], sizes = [16, 256], strides = [1, 1]} : vector<144x256xf32> to vector<16x256xf32>
    %35 = arith.maximumf %33, %34 : vector<16x256xf32>
    %36 = vector.extract_strided_slice %26 {offsets = [80, 0], sizes = [16, 256], strides = [1, 1]} : vector<144x256xf32> to vector<16x256xf32>
    %37 = arith.maximumf %35, %36 : vector<16x256xf32>
    %38 = vector.extract_strided_slice %26 {offsets = [96, 0], sizes = [16, 256], strides = [1, 1]} : vector<144x256xf32> to vector<16x256xf32>
    %39 = arith.maximumf %37, %38 : vector<16x256xf32>
    %40 = vector.extract_strided_slice %26 {offsets = [112, 0], sizes = [16, 256], strides = [1, 1]} : vector<144x256xf32> to vector<16x256xf32>
    %41 = arith.maximumf %39, %40 : vector<16x256xf32>
    %42 = vector.extract_strided_slice %26 {offsets = [128, 0], sizes = [16, 256], strides = [1, 1]} : vector<144x256xf32> to vector<16x256xf32>
    %43 = arith.maximumf %41, %42 : vector<16x256xf32>
    %44 = arith.truncf %43 : vector<16x256xf32> to vector<16x256xbf16>
    %c0_11 = arith.constant 0 : index
    %c0_12 = arith.constant 0 : index
    %c0_13 = arith.constant 0 : index
    %45 = vector.load %arg3[%c0_11, %c0_12, %c0_13] : memref<1x16x256xbf16, #tpu.memory_space<vmem>>, vector<1x16x256xbf16>
    %46 = vector.shape_cast %45 : vector<1x16x256xbf16> to vector<16x256xbf16>
    %47 = vector.shape_cast %44 : vector<16x256xbf16> to vector<1x16x256xbf16>
    tpu.vector_store %arg3[%c0_11, %c0_12, %c0_13], %47 {strides = array<i32>} : memref<1x16x256xbf16, #tpu.memory_space<vmem>>, vector<1x16x256xbf16>,
    return
  }
  func.func @transform_0(%arg0: i32) -> (i32, i32, i32) {
    %c0_i32 = arith.constant 0 : i32
    %c0_i32_0 = arith.constant 0 : i32
    %c0_i32_1 = arith.constant 0 : i32
    return %arg0, %c0_i32, %c0_i32_0 : i32, i32, i32
  }
  func.func @transform_1(%arg0: i32) -> (i32, i32) {
    %c0_i32 = arith.constant 0 : i32
    %c0_i32_0 = arith.constant 0 : i32
    %c0_i32_1 = arith.constant 0 : i32
    return %c0_i32, %c0_i32_0 : i32, i32
  }
  func.func @transform_2(%arg0: i32) -> (i32, i32, i32) {
    %c0_i32 = arith.constant 0 : i32
    %c0_i32_0 = arith.constant 0 : i32
    %c0_i32_1 = arith.constant 0 : i32
    return %arg0, %c0_i32, %c0_i32_0 : i32, i32, i32
  }
}

module attributes {stable_mosaic.version = 11 : i64} {
  func.func @_annuconv_kernel(%arg0: i32, %arg1: memref<1x48x768xbf16, #tpu.memory_space<vmem>>, %arg2: memref<768x128xbf16, #tpu.memory_space<vmem>>, %arg3: memref<1x128xf32, #tpu.memory_space<vmem>>, %arg4: memref<3x128x128xbf16, #tpu.memory_space<vmem>>, %arg5: memref<1x128xf32, #tpu.memory_space<vmem>>, %arg6: memref<1x16x128xbf16, #tpu.memory_space<vmem>>) attributes {dimension_semantics = [#tpu.dimension_semantics<parallel>], iteration_bounds = array<i64: 2>, scalar_prefetch = 0 : i64, scratch_operands = 0 : i64, tpu.core_type = #tpu.core_type<tc>, window_params = [{transform_indices = @transform_0, window_bounds = array<i64: 1, 48, 768>}, {pipeline_mode = #tpu.pipeline_mode<synchronous>, transform_indices = @transform_1, window_bounds = array<i64: 768, 128>}, {pipeline_mode = #tpu.pipeline_mode<synchronous>, transform_indices = @transform_2, window_bounds = array<i64: 1, 128>}, {pipeline_mode = #tpu.pipeline_mode<synchronous>, transform_indices = @transform_3, window_bounds = array<i64: 3, 128, 128>}, {pipeline_mode = #tpu.pipeline_mode<synchronous>, transform_indices = @transform_4, window_bounds = array<i64: 1, 128>}, {transform_indices = @transform_5, window_bounds = array<i64: 1, 16, 128>}]} {
    %c0 = arith.constant 0 : index
    %c0_0 = arith.constant 0 : index
    %c0_1 = arith.constant 0 : index
    %0 = vector.load %arg1[%c0, %c0_0, %c0_1] : memref<1x48x768xbf16, #tpu.memory_space<vmem>>, vector<1x48x768xbf16>
    %1 = vector.shape_cast %0 : vector<1x48x768xbf16> to vector<48x768xbf16>
    %c0_2 = arith.constant 0 : index
    %c0_3 = arith.constant 0 : index
    %2 = vector.load %arg2[%c0_2, %c0_3] : memref<768x128xbf16, #tpu.memory_space<vmem>>, vector<768x128xbf16>
    %cst = arith.constant dense<0.000000e+00> : vector<48x128xf32>
    %3 = tpu.matmul %1, %2, %cst {dimension_numbers = #tpu.dot_dimension_numbers<[1], [0], [0], [1], [0, 0, 1, 1], [], []>} : vector<48x768xbf16>, vector<768x128xbf16>, vector<48x128xf32> -> vector<48x128xf32>
    %c0_4 = arith.constant 0 : index
    %c0_5 = arith.constant 0 : index
    %4 = vector.load %arg3[%c0_4, %c0_5] : memref<1x128xf32, #tpu.memory_space<vmem>>, vector<1x128xf32>
    %5 = vector.broadcast %4 : vector<1x128xf32> to vector<48x128xf32>
    %6 = arith.addf %3, %5 : vector<48x128xf32>
    %cst_6 = arith.constant dense<0.000000e+00> : vector<128xf32>
    %7 = vector.multi_reduction <add>, %6, %cst_6 [0] : vector<48x128xf32> to vector<128xf32>
    %8 = vector.shape_cast %7 : vector<128xf32> to vector<1x128xf32>
    %cst_7 = arith.constant 4.800000e+01 : f32
    %9 = vector.broadcast %cst_7 : f32 to vector<1x128xf32>
    %10 = arith.divf %8, %9 : vector<1x128xf32>
    %11 = vector.broadcast %10 : vector<1x128xf32> to vector<48x128xf32>
    %12 = arith.subf %6, %11 : vector<48x128xf32>
    %13 = arith.mulf %12, %12 : vector<48x128xf32>
    %cst_8 = arith.constant dense<0.000000e+00> : vector<128xf32>
    %14 = vector.multi_reduction <add>, %13, %cst_8 [0] : vector<48x128xf32> to vector<128xf32>
    %15 = vector.shape_cast %14 : vector<128xf32> to vector<1x128xf32>
    %cst_9 = arith.constant 4.800000e+01 : f32
    %16 = vector.broadcast %cst_9 : f32 to vector<1x128xf32>
    %17 = arith.divf %15, %16 : vector<1x128xf32>
    %18 = vector.broadcast %10 : vector<1x128xf32> to vector<48x128xf32>
    %19 = arith.subf %6, %18 : vector<48x128xf32>
    %cst_10 = arith.constant 9.99999974E-6 : f32
    %20 = vector.broadcast %cst_10 : f32 to vector<1x128xf32>
    %21 = arith.addf %17, %20 : vector<1x128xf32>
    %22 = math.rsqrt %21 : vector<1x128xf32>
    %23 = vector.broadcast %22 : vector<1x128xf32> to vector<48x128xf32>
    %24 = arith.mulf %19, %23 : vector<48x128xf32>
    %cst_11 = arith.constant 0.000000e+00 : f32
    %25 = vector.broadcast %cst_11 : f32 to vector<48x128xf32>
    %26 = arith.maximumf %24, %25 : vector<48x128xf32>
    %27 = vector.extract_strided_slice %26 {offsets = [0, 0], sizes = [16, 128], strides = [1, 1]} : vector<48x128xf32> to vector<16x128xf32>
    %28 = arith.truncf %27 : vector<16x128xf32> to vector<16x128xbf16>
    %c0_12 = arith.constant 0 : index
    %c0_13 = arith.constant 0 : index
    %c0_14 = arith.constant 0 : index
    %29 = vector.load %arg4[%c0_12, %c0_13, %c0_14] : memref<3x128x128xbf16, #tpu.memory_space<vmem>>, vector<1x128x128xbf16>
    %30 = vector.shape_cast %29 : vector<1x128x128xbf16> to vector<128x128xbf16>
    %cst_15 = arith.constant dense<0.000000e+00> : vector<16x128xf32>
    %31 = tpu.matmul %28, %30, %cst_15 {dimension_numbers = #tpu.dot_dimension_numbers<[1], [0], [0], [1], [0, 0, 1, 1], [], []>} : vector<16x128xbf16>, vector<128x128xbf16>, vector<16x128xf32> -> vector<16x128xf32>
    %32 = vector.extract_strided_slice %26 {offsets = [16, 0], sizes = [16, 128], strides = [1, 1]} : vector<48x128xf32> to vector<16x128xf32>
    %33 = arith.truncf %32 : vector<16x128xf32> to vector<16x128xbf16>
    %c1 = arith.constant 1 : index
    %c0_16 = arith.constant 0 : index
    %c0_17 = arith.constant 0 : index
    %34 = vector.load %arg4[%c1, %c0_16, %c0_17] : memref<3x128x128xbf16, #tpu.memory_space<vmem>>, vector<1x128x128xbf16>
    %35 = vector.shape_cast %34 : vector<1x128x128xbf16> to vector<128x128xbf16>
    %cst_18 = arith.constant dense<0.000000e+00> : vector<16x128xf32>
    %36 = tpu.matmul %33, %35, %cst_18 {dimension_numbers = #tpu.dot_dimension_numbers<[1], [0], [0], [1], [0, 0, 1, 1], [], []>} : vector<16x128xbf16>, vector<128x128xbf16>, vector<16x128xf32> -> vector<16x128xf32>
    %37 = arith.addf %31, %36 : vector<16x128xf32>
    %38 = vector.extract_strided_slice %26 {offsets = [32, 0], sizes = [16, 128], strides = [1, 1]} : vector<48x128xf32> to vector<16x128xf32>
    %39 = arith.truncf %38 : vector<16x128xf32> to vector<16x128xbf16>
    %c2 = arith.constant 2 : index
    %c0_19 = arith.constant 0 : index
    %c0_20 = arith.constant 0 : index
    %40 = vector.load %arg4[%c2, %c0_19, %c0_20] : memref<3x128x128xbf16, #tpu.memory_space<vmem>>, vector<1x128x128xbf16>
    %41 = vector.shape_cast %40 : vector<1x128x128xbf16> to vector<128x128xbf16>
    %cst_21 = arith.constant dense<0.000000e+00> : vector<16x128xf32>
    %42 = tpu.matmul %39, %41, %cst_21 {dimension_numbers = #tpu.dot_dimension_numbers<[1], [0], [0], [1], [0, 0, 1, 1], [], []>} : vector<16x128xbf16>, vector<128x128xbf16>, vector<16x128xf32> -> vector<16x128xf32>
    %43 = arith.addf %37, %42 : vector<16x128xf32>
    %c0_22 = arith.constant 0 : index
    %c0_23 = arith.constant 0 : index
    %44 = vector.load %arg5[%c0_22, %c0_23] : memref<1x128xf32, #tpu.memory_space<vmem>>, vector<1x128xf32>
    %45 = vector.broadcast %44 : vector<1x128xf32> to vector<16x128xf32>
    %46 = arith.addf %43, %45 : vector<16x128xf32>
    %cst_24 = arith.constant dense<0.000000e+00> : vector<128xf32>
    %47 = vector.multi_reduction <add>, %46, %cst_24 [0] : vector<16x128xf32> to vector<128xf32>
    %48 = vector.shape_cast %47 : vector<128xf32> to vector<1x128xf32>
    %cst_25 = arith.constant 1.600000e+01 : f32
    %49 = vector.broadcast %cst_25 : f32 to vector<1x128xf32>
    %50 = arith.divf %48, %49 : vector<1x128xf32>
    %51 = vector.broadcast %50 : vector<1x128xf32> to vector<16x128xf32>
    %52 = arith.subf %46, %51 : vector<16x128xf32>
    %53 = arith.mulf %52, %52 : vector<16x128xf32>
    %cst_26 = arith.constant dense<0.000000e+00> : vector<128xf32>
    %54 = vector.multi_reduction <add>, %53, %cst_26 [0] : vector<16x128xf32> to vector<128xf32>
    %55 = vector.shape_cast %54 : vector<128xf32> to vector<1x128xf32>
    %cst_27 = arith.constant 1.600000e+01 : f32
    %56 = vector.broadcast %cst_27 : f32 to vector<1x128xf32>
    %57 = arith.divf %55, %56 : vector<1x128xf32>
    %58 = vector.broadcast %50 : vector<1x128xf32> to vector<16x128xf32>
    %59 = arith.subf %46, %58 : vector<16x128xf32>
    %cst_28 = arith.constant 9.99999974E-6 : f32
    %60 = vector.broadcast %cst_28 : f32 to vector<1x128xf32>
    %61 = arith.addf %57, %60 : vector<1x128xf32>
    %62 = math.rsqrt %61 : vector<1x128xf32>
    %63 = vector.broadcast %62 : vector<1x128xf32> to vector<16x128xf32>
    %64 = arith.mulf %59, %63 : vector<16x128xf32>
    %cst_29 = arith.constant 0.000000e+00 : f32
    %65 = vector.broadcast %cst_29 : f32 to vector<16x128xf32>
    %66 = arith.maximumf %64, %65 : vector<16x128xf32>
    %67 = arith.truncf %66 : vector<16x128xf32> to vector<16x128xbf16>
    %c0_30 = arith.constant 0 : index
    %c0_31 = arith.constant 0 : index
    %c0_32 = arith.constant 0 : index
    %68 = vector.load %arg6[%c0_30, %c0_31, %c0_32] : memref<1x16x128xbf16, #tpu.memory_space<vmem>>, vector<1x16x128xbf16>
    %69 = vector.shape_cast %68 : vector<1x16x128xbf16> to vector<16x128xbf16>
    %70 = vector.shape_cast %67 : vector<16x128xbf16> to vector<1x16x128xbf16>
    tpu.vector_store %arg6[%c0_30, %c0_31, %c0_32], %70 {strides = array<i32>} : memref<1x16x128xbf16, #tpu.memory_space<vmem>>, vector<1x16x128xbf16>,
    return
  }
  func.func @transform_0(%arg0: i32) -> (i32, i32, i32) {
    %c0_i32 = arith.constant 0 : i32
    %c0_i32_0 = arith.constant 0 : i32
    %c0_i32_1 = arith.constant 0 : i32
    return %arg0, %c0_i32, %c0_i32_0 : i32, i32, i32
  }
  func.func @transform_1(%arg0: i32) -> (i32, i32) {
    %c0_i32 = arith.constant 0 : i32
    %c0_i32_0 = arith.constant 0 : i32
    %c0_i32_1 = arith.constant 0 : i32
    return %c0_i32, %c0_i32_0 : i32, i32
  }
  func.func @transform_2(%arg0: i32) -> (i32, i32) {
    %c0_i32 = arith.constant 0 : i32
    %c0_i32_0 = arith.constant 0 : i32
    %c0_i32_1 = arith.constant 0 : i32
    return %c0_i32, %c0_i32_0 : i32, i32
  }
  func.func @transform_3(%arg0: i32) -> (i32, i32, i32) {
    %c0_i32 = arith.constant 0 : i32
    %c0_i32_0 = arith.constant 0 : i32
    %c0_i32_1 = arith.constant 0 : i32
    %c0_i32_2 = arith.constant 0 : i32
    return %c0_i32, %c0_i32_0, %c0_i32_1 : i32, i32, i32
  }
  func.func @transform_4(%arg0: i32) -> (i32, i32) {
    %c0_i32 = arith.constant 0 : i32
    %c0_i32_0 = arith.constant 0 : i32
    %c0_i32_1 = arith.constant 0 : i32
    return %c0_i32, %c0_i32_0 : i32, i32
  }
  func.func @transform_5(%arg0: i32) -> (i32, i32, i32) {
    %c0_i32 = arith.constant 0 : i32
    %c0_i32_0 = arith.constant 0 : i32
    %c0_i32_1 = arith.constant 0 : i32
    return %arg0, %c0_i32, %c0_i32_0 : i32, i32, i32
  }
}

module attributes {stable_mosaic.version = 11 : i64} {
  func.func @_annuconv_kernel(%arg0: i32, %arg1: memref<1x48x16xbf16, #tpu.memory_space<vmem>>, %arg2: memref<16x128xbf16, #tpu.memory_space<vmem>>, %arg3: memref<1x128xf32, #tpu.memory_space<vmem>>, %arg4: memref<3x128x128xbf16, #tpu.memory_space<vmem>>, %arg5: memref<1x128xf32, #tpu.memory_space<vmem>>, %arg6: memref<1x16x128xbf16, #tpu.memory_space<vmem>>) attributes {dimension_semantics = [#tpu.dimension_semantics<parallel>], iteration_bounds = array<i64: 2>, scalar_prefetch = 0 : i64, scratch_operands = 0 : i64, tpu.core_type = #tpu.core_type<tc>, window_params = [{transform_indices = @transform_0, window_bounds = array<i64: 1, 48, 16>}, {pipeline_mode = #tpu.pipeline_mode<synchronous>, transform_indices = @transform_1, window_bounds = array<i64: 16, 128>}, {pipeline_mode = #tpu.pipeline_mode<synchronous>, transform_indices = @transform_2, window_bounds = array<i64: 1, 128>}, {pipeline_mode = #tpu.pipeline_mode<synchronous>, transform_indices = @transform_3, window_bounds = array<i64: 3, 128, 128>}, {pipeline_mode = #tpu.pipeline_mode<synchronous>, transform_indices = @transform_4, window_bounds = array<i64: 1, 128>}, {transform_indices = @transform_5, window_bounds = array<i64: 1, 16, 128>}]} {
    %c0 = arith.constant 0 : index
    %c0_0 = arith.constant 0 : index
    %c0_1 = arith.constant 0 : index
    %0 = vector.load %arg1[%c0, %c0_0, %c0_1] : memref<1x48x16xbf16, #tpu.memory_space<vmem>>, vector<1x48x16xbf16>
    %1 = vector.shape_cast %0 : vector<1x48x16xbf16> to vector<48x16xbf16>
    %c0_2 = arith.constant 0 : index
    %c0_3 = arith.constant 0 : index
    %2 = vector.load %arg2[%c0_2, %c0_3] : memref<16x128xbf16, #tpu.memory_space<vmem>>, vector<16x128xbf16>
    %cst = arith.constant dense<0.000000e+00> : vector<48x128xf32>
    %3 = tpu.matmul %1, %2, %cst {dimension_numbers = #tpu.dot_dimension_numbers<[1], [0], [0], [1], [0, 0, 1, 1], [], []>} : vector<48x16xbf16>, vector<16x128xbf16>, vector<48x128xf32> -> vector<48x128xf32>
    %c0_4 = arith.constant 0 : index
    %c0_5 = arith.constant 0 : index
    %4 = vector.load %arg3[%c0_4, %c0_5] : memref<1x128xf32, #tpu.memory_space<vmem>>, vector<1x128xf32>
    %5 = vector.broadcast %4 : vector<1x128xf32> to vector<48x128xf32>
    %6 = arith.addf %3, %5 : vector<48x128xf32>
    %cst_6 = arith.constant dense<0.000000e+00> : vector<128xf32>
    %7 = vector.multi_reduction <add>, %6, %cst_6 [0] : vector<48x128xf32> to vector<128xf32>
    %8 = vector.shape_cast %7 : vector<128xf32> to vector<1x128xf32>
    %cst_7 = arith.constant 4.800000e+01 : f32
    %9 = vector.broadcast %cst_7 : f32 to vector<1x128xf32>
    %10 = arith.divf %8, %9 : vector<1x128xf32>
    %11 = vector.broadcast %10 : vector<1x128xf32> to vector<48x128xf32>
    %12 = arith.subf %6, %11 : vector<48x128xf32>
    %13 = arith.mulf %12, %12 : vector<48x128xf32>
    %cst_8 = arith.constant dense<0.000000e+00> : vector<128xf32>
    %14 = vector.multi_reduction <add>, %13, %cst_8 [0] : vector<48x128xf32> to vector<128xf32>
    %15 = vector.shape_cast %14 : vector<128xf32> to vector<1x128xf32>
    %cst_9 = arith.constant 4.800000e+01 : f32
    %16 = vector.broadcast %cst_9 : f32 to vector<1x128xf32>
    %17 = arith.divf %15, %16 : vector<1x128xf32>
    %18 = vector.broadcast %10 : vector<1x128xf32> to vector<48x128xf32>
    %19 = arith.subf %6, %18 : vector<48x128xf32>
    %cst_10 = arith.constant 9.99999974E-6 : f32
    %20 = vector.broadcast %cst_10 : f32 to vector<1x128xf32>
    %21 = arith.addf %17, %20 : vector<1x128xf32>
    %22 = math.rsqrt %21 : vector<1x128xf32>
    %23 = vector.broadcast %22 : vector<1x128xf32> to vector<48x128xf32>
    %24 = arith.mulf %19, %23 : vector<48x128xf32>
    %cst_11 = arith.constant 0.000000e+00 : f32
    %25 = vector.broadcast %cst_11 : f32 to vector<48x128xf32>
    %26 = arith.maximumf %24, %25 : vector<48x128xf32>
    %27 = vector.extract_strided_slice %26 {offsets = [0, 0], sizes = [16, 128], strides = [1, 1]} : vector<48x128xf32> to vector<16x128xf32>
    %28 = arith.truncf %27 : vector<16x128xf32> to vector<16x128xbf16>
    %c0_12 = arith.constant 0 : index
    %c0_13 = arith.constant 0 : index
    %c0_14 = arith.constant 0 : index
    %29 = vector.load %arg4[%c0_12, %c0_13, %c0_14] : memref<3x128x128xbf16, #tpu.memory_space<vmem>>, vector<1x128x128xbf16>
    %30 = vector.shape_cast %29 : vector<1x128x128xbf16> to vector<128x128xbf16>
    %cst_15 = arith.constant dense<0.000000e+00> : vector<16x128xf32>
    %31 = tpu.matmul %28, %30, %cst_15 {dimension_numbers = #tpu.dot_dimension_numbers<[1], [0], [0], [1], [0, 0, 1, 1], [], []>} : vector<16x128xbf16>, vector<128x128xbf16>, vector<16x128xf32> -> vector<16x128xf32>
    %32 = vector.extract_strided_slice %26 {offsets = [16, 0], sizes = [16, 128], strides = [1, 1]} : vector<48x128xf32> to vector<16x128xf32>
    %33 = arith.truncf %32 : vector<16x128xf32> to vector<16x128xbf16>
    %c1 = arith.constant 1 : index
    %c0_16 = arith.constant 0 : index
    %c0_17 = arith.constant 0 : index
    %34 = vector.load %arg4[%c1, %c0_16, %c0_17] : memref<3x128x128xbf16, #tpu.memory_space<vmem>>, vector<1x128x128xbf16>
    %35 = vector.shape_cast %34 : vector<1x128x128xbf16> to vector<128x128xbf16>
    %cst_18 = arith.constant dense<0.000000e+00> : vector<16x128xf32>
    %36 = tpu.matmul %33, %35, %cst_18 {dimension_numbers = #tpu.dot_dimension_numbers<[1], [0], [0], [1], [0, 0, 1, 1], [], []>} : vector<16x128xbf16>, vector<128x128xbf16>, vector<16x128xf32> -> vector<16x128xf32>
    %37 = arith.addf %31, %36 : vector<16x128xf32>
    %38 = vector.extract_strided_slice %26 {offsets = [32, 0], sizes = [16, 128], strides = [1, 1]} : vector<48x128xf32> to vector<16x128xf32>
    %39 = arith.truncf %38 : vector<16x128xf32> to vector<16x128xbf16>
    %c2 = arith.constant 2 : index
    %c0_19 = arith.constant 0 : index
    %c0_20 = arith.constant 0 : index
    %40 = vector.load %arg4[%c2, %c0_19, %c0_20] : memref<3x128x128xbf16, #tpu.memory_space<vmem>>, vector<1x128x128xbf16>
    %41 = vector.shape_cast %40 : vector<1x128x128xbf16> to vector<128x128xbf16>
    %cst_21 = arith.constant dense<0.000000e+00> : vector<16x128xf32>
    %42 = tpu.matmul %39, %41, %cst_21 {dimension_numbers = #tpu.dot_dimension_numbers<[1], [0], [0], [1], [0, 0, 1, 1], [], []>} : vector<16x128xbf16>, vector<128x128xbf16>, vector<16x128xf32> -> vector<16x128xf32>
    %43 = arith.addf %37, %42 : vector<16x128xf32>
    %c0_22 = arith.constant 0 : index
    %c0_23 = arith.constant 0 : index
    %44 = vector.load %arg5[%c0_22, %c0_23] : memref<1x128xf32, #tpu.memory_space<vmem>>, vector<1x128xf32>
    %45 = vector.broadcast %44 : vector<1x128xf32> to vector<16x128xf32>
    %46 = arith.addf %43, %45 : vector<16x128xf32>
    %cst_24 = arith.constant dense<0.000000e+00> : vector<128xf32>
    %47 = vector.multi_reduction <add>, %46, %cst_24 [0] : vector<16x128xf32> to vector<128xf32>
    %48 = vector.shape_cast %47 : vector<128xf32> to vector<1x128xf32>
    %cst_25 = arith.constant 1.600000e+01 : f32
    %49 = vector.broadcast %cst_25 : f32 to vector<1x128xf32>
    %50 = arith.divf %48, %49 : vector<1x128xf32>
    %51 = vector.broadcast %50 : vector<1x128xf32> to vector<16x128xf32>
    %52 = arith.subf %46, %51 : vector<16x128xf32>
    %53 = arith.mulf %52, %52 : vector<16x128xf32>
    %cst_26 = arith.constant dense<0.000000e+00> : vector<128xf32>
    %54 = vector.multi_reduction <add>, %53, %cst_26 [0] : vector<16x128xf32> to vector<128xf32>
    %55 = vector.shape_cast %54 : vector<128xf32> to vector<1x128xf32>
    %cst_27 = arith.constant 1.600000e+01 : f32
    %56 = vector.broadcast %cst_27 : f32 to vector<1x128xf32>
    %57 = arith.divf %55, %56 : vector<1x128xf32>
    %58 = vector.broadcast %50 : vector<1x128xf32> to vector<16x128xf32>
    %59 = arith.subf %46, %58 : vector<16x128xf32>
    %cst_28 = arith.constant 9.99999974E-6 : f32
    %60 = vector.broadcast %cst_28 : f32 to vector<1x128xf32>
    %61 = arith.addf %57, %60 : vector<1x128xf32>
    %62 = math.rsqrt %61 : vector<1x128xf32>
    %63 = vector.broadcast %62 : vector<1x128xf32> to vector<16x128xf32>
    %64 = arith.mulf %59, %63 : vector<16x128xf32>
    %cst_29 = arith.constant 0.000000e+00 : f32
    %65 = vector.broadcast %cst_29 : f32 to vector<16x128xf32>
    %66 = arith.maximumf %64, %65 : vector<16x128xf32>
    %67 = arith.truncf %66 : vector<16x128xf32> to vector<16x128xbf16>
    %c0_30 = arith.constant 0 : index
    %c0_31 = arith.constant 0 : index
    %c0_32 = arith.constant 0 : index
    %68 = vector.load %arg6[%c0_30, %c0_31, %c0_32] : memref<1x16x128xbf16, #tpu.memory_space<vmem>>, vector<1x16x128xbf16>
    %69 = vector.shape_cast %68 : vector<1x16x128xbf16> to vector<16x128xbf16>
    %70 = vector.shape_cast %67 : vector<16x128xbf16> to vector<1x16x128xbf16>
    tpu.vector_store %arg6[%c0_30, %c0_31, %c0_32], %70 {strides = array<i32>} : memref<1x16x128xbf16, #tpu.memory_space<vmem>>, vector<1x16x128xbf16>,
    return
  }
  func.func @transform_0(%arg0: i32) -> (i32, i32, i32) {
    %c0_i32 = arith.constant 0 : i32
    %c0_i32_0 = arith.constant 0 : i32
    %c0_i32_1 = arith.constant 0 : i32
    return %arg0, %c0_i32, %c0_i32_0 : i32, i32, i32
  }
  func.func @transform_1(%arg0: i32) -> (i32, i32) {
    %c0_i32 = arith.constant 0 : i32
    %c0_i32_0 = arith.constant 0 : i32
    %c0_i32_1 = arith.constant 0 : i32
    return %c0_i32, %c0_i32_0 : i32, i32
  }
  func.func @transform_2(%arg0: i32) -> (i32, i32) {
    %c0_i32 = arith.constant 0 : i32
    %c0_i32_0 = arith.constant 0 : i32
    %c0_i32_1 = arith.constant 0 : i32
    return %c0_i32, %c0_i32_0 : i32, i32
  }
  func.func @transform_3(%arg0: i32) -> (i32, i32, i32) {
    %c0_i32 = arith.constant 0 : i32
    %c0_i32_0 = arith.constant 0 : i32
    %c0_i32_1 = arith.constant 0 : i32
    %c0_i32_2 = arith.constant 0 : i32
    return %c0_i32, %c0_i32_0, %c0_i32_1 : i32, i32, i32
  }
  func.func @transform_4(%arg0: i32) -> (i32, i32) {
    %c0_i32 = arith.constant 0 : i32
    %c0_i32_0 = arith.constant 0 : i32
    %c0_i32_1 = arith.constant 0 : i32
    return %c0_i32, %c0_i32_0 : i32, i32
  }
  func.func @transform_5(%arg0: i32) -> (i32, i32, i32) {
    %c0_i32 = arith.constant 0 : i32
    %c0_i32_0 = arith.constant 0 : i32
    %c0_i32_1 = arith.constant 0 : i32
    return %arg0, %c0_i32, %c0_i32_0 : i32, i32, i32
  }
}

module attributes {stable_mosaic.version = 11 : i64} {
  func.func @_conv3_sum_kernel(%arg0: i32, %arg1: memref<1x16x128xbf16, #tpu.memory_space<vmem>>, %arg2: memref<1x16x128xbf16, #tpu.memory_space<vmem>>, %arg3: memref<1x16x128xbf16, #tpu.memory_space<vmem>>, %arg4: memref<1x16x128xbf16, #tpu.memory_space<vmem>>, %arg5: memref<1x16x128xbf16, #tpu.memory_space<vmem>>, %arg6: memref<1x16x256xbf16, #tpu.memory_space<vmem>>, %arg7: memref<128x128xbf16, #tpu.memory_space<vmem>>, %arg8: memref<128x128xbf16, #tpu.memory_space<vmem>>, %arg9: memref<128x128xbf16, #tpu.memory_space<vmem>>, %arg10: memref<128x128xbf16, #tpu.memory_space<vmem>>, %arg11: memref<128x128xbf16, #tpu.memory_space<vmem>>, %arg12: memref<128x128xbf16, #tpu.memory_space<vmem>>, %arg13: memref<256x128xbf16, #tpu.memory_space<vmem>>, %arg14: memref<1x16x128xf32, #tpu.memory_space<vmem>>) attributes {dimension_semantics = [#tpu.dimension_semantics<parallel>], iteration_bounds = array<i64: 2>, scalar_prefetch = 0 : i64, scratch_operands = 0 : i64, tpu.core_type = #tpu.core_type<tc>, window_params = [{transform_indices = @transform_0, window_bounds = array<i64: 1, 16, 128>}, {transform_indices = @transform_1, window_bounds = array<i64: 1, 16, 128>}, {transform_indices = @transform_2, window_bounds = array<i64: 1, 16, 128>}, {transform_indices = @transform_3, window_bounds = array<i64: 1, 16, 128>}, {transform_indices = @transform_4, window_bounds = array<i64: 1, 16, 128>}, {transform_indices = @transform_5, window_bounds = array<i64: 1, 16, 256>}, {pipeline_mode = #tpu.pipeline_mode<synchronous>, transform_indices = @transform_6, window_bounds = array<i64: 128, 128>}, {pipeline_mode = #tpu.pipeline_mode<synchronous>, transform_indices = @transform_7, window_bounds = array<i64: 128, 128>}, {pipeline_mode = #tpu.pipeline_mode<synchronous>, transform_indices = @transform_8, window_bounds = array<i64: 128, 128>}, {pipeline_mode = #tpu.pipeline_mode<synchronous>, transform_indices = @transform_9, window_bounds = array<i64: 128, 128>}, {pipeline_mode = #tpu.pipeline_mode<synchronous>, transform_indices = @transform_10, window_bounds = array<i64: 128, 128>}, {pipeline_mode = #tpu.pipeline_mode<synchronous>, transform_indices = @transform_11, window_bounds = array<i64: 128, 128>}, {pipeline_mode = #tpu.pipeline_mode<synchronous>, transform_indices = @transform_12, window_bounds = array<i64: 256, 128>}, {transform_indices = @transform_13, window_bounds = array<i64: 1, 16, 128>}]} {
    %c0 = arith.constant 0 : index
    %c0_0 = arith.constant 0 : index
    %c0_1 = arith.constant 0 : index
    %0 = vector.load %arg1[%c0, %c0_0, %c0_1] : memref<1x16x128xbf16, #tpu.memory_space<vmem>>, vector<1x16x128xbf16>
    %1 = vector.shape_cast %0 : vector<1x16x128xbf16> to vector<16x128xbf16>
    %c0_2 = arith.constant 0 : index
    %c0_3 = arith.constant 0 : index
    %2 = vector.load %arg7[%c0_2, %c0_3] : memref<128x128xbf16, #tpu.memory_space<vmem>>, vector<128x128xbf16>
    %cst = arith.constant dense<0.000000e+00> : vector<16x128xf32>
    %3 = tpu.matmul %1, %2, %cst {dimension_numbers = #tpu.dot_dimension_numbers<[1], [0], [0], [1], [0, 0, 1, 1], [], []>} : vector<16x128xbf16>, vector<128x128xbf16>, vector<16x128xf32> -> vector<16x128xf32>
    %c0_4 = arith.constant 0 : index
    %c0_5 = arith.constant 0 : index
    %c0_6 = arith.constant 0 : index
    %4 = vector.load %arg2[%c0_4, %c0_5, %c0_6] : memref<1x16x128xbf16, #tpu.memory_space<vmem>>, vector<1x16x128xbf16>
    %5 = vector.shape_cast %4 : vector<1x16x128xbf16> to vector<16x128xbf16>
    %c0_7 = arith.constant 0 : index
    %c0_8 = arith.constant 0 : index
    %6 = vector.load %arg8[%c0_7, %c0_8] : memref<128x128xbf16, #tpu.memory_space<vmem>>, vector<128x128xbf16>
    %cst_9 = arith.constant dense<0.000000e+00> : vector<16x128xf32>
    %7 = tpu.matmul %5, %6, %cst_9 {dimension_numbers = #tpu.dot_dimension_numbers<[1], [0], [0], [1], [0, 0, 1, 1], [], []>} : vector<16x128xbf16>, vector<128x128xbf16>, vector<16x128xf32> -> vector<16x128xf32>
    %8 = arith.addf %3, %7 : vector<16x128xf32>
    %c0_10 = arith.constant 0 : index
    %c0_11 = arith.constant 0 : index
    %c0_12 = arith.constant 0 : index
    %9 = vector.load %arg3[%c0_10, %c0_11, %c0_12] : memref<1x16x128xbf16, #tpu.memory_space<vmem>>, vector<1x16x128xbf16>
    %10 = vector.shape_cast %9 : vector<1x16x128xbf16> to vector<16x128xbf16>
    %c0_13 = arith.constant 0 : index
    %c0_14 = arith.constant 0 : index
    %11 = vector.load %arg9[%c0_13, %c0_14] : memref<128x128xbf16, #tpu.memory_space<vmem>>, vector<128x128xbf16>
    %cst_15 = arith.constant dense<0.000000e+00> : vector<16x128xf32>
    %12 = tpu.matmul %10, %11, %cst_15 {dimension_numbers = #tpu.dot_dimension_numbers<[1], [0], [0], [1], [0, 0, 1, 1], [], []>} : vector<16x128xbf16>, vector<128x128xbf16>, vector<16x128xf32> -> vector<16x128xf32>
    %13 = arith.addf %8, %12 : vector<16x128xf32>
    %c0_16 = arith.constant 0 : index
    %c0_17 = arith.constant 0 : index
    %c0_18 = arith.constant 0 : index
    %14 = vector.load %arg4[%c0_16, %c0_17, %c0_18] : memref<1x16x128xbf16, #tpu.memory_space<vmem>>, vector<1x16x128xbf16>
    %15 = vector.shape_cast %14 : vector<1x16x128xbf16> to vector<16x128xbf16>
    %c0_19 = arith.constant 0 : index
    %c0_20 = arith.constant 0 : index
    %16 = vector.load %arg10[%c0_19, %c0_20] : memref<128x128xbf16, #tpu.memory_space<vmem>>, vector<128x128xbf16>
    %cst_21 = arith.constant dense<0.000000e+00> : vector<16x128xf32>
    %17 = tpu.matmul %15, %16, %cst_21 {dimension_numbers = #tpu.dot_dimension_numbers<[1], [0], [0], [1], [0, 0, 1, 1], [], []>} : vector<16x128xbf16>, vector<128x128xbf16>, vector<16x128xf32> -> vector<16x128xf32>
    %18 = arith.addf %13, %17 : vector<16x128xf32>
    %c0_22 = arith.constant 0 : index
    %c0_23 = arith.constant 0 : index
    %19 = vector.load %arg11[%c0_22, %c0_23] : memref<128x128xbf16, #tpu.memory_space<vmem>>, vector<128x128xbf16>
    %cst_24 = arith.constant dense<0.000000e+00> : vector<16x128xf32>
    %20 = tpu.matmul %1, %19, %cst_24 {dimension_numbers = #tpu.dot_dimension_numbers<[1], [0], [0], [1], [0, 0, 1, 1], [], []>} : vector<16x128xbf16>, vector<128x128xbf16>, vector<16x128xf32> -> vector<16x128xf32>
    %c0_25 = arith.constant 0 : index
    %c0_26 = arith.constant 0 : index
    %c0_27 = arith.constant 0 : index
    %21 = vector.load %arg5[%c0_25, %c0_26, %c0_27] : memref<1x16x128xbf16, #tpu.memory_space<vmem>>, vector<1x16x128xbf16>
    %22 = vector.shape_cast %21 : vector<1x16x128xbf16> to vector<16x128xbf16>
    %c0_28 = arith.constant 0 : index
    %c0_29 = arith.constant 0 : index
    %23 = vector.load %arg12[%c0_28, %c0_29] : memref<128x128xbf16, #tpu.memory_space<vmem>>, vector<128x128xbf16>
    %cst_30 = arith.constant dense<0.000000e+00> : vector<16x128xf32>
    %24 = tpu.matmul %22, %23, %cst_30 {dimension_numbers = #tpu.dot_dimension_numbers<[1], [0], [0], [1], [0, 0, 1, 1], [], []>} : vector<16x128xbf16>, vector<128x128xbf16>, vector<16x128xf32> -> vector<16x128xf32>
    %25 = arith.addf %20, %24 : vector<16x128xf32>
    %c0_31 = arith.constant 0 : index
    %c0_32 = arith.constant 0 : index
    %c0_33 = arith.constant 0 : index
    %26 = vector.load %arg6[%c0_31, %c0_32, %c0_33] : memref<1x16x256xbf16, #tpu.memory_space<vmem>>, vector<1x16x256xbf16>
    %27 = vector.shape_cast %26 : vector<1x16x256xbf16> to vector<16x256xbf16>
    %c0_34 = arith.constant 0 : index
    %c0_35 = arith.constant 0 : index
    %28 = vector.load %arg13[%c0_34, %c0_35] : memref<256x128xbf16, #tpu.memory_space<vmem>>, vector<256x128xbf16>
    %cst_36 = arith.constant dense<0.000000e+00> : vector<16x128xf32>
    %29 = tpu.matmul %27, %28, %cst_36 {dimension_numbers = #tpu.dot_dimension_numbers<[1], [0], [0], [1], [0, 0, 1, 1], [], []>} : vector<16x256xbf16>, vector<256x128xbf16>, vector<16x128xf32> -> vector<16x128xf32>
    %30 = arith.addf %25, %29 : vector<16x128xf32>
    %cst_37 = arith.constant dense<0.000000e+00> : vector<128xf32>
    %31 = vector.multi_reduction <add>, %18, %cst_37 [0] : vector<16x128xf32> to vector<128xf32>
    %32 = vector.shape_cast %31 : vector<128xf32> to vector<1x128xf32>
    %cst_38 = arith.constant 1.600000e+01 : f32
    %33 = vector.broadcast %cst_38 : f32 to vector<1x128xf32>
    %34 = arith.divf %32, %33 : vector<1x128xf32>
    %35 = vector.broadcast %34 : vector<1x128xf32> to vector<16x128xf32>
    %36 = arith.subf %18, %35 : vector<16x128xf32>
    %37 = arith.mulf %36, %36 : vector<16x128xf32>
    %cst_39 = arith.constant dense<0.000000e+00> : vector<128xf32>
    %38 = vector.multi_reduction <add>, %37, %cst_39 [0] : vector<16x128xf32> to vector<128xf32>
    %39 = vector.shape_cast %38 : vector<128xf32> to vector<1x128xf32>
    %cst_40 = arith.constant 1.600000e+01 : f32
    %40 = vector.broadcast %cst_40 : f32 to vector<1x128xf32>
    %41 = arith.divf %39, %40 : vector<1x128xf32>
    %42 = vector.broadcast %34 : vector<1x128xf32> to vector<16x128xf32>
    %43 = arith.subf %18, %42 : vector<16x128xf32>
    %cst_41 = arith.constant 9.99999974E-6 : f32
    %44 = vector.broadcast %cst_41 : f32 to vector<1x128xf32>
    %45 = arith.addf %41, %44 : vector<1x128xf32>
    %46 = math.rsqrt %45 : vector<1x128xf32>
    %47 = vector.broadcast %46 : vector<1x128xf32> to vector<16x128xf32>
    %48 = arith.mulf %43, %47 : vector<16x128xf32>
    %cst_42 = arith.constant 0.000000e+00 : f32
    %49 = vector.broadcast %cst_42 : f32 to vector<16x128xf32>
    %50 = arith.cmpf oge, %48, %49 : vector<16x128xf32>
    %cst_43 = arith.constant 2.000000e-01 : f32
    %51 = vector.broadcast %cst_43 : f32 to vector<16x128xf32>
    %52 = arith.mulf %51, %48 : vector<16x128xf32>
    %53 = arith.select %50, %48, %52 : vector<16x128xi1>, vector<16x128xf32>
    %cst_44 = arith.constant dense<0.000000e+00> : vector<128xf32>
    %54 = vector.multi_reduction <add>, %30, %cst_44 [0] : vector<16x128xf32> to vector<128xf32>
    %55 = vector.shape_cast %54 : vector<128xf32> to vector<1x128xf32>
    %cst_45 = arith.constant 1.600000e+01 : f32
    %56 = vector.broadcast %cst_45 : f32 to vector<1x128xf32>
    %57 = arith.divf %55, %56 : vector<1x128xf32>
    %58 = vector.broadcast %57 : vector<1x128xf32> to vector<16x128xf32>
    %59 = arith.subf %30, %58 : vector<16x128xf32>
    %60 = arith.mulf %59, %59 : vector<16x128xf32>
    %cst_46 = arith.constant dense<0.000000e+00> : vector<128xf32>
    %61 = vector.multi_reduction <add>, %60, %cst_46 [0] : vector<16x128xf32> to vector<128xf32>
    %62 = vector.shape_cast %61 : vector<128xf32> to vector<1x128xf32>
    %cst_47 = arith.constant 1.600000e+01 : f32
    %63 = vector.broadcast %cst_47 : f32 to vector<1x128xf32>
    %64 = arith.divf %62, %63 : vector<1x128xf32>
    %65 = vector.broadcast %57 : vector<1x128xf32> to vector<16x128xf32>
    %66 = arith.subf %30, %65 : vector<16x128xf32>
    %cst_48 = arith.constant 9.99999974E-6 : f32
    %67 = vector.broadcast %cst_48 : f32 to vector<1x128xf32>
    %68 = arith.addf %64, %67 : vector<1x128xf32>
    %69 = math.rsqrt %68 : vector<1x128xf32>
    %70 = vector.broadcast %69 : vector<1x128xf32> to vector<16x128xf32>
    %71 = arith.mulf %66, %70 : vector<16x128xf32>
    %cst_49 = arith.constant 0.000000e+00 : f32
    %72 = vector.broadcast %cst_49 : f32 to vector<16x128xf32>
    %73 = arith.cmpf oge, %71, %72 : vector<16x128xf32>
    %cst_50 = arith.constant 2.000000e-01 : f32
    %74 = vector.broadcast %cst_50 : f32 to vector<16x128xf32>
    %75 = arith.mulf %74, %71 : vector<16x128xf32>
    %76 = arith.select %73, %71, %75 : vector<16x128xi1>, vector<16x128xf32>
    %77 = arith.addf %53, %76 : vector<16x128xf32>
    %c0_51 = arith.constant 0 : index
    %c0_52 = arith.constant 0 : index
    %c0_53 = arith.constant 0 : index
    %78 = vector.load %arg14[%c0_51, %c0_52, %c0_53] : memref<1x16x128xf32, #tpu.memory_space<vmem>>, vector<1x16x128xf32>
    %79 = vector.shape_cast %78 : vector<1x16x128xf32> to vector<16x128xf32>
    %80 = vector.shape_cast %77 : vector<16x128xf32> to vector<1x16x128xf32>
    tpu.vector_store %arg14[%c0_51, %c0_52, %c0_53], %80 {strides = array<i32>} : memref<1x16x128xf32, #tpu.memory_space<vmem>>, vector<1x16x128xf32>,
    return
  }
  func.func @transform_0(%arg0: i32) -> (i32, i32, i32) {
    %c0_i32 = arith.constant 0 : i32
    %c0_i32_0 = arith.constant 0 : i32
    %c0_i32_1 = arith.constant 0 : i32
    return %arg0, %c0_i32, %c0_i32_0 : i32, i32, i32
  }
  func.func @transform_1(%arg0: i32) -> (i32, i32, i32) {
    %c0_i32 = arith.constant 0 : i32
    %c0_i32_0 = arith.constant 0 : i32
    %c0_i32_1 = arith.constant 0 : i32
    return %arg0, %c0_i32, %c0_i32_0 : i32, i32, i32
  }
  func.func @transform_2(%arg0: i32) -> (i32, i32, i32) {
    %c0_i32 = arith.constant 0 : i32
    %c0_i32_0 = arith.constant 0 : i32
    %c0_i32_1 = arith.constant 0 : i32
    return %arg0, %c0_i32, %c0_i32_0 : i32, i32, i32
  }
  func.func @transform_3(%arg0: i32) -> (i32, i32, i32) {
    %c0_i32 = arith.constant 0 : i32
    %c0_i32_0 = arith.constant 0 : i32
    %c0_i32_1 = arith.constant 0 : i32
    return %arg0, %c0_i32, %c0_i32_0 : i32, i32, i32
  }
  func.func @transform_4(%arg0: i32) -> (i32, i32, i32) {
    %c0_i32 = arith.constant 0 : i32
    %c0_i32_0 = arith.constant 0 : i32
    %c0_i32_1 = arith.constant 0 : i32
    return %arg0, %c0_i32, %c0_i32_0 : i32, i32, i32
  }
  func.func @transform_5(%arg0: i32) -> (i32, i32, i32) {
    %c0_i32 = arith.constant 0 : i32
    %c0_i32_0 = arith.constant 0 : i32
    %c0_i32_1 = arith.constant 0 : i32
    return %arg0, %c0_i32, %c0_i32_0 : i32, i32, i32
  }
  func.func @transform_6(%arg0: i32) -> (i32, i32) {
    %c0_i32 = arith.constant 0 : i32
    %c0_i32_0 = arith.constant 0 : i32
    %c0_i32_1 = arith.constant 0 : i32
    return %c0_i32, %c0_i32_0 : i32, i32
  }
  func.func @transform_7(%arg0: i32) -> (i32, i32) {
    %c0_i32 = arith.constant 0 : i32
    %c0_i32_0 = arith.constant 0 : i32
    %c0_i32_1 = arith.constant 0 : i32
    return %c0_i32, %c0_i32_0 : i32, i32
  }
  func.func @transform_8(%arg0: i32) -> (i32, i32) {
    %c0_i32 = arith.constant 0 : i32
    %c0_i32_0 = arith.constant 0 : i32
    %c0_i32_1 = arith.constant 0 : i32
    return %c0_i32, %c0_i32_0 : i32, i32
  }
  func.func @transform_9(%arg0: i32) -> (i32, i32) {
    %c0_i32 = arith.constant 0 : i32
    %c0_i32_0 = arith.constant 0 : i32
    %c0_i32_1 = arith.constant 0 : i32
    return %c0_i32, %c0_i32_0 : i32, i32
  }
  func.func @transform_10(%arg0: i32) -> (i32, i32) {
    %c0_i32 = arith.constant 0 : i32
    %c0_i32_0 = arith.constant 0 : i32
    %c0_i32_1 = arith.constant 0 : i32
    return %c0_i32, %c0_i32_0 : i32, i32
  }
  func.func @transform_11(%arg0: i32) -> (i32, i32) {
    %c0_i32 = arith.constant 0 : i32
    %c0_i32_0 = arith.constant 0 : i32
    %c0_i32_1 = arith.constant 0 : i32
    return %c0_i32, %c0_i32_0 : i32, i32
  }
  func.func @transform_12(%arg0: i32) -> (i32, i32) {
    %c0_i32 = arith.constant 0 : i32
    %c0_i32_0 = arith.constant 0 : i32
    %c0_i32_1 = arith.constant 0 : i32
    return %c0_i32, %c0_i32_0 : i32, i32
  }
  func.func @transform_13(%arg0: i32) -> (i32, i32, i32) {
    %c0_i32 = arith.constant 0 : i32
    %c0_i32_0 = arith.constant 0 : i32
    %c0_i32_1 = arith.constant 0 : i32
    return %arg0, %c0_i32, %c0_i32_0 : i32, i32, i32
  }
}

module attributes {stable_mosaic.version = 11 : i64} {
  func.func @_attn_prop_kernel(%arg0: i32, %arg1: memref<1x16x128xf32, #tpu.memory_space<vmem>>, %arg2: memref<1x16x128xf32, #tpu.memory_space<vmem>>, %arg3: memref<128x128xbf16, #tpu.memory_space<vmem>>, %arg4: memref<1x128xf32, #tpu.memory_space<vmem>>, %arg5: memref<128x256xbf16, #tpu.memory_space<vmem>>, %arg6: memref<1x256xf32, #tpu.memory_space<vmem>>, %arg7: memref<128x128xbf16, #tpu.memory_space<vmem>>, %arg8: memref<1x128xf32, #tpu.memory_space<vmem>>, %arg9: memref<128x256xbf16, #tpu.memory_space<vmem>>, %arg10: memref<128x256xbf16, #tpu.memory_space<vmem>>, %arg11: memref<1x256xf32, #tpu.memory_space<vmem>>, %arg12: memref<256x128xbf16, #tpu.memory_space<vmem>>, %arg13: memref<1x128xf32, #tpu.memory_space<vmem>>, %arg14: memref<1x16x128xf32, #tpu.memory_space<vmem>>) attributes {dimension_semantics = [#tpu.dimension_semantics<parallel>], iteration_bounds = array<i64: 2>, scalar_prefetch = 0 : i64, scratch_operands = 0 : i64, tpu.core_type = #tpu.core_type<tc>, window_params = [{transform_indices = @transform_0, window_bounds = array<i64: 1, 16, 128>}, {transform_indices = @transform_1, window_bounds = array<i64: 1, 16, 128>}, {pipeline_mode = #tpu.pipeline_mode<synchronous>, transform_indices = @transform_2, window_bounds = array<i64: 128, 128>}, {pipeline_mode = #tpu.pipeline_mode<synchronous>, transform_indices = @transform_3, window_bounds = array<i64: 1, 128>}, {pipeline_mode = #tpu.pipeline_mode<synchronous>, transform_indices = @transform_4, window_bounds = array<i64: 128, 256>}, {pipeline_mode = #tpu.pipeline_mode<synchronous>, transform_indices = @transform_5, window_bounds = array<i64: 1, 256>}, {pipeline_mode = #tpu.pipeline_mode<synchronous>, transform_indices = @transform_6, window_bounds = array<i64: 128, 128>}, {pipeline_mode = #tpu.pipeline_mode<synchronous>, transform_indices = @transform_7, window_bounds = array<i64: 1, 128>}, {pipeline_mode = #tpu.pipeline_mode<synchronous>, transform_indices = @transform_8, window_bounds = array<i64: 128, 256>}, {pipeline_mode = #tpu.pipeline_mode<synchronous>, transform_indices = @transform_9, window_bounds = array<i64: 128, 256>}, {pipeline_mode = #tpu.pipeline_mode<synchronous>, transform_indices = @transform_10, window_bounds = array<i64: 1, 256>}, {pipeline_mode = #tpu.pipeline_mode<synchronous>, transform_indices = @transform_11, window_bounds = array<i64: 256, 128>}, {pipeline_mode = #tpu.pipeline_mode<synchronous>, transform_indices = @transform_12, window_bounds = array<i64: 1, 128>}, {transform_indices = @transform_13, window_bounds = array<i64: 1, 16, 128>}]} {
    %c0 = arith.constant 0 : index
    %c0_0 = arith.constant 0 : index
    %c0_1 = arith.constant 0 : index
    %0 = vector.load %arg1[%c0, %c0_0, %c0_1] : memref<1x16x128xf32, #tpu.memory_space<vmem>>, vector<1x16x128xf32>
    %1 = vector.shape_cast %0 : vector<1x16x128xf32> to vector<16x128xf32>
    %2 = arith.truncf %1 : vector<16x128xf32> to vector<16x128xbf16>
    %c0_2 = arith.constant 0 : index
    %c0_3 = arith.constant 0 : index
    %c0_4 = arith.constant 0 : index
    %3 = vector.load %arg2[%c0_2, %c0_3, %c0_4] : memref<1x16x128xf32, #tpu.memory_space<vmem>>, vector<1x16x128xf32>
    %4 = vector.shape_cast %3 : vector<1x16x128xf32> to vector<16x128xf32>
    %5 = arith.truncf %4 : vector<16x128xf32> to vector<16x128xbf16>
    %c0_5 = arith.constant 0 : index
    %c0_6 = arith.constant 0 : index
    %6 = vector.load %arg3[%c0_5, %c0_6] : memref<128x128xbf16, #tpu.memory_space<vmem>>, vector<128x128xbf16>
    %cst = arith.constant dense<0.000000e+00> : vector<16x128xf32>
    %7 = tpu.matmul %2, %6, %cst {dimension_numbers = #tpu.dot_dimension_numbers<[1], [0], [0], [1], [0, 0, 1, 1], [], []>} : vector<16x128xbf16>, vector<128x128xbf16>, vector<16x128xf32> -> vector<16x128xf32>
    %c0_7 = arith.constant 0 : index
    %c0_8 = arith.constant 0 : index
    %8 = vector.load %arg4[%c0_7, %c0_8] : memref<1x128xf32, #tpu.memory_space<vmem>>, vector<1x128xf32>
    %9 = vector.broadcast %8 : vector<1x128xf32> to vector<16x128xf32>
    %10 = arith.addf %7, %9 : vector<16x128xf32>
    %c0_9 = arith.constant 0 : index
    %c0_10 = arith.constant 0 : index
    %11 = vector.load %arg5[%c0_9, %c0_10] : memref<128x256xbf16, #tpu.memory_space<vmem>>, vector<128x256xbf16>
    %cst_11 = arith.constant dense<0.000000e+00> : vector<16x256xf32>
    %12 = tpu.matmul %5, %11, %cst_11 {dimension_numbers = #tpu.dot_dimension_numbers<[1], [0], [0], [1], [0, 0, 1, 1], [], []>} : vector<16x128xbf16>, vector<128x256xbf16>, vector<16x256xf32> -> vector<16x256xf32>
    %c0_12 = arith.constant 0 : index
    %c0_13 = arith.constant 0 : index
    %13 = vector.load %arg6[%c0_12, %c0_13] : memref<1x256xf32, #tpu.memory_space<vmem>>, vector<1x256xf32>
    %14 = vector.broadcast %13 : vector<1x256xf32> to vector<16x256xf32>
    %15 = arith.addf %12, %14 : vector<16x256xf32>
    %c0_14 = arith.constant 0 : index
    %c0_15 = arith.constant 0 : index
    %16 = vector.load %arg7[%c0_14, %c0_15] : memref<128x128xbf16, #tpu.memory_space<vmem>>, vector<128x128xbf16>
    %c0_16 = arith.constant 0 : index
    %c0_17 = arith.constant 0 : index
    %17 = vector.load %arg8[%c0_16, %c0_17] : memref<1x128xf32, #tpu.memory_space<vmem>>, vector<1x128xf32>
    %18 = vector.extract_strided_slice %10 {offsets = [0, 0], sizes = [16, 32], strides = [1, 1]} : vector<16x128xf32> to vector<16x32xf32>
    %19 = arith.truncf %18 : vector<16x32xf32> to vector<16x32xbf16>
    %20 = vector.extract_strided_slice %15 {offsets = [0, 0], sizes = [16, 32], strides = [1, 1]} : vector<16x256xf32> to vector<16x32xf32>
    %21 = arith.truncf %20 : vector<16x32xf32> to vector<16x32xbf16>
    %22 = vector.extract_strided_slice %15 {offsets = [0, 128], sizes = [16, 32], strides = [1, 1]} : vector<16x256xf32> to vector<16x32xf32>
    %23 = arith.truncf %22 : vector<16x32xf32> to vector<16x32xbf16>
    %cst_18 = arith.constant dense<0.000000e+00> : vector<16x16xf32>
    %24 = tpu.matmul %19, %21, %cst_18 {dimension_numbers = #tpu.dot_dimension_numbers<[1], [1], [0], [0], [0, 0, 1, 0], [], []>} : vector<16x32xbf16>, vector<16x32xbf16>, vector<16x16xf32> -> vector<16x16xf32>
    %cst_19 = arith.constant dense<0xFF800000> : vector<16xf32>
    %25 = vector.multi_reduction <maximumf>, %24, %cst_19 [1] : vector<16x16xf32> to vector<16xf32>
    %26 = vector.shape_cast %25 : vector<16xf32> to vector<16x1xf32>
    %27 = vector.broadcast %26 : vector<16x1xf32> to vector<16x16xf32>
    %28 = arith.subf %24, %27 : vector<16x16xf32>
    %29 = math.exp %28 : vector<16x16xf32>
    %cst_20 = arith.constant dense<0.000000e+00> : vector<16xf32>
    %30 = vector.multi_reduction <add>, %29, %cst_20 [1] : vector<16x16xf32> to vector<16xf32>
    %31 = vector.shape_cast %30 : vector<16xf32> to vector<16x1xf32>
    %32 = tpu.reciprocal %31 {approx = true} : vector<16x1xf32> -> vector<16x1xf32>
    %33 = vector.broadcast %32 : vector<16x1xf32> to vector<16x16xf32>
    %34 = arith.mulf %29, %33 : vector<16x16xf32>
    %35 = arith.truncf %34 : vector<16x16xf32> to vector<16x16xbf16>
    %cst_21 = arith.constant dense<0.000000e+00> : vector<16x32xf32>
    %36 = tpu.matmul %35, %23, %cst_21 {dimension_numbers = #tpu.dot_dimension_numbers<[1], [0], [0], [1], [0, 0, 1, 1], [], []>} : vector<16x16xbf16>, vector<16x32xbf16>, vector<16x32xf32> -> vector<16x32xf32>
    %37 = arith.truncf %36 : vector<16x32xf32> to vector<16x32xbf16>
    %38 = vector.extract_strided_slice %16 {offsets = [0, 0], sizes = [32, 128], strides = [1, 1]} : vector<128x128xbf16> to vector<32x128xbf16>
    %cst_22 = arith.constant dense<0.000000e+00> : vector<16x128xf32>
    %39 = tpu.matmul %37, %38, %cst_22 {dimension_numbers = #tpu.dot_dimension_numbers<[1], [0], [0], [1], [0, 0, 1, 1], [], []>} : vector<16x32xbf16>, vector<32x128xbf16>, vector<16x128xf32> -> vector<16x128xf32>
    %40 = vector.broadcast %17 : vector<1x128xf32> to vector<16x128xf32>
    %41 = arith.addf %40, %39 : vector<16x128xf32>
    %42 = vector.extract_strided_slice %10 {offsets = [0, 32], sizes = [16, 32], strides = [1, 1]} : vector<16x128xf32> to vector<16x32xf32>
    %43 = arith.truncf %42 : vector<16x32xf32> to vector<16x32xbf16>
    %44 = vector.extract_strided_slice %15 {offsets = [0, 32], sizes = [16, 32], strides = [1, 1]} : vector<16x256xf32> to vector<16x32xf32>
    %45 = arith.truncf %44 : vector<16x32xf32> to vector<16x32xbf16>
    %46 = vector.extract_strided_slice %15 {offsets = [0, 160], sizes = [16, 32], strides = [1, 1]} : vector<16x256xf32> to vector<16x32xf32>
    %47 = arith.truncf %46 : vector<16x32xf32> to vector<16x32xbf16>
    %cst_23 = arith.constant dense<0.000000e+00> : vector<16x16xf32>
    %48 = tpu.matmul %43, %45, %cst_23 {dimension_numbers = #tpu.dot_dimension_numbers<[1], [1], [0], [0], [0, 0, 1, 0], [], []>} : vector<16x32xbf16>, vector<16x32xbf16>, vector<16x16xf32> -> vector<16x16xf32>
    %cst_24 = arith.constant dense<0xFF800000> : vector<16xf32>
    %49 = vector.multi_reduction <maximumf>, %48, %cst_24 [1] : vector<16x16xf32> to vector<16xf32>
    %50 = vector.shape_cast %49 : vector<16xf32> to vector<16x1xf32>
    %51 = vector.broadcast %50 : vector<16x1xf32> to vector<16x16xf32>
    %52 = arith.subf %48, %51 : vector<16x16xf32>
    %53 = math.exp %52 : vector<16x16xf32>
    %cst_25 = arith.constant dense<0.000000e+00> : vector<16xf32>
    %54 = vector.multi_reduction <add>, %53, %cst_25 [1] : vector<16x16xf32> to vector<16xf32>
    %55 = vector.shape_cast %54 : vector<16xf32> to vector<16x1xf32>
    %56 = tpu.reciprocal %55 {approx = true} : vector<16x1xf32> -> vector<16x1xf32>
    %57 = vector.broadcast %56 : vector<16x1xf32> to vector<16x16xf32>
    %58 = arith.mulf %53, %57 : vector<16x16xf32>
    %59 = arith.truncf %58 : vector<16x16xf32> to vector<16x16xbf16>
    %cst_26 = arith.constant dense<0.000000e+00> : vector<16x32xf32>
    %60 = tpu.matmul %59, %47, %cst_26 {dimension_numbers = #tpu.dot_dimension_numbers<[1], [0], [0], [1], [0, 0, 1, 1], [], []>} : vector<16x16xbf16>, vector<16x32xbf16>, vector<16x32xf32> -> vector<16x32xf32>
    %61 = arith.truncf %60 : vector<16x32xf32> to vector<16x32xbf16>
    %62 = vector.extract_strided_slice %16 {offsets = [32, 0], sizes = [32, 128], strides = [1, 1]} : vector<128x128xbf16> to vector<32x128xbf16>
    %cst_27 = arith.constant dense<0.000000e+00> : vector<16x128xf32>
    %63 = tpu.matmul %61, %62, %cst_27 {dimension_numbers = #tpu.dot_dimension_numbers<[1], [0], [0], [1], [0, 0, 1, 1], [], []>} : vector<16x32xbf16>, vector<32x128xbf16>, vector<16x128xf32> -> vector<16x128xf32>
    %64 = arith.addf %41, %63 : vector<16x128xf32>
    %65 = vector.extract_strided_slice %10 {offsets = [0, 64], sizes = [16, 32], strides = [1, 1]} : vector<16x128xf32> to vector<16x32xf32>
    %66 = arith.truncf %65 : vector<16x32xf32> to vector<16x32xbf16>
    %67 = vector.extract_strided_slice %15 {offsets = [0, 64], sizes = [16, 32], strides = [1, 1]} : vector<16x256xf32> to vector<16x32xf32>
    %68 = arith.truncf %67 : vector<16x32xf32> to vector<16x32xbf16>
    %69 = vector.extract_strided_slice %15 {offsets = [0, 192], sizes = [16, 32], strides = [1, 1]} : vector<16x256xf32> to vector<16x32xf32>
    %70 = arith.truncf %69 : vector<16x32xf32> to vector<16x32xbf16>
    %cst_28 = arith.constant dense<0.000000e+00> : vector<16x16xf32>
    %71 = tpu.matmul %66, %68, %cst_28 {dimension_numbers = #tpu.dot_dimension_numbers<[1], [1], [0], [0], [0, 0, 1, 0], [], []>} : vector<16x32xbf16>, vector<16x32xbf16>, vector<16x16xf32> -> vector<16x16xf32>
    %cst_29 = arith.constant dense<0xFF800000> : vector<16xf32>
    %72 = vector.multi_reduction <maximumf>, %71, %cst_29 [1] : vector<16x16xf32> to vector<16xf32>
    %73 = vector.shape_cast %72 : vector<16xf32> to vector<16x1xf32>
    %74 = vector.broadcast %73 : vector<16x1xf32> to vector<16x16xf32>
    %75 = arith.subf %71, %74 : vector<16x16xf32>
    %76 = math.exp %75 : vector<16x16xf32>
    %cst_30 = arith.constant dense<0.000000e+00> : vector<16xf32>
    %77 = vector.multi_reduction <add>, %76, %cst_30 [1] : vector<16x16xf32> to vector<16xf32>
    %78 = vector.shape_cast %77 : vector<16xf32> to vector<16x1xf32>
    %79 = tpu.reciprocal %78 {approx = true} : vector<16x1xf32> -> vector<16x1xf32>
    %80 = vector.broadcast %79 : vector<16x1xf32> to vector<16x16xf32>
    %81 = arith.mulf %76, %80 : vector<16x16xf32>
    %82 = arith.truncf %81 : vector<16x16xf32> to vector<16x16xbf16>
    %cst_31 = arith.constant dense<0.000000e+00> : vector<16x32xf32>
    %83 = tpu.matmul %82, %70, %cst_31 {dimension_numbers = #tpu.dot_dimension_numbers<[1], [0], [0], [1], [0, 0, 1, 1], [], []>} : vector<16x16xbf16>, vector<16x32xbf16>, vector<16x32xf32> -> vector<16x32xf32>
    %84 = arith.truncf %83 : vector<16x32xf32> to vector<16x32xbf16>
    %85 = vector.extract_strided_slice %16 {offsets = [64, 0], sizes = [32, 128], strides = [1, 1]} : vector<128x128xbf16> to vector<32x128xbf16>
    %cst_32 = arith.constant dense<0.000000e+00> : vector<16x128xf32>
    %86 = tpu.matmul %84, %85, %cst_32 {dimension_numbers = #tpu.dot_dimension_numbers<[1], [0], [0], [1], [0, 0, 1, 1], [], []>} : vector<16x32xbf16>, vector<32x128xbf16>, vector<16x128xf32> -> vector<16x128xf32>
    %87 = arith.addf %64, %86 : vector<16x128xf32>
    %88 = vector.extract_strided_slice %10 {offsets = [0, 96], sizes = [16, 32], strides = [1, 1]} : vector<16x128xf32> to vector<16x32xf32>
    %89 = arith.truncf %88 : vector<16x32xf32> to vector<16x32xbf16>
    %90 = vector.extract_strided_slice %15 {offsets = [0, 96], sizes = [16, 32], strides = [1, 1]} : vector<16x256xf32> to vector<16x32xf32>
    %91 = arith.truncf %90 : vector<16x32xf32> to vector<16x32xbf16>
    %92 = vector.extract_strided_slice %15 {offsets = [0, 224], sizes = [16, 32], strides = [1, 1]} : vector<16x256xf32> to vector<16x32xf32>
    %93 = arith.truncf %92 : vector<16x32xf32> to vector<16x32xbf16>
    %cst_33 = arith.constant dense<0.000000e+00> : vector<16x16xf32>
    %94 = tpu.matmul %89, %91, %cst_33 {dimension_numbers = #tpu.dot_dimension_numbers<[1], [1], [0], [0], [0, 0, 1, 0], [], []>} : vector<16x32xbf16>, vector<16x32xbf16>, vector<16x16xf32> -> vector<16x16xf32>
    %cst_34 = arith.constant dense<0xFF800000> : vector<16xf32>
    %95 = vector.multi_reduction <maximumf>, %94, %cst_34 [1] : vector<16x16xf32> to vector<16xf32>
    %96 = vector.shape_cast %95 : vector<16xf32> to vector<16x1xf32>
    %97 = vector.broadcast %96 : vector<16x1xf32> to vector<16x16xf32>
    %98 = arith.subf %94, %97 : vector<16x16xf32>
    %99 = math.exp %98 : vector<16x16xf32>
    %cst_35 = arith.constant dense<0.000000e+00> : vector<16xf32>
    %100 = vector.multi_reduction <add>, %99, %cst_35 [1] : vector<16x16xf32> to vector<16xf32>
    %101 = vector.shape_cast %100 : vector<16xf32> to vector<16x1xf32>
    %102 = tpu.reciprocal %101 {approx = true} : vector<16x1xf32> -> vector<16x1xf32>
    %103 = vector.broadcast %102 : vector<16x1xf32> to vector<16x16xf32>
    %104 = arith.mulf %99, %103 : vector<16x16xf32>
    %105 = arith.truncf %104 : vector<16x16xf32> to vector<16x16xbf16>
    %cst_36 = arith.constant dense<0.000000e+00> : vector<16x32xf32>
    %106 = tpu.matmul %105, %93, %cst_36 {dimension_numbers = #tpu.dot_dimension_numbers<[1], [0], [0], [1], [0, 0, 1, 1], [], []>} : vector<16x16xbf16>, vector<16x32xbf16>, vector<16x32xf32> -> vector<16x32xf32>
    %107 = arith.truncf %106 : vector<16x32xf32> to vector<16x32xbf16>
    %108 = vector.extract_strided_slice %16 {offsets = [96, 0], sizes = [32, 128], strides = [1, 1]} : vector<128x128xbf16> to vector<32x128xbf16>
    %cst_37 = arith.constant dense<0.000000e+00> : vector<16x128xf32>
    %109 = tpu.matmul %107, %108, %cst_37 {dimension_numbers = #tpu.dot_dimension_numbers<[1], [0], [0], [1], [0, 0, 1, 1], [], []>} : vector<16x32xbf16>, vector<32x128xbf16>, vector<16x128xf32> -> vector<16x128xf32>
    %110 = arith.addf %87, %109 : vector<16x128xf32>
    %c0_38 = arith.constant 0 : index
    %c0_39 = arith.constant 0 : index
    %111 = vector.load %arg9[%c0_38, %c0_39] : memref<128x256xbf16, #tpu.memory_space<vmem>>, vector<128x256xbf16>
    %cst_40 = arith.constant dense<0.000000e+00> : vector<16x256xf32>
    %112 = tpu.matmul %2, %111, %cst_40 {dimension_numbers = #tpu.dot_dimension_numbers<[1], [0], [0], [1], [0, 0, 1, 1], [], []>} : vector<16x128xbf16>, vector<128x256xbf16>, vector<16x256xf32> -> vector<16x256xf32>
    %113 = arith.truncf %110 : vector<16x128xf32> to vector<16x128xbf16>
    %c0_41 = arith.constant 0 : index
    %c0_42 = arith.constant 0 : index
    %114 = vector.load %arg10[%c0_41, %c0_42] : memref<128x256xbf16, #tpu.memory_space<vmem>>, vector<128x256xbf16>
    %cst_43 = arith.constant dense<0.000000e+00> : vector<16x256xf32>
    %115 = tpu.matmul %113, %114, %cst_43 {dimension_numbers = #tpu.dot_dimension_numbers<[1], [0], [0], [1], [0, 0, 1, 1], [], []>} : vector<16x128xbf16>, vector<128x256xbf16>, vector<16x256xf32> -> vector<16x256xf32>
    %116 = arith.addf %112, %115 : vector<16x256xf32>
    %c0_44 = arith.constant 0 : index
    %c0_45 = arith.constant 0 : index
    %117 = vector.load %arg11[%c0_44, %c0_45] : memref<1x256xf32, #tpu.memory_space<vmem>>, vector<1x256xf32>
    %118 = vector.broadcast %117 : vector<1x256xf32> to vector<16x256xf32>
    %119 = arith.addf %116, %118 : vector<16x256xf32>
    %cst_46 = arith.constant dense<0.000000e+00> : vector<256xf32>
    %120 = vector.multi_reduction <add>, %119, %cst_46 [0] : vector<16x256xf32> to vector<256xf32>
    %121 = vector.shape_cast %120 : vector<256xf32> to vector<1x256xf32>
    %cst_47 = arith.constant 1.600000e+01 : f32
    %122 = vector.broadcast %cst_47 : f32 to vector<1x256xf32>
    %123 = arith.divf %121, %122 : vector<1x256xf32>
    %124 = vector.broadcast %123 : vector<1x256xf32> to vector<16x256xf32>
    %125 = arith.subf %119, %124 : vector<16x256xf32>
    %126 = arith.mulf %125, %125 : vector<16x256xf32>
    %cst_48 = arith.constant dense<0.000000e+00> : vector<256xf32>
    %127 = vector.multi_reduction <add>, %126, %cst_48 [0] : vector<16x256xf32> to vector<256xf32>
    %128 = vector.shape_cast %127 : vector<256xf32> to vector<1x256xf32>
    %cst_49 = arith.constant 1.600000e+01 : f32
    %129 = vector.broadcast %cst_49 : f32 to vector<1x256xf32>
    %130 = arith.divf %128, %129 : vector<1x256xf32>
    %131 = vector.broadcast %123 : vector<1x256xf32> to vector<16x256xf32>
    %132 = arith.subf %119, %131 : vector<16x256xf32>
    %cst_50 = arith.constant 9.99999974E-6 : f32
    %133 = vector.broadcast %cst_50 : f32 to vector<1x256xf32>
    %134 = arith.addf %130, %133 : vector<1x256xf32>
    %135 = math.rsqrt %134 : vector<1x256xf32>
    %136 = vector.broadcast %135 : vector<1x256xf32> to vector<16x256xf32>
    %137 = arith.mulf %132, %136 : vector<16x256xf32>
    %cst_51 = arith.constant 0.000000e+00 : f32
    %138 = vector.broadcast %cst_51 : f32 to vector<16x256xf32>
    %139 = arith.maximumf %137, %138 : vector<16x256xf32>
    %140 = arith.truncf %139 : vector<16x256xf32> to vector<16x256xbf16>
    %c0_52 = arith.constant 0 : index
    %c0_53 = arith.constant 0 : index
    %141 = vector.load %arg12[%c0_52, %c0_53] : memref<256x128xbf16, #tpu.memory_space<vmem>>, vector<256x128xbf16>
    %cst_54 = arith.constant dense<0.000000e+00> : vector<16x128xf32>
    %142 = tpu.matmul %140, %141, %cst_54 {dimension_numbers = #tpu.dot_dimension_numbers<[1], [0], [0], [1], [0, 0, 1, 1], [], []>} : vector<16x256xbf16>, vector<256x128xbf16>, vector<16x128xf32> -> vector<16x128xf32>
    %c0_55 = arith.constant 0 : index
    %c0_56 = arith.constant 0 : index
    %143 = vector.load %arg13[%c0_55, %c0_56] : memref<1x128xf32, #tpu.memory_space<vmem>>, vector<1x128xf32>
    %144 = vector.broadcast %143 : vector<1x128xf32> to vector<16x128xf32>
    %145 = arith.addf %142, %144 : vector<16x128xf32>
    %146 = arith.addf %1, %145 : vector<16x128xf32>
    %c0_57 = arith.constant 0 : index
    %c0_58 = arith.constant 0 : index
    %c0_59 = arith.constant 0 : index
    %147 = vector.load %arg14[%c0_57, %c0_58, %c0_59] : memref<1x16x128xf32, #tpu.memory_space<vmem>>, vector<1x16x128xf32>
    %148 = vector.shape_cast %147 : vector<1x16x128xf32> to vector<16x128xf32>
    %149 = vector.shape_cast %146 : vector<16x128xf32> to vector<1x16x128xf32>
    tpu.vector_store %arg14[%c0_57, %c0_58, %c0_59], %149 {strides = array<i32>} : memref<1x16x128xf32, #tpu.memory_space<vmem>>, vector<1x16x128xf32>,
    return
  }
  func.func @transform_0(%arg0: i32) -> (i32, i32, i32) {
    %c0_i32 = arith.constant 0 : i32
    %c0_i32_0 = arith.constant 0 : i32
    %c0_i32_1 = arith.constant 0 : i32
    return %arg0, %c0_i32, %c0_i32_0 : i32, i32, i32
  }
  func.func @transform_1(%arg0: i32) -> (i32, i32, i32) {
    %c0_i32 = arith.constant 0 : i32
    %c0_i32_0 = arith.constant 0 : i32
    %c0_i32_1 = arith.constant 0 : i32
    return %arg0, %c0_i32, %c0_i32_0 : i32, i32, i32
  }
  func.func @transform_2(%arg0: i32) -> (i32, i32) {
    %c0_i32 = arith.constant 0 : i32
    %c0_i32_0 = arith.constant 0 : i32
    %c0_i32_1 = arith.constant 0 : i32
    return %c0_i32, %c0_i32_0 : i32, i32
  }
  func.func @transform_3(%arg0: i32) -> (i32, i32) {
    %c0_i32 = arith.constant 0 : i32
    %c0_i32_0 = arith.constant 0 : i32
    %c0_i32_1 = arith.constant 0 : i32
    return %c0_i32, %c0_i32_0 : i32, i32
  }
  func.func @transform_4(%arg0: i32) -> (i32, i32) {
    %c0_i32 = arith.constant 0 : i32
    %c0_i32_0 = arith.constant 0 : i32
    %c0_i32_1 = arith.constant 0 : i32
    return %c0_i32, %c0_i32_0 : i32, i32
  }
  func.func @transform_5(%arg0: i32) -> (i32, i32) {
    %c0_i32 = arith.constant 0 : i32
    %c0_i32_0 = arith.constant 0 : i32
    %c0_i32_1 = arith.constant 0 : i32
    return %c0_i32, %c0_i32_0 : i32, i32
  }
  func.func @transform_6(%arg0: i32) -> (i32, i32) {
    %c0_i32 = arith.constant 0 : i32
    %c0_i32_0 = arith.constant 0 : i32
    %c0_i32_1 = arith.constant 0 : i32
    return %c0_i32, %c0_i32_0 : i32, i32
  }
  func.func @transform_7(%arg0: i32) -> (i32, i32) {
    %c0_i32 = arith.constant 0 : i32
    %c0_i32_0 = arith.constant 0 : i32
    %c0_i32_1 = arith.constant 0 : i32
    return %c0_i32, %c0_i32_0 : i32, i32
  }
  func.func @transform_8(%arg0: i32) -> (i32, i32) {
    %c0_i32 = arith.constant 0 : i32
    %c0_i32_0 = arith.constant 0 : i32
    %c0_i32_1 = arith.constant 0 : i32
    return %c0_i32, %c0_i32_0 : i32, i32
  }
  func.func @transform_9(%arg0: i32) -> (i32, i32) {
    %c0_i32 = arith.constant 0 : i32
    %c0_i32_0 = arith.constant 0 : i32
    %c0_i32_1 = arith.constant 0 : i32
    return %c0_i32, %c0_i32_0 : i32, i32
  }
  func.func @transform_10(%arg0: i32) -> (i32, i32) {
    %c0_i32 = arith.constant 0 : i32
    %c0_i32_0 = arith.constant 0 : i32
    %c0_i32_1 = arith.constant 0 : i32
    return %c0_i32, %c0_i32_0 : i32, i32
  }
  func.func @transform_11(%arg0: i32) -> (i32, i32) {
    %c0_i32 = arith.constant 0 : i32
    %c0_i32_0 = arith.constant 0 : i32
    %c0_i32_1 = arith.constant 0 : i32
    return %c0_i32, %c0_i32_0 : i32, i32
  }
  func.func @transform_12(%arg0: i32) -> (i32, i32) {
    %c0_i32 = arith.constant 0 : i32
    %c0_i32_0 = arith.constant 0 : i32
    %c0_i32_1 = arith.constant 0 : i32
    return %c0_i32, %c0_i32_0 : i32, i32
  }
  func.func @transform_13(%arg0: i32) -> (i32, i32, i32) {
    %c0_i32 = arith.constant 0 : i32
    %c0_i32_0 = arith.constant 0 : i32
    %c0_i32_1 = arith.constant 0 : i32
    return %arg0, %c0_i32, %c0_i32_0 : i32, i32, i32
  }
}

module attributes {stable_mosaic.version = 11 : i64} {
  func.func @_attn_prop_kernel(%arg0: i32, %arg1: memref<1x16x128xf32, #tpu.memory_space<vmem>>, %arg2: memref<1x16x128xf32, #tpu.memory_space<vmem>>, %arg3: memref<128x128xbf16, #tpu.memory_space<vmem>>, %arg4: memref<1x128xf32, #tpu.memory_space<vmem>>, %arg5: memref<128x256xbf16, #tpu.memory_space<vmem>>, %arg6: memref<1x256xf32, #tpu.memory_space<vmem>>, %arg7: memref<128x128xbf16, #tpu.memory_space<vmem>>, %arg8: memref<1x128xf32, #tpu.memory_space<vmem>>, %arg9: memref<128x256xbf16, #tpu.memory_space<vmem>>, %arg10: memref<128x256xbf16, #tpu.memory_space<vmem>>, %arg11: memref<1x256xf32, #tpu.memory_space<vmem>>, %arg12: memref<256x128xbf16, #tpu.memory_space<vmem>>, %arg13: memref<1x128xf32, #tpu.memory_space<vmem>>, %arg14: memref<1x16x128xf32, #tpu.memory_space<vmem>>) attributes {dimension_semantics = [#tpu.dimension_semantics<parallel>], iteration_bounds = array<i64: 2>, scalar_prefetch = 0 : i64, scratch_operands = 0 : i64, tpu.core_type = #tpu.core_type<tc>, window_params = [{transform_indices = @transform_0, window_bounds = array<i64: 1, 16, 128>}, {transform_indices = @transform_1, window_bounds = array<i64: 1, 16, 128>}, {pipeline_mode = #tpu.pipeline_mode<synchronous>, transform_indices = @transform_2, window_bounds = array<i64: 128, 128>}, {pipeline_mode = #tpu.pipeline_mode<synchronous>, transform_indices = @transform_3, window_bounds = array<i64: 1, 128>}, {pipeline_mode = #tpu.pipeline_mode<synchronous>, transform_indices = @transform_4, window_bounds = array<i64: 128, 256>}, {pipeline_mode = #tpu.pipeline_mode<synchronous>, transform_indices = @transform_5, window_bounds = array<i64: 1, 256>}, {pipeline_mode = #tpu.pipeline_mode<synchronous>, transform_indices = @transform_6, window_bounds = array<i64: 128, 128>}, {pipeline_mode = #tpu.pipeline_mode<synchronous>, transform_indices = @transform_7, window_bounds = array<i64: 1, 128>}, {pipeline_mode = #tpu.pipeline_mode<synchronous>, transform_indices = @transform_8, window_bounds = array<i64: 128, 256>}, {pipeline_mode = #tpu.pipeline_mode<synchronous>, transform_indices = @transform_9, window_bounds = array<i64: 128, 256>}, {pipeline_mode = #tpu.pipeline_mode<synchronous>, transform_indices = @transform_10, window_bounds = array<i64: 1, 256>}, {pipeline_mode = #tpu.pipeline_mode<synchronous>, transform_indices = @transform_11, window_bounds = array<i64: 256, 128>}, {pipeline_mode = #tpu.pipeline_mode<synchronous>, transform_indices = @transform_12, window_bounds = array<i64: 1, 128>}, {transform_indices = @transform_13, window_bounds = array<i64: 1, 16, 128>}]} {
    %c0 = arith.constant 0 : index
    %c0_0 = arith.constant 0 : index
    %c0_1 = arith.constant 0 : index
    %0 = vector.load %arg1[%c0, %c0_0, %c0_1] : memref<1x16x128xf32, #tpu.memory_space<vmem>>, vector<1x16x128xf32>
    %1 = vector.shape_cast %0 : vector<1x16x128xf32> to vector<16x128xf32>
    %2 = arith.truncf %1 : vector<16x128xf32> to vector<16x128xbf16>
    %c0_2 = arith.constant 0 : index
    %c0_3 = arith.constant 0 : index
    %c0_4 = arith.constant 0 : index
    %3 = vector.load %arg2[%c0_2, %c0_3, %c0_4] : memref<1x16x128xf32, #tpu.memory_space<vmem>>, vector<1x16x128xf32>
    %4 = vector.shape_cast %3 : vector<1x16x128xf32> to vector<16x128xf32>
    %5 = arith.truncf %4 : vector<16x128xf32> to vector<16x128xbf16>
    %c0_5 = arith.constant 0 : index
    %c0_6 = arith.constant 0 : index
    %6 = vector.load %arg3[%c0_5, %c0_6] : memref<128x128xbf16, #tpu.memory_space<vmem>>, vector<128x128xbf16>
    %cst = arith.constant dense<0.000000e+00> : vector<16x128xf32>
    %7 = tpu.matmul %2, %6, %cst {dimension_numbers = #tpu.dot_dimension_numbers<[1], [0], [0], [1], [0, 0, 1, 1], [], []>} : vector<16x128xbf16>, vector<128x128xbf16>, vector<16x128xf32> -> vector<16x128xf32>
    %c0_7 = arith.constant 0 : index
    %c0_8 = arith.constant 0 : index
    %8 = vector.load %arg4[%c0_7, %c0_8] : memref<1x128xf32, #tpu.memory_space<vmem>>, vector<1x128xf32>
    %9 = vector.broadcast %8 : vector<1x128xf32> to vector<16x128xf32>
    %10 = arith.addf %7, %9 : vector<16x128xf32>
    %c0_9 = arith.constant 0 : index
    %c0_10 = arith.constant 0 : index
    %11 = vector.load %arg5[%c0_9, %c0_10] : memref<128x256xbf16, #tpu.memory_space<vmem>>, vector<128x256xbf16>
    %cst_11 = arith.constant dense<0.000000e+00> : vector<16x256xf32>
    %12 = tpu.matmul %5, %11, %cst_11 {dimension_numbers = #tpu.dot_dimension_numbers<[1], [0], [0], [1], [0, 0, 1, 1], [], []>} : vector<16x128xbf16>, vector<128x256xbf16>, vector<16x256xf32> -> vector<16x256xf32>
    %c0_12 = arith.constant 0 : index
    %c0_13 = arith.constant 0 : index
    %13 = vector.load %arg6[%c0_12, %c0_13] : memref<1x256xf32, #tpu.memory_space<vmem>>, vector<1x256xf32>
    %14 = vector.broadcast %13 : vector<1x256xf32> to vector<16x256xf32>
    %15 = arith.addf %12, %14 : vector<16x256xf32>
    %c0_14 = arith.constant 0 : index
    %c0_15 = arith.constant 0 : index
    %16 = vector.load %arg7[%c0_14, %c0_15] : memref<128x128xbf16, #tpu.memory_space<vmem>>, vector<128x128xbf16>
    %c0_16 = arith.constant 0 : index
    %c0_17 = arith.constant 0 : index
    %17 = vector.load %arg8[%c0_16, %c0_17] : memref<1x128xf32, #tpu.memory_space<vmem>>, vector<1x128xf32>
    %18 = vector.extract_strided_slice %10 {offsets = [0, 0], sizes = [16, 32], strides = [1, 1]} : vector<16x128xf32> to vector<16x32xf32>
    %19 = arith.truncf %18 : vector<16x32xf32> to vector<16x32xbf16>
    %20 = vector.extract_strided_slice %15 {offsets = [0, 0], sizes = [16, 32], strides = [1, 1]} : vector<16x256xf32> to vector<16x32xf32>
    %21 = arith.truncf %20 : vector<16x32xf32> to vector<16x32xbf16>
    %22 = vector.extract_strided_slice %15 {offsets = [0, 128], sizes = [16, 32], strides = [1, 1]} : vector<16x256xf32> to vector<16x32xf32>
    %23 = arith.truncf %22 : vector<16x32xf32> to vector<16x32xbf16>
    %cst_18 = arith.constant dense<0.000000e+00> : vector<16x16xf32>
    %24 = tpu.matmul %19, %21, %cst_18 {dimension_numbers = #tpu.dot_dimension_numbers<[1], [1], [0], [0], [0, 0, 1, 0], [], []>} : vector<16x32xbf16>, vector<16x32xbf16>, vector<16x16xf32> -> vector<16x16xf32>
    %cst_19 = arith.constant dense<0xFF800000> : vector<16xf32>
    %25 = vector.multi_reduction <maximumf>, %24, %cst_19 [1] : vector<16x16xf32> to vector<16xf32>
    %26 = vector.shape_cast %25 : vector<16xf32> to vector<16x1xf32>
    %27 = vector.broadcast %26 : vector<16x1xf32> to vector<16x16xf32>
    %28 = arith.subf %24, %27 : vector<16x16xf32>
    %29 = math.exp %28 : vector<16x16xf32>
    %cst_20 = arith.constant dense<0.000000e+00> : vector<16xf32>
    %30 = vector.multi_reduction <add>, %29, %cst_20 [1] : vector<16x16xf32> to vector<16xf32>
    %31 = vector.shape_cast %30 : vector<16xf32> to vector<16x1xf32>
    %32 = tpu.reciprocal %31 {approx = true} : vector<16x1xf32> -> vector<16x1xf32>
    %33 = vector.broadcast %32 : vector<16x1xf32> to vector<16x16xf32>
    %34 = arith.mulf %29, %33 : vector<16x16xf32>
    %35 = arith.truncf %34 : vector<16x16xf32> to vector<16x16xbf16>
    %cst_21 = arith.constant dense<0.000000e+00> : vector<16x32xf32>
    %36 = tpu.matmul %35, %23, %cst_21 {dimension_numbers = #tpu.dot_dimension_numbers<[1], [0], [0], [1], [0, 0, 1, 1], [], []>} : vector<16x16xbf16>, vector<16x32xbf16>, vector<16x32xf32> -> vector<16x32xf32>
    %37 = arith.truncf %36 : vector<16x32xf32> to vector<16x32xbf16>
    %38 = vector.extract_strided_slice %16 {offsets = [0, 0], sizes = [32, 128], strides = [1, 1]} : vector<128x128xbf16> to vector<32x128xbf16>
    %cst_22 = arith.constant dense<0.000000e+00> : vector<16x128xf32>
    %39 = tpu.matmul %37, %38, %cst_22 {dimension_numbers = #tpu.dot_dimension_numbers<[1], [0], [0], [1], [0, 0, 1, 1], [], []>} : vector<16x32xbf16>, vector<32x128xbf16>, vector<16x128xf32> -> vector<16x128xf32>
    %40 = vector.broadcast %17 : vector<1x128xf32> to vector<16x128xf32>
    %41 = arith.addf %40, %39 : vector<16x128xf32>
    %42 = vector.extract_strided_slice %10 {offsets = [0, 32], sizes = [16, 32], strides = [1, 1]} : vector<16x128xf32> to vector<16x32xf32>
    %43 = arith.truncf %42 : vector<16x32xf32> to vector<16x32xbf16>
    %44 = vector.extract_strided_slice %15 {offsets = [0, 32], sizes = [16, 32], strides = [1, 1]} : vector<16x256xf32> to vector<16x32xf32>
    %45 = arith.truncf %44 : vector<16x32xf32> to vector<16x32xbf16>
    %46 = vector.extract_strided_slice %15 {offsets = [0, 160], sizes = [16, 32], strides = [1, 1]} : vector<16x256xf32> to vector<16x32xf32>
    %47 = arith.truncf %46 : vector<16x32xf32> to vector<16x32xbf16>
    %cst_23 = arith.constant dense<0.000000e+00> : vector<16x16xf32>
    %48 = tpu.matmul %43, %45, %cst_23 {dimension_numbers = #tpu.dot_dimension_numbers<[1], [1], [0], [0], [0, 0, 1, 0], [], []>} : vector<16x32xbf16>, vector<16x32xbf16>, vector<16x16xf32> -> vector<16x16xf32>
    %cst_24 = arith.constant dense<0xFF800000> : vector<16xf32>
    %49 = vector.multi_reduction <maximumf>, %48, %cst_24 [1] : vector<16x16xf32> to vector<16xf32>
    %50 = vector.shape_cast %49 : vector<16xf32> to vector<16x1xf32>
    %51 = vector.broadcast %50 : vector<16x1xf32> to vector<16x16xf32>
    %52 = arith.subf %48, %51 : vector<16x16xf32>
    %53 = math.exp %52 : vector<16x16xf32>
    %cst_25 = arith.constant dense<0.000000e+00> : vector<16xf32>
    %54 = vector.multi_reduction <add>, %53, %cst_25 [1] : vector<16x16xf32> to vector<16xf32>
    %55 = vector.shape_cast %54 : vector<16xf32> to vector<16x1xf32>
    %56 = tpu.reciprocal %55 {approx = true} : vector<16x1xf32> -> vector<16x1xf32>
    %57 = vector.broadcast %56 : vector<16x1xf32> to vector<16x16xf32>
    %58 = arith.mulf %53, %57 : vector<16x16xf32>
    %59 = arith.truncf %58 : vector<16x16xf32> to vector<16x16xbf16>
    %cst_26 = arith.constant dense<0.000000e+00> : vector<16x32xf32>
    %60 = tpu.matmul %59, %47, %cst_26 {dimension_numbers = #tpu.dot_dimension_numbers<[1], [0], [0], [1], [0, 0, 1, 1], [], []>} : vector<16x16xbf16>, vector<16x32xbf16>, vector<16x32xf32> -> vector<16x32xf32>
    %61 = arith.truncf %60 : vector<16x32xf32> to vector<16x32xbf16>
    %62 = vector.extract_strided_slice %16 {offsets = [32, 0], sizes = [32, 128], strides = [1, 1]} : vector<128x128xbf16> to vector<32x128xbf16>
    %cst_27 = arith.constant dense<0.000000e+00> : vector<16x128xf32>
    %63 = tpu.matmul %61, %62, %cst_27 {dimension_numbers = #tpu.dot_dimension_numbers<[1], [0], [0], [1], [0, 0, 1, 1], [], []>} : vector<16x32xbf16>, vector<32x128xbf16>, vector<16x128xf32> -> vector<16x128xf32>
    %64 = arith.addf %41, %63 : vector<16x128xf32>
    %65 = vector.extract_strided_slice %10 {offsets = [0, 64], sizes = [16, 32], strides = [1, 1]} : vector<16x128xf32> to vector<16x32xf32>
    %66 = arith.truncf %65 : vector<16x32xf32> to vector<16x32xbf16>
    %67 = vector.extract_strided_slice %15 {offsets = [0, 64], sizes = [16, 32], strides = [1, 1]} : vector<16x256xf32> to vector<16x32xf32>
    %68 = arith.truncf %67 : vector<16x32xf32> to vector<16x32xbf16>
    %69 = vector.extract_strided_slice %15 {offsets = [0, 192], sizes = [16, 32], strides = [1, 1]} : vector<16x256xf32> to vector<16x32xf32>
    %70 = arith.truncf %69 : vector<16x32xf32> to vector<16x32xbf16>
    %cst_28 = arith.constant dense<0.000000e+00> : vector<16x16xf32>
    %71 = tpu.matmul %66, %68, %cst_28 {dimension_numbers = #tpu.dot_dimension_numbers<[1], [1], [0], [0], [0, 0, 1, 0], [], []>} : vector<16x32xbf16>, vector<16x32xbf16>, vector<16x16xf32> -> vector<16x16xf32>
    %cst_29 = arith.constant dense<0xFF800000> : vector<16xf32>
    %72 = vector.multi_reduction <maximumf>, %71, %cst_29 [1] : vector<16x16xf32> to vector<16xf32>
    %73 = vector.shape_cast %72 : vector<16xf32> to vector<16x1xf32>
    %74 = vector.broadcast %73 : vector<16x1xf32> to vector<16x16xf32>
    %75 = arith.subf %71, %74 : vector<16x16xf32>
    %76 = math.exp %75 : vector<16x16xf32>
    %cst_30 = arith.constant dense<0.000000e+00> : vector<16xf32>
    %77 = vector.multi_reduction <add>, %76, %cst_30 [1] : vector<16x16xf32> to vector<16xf32>
    %78 = vector.shape_cast %77 : vector<16xf32> to vector<16x1xf32>
    %79 = tpu.reciprocal %78 {approx = true} : vector<16x1xf32> -> vector<16x1xf32>
    %80 = vector.broadcast %79 : vector<16x1xf32> to vector<16x16xf32>
    %81 = arith.mulf %76, %80 : vector<16x16xf32>
    %82 = arith.truncf %81 : vector<16x16xf32> to vector<16x16xbf16>
    %cst_31 = arith.constant dense<0.000000e+00> : vector<16x32xf32>
    %83 = tpu.matmul %82, %70, %cst_31 {dimension_numbers = #tpu.dot_dimension_numbers<[1], [0], [0], [1], [0, 0, 1, 1], [], []>} : vector<16x16xbf16>, vector<16x32xbf16>, vector<16x32xf32> -> vector<16x32xf32>
    %84 = arith.truncf %83 : vector<16x32xf32> to vector<16x32xbf16>
    %85 = vector.extract_strided_slice %16 {offsets = [64, 0], sizes = [32, 128], strides = [1, 1]} : vector<128x128xbf16> to vector<32x128xbf16>
    %cst_32 = arith.constant dense<0.000000e+00> : vector<16x128xf32>
    %86 = tpu.matmul %84, %85, %cst_32 {dimension_numbers = #tpu.dot_dimension_numbers<[1], [0], [0], [1], [0, 0, 1, 1], [], []>} : vector<16x32xbf16>, vector<32x128xbf16>, vector<16x128xf32> -> vector<16x128xf32>
    %87 = arith.addf %64, %86 : vector<16x128xf32>
    %88 = vector.extract_strided_slice %10 {offsets = [0, 96], sizes = [16, 32], strides = [1, 1]} : vector<16x128xf32> to vector<16x32xf32>
    %89 = arith.truncf %88 : vector<16x32xf32> to vector<16x32xbf16>
    %90 = vector.extract_strided_slice %15 {offsets = [0, 96], sizes = [16, 32], strides = [1, 1]} : vector<16x256xf32> to vector<16x32xf32>
    %91 = arith.truncf %90 : vector<16x32xf32> to vector<16x32xbf16>
    %92 = vector.extract_strided_slice %15 {offsets = [0, 224], sizes = [16, 32], strides = [1, 1]} : vector<16x256xf32> to vector<16x32xf32>
    %93 = arith.truncf %92 : vector<16x32xf32> to vector<16x32xbf16>
    %cst_33 = arith.constant dense<0.000000e+00> : vector<16x16xf32>
    %94 = tpu.matmul %89, %91, %cst_33 {dimension_numbers = #tpu.dot_dimension_numbers<[1], [1], [0], [0], [0, 0, 1, 0], [], []>} : vector<16x32xbf16>, vector<16x32xbf16>, vector<16x16xf32> -> vector<16x16xf32>
    %cst_34 = arith.constant dense<0xFF800000> : vector<16xf32>
    %95 = vector.multi_reduction <maximumf>, %94, %cst_34 [1] : vector<16x16xf32> to vector<16xf32>
    %96 = vector.shape_cast %95 : vector<16xf32> to vector<16x1xf32>
    %97 = vector.broadcast %96 : vector<16x1xf32> to vector<16x16xf32>
    %98 = arith.subf %94, %97 : vector<16x16xf32>
    %99 = math.exp %98 : vector<16x16xf32>
    %cst_35 = arith.constant dense<0.000000e+00> : vector<16xf32>
    %100 = vector.multi_reduction <add>, %99, %cst_35 [1] : vector<16x16xf32> to vector<16xf32>
    %101 = vector.shape_cast %100 : vector<16xf32> to vector<16x1xf32>
    %102 = tpu.reciprocal %101 {approx = true} : vector<16x1xf32> -> vector<16x1xf32>
    %103 = vector.broadcast %102 : vector<16x1xf32> to vector<16x16xf32>
    %104 = arith.mulf %99, %103 : vector<16x16xf32>
    %105 = arith.truncf %104 : vector<16x16xf32> to vector<16x16xbf16>
    %cst_36 = arith.constant dense<0.000000e+00> : vector<16x32xf32>
    %106 = tpu.matmul %105, %93, %cst_36 {dimension_numbers = #tpu.dot_dimension_numbers<[1], [0], [0], [1], [0, 0, 1, 1], [], []>} : vector<16x16xbf16>, vector<16x32xbf16>, vector<16x32xf32> -> vector<16x32xf32>
    %107 = arith.truncf %106 : vector<16x32xf32> to vector<16x32xbf16>
    %108 = vector.extract_strided_slice %16 {offsets = [96, 0], sizes = [32, 128], strides = [1, 1]} : vector<128x128xbf16> to vector<32x128xbf16>
    %cst_37 = arith.constant dense<0.000000e+00> : vector<16x128xf32>
    %109 = tpu.matmul %107, %108, %cst_37 {dimension_numbers = #tpu.dot_dimension_numbers<[1], [0], [0], [1], [0, 0, 1, 1], [], []>} : vector<16x32xbf16>, vector<32x128xbf16>, vector<16x128xf32> -> vector<16x128xf32>
    %110 = arith.addf %87, %109 : vector<16x128xf32>
    %c0_38 = arith.constant 0 : index
    %c0_39 = arith.constant 0 : index
    %111 = vector.load %arg9[%c0_38, %c0_39] : memref<128x256xbf16, #tpu.memory_space<vmem>>, vector<128x256xbf16>
    %cst_40 = arith.constant dense<0.000000e+00> : vector<16x256xf32>
    %112 = tpu.matmul %2, %111, %cst_40 {dimension_numbers = #tpu.dot_dimension_numbers<[1], [0], [0], [1], [0, 0, 1, 1], [], []>} : vector<16x128xbf16>, vector<128x256xbf16>, vector<16x256xf32> -> vector<16x256xf32>
    %113 = arith.truncf %110 : vector<16x128xf32> to vector<16x128xbf16>
    %c0_41 = arith.constant 0 : index
    %c0_42 = arith.constant 0 : index
    %114 = vector.load %arg10[%c0_41, %c0_42] : memref<128x256xbf16, #tpu.memory_space<vmem>>, vector<128x256xbf16>
    %cst_43 = arith.constant dense<0.000000e+00> : vector<16x256xf32>
    %115 = tpu.matmul %113, %114, %cst_43 {dimension_numbers = #tpu.dot_dimension_numbers<[1], [0], [0], [1], [0, 0, 1, 1], [], []>} : vector<16x128xbf16>, vector<128x256xbf16>, vector<16x256xf32> -> vector<16x256xf32>
    %116 = arith.addf %112, %115 : vector<16x256xf32>
    %c0_44 = arith.constant 0 : index
    %c0_45 = arith.constant 0 : index
    %117 = vector.load %arg11[%c0_44, %c0_45] : memref<1x256xf32, #tpu.memory_space<vmem>>, vector<1x256xf32>
    %118 = vector.broadcast %117 : vector<1x256xf32> to vector<16x256xf32>
    %119 = arith.addf %116, %118 : vector<16x256xf32>
    %cst_46 = arith.constant dense<0.000000e+00> : vector<256xf32>
    %120 = vector.multi_reduction <add>, %119, %cst_46 [0] : vector<16x256xf32> to vector<256xf32>
    %121 = vector.shape_cast %120 : vector<256xf32> to vector<1x256xf32>
    %cst_47 = arith.constant 1.600000e+01 : f32
    %122 = vector.broadcast %cst_47 : f32 to vector<1x256xf32>
    %123 = arith.divf %121, %122 : vector<1x256xf32>
    %124 = vector.broadcast %123 : vector<1x256xf32> to vector<16x256xf32>
    %125 = arith.subf %119, %124 : vector<16x256xf32>
    %126 = arith.mulf %125, %125 : vector<16x256xf32>
    %cst_48 = arith.constant dense<0.000000e+00> : vector<256xf32>
    %127 = vector.multi_reduction <add>, %126, %cst_48 [0] : vector<16x256xf32> to vector<256xf32>
    %128 = vector.shape_cast %127 : vector<256xf32> to vector<1x256xf32>
    %cst_49 = arith.constant 1.600000e+01 : f32
    %129 = vector.broadcast %cst_49 : f32 to vector<1x256xf32>
    %130 = arith.divf %128, %129 : vector<1x256xf32>
    %131 = vector.broadcast %123 : vector<1x256xf32> to vector<16x256xf32>
    %132 = arith.subf %119, %131 : vector<16x256xf32>
    %cst_50 = arith.constant 9.99999974E-6 : f32
    %133 = vector.broadcast %cst_50 : f32 to vector<1x256xf32>
    %134 = arith.addf %130, %133 : vector<1x256xf32>
    %135 = math.rsqrt %134 : vector<1x256xf32>
    %136 = vector.broadcast %135 : vector<1x256xf32> to vector<16x256xf32>
    %137 = arith.mulf %132, %136 : vector<16x256xf32>
    %cst_51 = arith.constant 0.000000e+00 : f32
    %138 = vector.broadcast %cst_51 : f32 to vector<16x256xf32>
    %139 = arith.maximumf %137, %138 : vector<16x256xf32>
    %140 = arith.truncf %139 : vector<16x256xf32> to vector<16x256xbf16>
    %c0_52 = arith.constant 0 : index
    %c0_53 = arith.constant 0 : index
    %141 = vector.load %arg12[%c0_52, %c0_53] : memref<256x128xbf16, #tpu.memory_space<vmem>>, vector<256x128xbf16>
    %cst_54 = arith.constant dense<0.000000e+00> : vector<16x128xf32>
    %142 = tpu.matmul %140, %141, %cst_54 {dimension_numbers = #tpu.dot_dimension_numbers<[1], [0], [0], [1], [0, 0, 1, 1], [], []>} : vector<16x256xbf16>, vector<256x128xbf16>, vector<16x128xf32> -> vector<16x128xf32>
    %c0_55 = arith.constant 0 : index
    %c0_56 = arith.constant 0 : index
    %143 = vector.load %arg13[%c0_55, %c0_56] : memref<1x128xf32, #tpu.memory_space<vmem>>, vector<1x128xf32>
    %144 = vector.broadcast %143 : vector<1x128xf32> to vector<16x128xf32>
    %145 = arith.addf %142, %144 : vector<16x128xf32>
    %146 = arith.addf %1, %145 : vector<16x128xf32>
    %c0_57 = arith.constant 0 : index
    %c0_58 = arith.constant 0 : index
    %c0_59 = arith.constant 0 : index
    %147 = vector.load %arg14[%c0_57, %c0_58, %c0_59] : memref<1x16x128xf32, #tpu.memory_space<vmem>>, vector<1x16x128xf32>
    %148 = vector.shape_cast %147 : vector<1x16x128xf32> to vector<16x128xf32>
    %149 = vector.shape_cast %146 : vector<16x128xf32> to vector<1x16x128xf32>
    tpu.vector_store %arg14[%c0_57, %c0_58, %c0_59], %149 {strides = array<i32>} : memref<1x16x128xf32, #tpu.memory_space<vmem>>, vector<1x16x128xf32>,
    return
  }
  func.func @transform_0(%arg0: i32) -> (i32, i32, i32) {
    %c0_i32 = arith.constant 0 : i32
    %c0_i32_0 = arith.constant 0 : i32
    %c0_i32_1 = arith.constant 0 : i32
    return %arg0, %c0_i32, %c0_i32_0 : i32, i32, i32
  }
  func.func @transform_1(%arg0: i32) -> (i32, i32, i32) {
    %c0_i32 = arith.constant 0 : i32
    %c0_i32_0 = arith.constant 0 : i32
    %c0_i32_1 = arith.constant 0 : i32
    return %arg0, %c0_i32, %c0_i32_0 : i32, i32, i32
  }
  func.func @transform_2(%arg0: i32) -> (i32, i32) {
    %c0_i32 = arith.constant 0 : i32
    %c0_i32_0 = arith.constant 0 : i32
    %c0_i32_1 = arith.constant 0 : i32
    return %c0_i32, %c0_i32_0 : i32, i32
  }
  func.func @transform_3(%arg0: i32) -> (i32, i32) {
    %c0_i32 = arith.constant 0 : i32
    %c0_i32_0 = arith.constant 0 : i32
    %c0_i32_1 = arith.constant 0 : i32
    return %c0_i32, %c0_i32_0 : i32, i32
  }
  func.func @transform_4(%arg0: i32) -> (i32, i32) {
    %c0_i32 = arith.constant 0 : i32
    %c0_i32_0 = arith.constant 0 : i32
    %c0_i32_1 = arith.constant 0 : i32
    return %c0_i32, %c0_i32_0 : i32, i32
  }
  func.func @transform_5(%arg0: i32) -> (i32, i32) {
    %c0_i32 = arith.constant 0 : i32
    %c0_i32_0 = arith.constant 0 : i32
    %c0_i32_1 = arith.constant 0 : i32
    return %c0_i32, %c0_i32_0 : i32, i32
  }
  func.func @transform_6(%arg0: i32) -> (i32, i32) {
    %c0_i32 = arith.constant 0 : i32
    %c0_i32_0 = arith.constant 0 : i32
    %c0_i32_1 = arith.constant 0 : i32
    return %c0_i32, %c0_i32_0 : i32, i32
  }
  func.func @transform_7(%arg0: i32) -> (i32, i32) {
    %c0_i32 = arith.constant 0 : i32
    %c0_i32_0 = arith.constant 0 : i32
    %c0_i32_1 = arith.constant 0 : i32
    return %c0_i32, %c0_i32_0 : i32, i32
  }
  func.func @transform_8(%arg0: i32) -> (i32, i32) {
    %c0_i32 = arith.constant 0 : i32
    %c0_i32_0 = arith.constant 0 : i32
    %c0_i32_1 = arith.constant 0 : i32
    return %c0_i32, %c0_i32_0 : i32, i32
  }
  func.func @transform_9(%arg0: i32) -> (i32, i32) {
    %c0_i32 = arith.constant 0 : i32
    %c0_i32_0 = arith.constant 0 : i32
    %c0_i32_1 = arith.constant 0 : i32
    return %c0_i32, %c0_i32_0 : i32, i32
  }
  func.func @transform_10(%arg0: i32) -> (i32, i32) {
    %c0_i32 = arith.constant 0 : i32
    %c0_i32_0 = arith.constant 0 : i32
    %c0_i32_1 = arith.constant 0 : i32
    return %c0_i32, %c0_i32_0 : i32, i32
  }
  func.func @transform_11(%arg0: i32) -> (i32, i32) {
    %c0_i32 = arith.constant 0 : i32
    %c0_i32_0 = arith.constant 0 : i32
    %c0_i32_1 = arith.constant 0 : i32
    return %c0_i32, %c0_i32_0 : i32, i32
  }
  func.func @transform_12(%arg0: i32) -> (i32, i32) {
    %c0_i32 = arith.constant 0 : i32
    %c0_i32_0 = arith.constant 0 : i32
    %c0_i32_1 = arith.constant 0 : i32
    return %c0_i32, %c0_i32_0 : i32, i32
  }
  func.func @transform_13(%arg0: i32) -> (i32, i32, i32) {
    %c0_i32 = arith.constant 0 : i32
    %c0_i32_0 = arith.constant 0 : i32
    %c0_i32_1 = arith.constant 0 : i32
    return %arg0, %c0_i32, %c0_i32_0 : i32, i32, i32
  }
}

</mosaic_0001>

<llo_original>
// kernel: sub.6
$region0: #{sub.6}
  #allocation0 [shape = 's32[1]{0}', space=sflag, size = 0x4, scoped, tag = 'scoped memory for sub.6']
  %s0 = inlined_call_operand.vmem [shape: bf16[2,144,128], index: 0, kind: input, shape index: {}]
  %s1 = inlined_call_operand.vmem [shape: bf16[2,144,128], index: 1, kind: input, shape index: {}]
  %s2 = inlined_call_operand.vmem [shape: bf16[2,144,128], index: 2, kind: output, shape index: {}]
  %v3 = vld [vmem:[%s0] sm:$0xf]
  %v4 = vunpack.c.l.bf16 %v3
  %v5 = vunpack.c.h.bf16 %v3
  %v6 = vld [vmem:[%s1] sm:$0xf]
  %v7 = vunpack.c.l.bf16 %v6
  %v8 = vunpack.c.h.bf16 %v6
  %9 = xla_tuple %v4, %v7
  %10 = xla_tuple %9
  %v11 = vsub.f32 %v4, %v7
  %12 = xla_tuple %v11
  %v13 = vpack.c.bf16 0.0, %v11
  %14 = vst [vmem:[%s2] sm:$0xf] %v13
  %s15 = scalar_lea.vmem %s0, 72
  %v16 = vld [vmem:[%s15] sm:$0xf]
  %v17 = vunpack.c.l.bf16 %v16
  %v18 = vunpack.c.h.bf16 %v16
  %s19 = scalar_lea.vmem %s1, 72
  %v20 = vld [vmem:[%s19] sm:$0xf]
  %v21 = vunpack.c.l.bf16 %v20
  %v22 = vunpack.c.h.bf16 %v20
  %23 = xla_tuple %v17, %v21
  %24 = xla_tuple %23
  %v25 = vsub.f32 %v17, %v21
  %26 = xla_tuple %v25
  %s27 = scalar_lea.vmem %s2, 72
  %v28 = vpack.c.bf16 0.0, %v25
  %29 = vst [vmem:[%s27] sm:$0xf] %v28
  %s30 = scalar_lea.vmem %s0, 4
  %v31 = vld [vmem:[%s30] sm:$0xf]
  %v32 = vunpack.c.l.bf16 %v31
  %v33 = vunpack.c.h.bf16 %v31
  %s34 = scalar_lea.vmem %s1, 4
  %v35 = vld [vmem:[%s34] sm:$0xf]
  %v36 = vunpack.c.l.bf16 %v35
  %v37 = vunpack.c.h.bf16 %v35
  %38 = xla_tuple %v32, %v36
  %39 = xla_tuple %38
  %v40 = vsub.f32 %v32, %v36
  %41 = xla_tuple %v40
  %s42 = scalar_lea.vmem %s2, 4
  %v43 = vpack.c.bf16 0.0, %v40
  %44 = vst [vmem:[%s42] sm:$0xf] %v43
  %s45 = scalar_lea.vmem %s0, 76
  %v46 = vld [vmem:[%s45] sm:$0xf]
  %v47 = vunpack.c.l.bf16 %v46
  %v48 = vunpack.c.h.bf16 %v46
  %s49 = scalar_lea.vmem %s1, 76
  %v50 = vld [vmem:[%s49] sm:$0xf]
  %v51 = vunpack.c.l.bf16 %v50
  %v52 = vunpack.c.h.bf16 %v50
  %53 = xla_tuple %v47, %v51
  %54 = xla_tuple %53
  %v55 = vsub.f32 %v47, %v51
  %56 = xla_tuple %v55
  %s57 = scalar_lea.vmem %s2, 76
  %v58 = vpack.c.bf16 0.0, %v55
  %59 = vst [vmem:[%s57] sm:$0xf] %v58
  %s60 = scalar_lea.vmem %s0, 8
  %v61 = vld [vmem:[%s60] sm:$0xf]
  %v62 = vunpack.c.l.bf16 %v61
  %v63 = vunpack.c.h.bf16 %v61
  %s64 = scalar_lea.vmem %s1, 8
  %v65 = vld [vmem:[%s64] sm:$0xf]
  %v66 = vunpack.c.l.bf16 %v65
  %v67 = vunpack.c.h.bf16 %v65
  %68 = xla_tuple %v62, %v66
  %69 = xla_tuple %68
  %v70 = vsub.f32 %v62, %v66
  %71 = xla_tuple %v70
  %s72 = scalar_lea.vmem %s2, 8
  %v73 = vpack.c.bf16 0.0, %v70
  %74 = vst [vmem:[%s72] sm:$0xf] %v73
  %s75 = scalar_lea.vmem %s0, 80
  %v76 = vld [vmem:[%s75] sm:$0xf]
  %v77 = vunpack.c.l.bf16 %v76
  %v78 = vunpack.c.h.bf16 %v76
  %s79 = scalar_lea.vmem %s1, 80
  %v80 = vld [vmem:[%s79] sm:$0xf]
  %v81 = vunpack.c.l.bf16 %v80
  %v82 = vunpack.c.h.bf16 %v80
  %83 = xla_tuple %v77, %v81
  %84 = xla_tuple %83
  %v85 = vsub.f32 %v77, %v81
  %86 = xla_tuple %v85
  %s87 = scalar_lea.vmem %s2, 80
  %v88 = vpack.c.bf16 0.0, %v85
  %89 = vst [vmem:[%s87] sm:$0xf] %v88
  %s90 = scalar_lea.vmem %s0, 12
  %v91 = vld [vmem:[%s90] sm:$0xf]
  %v92 = vunpack.c.l.bf16 %v91
  %v93 = vunpack.c.h.bf16 %v91
  %s94 = scalar_lea.vmem %s1, 12
  %v95 = vld [vmem:[%s94] sm:$0xf]
  %v96 = vunpack.c.l.bf16 %v95
  %v97 = vunpack.c.h.bf16 %v95
  %98 = xla_tuple %v92, %v96
  %99 = xla_tuple %98
  %v100 = vsub.f32 %v92, %v96
  %101 = xla_tuple %v100
  %s102 = scalar_lea.vmem %s2, 12
  %v103 = vpack.c.bf16 0.0, %v100
  %104 = vst [vmem:[%s102] sm:$0xf] %v103
  %s105 = scalar_lea.vmem %s0, 84
  %v106 = vld [vmem:[%s105] sm:$0xf]
  %v107 = vunpack.c.l.bf16 %v106
  %v108 = vunpack.c.h.bf16 %v106
  %s109 = scalar_lea.vmem %s1, 84
  %v110 = vld [vmem:[%s109] sm:$0xf]
  %v111 = vunpack.c.l.bf16 %v110
  %v112 = vunpack.c.h.bf16 %v110
  %113 = xla_tuple %v107, %v111
  %114 = xla_tuple %113
  %v115 = vsub.f32 %v107, %v111
  %116 = xla_tuple %v115
  %s117 = scalar_lea.vmem %s2, 84
  %v118 = vpack.c.bf16 0.0, %v115
  %119 = vst [vmem:[%s117] sm:$0xf] %v118
  %s120 = scalar_lea.vmem %s0, 16
  %v121 = vld [vmem:[%s120] sm:$0xf]
  %v122 = vunpack.c.l.bf16 %v121
  %v123 = vunpack.c.h.bf16 %v121
  %s124 = scalar_lea.vmem %s1, 16
  %v125 = vld [vmem:[%s124] sm:$0xf]
  %v126 = vunpack.c.l.bf16 %v125
  %v127 = vunpack.c.h.bf16 %v125
  %128 = xla_tuple %v122, %v126
  %129 = xla_tuple %128
  %v130 = vsub.f32 %v122, %v126
  %131 = xla_tuple %v130
  %s132 = scalar_lea.vmem %s2, 16
  %v133 = vpack.c.bf16 0.0, %v130
  %134 = vst [vmem:[%s132] sm:$0xf] %v133
  %s135 = scalar_lea.vmem %s0, 88
  %v136 = vld [vmem:[%s135] sm:$0xf]
  %v137 = vunpack.c.l.bf16 %v136
  %v138 = vunpack.c.h.bf16 %v136
  %s139 = scalar_lea.vmem %s1, 88
  %v140 = vld [vmem:[%s139] sm:$0xf]
  %v141 = vunpack.c.l.bf16 %v140
  %v142 = vunpack.c.h.bf16 %v140
  %143 = xla_tuple %v137, %v141
  %144 = xla_tuple %143
  %v145 = vsub.f32 %v137, %v141
  %146 = xla_tuple %v145
  %s147 = scalar_lea.vmem %s2, 88
  %v148 = vpack.c.bf16 0.0, %v145
  %149 = vst [vmem:[%s147] sm:$0xf] %v148
  %s150 = scalar_lea.vmem %s0, 20
  %v151 = vld [vmem:[%s150] sm:$0xf]
  %v152 = vunpack.c.l.bf16 %v151
  %v153 = vunpack.c.h.bf16 %v151
  %s154 = scalar_lea.vmem %s1, 20
  %v155 = vld [vmem:[%s154] sm:$0xf]
  %v156 = vunpack.c.l.bf16 %v155
  %v157 = vunpack.c.h.bf16 %v155
  %158 = xla_tuple %v152, %v156
  %159 = xla_tuple %158
  %v160 = vsub.f32 %v152, %v156
  %161 = xla_tuple %v160
  %s162 = scalar_lea.vmem %s2, 20
  %v163 = vpack.c.bf16 0.0, %v160
  %164 = vst [vmem:[%s162] sm:$0xf] %v163
  %s165 = scalar_lea.vmem %s0, 92
  %v166 = vld [vmem:[%s165] sm:$0xf]
  %v167 = vunpack.c.l.bf16 %v166
  %v168 = vunpack.c.h.bf16 %v166
  %s169 = scalar_lea.vmem %s1, 92
  %v170 = vld [vmem:[%s169] sm:$0xf]
  %v171 = vunpack.c.l.bf16 %v170
  %v172 = vunpack.c.h.bf16 %v170
  %173 = xla_tuple %v167, %v171
  %174 = xla_tuple %173
  %v175 = vsub.f32 %v167, %v171
  %176 = xla_tuple %v175
  %s177 = scalar_lea.vmem %s2, 92
  %v178 = vpack.c.bf16 0.0, %v175
  %179 = vst [vmem:[%s177] sm:$0xf] %v178
  %s180 = scalar_lea.vmem %s0, 24
  %v181 = vld [vmem:[%s180] sm:$0xf]
  %v182 = vunpack.c.l.bf16 %v181
  %v183 = vunpack.c.h.bf16 %v181
  %s184 = scalar_lea.vmem %s1, 24
  %v185 = vld [vmem:[%s184] sm:$0xf]
  %v186 = vunpack.c.l.bf16 %v185
  %v187 = vunpack.c.h.bf16 %v185
  %188 = xla_tuple %v182, %v186
  %189 = xla_tuple %188
  %v190 = vsub.f32 %v182, %v186
  %191 = xla_tuple %v190
  %s192 = scalar_lea.vmem %s2, 24
  %v193 = vpack.c.bf16 0.0, %v190
  %194 = vst [vmem:[%s192] sm:$0xf] %v193
  %s195 = scalar_lea.vmem %s0, 96
  %v196 = vld [vmem:[%s195] sm:$0xf]
  %v197 = vunpack.c.l.bf16 %v196
  %v198 = vunpack.c.h.bf16 %v196
  %s199 = scalar_lea.vmem %s1, 96
  %v200 = vld [vmem:[%s199] sm:$0xf]
  %v201 = vunpack.c.l.bf16 %v200
  %v202 = vunpack.c.h.bf16 %v200
  %203 = xla_tuple %v197, %v201
  %204 = xla_tuple %203
  %v205 = vsub.f32 %v197, %v201
  %206 = xla_tuple %v205
  %s207 = scalar_lea.vmem %s2, 96
  %v208 = vpack.c.bf16 0.0, %v205
  %209 = vst [vmem:[%s207] sm:$0xf] %v208
  %s210 = scalar_lea.vmem %s0, 28
  %v211 = vld [vmem:[%s210] sm:$0xf]
  %v212 = vunpack.c.l.bf16 %v211
  %v213 = vunpack.c.h.bf16 %v211
  %s214 = scalar_lea.vmem %s1, 28
  %v215 = vld [vmem:[%s214] sm:$0xf]
  %v216 = vunpack.c.l.bf16 %v215
  %v217 = vunpack.c.h.bf16 %v215
  %218 = xla_tuple %v212, %v216
  %219 = xla_tuple %218
  %v220 = vsub.f32 %v212, %v216
  %221 = xla_tuple %v220
  %s222 = scalar_lea.vmem %s2, 28
  %v223 = vpack.c.bf16 0.0, %v220
  %224 = vst [vmem:[%s222] sm:$0xf] %v223
  %s225 = scalar_lea.vmem %s0, 100
  %v226 = vld [vmem:[%s225] sm:$0xf]
  %v227 = vunpack.c.l.bf16 %v226
  %v228 = vunpack.c.h.bf16 %v226
  %s229 = scalar_lea.vmem %s1, 100
  %v230 = vld [vmem:[%s229] sm:$0xf]
  %v231 = vunpack.c.l.bf16 %v230
  %v232 = vunpack.c.h.bf16 %v230
  %233 = xla_tuple %v227, %v231
  %234 = xla_tuple %233
  %v235 = vsub.f32 %v227, %v231
  %236 = xla_tuple %v235
  %s237 = scalar_lea.vmem %s2, 100
  %v238 = vpack.c.bf16 0.0, %v235
  %239 = vst [vmem:[%s237] sm:$0xf] %v238
  %s240 = scalar_lea.vmem %s0, 32
  %v241 = vld [vmem:[%s240] sm:$0xf]
  %v242 = vunpack.c.l.bf16 %v241
  %v243 = vunpack.c.h.bf16 %v241
  %s244 = scalar_lea.vmem %s1, 32
  %v245 = vld [vmem:[%s244] sm:$0xf]
  %v246 = vunpack.c.l.bf16 %v245
  %v247 = vunpack.c.h.bf16 %v245
  %248 = xla_tuple %v242, %v246
  %249 = xla_tuple %248
  %v250 = vsub.f32 %v242, %v246
  %251 = xla_tuple %v250
  %s252 = scalar_lea.vmem %s2, 32
  %v253 = vpack.c.bf16 0.0, %v250
  %254 = vst [vmem:[%s252] sm:$0xf] %v253
  %s255 = scalar_lea.vmem %s0, 104
  %v256 = vld [vmem:[%s255] sm:$0xf]
  %v257 = vunpack.c.l.bf16 %v256
  %v258 = vunpack.c.h.bf16 %v256
  %s259 = scalar_lea.vmem %s1, 104
  %v260 = vld [vmem:[%s259] sm:$0xf]
  %v261 = vunpack.c.l.bf16 %v260
  %v262 = vunpack.c.h.bf16 %v260
  %263 = xla_tuple %v257, %v261
  %264 = xla_tuple %263
  %v265 = vsub.f32 %v257, %v261
  %266 = xla_tuple %v265
  %s267 = scalar_lea.vmem %s2, 104
  %v268 = vpack.c.bf16 0.0, %v265
  %269 = vst [vmem:[%s267] sm:$0xf] %v268
  %s270 = scalar_lea.vmem %s0, 36
  %v271 = vld [vmem:[%s270] sm:$0xf]
  %v272 = vunpack.c.l.bf16 %v271
  %v273 = vunpack.c.h.bf16 %v271
  %s274 = scalar_lea.vmem %s1, 36
  %v275 = vld [vmem:[%s274] sm:$0xf]
  %v276 = vunpack.c.l.bf16 %v275
  %v277 = vunpack.c.h.bf16 %v275
  %278 = xla_tuple %v272, %v276
  %279 = xla_tuple %278
  %v280 = vsub.f32 %v272, %v276
  %281 = xla_tuple %v280
  %s282 = scalar_lea.vmem %s2, 36
  %v283 = vpack.c.bf16 0.0, %v280
  %284 = vst [vmem:[%s282] sm:$0xf] %v283
  %s285 = scalar_lea.vmem %s0, 108
  %v286 = vld [vmem:[%s285] sm:$0xf]
  %v287 = vunpack.c.l.bf16 %v286
  %v288 = vunpack.c.h.bf16 %v286
  %s289 = scalar_lea.vmem %s1, 108
  %v290 = vld [vmem:[%s289] sm:$0xf]
  %v291 = vunpack.c.l.bf16 %v290
  %v292 = vunpack.c.h.bf16 %v290
  %293 = xla_tuple %v287, %v291
  %294 = xla_tuple %293
  %v295 = vsub.f32 %v287, %v291
  %296 = xla_tuple %v295
  %s297 = scalar_lea.vmem %s2, 108
  %v298 = vpack.c.bf16 0.0, %v295
  %299 = vst [vmem:[%s297] sm:$0xf] %v298
  %s300 = scalar_lea.vmem %s0, 40
  %v301 = vld [vmem:[%s300] sm:$0xf]
  %v302 = vunpack.c.l.bf16 %v301
  %v303 = vunpack.c.h.bf16 %v301
  %s304 = scalar_lea.vmem %s1, 40
  %v305 = vld [vmem:[%s304] sm:$0xf]
  %v306 = vunpack.c.l.bf16 %v305
  %v307 = vunpack.c.h.bf16 %v305
  %308 = xla_tuple %v302, %v306
  %309 = xla_tuple %308
  %v310 = vsub.f32 %v302, %v306
  %311 = xla_tuple %v310
  %s312 = scalar_lea.vmem %s2, 40
  %v313 = vpack.c.bf16 0.0, %v310
  %314 = vst [vmem:[%s312] sm:$0xf] %v313
  %s315 = scalar_lea.vmem %s0, 112
  %v316 = vld [vmem:[%s315] sm:$0xf]
  %v317 = vunpack.c.l.bf16 %v316
  %v318 = vunpack.c.h.bf16 %v316
  %s319 = scalar_lea.vmem %s1, 112
  %v320 = vld [vmem:[%s319] sm:$0xf]
  %v321 = vunpack.c.l.bf16 %v320
  %v322 = vunpack.c.h.bf16 %v320
  %323 = xla_tuple %v317, %v321
  %324 = xla_tuple %323
  %v325 = vsub.f32 %v317, %v321
  %326 = xla_tuple %v325
  %s327 = scalar_lea.vmem %s2, 112
  %v328 = vpack.c.bf16 0.0, %v325
  %329 = vst [vmem:[%s327] sm:$0xf] %v328
  %s330 = scalar_lea.vmem %s0, 44
  %v331 = vld [vmem:[%s330] sm:$0xf]
  %v332 = vunpack.c.l.bf16 %v331
  %v333 = vunpack.c.h.bf16 %v331
  %s334 = scalar_lea.vmem %s1, 44
  %v335 = vld [vmem:[%s334] sm:$0xf]
  %v336 = vunpack.c.l.bf16 %v335
  %v337 = vunpack.c.h.bf16 %v335
  %338 = xla_tuple %v332, %v336
  %339 = xla_tuple %338
  %v340 = vsub.f32 %v332, %v336
  %341 = xla_tuple %v340
  %s342 = scalar_lea.vmem %s2, 44
  %v343 = vpack.c.bf16 0.0, %v340
  %344 = vst [vmem:[%s342] sm:$0xf] %v343
  %s345 = scalar_lea.vmem %s0, 116
  %v346 = vld [vmem:[%s345] sm:$0xf]
  %v347 = vunpack.c.l.bf16 %v346
  %v348 = vunpack.c.h.bf16 %v346
  %s349 = scalar_lea.vmem %s1, 116
  %v350 = vld [vmem:[%s349] sm:$0xf]
  %v351 = vunpack.c.l.bf16 %v350
  %v352 = vunpack.c.h.bf16 %v350
  %353 = xla_tuple %v347, %v351
  %354 = xla_tuple %353
  %v355 = vsub.f32 %v347, %v351
  %356 = xla_tuple %v355
  %s357 = scalar_lea.vmem %s2, 116
  %v358 = vpack.c.bf16 0.0, %v355
  %359 = vst [vmem:[%s357] sm:$0xf] %v358
  %s360 = scalar_lea.vmem %s0, 48
  %v361 = vld [vmem:[%s360] sm:$0xf]
  %v362 = vunpack.c.l.bf16 %v361
  %v363 = vunpack.c.h.bf16 %v361
  %s364 = scalar_lea.vmem %s1, 48
  %v365 = vld [vmem:[%s364] sm:$0xf]
  %v366 = vunpack.c.l.bf16 %v365
  %v367 = vunpack.c.h.bf16 %v365
  %368 = xla_tuple %v362, %v366
  %369 = xla_tuple %368
  %v370 = vsub.f32 %v362, %v366
  %371 = xla_tuple %v370
  %s372 = scalar_lea.vmem %s2, 48
  %v373 = vpack.c.bf16 0.0, %v370
  %374 = vst [vmem:[%s372] sm:$0xf] %v373
  %s375 = scalar_lea.vmem %s0, 120
  %v376 = vld [vmem:[%s375] sm:$0xf]
  %v377 = vunpack.c.l.bf16 %v376
  %v378 = vunpack.c.h.bf16 %v376
  %s379 = scalar_lea.vmem %s1, 120
  %v380 = vld [vmem:[%s379] sm:$0xf]
  %v381 = vunpack.c.l.bf16 %v380
  %v382 = vunpack.c.h.bf16 %v380
  %383 = xla_tuple %v377, %v381
  %384 = xla_tuple %383
  %v385 = vsub.f32 %v377, %v381
  %386 = xla_tuple %v385
  %s387 = scalar_lea.vmem %s2, 120
  %v388 = vpack.c.bf16 0.0, %v385
  %389 = vst [vmem:[%s387] sm:$0xf] %v388
  %s390 = scalar_lea.vmem %s0, 52
  %v391 = vld [vmem:[%s390] sm:$0xf]
  %v392 = vunpack.c.l.bf16 %v391
  %v393 = vunpack.c.h.bf16 %v391
  %s394 = scalar_lea.vmem %s1, 52
  %v395 = vld [vmem:[%s394] sm:$0xf]
  %v396 = vunpack.c.l.bf16 %v395
  %v397 = vunpack.c.h.bf16 %v395
  %398 = xla_tuple %v392, %v396
  %399 = xla_tuple %398
  %v400 = vsub.f32 %v392, %v396
  %401 = xla_tuple %v400
  %s402 = scalar_lea.vmem %s2, 52
  %v403 = vpack.c.bf16 0.0, %v400
  %404 = vst [vmem:[%s402] sm:$0xf] %v403
  %s405 = scalar_lea.vmem %s0, 124
  %v406 = vld [vmem:[%s405] sm:$0xf]
  %v407 = vunpack.c.l.bf16 %v406
  %v408 = vunpack.c.h.bf16 %v406
  %s409 = scalar_lea.vmem %s1, 124
  %v410 = vld [vmem:[%s409] sm:$0xf]
  %v411 = vunpack.c.l.bf16 %v410
  %v412 = vunpack.c.h.bf16 %v410
  %413 = xla_tuple %v407, %v411
  %414 = xla_tuple %413
  %v415 = vsub.f32 %v407, %v411
  %416 = xla_tuple %v415
  %s417 = scalar_lea.vmem %s2, 124
  %v418 = vpack.c.bf16 0.0, %v415
  %419 = vst [vmem:[%s417] sm:$0xf] %v418
  %s420 = scalar_lea.vmem %s0, 56
  %v421 = vld [vmem:[%s420] sm:$0xf]
  %v422 = vunpack.c.l.bf16 %v421
  %v423 = vunpack.c.h.bf16 %v421
  %s424 = scalar_lea.vmem %s1, 56
  %v425 = vld [vmem:[%s424] sm:$0xf]
  %v426 = vunpack.c.l.bf16 %v425
  %v427 = vunpack.c.h.bf16 %v425
  %428 = xla_tuple %v422, %v426
  %429 = xla_tuple %428
  %v430 = vsub.f32 %v422, %v426
  %431 = xla_tuple %v430
  %s432 = scalar_lea.vmem %s2, 56
  %v433 = vpack.c.bf16 0.0, %v430
  %434 = vst [vmem:[%s432] sm:$0xf] %v433
  %s435 = scalar_lea.vmem %s0, 128
  %v436 = vld [vmem:[%s435] sm:$0xf]
  %v437 = vunpack.c.l.bf16 %v436
  %v438 = vunpack.c.h.bf16 %v436
  %s439 = scalar_lea.vmem %s1, 128
  %v440 = vld [vmem:[%s439] sm:$0xf]
  %v441 = vunpack.c.l.bf16 %v440
  %v442 = vunpack.c.h.bf16 %v440
  %443 = xla_tuple %v437, %v441
  %444 = xla_tuple %443
  %v445 = vsub.f32 %v437, %v441
  %446 = xla_tuple %v445
  %s447 = scalar_lea.vmem %s2, 128
  %v448 = vpack.c.bf16 0.0, %v445
  %449 = vst [vmem:[%s447] sm:$0xf] %v448
  %s450 = scalar_lea.vmem %s0, 60
  %v451 = vld [vmem:[%s450] sm:$0xf]
  %v452 = vunpack.c.l.bf16 %v451
  %v453 = vunpack.c.h.bf16 %v451
  %s454 = scalar_lea.vmem %s1, 60
  %v455 = vld [vmem:[%s454] sm:$0xf]
  %v456 = vunpack.c.l.bf16 %v455
  %v457 = vunpack.c.h.bf16 %v455
  %458 = xla_tuple %v452, %v456
  %459 = xla_tuple %458
  %v460 = vsub.f32 %v452, %v456
  %461 = xla_tuple %v460
  %s462 = scalar_lea.vmem %s2, 60
  %v463 = vpack.c.bf16 0.0, %v460
  %464 = vst [vmem:[%s462] sm:$0xf] %v463
  %s465 = scalar_lea.vmem %s0, 132
  %v466 = vld [vmem:[%s465] sm:$0xf]
  %v467 = vunpack.c.l.bf16 %v466
  %v468 = vunpack.c.h.bf16 %v466
  %s469 = scalar_lea.vmem %s1, 132
  %v470 = vld [vmem:[%s469] sm:$0xf]
  %v471 = vunpack.c.l.bf16 %v470
  %v472 = vunpack.c.h.bf16 %v470
  %473 = xla_tuple %v467, %v471
  %474 = xla_tuple %473
  %v475 = vsub.f32 %v467, %v471
  %476 = xla_tuple %v475
  %s477 = scalar_lea.vmem %s2, 132
  %v478 = vpack.c.bf16 0.0, %v475
  %479 = vst [vmem:[%s477] sm:$0xf] %v478
  %s480 = scalar_lea.vmem %s0, 64
  %v481 = vld [vmem:[%s480] sm:$0xf]
  %v482 = vunpack.c.l.bf16 %v481
  %v483 = vunpack.c.h.bf16 %v481
  %s484 = scalar_lea.vmem %s1, 64
  %v485 = vld [vmem:[%s484] sm:$0xf]
  %v486 = vunpack.c.l.bf16 %v485
  %v487 = vunpack.c.h.bf16 %v485
  %488 = xla_tuple %v482, %v486
  %489 = xla_tuple %488
  %v490 = vsub.f32 %v482, %v486
  %491 = xla_tuple %v490
  %s492 = scalar_lea.vmem %s2, 64
  %v493 = vpack.c.bf16 0.0, %v490
  %494 = vst [vmem:[%s492] sm:$0xf] %v493
  %s495 = scalar_lea.vmem %s0, 136
  %v496 = vld [vmem:[%s495] sm:$0xf]
  %v497 = vunpack.c.l.bf16 %v496
  %v498 = vunpack.c.h.bf16 %v496
  %s499 = scalar_lea.vmem %s1, 136
  %v500 = vld [vmem:[%s499] sm:$0xf]
  %v501 = vunpack.c.l.bf16 %v500
  %v502 = vunpack.c.h.bf16 %v500
  %503 = xla_tuple %v497, %v501
  %504 = xla_tuple %503
  %v505 = vsub.f32 %v497, %v501
  %506 = xla_tuple %v505
  %s507 = scalar_lea.vmem %s2, 136
  %v508 = vpack.c.bf16 0.0, %v505
  %509 = vst [vmem:[%s507] sm:$0xf] %v508
  %s510 = scalar_lea.vmem %s0, 68
  %v511 = vld [vmem:[%s510] sm:$0xf]
  %v512 = vunpack.c.l.bf16 %v511
  %v513 = vunpack.c.h.bf16 %v511
  %s514 = scalar_lea.vmem %s1, 68
  %v515 = vld [vmem:[%s514] sm:$0xf]
  %v516 = vunpack.c.l.bf16 %v515
  %v517 = vunpack.c.h.bf16 %v515
  %518 = xla_tuple %v512, %v516
  %519 = xla_tuple %518
  %v520 = vsub.f32 %v512, %v516
  %521 = xla_tuple %v520
  %s522 = scalar_lea.vmem %s2, 68
  %v523 = vpack.c.bf16 0.0, %v520
  %524 = vst [vmem:[%s522] sm:$0xf] %v523
  %s525 = scalar_lea.vmem %s0, 140
  %v526 = vld [vmem:[%s525] sm:$0xf]
  %v527 = vunpack.c.l.bf16 %v526
  %v528 = vunpack.c.h.bf16 %v526
  %s529 = scalar_lea.vmem %s1, 140
  %v530 = vld [vmem:[%s529] sm:$0xf]
  %v531 = vunpack.c.l.bf16 %v530
  %v532 = vunpack.c.h.bf16 %v530
  %533 = xla_tuple %v527, %v531
  %534 = xla_tuple %533
  %v535 = vsub.f32 %v527, %v531
  %536 = xla_tuple %v535
  %s537 = scalar_lea.vmem %s2, 140
  %v538 = vpack.c.bf16 0.0, %v535
  %539 = vst [vmem:[%s537] sm:$0xf] %v538

// kernel: _lambda_.23
$region0: #{_lambda_.23}
  #allocation0 [shape = 'u32[]', space=smem, size = 0x4, offset = 0x4, fixed_abs, tag = 'smem constant byte address 0x4 - core index']
  #allocation1 [shape = 'u32[144,128]{1,0:T(1,128)}', space=vmem, size = 0x12000, scoped, tag = 'internal scratch']
  %s0 = inlined_call_operand.vmem [shape: bf16[2,144,256], index: 0, kind: input, shape index: {}]
  %s1 = inlined_call_operand.vmem [shape: bf16[256,128], index: 1, kind: input, shape index: {}]
  %s2 = inlined_call_operand.vmem [shape: bf16[2,16,128], index: 2, kind: output, shape index: {}]
  %s3 = sld [smem:[#allocation0]]
  $region41: #{_lambda_.23} parent=0
    _
  %s5 = ssub.s32 1, %s3
  %s6 = scalar_select 0, %s5, %s3
  loop: start=0, step=1, limit=4
  $region2: #{_lambda_.23} parent=0 // loop_pre_header
    _
  $region3: #{_lambda_.23} parent=0 // loop_header
    %s8 = sphi 0, %s12
    %p9 = scmp.ge.s32.totalorder %s8, 4
    %s18 = sphi 0, %s20
    %s21 = sphi 0, %s18
    %s22 = sphi 0, %s21
    %s38 = sphi 0, %s22
    %s42 = sphi 0, %s42
    %s44 = sphi 0, %s42
    %s45 = sphi 0, %s44
    %s59 = sphi 0, %s45
    %s65 = sphi 0, %s67
    %s68 = sphi 0, %s65
    %s69 = sphi 0, %s68
    %s85 = sphi 0, %s69
  $region4: #{_lambda_.23} parent=0 // loop_header_branch
    %11 = sbr.rel (%p9) target = $region8
  $region5: #{_lambda_.23} parent=0 // loop_body
    %s13 = ssub.s32 %s8, 1
    %s14 = ssub.s32 %s8, 2
    %s15 = sadd.s32 %s8, 1
    %s16 = ssub.s32 %s8, %s15
    %p17 = scmp.eq.s32.totalorder %s16, 0
    %s19 = sadd.s32 %s18, 1
    %s20 = scalar_select %p17, %s18, %s19
    %p23 = pneg %p17
    %p24 = scmp.eq.s32.totalorder %s8, 1
    %p25 = por %p23, %p24
    %p26 = scmp.ne.s32.totalorder %s18, %s21
    %p27 = scmp.eq.s32.totalorder %s8, 0
    %p28 = por %p26, %p27
    %p29 = scmp.ne.s32.totalorder %s18, %s21
    %p30 = scmp.eq.s32.totalorder %s13, 1
    %p31 = por %p29, %p30
    %p32 = scmp.ne.s32.totalorder %s21, %s22
    %p33 = scmp.eq.s32.totalorder %s13, 0
    %p34 = por %p32, %p33
    %p35 = scmp.ne.s32.totalorder %s21, %s22
    %p36 = scmp.eq.s32.totalorder %s14, 1
    %p37 = por %p35, %p36
    %p39 = scmp.ne.s32.totalorder %s22, %s38
    %p40 = scmp.eq.s32.totalorder %s14, 0
    %p41 = por %p39, %p40
    %s43 = sadd.s32 %s42, 1
    %p46 = scmp.eq.s32.totalorder %s8, 1
    %p47 = scmp.ne.s32.totalorder %s42, %s44
    %p48 = scmp.eq.s32.totalorder %s8, 0
    %p49 = por %p47, %p48
    %p50 = scmp.ne.s32.totalorder %s42, %s44
    %p51 = scmp.eq.s32.totalorder %s13, 1
    %p52 = por %p50, %p51
    %p53 = scmp.ne.s32.totalorder %s44, %s45
    %p54 = scmp.eq.s32.totalorder %s13, 0
    %p55 = por %p53, %p54
    %p56 = scmp.ne.s32.totalorder %s44, %s45
    %p57 = scmp.eq.s32.totalorder %s14, 1
    %p58 = por %p56, %p57
    %p60 = scmp.ne.s32.totalorder %s45, %s59
    %p61 = scmp.eq.s32.totalorder %s14, 0
    %p62 = por %p60, %p61
    %s63 = ssub.s32 %s8, %s15
    %p64 = scmp.eq.s32.totalorder %s63, 0
    %s66 = sadd.s32 %s65, 1
    %s67 = scalar_select %p64, %s65, %s66
    %p70 = pneg %p64
    %p71 = scmp.eq.s32.totalorder %s8, 1
    %p72 = por %p70, %p71
    %p73 = scmp.ne.s32.totalorder %s65, %s68
    %p74 = scmp.eq.s32.totalorder %s8, 0
    %p75 = por %p73, %p74
    %p76 = scmp.ne.s32.totalorder %s65, %s68
    %p77 = scmp.eq.s32.totalorder %s13, 1
    %p78 = por %p76, %p77
    %p79 = scmp.ne.s32.totalorder %s68, %s69
    %p80 = scmp.eq.s32.totalorder %s13, 0
    %p81 = por %p79, %p80
    %p82 = scmp.ne.s32.totalorder %s68, %s69
    %p83 = scmp.eq.s32.totalorder %s14, 1
    %p84 = por %p82, %p83
    %p86 = scmp.ne.s32.totalorder %s69, %s85
    %p87 = scmp.eq.s32.totalorder %s14, 0
    %p88 = por %p86, %p87
    %p89 = scmp.le.s32.totalorder 1, %s8
    %p90 = scmp.lt.s32.totalorder %s8, 3
    %p91 = pnand %p89, %p90
    %p92 = pneg %p91
    // Predicated region
    $region9: #{_lambda_.23} parent=5 // pred_check
      _
    $region10: #{_lambda_.23} parent=5 // pred_check_branch
      %94 = sbr.rel (%p91) target = $region12
    $region11: #{_lambda_.23} parent=5 // pred_region
      %s95 = ssub.s32 %s8, 1
      // Predicated region
      $region13: #{_lambda_.23} parent=11 // pred_check
        %p96 = pneg %p55
      $region14: #{_lambda_.23} parent=11 // pred_check_branch
        %98 = sbr.rel (%p96) target = $region16
      $region15: #{_lambda_.23} parent=11 // pred_region
        _
      $region16: #{_lambda_.23} parent=11 // pred_fallthru
        _
    $region12: #{_lambda_.23} parent=5 // pred_fallthru
      _
    %p99 = scmp.lt.s32.totalorder %s8, 2
    // Predicated region
    $region17: #{_lambda_.23} parent=5 // pred_check
      %p100 = pneg %p99
    $region18: #{_lambda_.23} parent=5 // pred_check_branch
      %102 = sbr.rel (%p100) target = $region20
    $region19: #{_lambda_.23} parent=5 // pred_region
      // Predicated region
      $region21: #{_lambda_.23} parent=19 // pred_check
        %p103 = pneg %p28
      $region22: #{_lambda_.23} parent=19 // pred_check_branch
        %105 = sbr.rel (%p103) target = $region24
      $region23: #{_lambda_.23} parent=19 // pred_region
        %p106 = scmp.lt.s32.totalorder %s8, 1
        %s107 = scalar_select %p106, %s8, 1
        %s108 = smul.addr %s107, 36
        %s109 = smul.addr %s108, 4
        %s110 = scalar_lea.vmem %s0, %s109
      $region24: #{_lambda_.23} parent=19 // pred_fallthru
        _
    $region20: #{_lambda_.23} parent=5 // pred_fallthru
      _
    %p111 = scmp.le.s32.totalorder 1, %s8
    %p112 = scmp.lt.s32.totalorder %s8, 3
    %p113 = pnand %p111, %p112
    %p114 = pneg %p113
    // Predicated region
    $region25: #{_lambda_.23} parent=5 // pred_check
      _
    $region26: #{_lambda_.23} parent=5 // pred_check_branch
      %116 = sbr.rel (%p113) target = $region28
    $region27: #{_lambda_.23} parent=5 // pred_region
      %s117 = ssub.s32 %s8, 1
      %p118 = scmp.lt.s32.totalorder %s13, 1
      %s119 = scalar_select %p118, %s13, 1
      %s120 = smul.addr %s119, 36
      %s121 = smul.addr %s120, 4
      %s122 = scalar_lea.vmem %s0, %s121
      %p123 = pneg %p34
      %p124 = pneg %p31
      %p125 = pneg %p55
      %p126 = pneg %p52
      %p127 = pneg %p81
      %p128 = pneg %p78
      %p129 = scmp.lt.s32.totalorder %s13, 1
      %s130 = scalar_select %p129, %s13, 1
      %s131 = smul.addr %s130, 2
      %s132 = smul.addr %s131, 4
      %s133 = scalar_lea.vmem %s2, %s132
      %p134 = scmp.lt.s32.totalorder %s13, 1
      %s135 = scalar_select %p134, %s13, 1
      %s136 = smul.addr %s135, 36
      %s137 = smul.addr %s136, 4
      %s138 = scalar_lea.vmem %s0, %s137
      %p139 = scmp.lt.s32.totalorder %s13, 1
      %s140 = scalar_select %p139, %s13, 1
      %s141 = smul.addr %s140, 2
      %s142 = smul.addr %s141, 4
      %s143 = scalar_lea.vmem %s2, %s142
      %v145 = vld [vmem:[%s138] sm:$0xff]
      %v146 = vld [vmem:[%s138 + $0x8] sm:$0xff]
      %v147 = vld [vmem:[%s138 + $0x10] sm:$0xff]
      %v148 = vld [vmem:[%s138 + $0x18] sm:$0xff]
      %v149 = vld [vmem:[%s138 + $0x20] sm:$0xff]
      %v150 = vld [vmem:[%s138 + $0x28] sm:$0xff]
      %v151 = vld [vmem:[%s138 + $0x30] sm:$0xff]
      %v152 = vld [vmem:[%s138 + $0x38] sm:$0xff]
      %v153 = vld [vmem:[%s138 + $0x40] sm:$0xff]
      %v154 = vld [vmem:[%s138 + $0x48] sm:$0xff]
      %v155 = vld [vmem:[%s138 + $0x50] sm:$0xff]
      %v156 = vld [vmem:[%s138 + $0x58] sm:$0xff]
      %v157 = vld [vmem:[%s138 + $0x60] sm:$0xff]
      %v158 = vld [vmem:[%s138 + $0x68] sm:$0xff]
      %v159 = vld [vmem:[%s138 + $0x70] sm:$0xff]
      %v160 = vld [vmem:[%s138 + $0x78] sm:$0xff]
      %v161 = vld [vmem:[%s138 + $0x80] sm:$0xff]
      %v162 = vld [vmem:[%s138 + $0x88] sm:$0xff]
      %v163 = vld [vmem:[%s1] sm:$0xf]
      %v164 = vld [vmem:[%s1 + $0x4] sm:$0xf]
      %v165 = vld [vmem:[%s1 + $0x8] sm:$0xf]
      %v166 = vld [vmem:[%s1 + $0xc] sm:$0xf]
      %v167 = vld [vmem:[%s1 + $0x10] sm:$0xf]
      %v168 = vld [vmem:[%s1 + $0x14] sm:$0xf]
      %v169 = vld [vmem:[%s1 + $0x18] sm:$0xf]
      %v170 = vld [vmem:[%s1 + $0x1c] sm:$0xf]
      %v171 = vld [vmem:[%s1 + $0x20] sm:$0xf]
      %v172 = vld [vmem:[%s1 + $0x24] sm:$0xf]
      %v173 = vld [vmem:[%s1 + $0x28] sm:$0xf]
      %v174 = vld [vmem:[%s1 + $0x2c] sm:$0xf]
      %v175 = vld [vmem:[%s1 + $0x30] sm:$0xf]
      %v176 = vld [vmem:[%s1 + $0x34] sm:$0xf]
      %v177 = vld [vmem:[%s1 + $0x38] sm:$0xf]
      %v178 = vld [vmem:[%s1 + $0x3c] sm:$0xf]
      %v179 = vld [vmem:[%s1 + $0x40] sm:$0xf]
      %v180 = vld [vmem:[%s1 + $0x44] sm:$0xf]
      %v181 = vld [vmem:[%s1 + $0x48] sm:$0xf]
      %v182 = vld [vmem:[%s1 + $0x4c] sm:$0xf]
      %v183 = vld [vmem:[%s1 + $0x50] sm:$0xf]
      %v184 = vld [vmem:[%s1 + $0x54] sm:$0xf]
      %v185 = vld [vmem:[%s1 + $0x58] sm:$0xf]
      %v186 = vld [vmem:[%s1 + $0x5c] sm:$0xf]
      %v187 = vld [vmem:[%s1 + $0x60] sm:$0xf]
      %v188 = vld [vmem:[%s1 + $0x64] sm:$0xf]
      %v189 = vld [vmem:[%s1 + $0x68] sm:$0xf]
      %v190 = vld [vmem:[%s1 + $0x6c] sm:$0xf]
      %v191 = vld [vmem:[%s1 + $0x70] sm:$0xf]
      %v192 = vld [vmem:[%s1 + $0x74] sm:$0xf]
      %v193 = vld [vmem:[%s1 + $0x78] sm:$0xf]
      %v194 = vld [vmem:[%s1 + $0x7c] sm:$0xf]
      %v213 = vunpack.c.l.b16 %v145
      %v214 = vunpack.c.h.b16 %v145
      %v215 = vunpack.c.l.b16 %v146
      %v216 = vunpack.c.h.b16 %v146
      %v217 = vunpack.c.l.b16 %v147
      %v218 = vunpack.c.h.b16 %v147
      %v219 = vunpack.c.l.b16 %v148
      %v220 = vunpack.c.h.b16 %v148
      %v221 = vunpack.c.l.b16 %v149
      %v222 = vunpack.c.h.b16 %v149
      %v223 = vunpack.c.l.b16 %v150
      %v224 = vunpack.c.h.b16 %v150
      %v225 = vunpack.c.l.b16 %v151
      %v226 = vunpack.c.h.b16 %v151
      %v227 = vunpack.c.l.b16 %v152
      %v228 = vunpack.c.h.b16 %v152
      %v229 = vunpack.c.l.b16 %v153
      %v230 = vunpack.c.h.b16 %v153
      %v231 = vunpack.c.l.b16 %v154
      %v232 = vunpack.c.h.b16 %v154
      %v233 = vunpack.c.l.b16 %v155
      %v234 = vunpack.c.h.b16 %v155
      %v235 = vunpack.c.l.b16 %v156
      %v236 = vunpack.c.h.b16 %v156
      %v237 = vunpack.c.l.b16 %v157
      %v238 = vunpack.c.h.b16 %v157
      %v239 = vunpack.c.l.b16 %v158
      %v240 = vunpack.c.h.b16 %v158
      %v241 = vunpack.c.l.b16 %v159
      %v242 = vunpack.c.h.b16 %v159
      %v243 = vunpack.c.l.b16 %v160
      %v244 = vunpack.c.h.b16 %v160
      %v245 = vunpack.c.l.b16 %v161
      %v246 = vunpack.c.h.b16 %v161
      %v247 = vunpack.c.l.b16 %v162
      %v248 = vunpack.c.h.b16 %v162
      %v249 = vpack.c.b16 %v215, %v213
      %v250 = vpack.c.b16 %v216, %v214
      %v251 = vpack.c.b16 %v219, %v217
      %v252 = vpack.c.b16 %v220, %v218
      %v253 = vpack.c.b16 %v223, %v221
      %v254 = vpack.c.b16 %v224, %v222
      %v255 = vpack.c.b16 %v227, %v225
      %v256 = vpack.c.b16 %v228, %v226
      %v257 = vpack.c.b16 %v231, %v229
      %v258 = vpack.c.b16 %v232, %v230
      %v259 = vpack.c.b16 %v235, %v233
      %v260 = vpack.c.b16 %v236, %v234
      %v261 = vpack.c.b16 %v239, %v237
      %v262 = vpack.c.b16 %v240, %v238
      %v263 = vpack.c.b16 %v243, %v241
      %v264 = vpack.c.b16 %v244, %v242
      %v265 = vpack.c.b16 %v247, %v245
      %v266 = vpack.c.b16 %v248, %v246
      %v317 = vunpack.c.l.b16 %v163
      %v318 = vunpack.c.l.b16 %v164
      %v319 = vunpack.c.l.b16 %v165
      %v320 = vunpack.c.l.b16 %v166
      %v321 = vunpack.c.l.b16 %v167
      %v322 = vunpack.c.l.b16 %v168
      %v323 = vunpack.c.l.b16 %v169
      %v324 = vunpack.c.l.b16 %v170
      %v325 = vunpack.c.l.b16 %v171
      %v326 = vunpack.c.l.b16 %v172
      %v327 = vunpack.c.l.b16 %v173
      %v328 = vunpack.c.l.b16 %v174
      %v329 = vunpack.c.l.b16 %v175
      %v330 = vunpack.c.l.b16 %v176
      %v331 = vunpack.c.l.b16 %v177
      %v332 = vunpack.c.l.b16 %v178
      %v333 = vunpack.c.l.b16 %v179
      %v334 = vunpack.c.l.b16 %v180
      %v335 = vunpack.c.l.b16 %v181
      %v336 = vunpack.c.l.b16 %v182
      %v337 = vunpack.c.l.b16 %v183
      %v338 = vunpack.c.l.b16 %v184
      %v339 = vunpack.c.l.b16 %v185
      %v340 = vunpack.c.l.b16 %v186
      %v341 = vunpack.c.l.b16 %v187
      %v342 = vunpack.c.l.b16 %v188
      %v343 = vunpack.c.l.b16 %v189
      %v344 = vunpack.c.l.b16 %v190
      %v345 = vunpack.c.l.b16 %v191
      %v346 = vunpack.c.l.b16 %v192
      %v347 = vunpack.c.l.b16 %v193
      %v348 = vunpack.c.l.b16 %v194
      %v349 = vpack.c.b16 %v318, %v317
      %v350 = vpack.c.b16 %v320, %v319
      %v351 = vpack.c.b16 %v322, %v321
      %v352 = vpack.c.b16 %v324, %v323
      %v353 = vpack.c.b16 %v326, %v325
      %v354 = vpack.c.b16 %v328, %v327
      %v355 = vpack.c.b16 %v330, %v329
      %v356 = vpack.c.b16 %v332, %v331
      %v357 = vpack.c.b16 %v334, %v333
      %v358 = vpack.c.b16 %v336, %v335
      %v359 = vpack.c.b16 %v338, %v337
      %v360 = vpack.c.b16 %v340, %v339
      %v361 = vpack.c.b16 %v342, %v341
      %v362 = vpack.c.b16 %v344, %v343
      %v363 = vpack.c.b16 %v346, %v345
      %v364 = vpack.c.b16 %v348, %v347
      %381 = vmatprep.subr.bf16.mxu0 0
      %382 = vmatpush1.bf16.msra.mxu0 %v349
      %383 = vmatprep.subr.bf16.mxu0 0
      %384 = vmatpush1.bf16.msra.mxu0 %v350
      %385 = vmatprep.subr.bf16.mxu0 0
      %386 = vmatpush1.bf16.msra.mxu0 %v351
      %387 = vmatprep.subr.bf16.mxu0 0
      %388 = vmatpush1.bf16.msra.mxu0 %v352
      %389 = vmatprep.subr.bf16.mxu0 0
      %390 = vmatpush1.bf16.msra.mxu0 %v353
      %391 = vmatprep.subr.bf16.mxu0 0
      %392 = vmatpush1.bf16.msra.mxu0 %v354
      %393 = vmatprep.subr.bf16.mxu0 0
      %394 = vmatpush1.bf16.msra.mxu0 %v355
      %395 = vmatprep.subr.bf16.mxu0 0
      %396 = vmatpush1.bf16.msra.mxu0 %v356
      %397 = vmatprep.subr.bf16.mxu0 0
      %398 = vmatpush1.bf16.msra.mxu0 %v357
      %399 = vmatprep.subr.bf16.mxu0 0
      %400 = vmatpush1.bf16.msra.mxu0 %v358
      %401 = vmatprep.subr.bf16.mxu0 0
      %402 = vmatpush1.bf16.msra.mxu0 %v359
      %403 = vmatprep.subr.bf16.mxu0 0
      %404 = vmatpush1.bf16.msra.mxu0 %v360
      %405 = vmatprep.subr.bf16.mxu0 0
      %406 = vmatpush1.bf16.msra.mxu0 %v361
      %407 = vmatprep.subr.bf16.mxu0 0
      %408 = vmatpush1.bf16.msra.mxu0 %v362
      %409 = vmatprep.subr.bf16.mxu0 0
      %410 = vmatpush1.bf16.msra.mxu0 %v363
      %411 = vmatprep.subr.bf16.mxu0 0
      %412 = vmatpush1.bf16.msra.mxu0 %v364
      %413 = vmatprep.mubr.bf16.mxu0 %v250
      %414 = vmatmul.mubr.bf16.gmra.mrb[0].mxu0 %v249
      %v415 = vpop.f32.mrb[0].mxu0
      %v416 = vadd.f32 0.0, %v415
      %v417 = vpop.f32.mrb[0].mxu0
      %v418 = vpop.f32.mrb[0].mxu0
      %v419 = vadd.f32 0.0, %v418
      %v420 = vpop.f32.mrb[0].mxu0
      %421 = vmatprep.mubr.bf16.mxu0 %v252
      %422 = vmatmul.mubr.bf16.gmra.mrb[0].mxu0 %v251
      %v423 = vpop.f32.mrb[0].mxu0
      %v424 = vadd.f32 0.0, %v423
      %v425 = vpop.f32.mrb[0].mxu0
      %v426 = vpop.f32.mrb[0].mxu0
      %v427 = vadd.f32 0.0, %v426
      %v428 = vpop.f32.mrb[0].mxu0
      %429 = vmatprep.mubr.bf16.mxu0 %v254
      %430 = vmatmul.mubr.bf16.gmra.mrb[0].mxu0 %v253
      %v431 = vpop.f32.mrb[0].mxu0
      %v432 = vadd.f32 0.0, %v431
      %v433 = vpop.f32.mrb[0].mxu0
      %v434 = vpop.f32.mrb[0].mxu0
      %v435 = vadd.f32 0.0, %v434
      %v436 = vpop.f32.mrb[0].mxu0
      %437 = vmatprep.mubr.bf16.mxu0 %v256
      %438 = vmatmul.mubr.bf16.gmra.mrb[0].mxu0 %v255
      %v439 = vpop.f32.mrb[0].mxu0
      %v440 = vadd.f32 0.0, %v439
      %v441 = vpop.f32.mrb[0].mxu0
      %v442 = vpop.f32.mrb[0].mxu0
      %v443 = vadd.f32 0.0, %v442
      %v444 = vpop.f32.mrb[0].mxu0
      %445 = vmatprep.mubr.bf16.mxu0 %v258
      %446 = vmatmul.mubr.bf16.gmra.mrb[0].mxu0 %v257
      %v447 = vpop.f32.mrb[0].mxu0
      %v448 = vadd.f32 0.0, %v447
      %v449 = vpop.f32.mrb[0].mxu0
      %v450 = vpop.f32.mrb[0].mxu0
      %v451 = vadd.f32 0.0, %v450
      %v452 = vpop.f32.mrb[0].mxu0
      %453 = vmatprep.mubr.bf16.mxu0 %v260
      %454 = vmatmul.mubr.bf16.gmra.mrb[0].mxu0 %v259
      %v455 = vpop.f32.mrb[0].mxu0
      %v456 = vadd.f32 0.0, %v455
      %v457 = vpop.f32.mrb[0].mxu0
      %v458 = vpop.f32.mrb[0].mxu0
      %v459 = vadd.f32 0.0, %v458
      %v460 = vpop.f32.mrb[0].mxu0
      %461 = vmatprep.mubr.bf16.mxu0 %v262
      %462 = vmatmul.mubr.bf16.gmra.mrb[0].mxu0 %v261
      %v463 = vpop.f32.mrb[0].mxu0
      %v464 = vadd.f32 0.0, %v463
      %v465 = vpop.f32.mrb[0].mxu0
      %v466 = vpop.f32.mrb[0].mxu0
      %v467 = vadd.f32 0.0, %v466
      %v468 = vpop.f32.mrb[0].mxu0
      %469 = vmatprep.mubr.bf16.mxu0 %v264
      %470 = vmatmul.mubr.bf16.gmra.mrb[0].mxu0 %v263
      %v471 = vpop.f32.mrb[0].mxu0
      %v472 = vadd.f32 0.0, %v471
      %v473 = vpop.f32.mrb[0].mxu0
      %v474 = vpop.f32.mrb[0].mxu0
      %v475 = vadd.f32 0.0, %v474
      %v476 = vpop.f32.mrb[0].mxu0
      %477 = vmatprep.mubr.bf16.mxu0 %v266
      %478 = vmatmul.mubr.bf16.gmra.mrb[0].mxu0 %v265
      %v479 = vpop.f32.mrb[0].mxu0
      %v480 = vadd.f32 0.0, %v479
      %v481 = vpop.f32.mrb[0].mxu0
      %v482 = vpop.f32.mrb[0].mxu0
      %v483 = vadd.f32 0.0, %v482
      %v484 = vpop.f32.mrb[0].mxu0
      %485 = vdwg.mxu0
      %v486 = vadd.f32 %v416, %v419
      %v487 = vadd.f32 %v486, %v424
      %v488 = vadd.f32 %v487, %v427
      %v489 = vadd.f32 %v488, %v432
      %v490 = vadd.f32 %v489, %v435
      %v491 = vadd.f32 %v490, %v440
      %v492 = vadd.f32 %v491, %v443
      %v493 = vadd.f32 %v492, %v448
      %v494 = vadd.f32 %v493, %v451
      %v495 = vadd.f32 %v494, %v456
      %v496 = vadd.f32 %v495, %v459
      %v497 = vadd.f32 %v496, %v464
      %v498 = vadd.f32 %v497, %v467
      %v499 = vadd.f32 %v498, %v472
      %v500 = vadd.f32 %v499, %v475
      %v501 = vadd.f32 %v500, %v480
      %v502 = vadd.f32 %v501, %v483
      %v503 = vrot.slane %v502, 4
      %v504 = vadd.f32 %v502, %v503
      %v505 = vrot.slane %v504, 2
      %v506 = vadd.f32 %v504, %v505
      %v507 = vrot.slane %v506, 1
      %v508 = vadd.f32 %v506, %v507
      %v509 = vrcp.pop 144.0
      %v510 = vmul.f32 %v508, %v509
      %v511 = vsub.f32 %v416, %v510
      %v512 = vsub.f32 %v419, %v510
      %v513 = vsub.f32 %v424, %v510
      %v514 = vsub.f32 %v427, %v510
      %v515 = vsub.f32 %v432, %v510
      %v516 = vsub.f32 %v435, %v510
      %v517 = vsub.f32 %v440, %v510
      %v518 = vsub.f32 %v443, %v510
      %v519 = vsub.f32 %v448, %v510
      %v520 = vsub.f32 %v451, %v510
      %v521 = vsub.f32 %v456, %v510
      %v522 = vsub.f32 %v459, %v510
      %v523 = vsub.f32 %v464, %v510
      %v524 = vsub.f32 %v467, %v510
      %v525 = vsub.f32 %v472, %v510
      %v526 = vsub.f32 %v475, %v510
      %v527 = vsub.f32 %v480, %v510
      %v528 = vsub.f32 %v483, %v510
      %v529 = vmul.f32 %v511, %v511
      %v530 = vmul.f32 %v512, %v512
      %v531 = vmul.f32 %v513, %v513
      %v532 = vmul.f32 %v514, %v514
      %v533 = vmul.f32 %v515, %v515
      %v534 = vmul.f32 %v516, %v516
      %v535 = vmul.f32 %v517, %v517
      %v536 = vmul.f32 %v518, %v518
      %v537 = vmul.f32 %v519, %v519
      %v538 = vmul.f32 %v520, %v520
      %v539 = vmul.f32 %v521, %v521
      %v540 = vmul.f32 %v522, %v522
      %v541 = vmul.f32 %v523, %v523
      %v542 = vmul.f32 %v524, %v524
      %v543 = vmul.f32 %v525, %v525
      %v544 = vmul.f32 %v526, %v526
      %v545 = vmul.f32 %v527, %v527
      %v546 = vmul.f32 %v528, %v528
      %v547 = vadd.f32 %v529, %v530
      %v548 = vadd.f32 %v547, %v531
      %v549 = vadd.f32 %v548, %v532
      %v550 = vadd.f32 %v549, %v533
      %v551 = vadd.f32 %v550, %v534
      %v552 = vadd.f32 %v551, %v535
      %v553 = vadd.f32 %v552, %v536
      %v554 = vadd.f32 %v553, %v537
      %v555 = vadd.f32 %v554, %v538
      %v556 = vadd.f32 %v555, %v539
      %v557 = vadd.f32 %v556, %v540
      %v558 = vadd.f32 %v557, %v541
      %v559 = vadd.f32 %v558, %v542
      %v560 = vadd.f32 %v559, %v543
      %v561 = vadd.f32 %v560, %v544
      %v562 = vadd.f32 %v561, %v545
      %v563 = vadd.f32 %v562, %v546
      %v564 = vrot.slane %v563, 4
      %v565 = vadd.f32 %v563, %v564
      %v566 = vrot.slane %v565, 2
      %v567 = vadd.f32 %v565, %v566
      %v568 = vrot.slane %v567, 1
      %v569 = vadd.f32 %v567, %v568
      %v570 = vmul.f32 %v569, %v509
      %v571 = vadd.f32 %v570, 1e-05
      %v572 = vrsqrt.pop %v571
      %v573 = vmul.f32 %v511, %v572
      %v574 = vmul.f32 %v512, %v572
      %v575 = vmul.f32 %v513, %v572
      %v576 = vmul.f32 %v514, %v572
      %v577 = vmul.f32 %v515, %v572
      %v578 = vmul.f32 %v516, %v572
      %v579 = vmul.f32 %v517, %v572
      %v580 = vmul.f32 %v518, %v572
      %v581 = vmul.f32 %v519, %v572
      %v582 = vmul.f32 %v520, %v572
      %v583 = vmul.f32 %v521, %v572
      %v584 = vmul.f32 %v522, %v572
      %v585 = vmul.f32 %v523, %v572
      %v586 = vmul.f32 %v524, %v572
      %v587 = vmul.f32 %v525, %v572
      %v588 = vmul.f32 %v526, %v572
      %v589 = vmul.f32 %v527, %v572
      %v590 = vmul.f32 %v528, %v572
      %vm591 = vcmp.ge.f32.partialorder %v573, 0.0
      %vm592 = vcmp.ge.f32.partialorder %v574, 0.0
      %vm593 = vcmp.ge.f32.partialorder %v575, 0.0
      %vm594 = vcmp.ge.f32.partialorder %v576, 0.0
      %vm595 = vcmp.ge.f32.partialorder %v577, 0.0
      %vm596 = vcmp.ge.f32.partialorder %v578, 0.0
      %vm597 = vcmp.ge.f32.partialorder %v579, 0.0
      %vm598 = vcmp.ge.f32.partialorder %v580, 0.0
      %vm599 = vcmp.ge.f32.partialorder %v581, 0.0
      %vm600 = vcmp.ge.f32.partialorder %v582, 0.0
      %vm601 = vcmp.ge.f32.partialorder %v583, 0.0
      %vm602 = vcmp.ge.f32.partialorder %v584, 0.0
      %vm603 = vcmp.ge.f32.partialorder %v585, 0.0
      %vm604 = vcmp.ge.f32.partialorder %v586, 0.0
      %vm605 = vcmp.ge.f32.partialorder %v587, 0.0
      %vm606 = vcmp.ge.f32.partialorder %v588, 0.0
      %vm607 = vcmp.ge.f32.partialorder %v589, 0.0
      %vm608 = vcmp.ge.f32.partialorder %v590, 0.0
      %v609 = vmul.f32 %v573, 0.2
      %v610 = vmul.f32 %v574, 0.2
      %v611 = vmul.f32 %v575, 0.2
      %v612 = vmul.f32 %v576, 0.2
      %v613 = vmul.f32 %v577, 0.2
      %v614 = vmul.f32 %v578, 0.2
      %v615 = vmul.f32 %v579, 0.2
      %v616 = vmul.f32 %v580, 0.2
      %v617 = vmul.f32 %v581, 0.2
      %v618 = vmul.f32 %v582, 0.2
      %v619 = vmul.f32 %v583, 0.2
      %v620 = vmul.f32 %v584, 0.2
      %v621 = vmul.f32 %v585, 0.2
      %v622 = vmul.f32 %v586, 0.2
      %v623 = vmul.f32 %v587, 0.2
      %v624 = vmul.f32 %v588, 0.2
      %v625 = vmul.f32 %v589, 0.2
      %v626 = vmul.f32 %v590, 0.2
      %v627 = vsel %vm591, %v573, %v609
      %v628 = vsel %vm592, %v574, %v610
      %v629 = vsel %vm593, %v575, %v611
      %v630 = vsel %vm594, %v576, %v612
      %v631 = vsel %vm595, %v577, %v613
      %v632 = vsel %vm596, %v578, %v614
      %v633 = vsel %vm597, %v579, %v615
      %v634 = vsel %vm598, %v580, %v616
      %v635 = vsel %vm599, %v581, %v617
      %v636 = vsel %vm600, %v582, %v618
      %v637 = vsel %vm601, %v583, %v619
      %v638 = vsel %vm602, %v584, %v620
      %v639 = vsel %vm603, %v585, %v621
      %v640 = vsel %vm604, %v586, %v622
      %v641 = vsel %vm605, %v587, %v623
      %v642 = vsel %vm606, %v588, %v624
      %v643 = vsel %vm607, %v589, %v625
      %v644 = vsel %vm608, %v590, %v626
      %v645 = vmax.f32 %v627, %v629
      %v646 = vmax.f32 %v628, %v630
      %v647 = vmax.f32 %v645, %v631
      %v648 = vmax.f32 %v646, %v632
      %v649 = vmax.f32 %v647, %v633
      %v650 = vmax.f32 %v648, %v634
      %v651 = vmax.f32 %v649, %v635
      %v652 = vmax.f32 %v650, %v636
      %v653 = vmax.f32 %v651, %v637
      %v654 = vmax.f32 %v652, %v638
      %v655 = vmax.f32 %v653, %v639
      %v656 = vmax.f32 %v654, %v640
      %v657 = vmax.f32 %v655, %v641
      %v658 = vmax.f32 %v656, %v642
      %v659 = vmax.f32 %v657, %v643
      %v660 = vmax.f32 %v658, %v644
      %v661 = vpack.c.bf16 %v660, %v659
      %v663 = vunpack.c.l.b16 %v661
      %v664 = vunpack.c.h.b16 %v661
      %v665 = vpack.c.b16 %v663, %v663
      %v666 = vpack.c.b16 %v664, %v664
      %669 = vst [vmem:[%s143] sm:$0xf] %v665
      %670 = vst [vmem:[%s143 + $0x4] sm:$0xf] %v666
      %p671 = scmp.lt.s32.totalorder %s13, 1
      %s672 = scalar_select %p671, %s13, 1
      %s673 = smul.addr %s672, 2
      %s674 = smul.addr %s673, 4
      %s675 = scalar_lea.vmem %s2, %s674
      // Predicated region
      $region29: #{_lambda_.23} parent=27 // pred_check
        %p676 = pneg %p78
      $region30: #{_lambda_.23} parent=27 // pred_check_branch
        %678 = sbr.rel (%p676) target = $region32
      $region31: #{_lambda_.23} parent=27 // pred_region
        _
      $region32: #{_lambda_.23} parent=27 // pred_fallthru
        _
    $region28: #{_lambda_.23} parent=5 // pred_fallthru
      _
    %p679 = scmp.le.s32.totalorder 2, %s8
    // Predicated region
    $region33: #{_lambda_.23} parent=5 // pred_check
      %p680 = pneg %p679
    $region34: #{_lambda_.23} parent=5 // pred_check_branch
      %682 = sbr.rel (%p680) target = $region36
    $region35: #{_lambda_.23} parent=5 // pred_region
      %s683 = ssub.s32 %s8, 2
      // Predicated region
      $region37: #{_lambda_.23} parent=35 // pred_check
        %p684 = pneg %p84
      $region38: #{_lambda_.23} parent=35 // pred_check_branch
        %686 = sbr.rel (%p684) target = $region40
      $region39: #{_lambda_.23} parent=35 // pred_region
        %p687 = scmp.lt.s32.totalorder %s14, 1
        %s688 = scalar_select %p687, %s14, 1
        %s689 = smul.addr %s688, 2
        %s690 = smul.addr %s689, 4
        %s691 = scalar_lea.vmem %s2, %s690
      $region40: #{_lambda_.23} parent=35 // pred_fallthru
        _
    $region36: #{_lambda_.23} parent=5 // pred_fallthru
      _
  $region6: #{_lambda_.23} parent=0 // loop_footer
    %s12 = sadd.s32 1, %s8
  $region7: #{_lambda_.23} parent=0 // loop_footer_branch
    %7 = sbr.rel target = $region3
  $region8: #{_lambda_.23} parent=0 // loop_exit
    _

// kernel: _lambda_.24
$region0: #{_lambda_.24}
  #allocation0 [shape = 'u32[]', space=smem, size = 0x4, offset = 0x4, fixed_abs, tag = 'smem constant byte address 0x4 - core index']
  #allocation1 [shape = 'u32[144,128]{1,0:T(1,128)}', space=vmem, size = 0x12000, scoped, tag = 'internal scratch']
  %s0 = inlined_call_operand.vmem [shape: bf16[2,144,256], index: 0, kind: input, shape index: {}]
  %s1 = inlined_call_operand.vmem [shape: bf16[256,256], index: 1, kind: input, shape index: {}]
  %s2 = inlined_call_operand.vmem [shape: bf16[2,16,256], index: 2, kind: output, shape index: {}]
  %s3 = sld [smem:[#allocation0]]
  $region41: #{_lambda_.24} parent=0
    _
  %s5 = ssub.s32 1, %s3
  %s6 = scalar_select 0, %s5, %s3
  loop: start=0, step=1, limit=4
  $region2: #{_lambda_.24} parent=0 // loop_pre_header
    _
  $region3: #{_lambda_.24} parent=0 // loop_header
    %s8 = sphi 0, %s12
    %p9 = scmp.ge.s32.totalorder %s8, 4
    %s18 = sphi 0, %s20
    %s21 = sphi 0, %s18
    %s22 = sphi 0, %s21
    %s38 = sphi 0, %s22
    %s42 = sphi 0, %s42
    %s44 = sphi 0, %s42
    %s45 = sphi 0, %s44
    %s59 = sphi 0, %s45
    %s65 = sphi 0, %s67
    %s68 = sphi 0, %s65
    %s69 = sphi 0, %s68
    %s85 = sphi 0, %s69
  $region4: #{_lambda_.24} parent=0 // loop_header_branch
    %11 = sbr.rel (%p9) target = $region8
  $region5: #{_lambda_.24} parent=0 // loop_body
    %s13 = ssub.s32 %s8, 1
    %s14 = ssub.s32 %s8, 2
    %s15 = sadd.s32 %s8, 1
    %s16 = ssub.s32 %s8, %s15
    %p17 = scmp.eq.s32.totalorder %s16, 0
    %s19 = sadd.s32 %s18, 1
    %s20 = scalar_select %p17, %s18, %s19
    %p23 = pneg %p17
    %p24 = scmp.eq.s32.totalorder %s8, 1
    %p25 = por %p23, %p24
    %p26 = scmp.ne.s32.totalorder %s18, %s21
    %p27 = scmp.eq.s32.totalorder %s8, 0
    %p28 = por %p26, %p27
    %p29 = scmp.ne.s32.totalorder %s18, %s21
    %p30 = scmp.eq.s32.totalorder %s13, 1
    %p31 = por %p29, %p30
    %p32 = scmp.ne.s32.totalorder %s21, %s22
    %p33 = scmp.eq.s32.totalorder %s13, 0
    %p34 = por %p32, %p33
    %p35 = scmp.ne.s32.totalorder %s21, %s22
    %p36 = scmp.eq.s32.totalorder %s14, 1
    %p37 = por %p35, %p36
    %p39 = scmp.ne.s32.totalorder %s22, %s38
    %p40 = scmp.eq.s32.totalorder %s14, 0
    %p41 = por %p39, %p40
    %s43 = sadd.s32 %s42, 1
    %p46 = scmp.eq.s32.totalorder %s8, 1
    %p47 = scmp.ne.s32.totalorder %s42, %s44
    %p48 = scmp.eq.s32.totalorder %s8, 0
    %p49 = por %p47, %p48
    %p50 = scmp.ne.s32.totalorder %s42, %s44
    %p51 = scmp.eq.s32.totalorder %s13, 1
    %p52 = por %p50, %p51
    %p53 = scmp.ne.s32.totalorder %s44, %s45
    %p54 = scmp.eq.s32.totalorder %s13, 0
    %p55 = por %p53, %p54
    %p56 = scmp.ne.s32.totalorder %s44, %s45
    %p57 = scmp.eq.s32.totalorder %s14, 1
    %p58 = por %p56, %p57
    %p60 = scmp.ne.s32.totalorder %s45, %s59
    %p61 = scmp.eq.s32.totalorder %s14, 0
    %p62 = por %p60, %p61
    %s63 = ssub.s32 %s8, %s15
    %p64 = scmp.eq.s32.totalorder %s63, 0
    %s66 = sadd.s32 %s65, 1
    %s67 = scalar_select %p64, %s65, %s66
    %p70 = pneg %p64
    %p71 = scmp.eq.s32.totalorder %s8, 1
    %p72 = por %p70, %p71
    %p73 = scmp.ne.s32.totalorder %s65, %s68
    %p74 = scmp.eq.s32.totalorder %s8, 0
    %p75 = por %p73, %p74
    %p76 = scmp.ne.s32.totalorder %s65, %s68
    %p77 = scmp.eq.s32.totalorder %s13, 1
    %p78 = por %p76, %p77
    %p79 = scmp.ne.s32.totalorder %s68, %s69
    %p80 = scmp.eq.s32.totalorder %s13, 0
    %p81 = por %p79, %p80
    %p82 = scmp.ne.s32.totalorder %s68, %s69
    %p83 = scmp.eq.s32.totalorder %s14, 1
    %p84 = por %p82, %p83
    %p86 = scmp.ne.s32.totalorder %s69, %s85
    %p87 = scmp.eq.s32.totalorder %s14, 0
    %p88 = por %p86, %p87
    %p89 = scmp.le.s32.totalorder 1, %s8
    %p90 = scmp.lt.s32.totalorder %s8, 3
    %p91 = pnand %p89, %p90
    %p92 = pneg %p91
    // Predicated region
    $region9: #{_lambda_.24} parent=5 // pred_check
      _
    $region10: #{_lambda_.24} parent=5 // pred_check_branch
      %94 = sbr.rel (%p91) target = $region12
    $region11: #{_lambda_.24} parent=5 // pred_region
      %s95 = ssub.s32 %s8, 1
      // Predicated region
      $region13: #{_lambda_.24} parent=11 // pred_check
        %p96 = pneg %p55
      $region14: #{_lambda_.24} parent=11 // pred_check_branch
        %98 = sbr.rel (%p96) target = $region16
      $region15: #{_lambda_.24} parent=11 // pred_region
        _
      $region16: #{_lambda_.24} parent=11 // pred_fallthru
        _
    $region12: #{_lambda_.24} parent=5 // pred_fallthru
      _
    %p99 = scmp.lt.s32.totalorder %s8, 2
    // Predicated region
    $region17: #{_lambda_.24} parent=5 // pred_check
      %p100 = pneg %p99
    $region18: #{_lambda_.24} parent=5 // pred_check_branch
      %102 = sbr.rel (%p100) target = $region20
    $region19: #{_lambda_.24} parent=5 // pred_region
      // Predicated region
      $region21: #{_lambda_.24} parent=19 // pred_check
        %p103 = pneg %p28
      $region22: #{_lambda_.24} parent=19 // pred_check_branch
        %105 = sbr.rel (%p103) target = $region24
      $region23: #{_lambda_.24} parent=19 // pred_region
        %p106 = scmp.lt.s32.totalorder %s8, 1
        %s107 = scalar_select %p106, %s8, 1
        %s108 = smul.addr %s107, 36
        %s109 = smul.addr %s108, 4
        %s110 = scalar_lea.vmem %s0, %s109
      $region24: #{_lambda_.24} parent=19 // pred_fallthru
        _
    $region20: #{_lambda_.24} parent=5 // pred_fallthru
      _
    %p111 = scmp.le.s32.totalorder 1, %s8
    %p112 = scmp.lt.s32.totalorder %s8, 3
    %p113 = pnand %p111, %p112
    %p114 = pneg %p113
    // Predicated region
    $region25: #{_lambda_.24} parent=5 // pred_check
      _
    $region26: #{_lambda_.24} parent=5 // pred_check_branch
      %116 = sbr.rel (%p113) target = $region28
    $region27: #{_lambda_.24} parent=5 // pred_region
      %s117 = ssub.s32 %s8, 1
      %p118 = scmp.lt.s32.totalorder %s13, 1
      %s119 = scalar_select %p118, %s13, 1
      %s120 = smul.addr %s119, 36
      %s121 = smul.addr %s120, 4
      %s122 = scalar_lea.vmem %s0, %s121
      %p123 = pneg %p34
      %p124 = pneg %p31
      %p125 = pneg %p55
      %p126 = pneg %p52
      %p127 = pneg %p81
      %p128 = pneg %p78
      %p129 = scmp.lt.s32.totalorder %s13, 1
      %s130 = scalar_select %p129, %s13, 1
      %s131 = smul.addr %s130, 4
      %s132 = smul.addr %s131, 4
      %s133 = scalar_lea.vmem %s2, %s132
      %p134 = scmp.lt.s32.totalorder %s13, 1
      %s135 = scalar_select %p134, %s13, 1
      %s136 = smul.addr %s135, 36
      %s137 = smul.addr %s136, 4
      %s138 = scalar_lea.vmem %s0, %s137
      %p139 = scmp.lt.s32.totalorder %s13, 1
      %s140 = scalar_select %p139, %s13, 1
      %s141 = smul.addr %s140, 4
      %s142 = smul.addr %s141, 4
      %s143 = scalar_lea.vmem %s2, %s142
      %v144 = vld [vmem:[%s138] sm:$0xff]
      %v145 = vld [vmem:[%s138 + $0x8] sm:$0xff]
      %v146 = vld [vmem:[%s138 + $0x10] sm:$0xff]
      %v147 = vld [vmem:[%s138 + $0x18] sm:$0xff]
      %v148 = vld [vmem:[%s138 + $0x20] sm:$0xff]
      %v149 = vld [vmem:[%s138 + $0x28] sm:$0xff]
      %v150 = vld [vmem:[%s138 + $0x30] sm:$0xff]
      %v151 = vld [vmem:[%s138 + $0x38] sm:$0xff]
      %v152 = vld [vmem:[%s138 + $0x40] sm:$0xff]
      %v153 = vld [vmem:[%s138 + $0x48] sm:$0xff]
      %v154 = vld [vmem:[%s138 + $0x50] sm:$0xff]
      %v155 = vld [vmem:[%s138 + $0x58] sm:$0xff]
      %v156 = vld [vmem:[%s138 + $0x60] sm:$0xff]
      %v157 = vld [vmem:[%s138 + $0x68] sm:$0xff]
      %v158 = vld [vmem:[%s138 + $0x70] sm:$0xff]
      %v159 = vld [vmem:[%s138 + $0x78] sm:$0xff]
      %v160 = vld [vmem:[%s138 + $0x80] sm:$0xff]
      %v161 = vld [vmem:[%s138 + $0x88] sm:$0xff]
      %v162 = vld [vmem:[%s1] sm:$0xff]
      %v163 = vld [vmem:[%s1 + $0x8] sm:$0xff]
      %v164 = vld [vmem:[%s1 + $0x10] sm:$0xff]
      %v165 = vld [vmem:[%s1 + $0x18] sm:$0xff]
      %v166 = vld [vmem:[%s1 + $0x20] sm:$0xff]
      %v167 = vld [vmem:[%s1 + $0x28] sm:$0xff]
      %v168 = vld [vmem:[%s1 + $0x30] sm:$0xff]
      %v169 = vld [vmem:[%s1 + $0x38] sm:$0xff]
      %v170 = vld [vmem:[%s1 + $0x40] sm:$0xff]
      %v171 = vld [vmem:[%s1 + $0x48] sm:$0xff]
      %v172 = vld [vmem:[%s1 + $0x50] sm:$0xff]
      %v173 = vld [vmem:[%s1 + $0x58] sm:$0xff]
      %v174 = vld [vmem:[%s1 + $0x60] sm:$0xff]
      %v175 = vld [vmem:[%s1 + $0x68] sm:$0xff]
      %v176 = vld [vmem:[%s1 + $0x70] sm:$0xff]
      %v177 = vld [vmem:[%s1 + $0x78] sm:$0xff]
      %v178 = vld [vmem:[%s1 + $0x80] sm:$0xff]
      %v179 = vld [vmem:[%s1 + $0x88] sm:$0xff]
      %v180 = vld [vmem:[%s1 + $0x90] sm:$0xff]
      %v181 = vld [vmem:[%s1 + $0x98] sm:$0xff]
      %v182 = vld [vmem:[%s1 + $0xa0] sm:$0xff]
      %v183 = vld [vmem:[%s1 + $0xa8] sm:$0xff]
      %v184 = vld [vmem:[%s1 + $0xb0] sm:$0xff]
      %v185 = vld [vmem:[%s1 + $0xb8] sm:$0xff]
      %v186 = vld [vmem:[%s1 + $0xc0] sm:$0xff]
      %v187 = vld [vmem:[%s1 + $0xc8] sm:$0xff]
      %v188 = vld [vmem:[%s1 + $0xd0] sm:$0xff]
      %v189 = vld [vmem:[%s1 + $0xd8] sm:$0xff]
      %v190 = vld [vmem:[%s1 + $0xe0] sm:$0xff]
      %v191 = vld [vmem:[%s1 + $0xe8] sm:$0xff]
      %v192 = vld [vmem:[%s1 + $0xf0] sm:$0xff]
      %v193 = vld [vmem:[%s1 + $0xf8] sm:$0xff]
      %v212 = vunpack.c.l.b16 %v144
      %v213 = vunpack.c.h.b16 %v144
      %v214 = vunpack.c.l.b16 %v145
      %v215 = vunpack.c.h.b16 %v145
      %v216 = vunpack.c.l.b16 %v146
      %v217 = vunpack.c.h.b16 %v146
      %v218 = vunpack.c.l.b16 %v147
      %v219 = vunpack.c.h.b16 %v147
      %v220 = vunpack.c.l.b16 %v148
      %v221 = vunpack.c.h.b16 %v148
      %v222 = vunpack.c.l.b16 %v149
      %v223 = vunpack.c.h.b16 %v149
      %v224 = vunpack.c.l.b16 %v150
      %v225 = vunpack.c.h.b16 %v150
      %v226 = vunpack.c.l.b16 %v151
      %v227 = vunpack.c.h.b16 %v151
      %v228 = vunpack.c.l.b16 %v152
      %v229 = vunpack.c.h.b16 %v152
      %v230 = vunpack.c.l.b16 %v153
      %v231 = vunpack.c.h.b16 %v153
      %v232 = vunpack.c.l.b16 %v154
      %v233 = vunpack.c.h.b16 %v154
      %v234 = vunpack.c.l.b16 %v155
      %v235 = vunpack.c.h.b16 %v155
      %v236 = vunpack.c.l.b16 %v156
      %v237 = vunpack.c.h.b16 %v156
      %v238 = vunpack.c.l.b16 %v157
      %v239 = vunpack.c.h.b16 %v157
      %v240 = vunpack.c.l.b16 %v158
      %v241 = vunpack.c.h.b16 %v158
      %v242 = vunpack.c.l.b16 %v159
      %v243 = vunpack.c.h.b16 %v159
      %v244 = vunpack.c.l.b16 %v160
      %v245 = vunpack.c.h.b16 %v160
      %v246 = vunpack.c.l.b16 %v161
      %v247 = vunpack.c.h.b16 %v161
      %v248 = vpack.c.b16 %v214, %v212
      %v249 = vpack.c.b16 %v215, %v213
      %v250 = vpack.c.b16 %v218, %v216
      %v251 = vpack.c.b16 %v219, %v217
      %v252 = vpack.c.b16 %v222, %v220
      %v253 = vpack.c.b16 %v223, %v221
      %v254 = vpack.c.b16 %v226, %v224
      %v255 = vpack.c.b16 %v227, %v225
      %v256 = vpack.c.b16 %v230, %v228
      %v257 = vpack.c.b16 %v231, %v229
      %v258 = vpack.c.b16 %v234, %v232
      %v259 = vpack.c.b16 %v235, %v233
      %v260 = vpack.c.b16 %v238, %v236
      %v261 = vpack.c.b16 %v239, %v237
      %v262 = vpack.c.b16 %v242, %v240
      %v263 = vpack.c.b16 %v243, %v241
      %v264 = vpack.c.b16 %v246, %v244
      %v265 = vpack.c.b16 %v247, %v245
      %v316 = vunpack.c.l.b16 %v162
      %v317 = vunpack.c.h.b16 %v162
      %v318 = vunpack.c.l.b16 %v163
      %v319 = vunpack.c.h.b16 %v163
      %v320 = vunpack.c.l.b16 %v164
      %v321 = vunpack.c.h.b16 %v164
      %v322 = vunpack.c.l.b16 %v165
      %v323 = vunpack.c.h.b16 %v165
      %v324 = vunpack.c.l.b16 %v166
      %v325 = vunpack.c.h.b16 %v166
      %v326 = vunpack.c.l.b16 %v167
      %v327 = vunpack.c.h.b16 %v167
      %v328 = vunpack.c.l.b16 %v168
      %v329 = vunpack.c.h.b16 %v168
      %v330 = vunpack.c.l.b16 %v169
      %v331 = vunpack.c.h.b16 %v169
      %v332 = vunpack.c.l.b16 %v170
      %v333 = vunpack.c.h.b16 %v170
      %v334 = vunpack.c.l.b16 %v171
      %v335 = vunpack.c.h.b16 %v171
      %v336 = vunpack.c.l.b16 %v172
      %v337 = vunpack.c.h.b16 %v172
      %v338 = vunpack.c.l.b16 %v173
      %v339 = vunpack.c.h.b16 %v173
      %v340 = vunpack.c.l.b16 %v174
      %v341 = vunpack.c.h.b16 %v174
      %v342 = vunpack.c.l.b16 %v175
      %v343 = vunpack.c.h.b16 %v175
      %v344 = vunpack.c.l.b16 %v176
      %v345 = vunpack.c.h.b16 %v176
      %v346 = vunpack.c.l.b16 %v177
      %v347 = vunpack.c.h.b16 %v177
      %v348 = vunpack.c.l.b16 %v178
      %v349 = vunpack.c.h.b16 %v178
      %v350 = vunpack.c.l.b16 %v179
      %v351 = vunpack.c.h.b16 %v179
      %v352 = vunpack.c.l.b16 %v180
      %v353 = vunpack.c.h.b16 %v180
      %v354 = vunpack.c.l.b16 %v181
      %v355 = vunpack.c.h.b16 %v181
      %v356 = vunpack.c.l.b16 %v182
      %v357 = vunpack.c.h.b16 %v182
      %v358 = vunpack.c.l.b16 %v183
      %v359 = vunpack.c.h.b16 %v183
      %v360 = vunpack.c.l.b16 %v184
      %v361 = vunpack.c.h.b16 %v184
      %v362 = vunpack.c.l.b16 %v185
      %v363 = vunpack.c.h.b16 %v185
      %v364 = vunpack.c.l.b16 %v186
      %v365 = vunpack.c.h.b16 %v186
      %v366 = vunpack.c.l.b16 %v187
      %v367 = vunpack.c.h.b16 %v187
      %v368 = vunpack.c.l.b16 %v188
      %v369 = vunpack.c.h.b16 %v188
      %v370 = vunpack.c.l.b16 %v189
      %v371 = vunpack.c.h.b16 %v189
      %v372 = vunpack.c.l.b16 %v190
      %v373 = vunpack.c.h.b16 %v190
      %v374 = vunpack.c.l.b16 %v191
      %v375 = vunpack.c.h.b16 %v191
      %v376 = vunpack.c.l.b16 %v192
      %v377 = vunpack.c.h.b16 %v192
      %v378 = vunpack.c.l.b16 %v193
      %v379 = vunpack.c.h.b16 %v193
      %v380 = vpack.c.b16 %v318, %v316
      %v381 = vpack.c.b16 %v319, %v317
      %v382 = vpack.c.b16 %v322, %v320
      %v383 = vpack.c.b16 %v323, %v321
      %v384 = vpack.c.b16 %v326, %v324
      %v385 = vpack.c.b16 %v327, %v325
      %v386 = vpack.c.b16 %v330, %v328
      %v387 = vpack.c.b16 %v331, %v329
      %v388 = vpack.c.b16 %v334, %v332
      %v389 = vpack.c.b16 %v335, %v333
      %v390 = vpack.c.b16 %v338, %v336
      %v391 = vpack.c.b16 %v339, %v337
      %v392 = vpack.c.b16 %v342, %v340
      %v393 = vpack.c.b16 %v343, %v341
      %v394 = vpack.c.b16 %v346, %v344
      %v395 = vpack.c.b16 %v347, %v345
      %v396 = vpack.c.b16 %v350, %v348
      %v397 = vpack.c.b16 %v351, %v349
      %v398 = vpack.c.b16 %v354, %v352
      %v399 = vpack.c.b16 %v355, %v353
      %v400 = vpack.c.b16 %v358, %v356
      %v401 = vpack.c.b16 %v359, %v357
      %v402 = vpack.c.b16 %v362, %v360
      %v403 = vpack.c.b16 %v363, %v361
      %v404 = vpack.c.b16 %v366, %v364
      %v405 = vpack.c.b16 %v367, %v365
      %v406 = vpack.c.b16 %v370, %v368
      %v407 = vpack.c.b16 %v371, %v369
      %v408 = vpack.c.b16 %v374, %v372
      %v409 = vpack.c.b16 %v375, %v373
      %v410 = vpack.c.b16 %v378, %v376
      %v411 = vpack.c.b16 %v379, %v377
      %444 = vmatprep.subr.bf16.mxu0 %v381
      %445 = vmatpush1.bf16.msra.mxu0 %v380
      %446 = vmatprep.subr.bf16.mxu0 %v383
      %447 = vmatpush1.bf16.msra.mxu0 %v382
      %448 = vmatprep.subr.bf16.mxu0 %v385
      %449 = vmatpush1.bf16.msra.mxu0 %v384
      %450 = vmatprep.subr.bf16.mxu0 %v387
      %451 = vmatpush1.bf16.msra.mxu0 %v386
      %452 = vmatprep.subr.bf16.mxu0 %v389
      %453 = vmatpush1.bf16.msra.mxu0 %v388
      %454 = vmatprep.subr.bf16.mxu0 %v391
      %455 = vmatpush1.bf16.msra.mxu0 %v390
      %456 = vmatprep.subr.bf16.mxu0 %v393
      %457 = vmatpush1.bf16.msra.mxu0 %v392
      %458 = vmatprep.subr.bf16.mxu0 %v395
      %459 = vmatpush1.bf16.msra.mxu0 %v394
      %460 = vmatprep.subr.bf16.mxu0 %v397
      %461 = vmatpush1.bf16.msra.mxu0 %v396
      %462 = vmatprep.subr.bf16.mxu0 %v399
      %463 = vmatpush1.bf16.msra.mxu0 %v398
      %464 = vmatprep.subr.bf16.mxu0 %v401
      %465 = vmatpush1.bf16.msra.mxu0 %v400
      %466 = vmatprep.subr.bf16.mxu0 %v403
      %467 = vmatpush1.bf16.msra.mxu0 %v402
      %468 = vmatprep.subr.bf16.mxu0 %v405
      %469 = vmatpush1.bf16.msra.mxu0 %v404
      %470 = vmatprep.subr.bf16.mxu0 %v407
      %471 = vmatpush1.bf16.msra.mxu0 %v406
      %472 = vmatprep.subr.bf16.mxu0 %v409
      %473 = vmatpush1.bf16.msra.mxu0 %v408
      %474 = vmatprep.subr.bf16.mxu0 %v411
      %475 = vmatpush1.bf16.msra.mxu0 %v410
      %476 = vmatprep.mubr.bf16.mxu0 %v249
      %477 = vmatmul.mubr.bf16.gmra.mrb[0].mxu0 %v248
      %v478 = vpop.f32.mrb[0].mxu0
      %v479 = vadd.f32 0.0, %v478
      %v480 = vpop.f32.mrb[0].mxu0
      %v481 = vadd.f32 0.0, %v480
      %v482 = vpop.f32.mrb[0].mxu0
      %v483 = vadd.f32 0.0, %v482
      %v484 = vpop.f32.mrb[0].mxu0
      %v485 = vadd.f32 0.0, %v484
      %486 = vmatprep.mubr.bf16.mxu0 %v251
      %487 = vmatmul.mubr.bf16.gmra.mrb[0].mxu0 %v250
      %v488 = vpop.f32.mrb[0].mxu0
      %v489 = vadd.f32 0.0, %v488
      %v490 = vpop.f32.mrb[0].mxu0
      %v491 = vadd.f32 0.0, %v490
      %v492 = vpop.f32.mrb[0].mxu0
      %v493 = vadd.f32 0.0, %v492
      %v494 = vpop.f32.mrb[0].mxu0
      %v495 = vadd.f32 0.0, %v494
      %496 = vmatprep.mubr.bf16.mxu0 %v253
      %497 = vmatmul.mubr.bf16.gmra.mrb[0].mxu0 %v252
      %v498 = vpop.f32.mrb[0].mxu0
      %v499 = vadd.f32 0.0, %v498
      %v500 = vpop.f32.mrb[0].mxu0
      %v501 = vadd.f32 0.0, %v500
      %v502 = vpop.f32.mrb[0].mxu0
      %v503 = vadd.f32 0.0, %v502
      %v504 = vpop.f32.mrb[0].mxu0
      %v505 = vadd.f32 0.0, %v504
      %506 = vmatprep.mubr.bf16.mxu0 %v255
      %507 = vmatmul.mubr.bf16.gmra.mrb[0].mxu0 %v254
      %v508 = vpop.f32.mrb[0].mxu0
      %v509 = vadd.f32 0.0, %v508
      %v510 = vpop.f32.mrb[0].mxu0
      %v511 = vadd.f32 0.0, %v510
      %v512 = vpop.f32.mrb[0].mxu0
      %v513 = vadd.f32 0.0, %v512
      %v514 = vpop.f32.mrb[0].mxu0
      %v515 = vadd.f32 0.0, %v514
      %516 = vmatprep.mubr.bf16.mxu0 %v257
      %517 = vmatmul.mubr.bf16.gmra.mrb[0].mxu0 %v256
      %v518 = vpop.f32.mrb[0].mxu0
      %v519 = vadd.f32 0.0, %v518
      %v520 = vpop.f32.mrb[0].mxu0
      %v521 = vadd.f32 0.0, %v520
      %v522 = vpop.f32.mrb[0].mxu0
      %v523 = vadd.f32 0.0, %v522
      %v524 = vpop.f32.mrb[0].mxu0
      %v525 = vadd.f32 0.0, %v524
      %526 = vmatprep.mubr.bf16.mxu0 %v259
      %527 = vmatmul.mubr.bf16.gmra.mrb[0].mxu0 %v258
      %v528 = vpop.f32.mrb[0].mxu0
      %v529 = vadd.f32 0.0, %v528
      %v530 = vpop.f32.mrb[0].mxu0
      %v531 = vadd.f32 0.0, %v530
      %v532 = vpop.f32.mrb[0].mxu0
      %v533 = vadd.f32 0.0, %v532
      %v534 = vpop.f32.mrb[0].mxu0
      %v535 = vadd.f32 0.0, %v534
      %536 = vmatprep.mubr.bf16.mxu0 %v261
      %537 = vmatmul.mubr.bf16.gmra.mrb[0].mxu0 %v260
      %v538 = vpop.f32.mrb[0].mxu0
      %v539 = vadd.f32 0.0, %v538
      %v540 = vpop.f32.mrb[0].mxu0
      %v541 = vadd.f32 0.0, %v540
      %v542 = vpop.f32.mrb[0].mxu0
      %v543 = vadd.f32 0.0, %v542
      %v544 = vpop.f32.mrb[0].mxu0
      %v545 = vadd.f32 0.0, %v544
      %546 = vmatprep.mubr.bf16.mxu0 %v263
      %547 = vmatmul.mubr.bf16.gmra.mrb[0].mxu0 %v262
      %v548 = vpop.f32.mrb[0].mxu0
      %v549 = vadd.f32 0.0, %v548
      %v550 = vpop.f32.mrb[0].mxu0
      %v551 = vadd.f32 0.0, %v550
      %v552 = vpop.f32.mrb[0].mxu0
      %v553 = vadd.f32 0.0, %v552
      %v554 = vpop.f32.mrb[0].mxu0
      %v555 = vadd.f32 0.0, %v554
      %556 = vmatprep.mubr.bf16.mxu0 %v265
      %557 = vmatmul.mubr.bf16.gmra.mrb[0].mxu0 %v264
      %v558 = vpop.f32.mrb[0].mxu0
      %v559 = vadd.f32 0.0, %v558
      %v560 = vpop.f32.mrb[0].mxu0
      %v561 = vadd.f32 0.0, %v560
      %v562 = vpop.f32.mrb[0].mxu0
      %v563 = vadd.f32 0.0, %v562
      %v564 = vpop.f32.mrb[0].mxu0
      %v565 = vadd.f32 0.0, %v564
      %566 = vdwg.mxu0
      %v567 = vadd.f32 %v479, %v483
      %v568 = vadd.f32 %v567, %v489
      %v569 = vadd.f32 %v568, %v493
      %v570 = vadd.f32 %v569, %v499
      %v571 = vadd.f32 %v570, %v503
      %v572 = vadd.f32 %v571, %v509
      %v573 = vadd.f32 %v572, %v513
      %v574 = vadd.f32 %v573, %v519
      %v575 = vadd.f32 %v574, %v523
      %v576 = vadd.f32 %v575, %v529
      %v577 = vadd.f32 %v576, %v533
      %v578 = vadd.f32 %v577, %v539
      %v579 = vadd.f32 %v578, %v543
      %v580 = vadd.f32 %v579, %v549
      %v581 = vadd.f32 %v580, %v553
      %v582 = vadd.f32 %v581, %v559
      %v583 = vadd.f32 %v582, %v563
      %v584 = vrot.slane %v583, 4
      %v585 = vadd.f32 %v583, %v584
      %v586 = vrot.slane %v585, 2
      %v587 = vadd.f32 %v585, %v586
      %v588 = vrot.slane %v587, 1
      %v589 = vadd.f32 %v587, %v588
      %v590 = vadd.f32 %v481, %v485
      %v591 = vadd.f32 %v590, %v491
      %v592 = vadd.f32 %v591, %v495
      %v593 = vadd.f32 %v592, %v501
      %v594 = vadd.f32 %v593, %v505
      %v595 = vadd.f32 %v594, %v511
      %v596 = vadd.f32 %v595, %v515
      %v597 = vadd.f32 %v596, %v521
      %v598 = vadd.f32 %v597, %v525
      %v599 = vadd.f32 %v598, %v531
      %v600 = vadd.f32 %v599, %v535
      %v601 = vadd.f32 %v600, %v541
      %v602 = vadd.f32 %v601, %v545
      %v603 = vadd.f32 %v602, %v551
      %v604 = vadd.f32 %v603, %v555
      %v605 = vadd.f32 %v604, %v561
      %v606 = vadd.f32 %v605, %v565
      %v607 = vrot.slane %v606, 4
      %v608 = vadd.f32 %v606, %v607
      %v609 = vrot.slane %v608, 2
      %v610 = vadd.f32 %v608, %v609
      %v611 = vrot.slane %v610, 1
      %v612 = vadd.f32 %v610, %v611
      %v613 = vrcp.pop 144.0
      %v614 = vmul.f32 %v589, %v613
      %v615 = vmul.f32 %v612, %v613
      %v616 = vsub.f32 %v479, %v614
      %v617 = vsub.f32 %v481, %v615
      %v618 = vsub.f32 %v483, %v614
      %v619 = vsub.f32 %v485, %v615
      %v620 = vsub.f32 %v489, %v614
      %v621 = vsub.f32 %v491, %v615
      %v622 = vsub.f32 %v493, %v614
      %v623 = vsub.f32 %v495, %v615
      %v624 = vsub.f32 %v499, %v614
      %v625 = vsub.f32 %v501, %v615
      %v626 = vsub.f32 %v503, %v614
      %v627 = vsub.f32 %v505, %v615
      %v628 = vsub.f32 %v509, %v614
      %v629 = vsub.f32 %v511, %v615
      %v630 = vsub.f32 %v513, %v614
      %v631 = vsub.f32 %v515, %v615
      %v632 = vsub.f32 %v519, %v614
      %v633 = vsub.f32 %v521, %v615
      %v634 = vsub.f32 %v523, %v614
      %v635 = vsub.f32 %v525, %v615
      %v636 = vsub.f32 %v529, %v614
      %v637 = vsub.f32 %v531, %v615
      %v638 = vsub.f32 %v533, %v614
      %v639 = vsub.f32 %v535, %v615
      %v640 = vsub.f32 %v539, %v614
      %v641 = vsub.f32 %v541, %v615
      %v642 = vsub.f32 %v543, %v614
      %v643 = vsub.f32 %v545, %v615
      %v644 = vsub.f32 %v549, %v614
      %v645 = vsub.f32 %v551, %v615
      %v646 = vsub.f32 %v553, %v614
      %v647 = vsub.f32 %v555, %v615
      %v648 = vsub.f32 %v559, %v614
      %v649 = vsub.f32 %v561, %v615
      %v650 = vsub.f32 %v563, %v614
      %v651 = vsub.f32 %v565, %v615
      %v652 = vmul.f32 %v616, %v616
      %v653 = vmul.f32 %v617, %v617
      %v654 = vmul.f32 %v618, %v618
      %v655 = vmul.f32 %v619, %v619
      %v656 = vmul.f32 %v620, %v620
      %v657 = vmul.f32 %v621, %v621
      %v658 = vmul.f32 %v622, %v622
      %v659 = vmul.f32 %v623, %v623
      %v660 = vmul.f32 %v624, %v624
      %v661 = vmul.f32 %v625, %v625
      %v662 = vmul.f32 %v626, %v626
      %v663 = vmul.f32 %v627, %v627
      %v664 = vmul.f32 %v628, %v628
      %v665 = vmul.f32 %v629, %v629
      %v666 = vmul.f32 %v630, %v630
      %v667 = vmul.f32 %v631, %v631
      %v668 = vmul.f32 %v632, %v632
      %v669 = vmul.f32 %v633, %v633
      %v670 = vmul.f32 %v634, %v634
      %v671 = vmul.f32 %v635, %v635
      %v672 = vmul.f32 %v636, %v636
      %v673 = vmul.f32 %v637, %v637
      %v674 = vmul.f32 %v638, %v638
      %v675 = vmul.f32 %v639, %v639
      %v676 = vmul.f32 %v640, %v640
      %v677 = vmul.f32 %v641, %v641
      %v678 = vmul.f32 %v642, %v642
      %v679 = vmul.f32 %v643, %v643
      %v680 = vmul.f32 %v644, %v644
      %v681 = vmul.f32 %v645, %v645
      %v682 = vmul.f32 %v646, %v646
      %v683 = vmul.f32 %v647, %v647
      %v684 = vmul.f32 %v648, %v648
      %v685 = vmul.f32 %v649, %v649
      %v686 = vmul.f32 %v650, %v650
      %v687 = vmul.f32 %v651, %v651
      %v688 = vadd.f32 %v652, %v654
      %v689 = vadd.f32 %v688, %v656
      %v690 = vadd.f32 %v689, %v658
      %v691 = vadd.f32 %v690, %v660
      %v692 = vadd.f32 %v691, %v662
      %v693 = vadd.f32 %v692, %v664
      %v694 = vadd.f32 %v693, %v666
      %v695 = vadd.f32 %v694, %v668
      %v696 = vadd.f32 %v695, %v670
      %v697 = vadd.f32 %v696, %v672
      %v698 = vadd.f32 %v697, %v674
      %v699 = vadd.f32 %v698, %v676
      %v700 = vadd.f32 %v699, %v678
      %v701 = vadd.f32 %v700, %v680
      %v702 = vadd.f32 %v701, %v682
      %v703 = vadd.f32 %v702, %v684
      %v704 = vadd.f32 %v703, %v686
      %v705 = vrot.slane %v704, 4
      %v706 = vadd.f32 %v704, %v705
      %v707 = vrot.slane %v706, 2
      %v708 = vadd.f32 %v706, %v707
      %v709 = vrot.slane %v708, 1
      %v710 = vadd.f32 %v708, %v709
      %v711 = vadd.f32 %v653, %v655
      %v712 = vadd.f32 %v711, %v657
      %v713 = vadd.f32 %v712, %v659
      %v714 = vadd.f32 %v713, %v661
      %v715 = vadd.f32 %v714, %v663
      %v716 = vadd.f32 %v715, %v665
      %v717 = vadd.f32 %v716, %v667
      %v718 = vadd.f32 %v717, %v669
      %v719 = vadd.f32 %v718, %v671
      %v720 = vadd.f32 %v719, %v673
      %v721 = vadd.f32 %v720, %v675
      %v722 = vadd.f32 %v721, %v677
      %v723 = vadd.f32 %v722, %v679
      %v724 = vadd.f32 %v723, %v681
      %v725 = vadd.f32 %v724, %v683
      %v726 = vadd.f32 %v725, %v685
      %v727 = vadd.f32 %v726, %v687
      %v728 = vrot.slane %v727, 4
      %v729 = vadd.f32 %v727, %v728
      %v730 = vrot.slane %v729, 2
      %v731 = vadd.f32 %v729, %v730
      %v732 = vrot.slane %v731, 1
      %v733 = vadd.f32 %v731, %v732
      %v734 = vmul.f32 %v710, %v613
      %v735 = vmul.f32 %v733, %v613
      %v736 = vadd.f32 %v734, 1e-05
      %v737 = vadd.f32 %v735, 1e-05
      %v738 = vrsqrt.pop %v736
      %v739 = vrsqrt.pop %v737
      %v740 = vmul.f32 %v616, %v738
      %v741 = vmul.f32 %v617, %v739
      %v742 = vmul.f32 %v618, %v738
      %v743 = vmul.f32 %v619, %v739
      %v744 = vmul.f32 %v620, %v738
      %v745 = vmul.f32 %v621, %v739
      %v746 = vmul.f32 %v622, %v738
      %v747 = vmul.f32 %v623, %v739
      %v748 = vmul.f32 %v624, %v738
      %v749 = vmul.f32 %v625, %v739
      %v750 = vmul.f32 %v626, %v738
      %v751 = vmul.f32 %v627, %v739
      %v752 = vmul.f32 %v628, %v738
      %v753 = vmul.f32 %v629, %v739
      %v754 = vmul.f32 %v630, %v738
      %v755 = vmul.f32 %v631, %v739
      %v756 = vmul.f32 %v632, %v738
      %v757 = vmul.f32 %v633, %v739
      %v758 = vmul.f32 %v634, %v738
      %v759 = vmul.f32 %v635, %v739
      %v760 = vmul.f32 %v636, %v738
      %v761 = vmul.f32 %v637, %v739
      %v762 = vmul.f32 %v638, %v738
      %v763 = vmul.f32 %v639, %v739
      %v764 = vmul.f32 %v640, %v738
      %v765 = vmul.f32 %v641, %v739
      %v766 = vmul.f32 %v642, %v738
      %v767 = vmul.f32 %v643, %v739
      %v768 = vmul.f32 %v644, %v738
      %v769 = vmul.f32 %v645, %v739
      %v770 = vmul.f32 %v646, %v738
      %v771 = vmul.f32 %v647, %v739
      %v772 = vmul.f32 %v648, %v738
      %v773 = vmul.f32 %v649, %v739
      %v774 = vmul.f32 %v650, %v738
      %v775 = vmul.f32 %v651, %v739
      %vm776 = vcmp.ge.f32.partialorder %v740, 0.0
      %vm777 = vcmp.ge.f32.partialorder %v741, 0.0
      %vm778 = vcmp.ge.f32.partialorder %v742, 0.0
      %vm779 = vcmp.ge.f32.partialorder %v743, 0.0
      %vm780 = vcmp.ge.f32.partialorder %v744, 0.0
      %vm781 = vcmp.ge.f32.partialorder %v745, 0.0
      %vm782 = vcmp.ge.f32.partialorder %v746, 0.0
      %vm783 = vcmp.ge.f32.partialorder %v747, 0.0
      %vm784 = vcmp.ge.f32.partialorder %v748, 0.0
      %vm785 = vcmp.ge.f32.partialorder %v749, 0.0
      %vm786 = vcmp.ge.f32.partialorder %v750, 0.0
      %vm787 = vcmp.ge.f32.partialorder %v751, 0.0
      %vm788 = vcmp.ge.f32.partialorder %v752, 0.0
      %vm789 = vcmp.ge.f32.partialorder %v753, 0.0
      %vm790 = vcmp.ge.f32.partialorder %v754, 0.0
      %vm791 = vcmp.ge.f32.partialorder %v755, 0.0
      %vm792 = vcmp.ge.f32.partialorder %v756, 0.0
      %vm793 = vcmp.ge.f32.partialorder %v757, 0.0
      %vm794 = vcmp.ge.f32.partialorder %v758, 0.0
      %vm795 = vcmp.ge.f32.partialorder %v759, 0.0
      %vm796 = vcmp.ge.f32.partialorder %v760, 0.0
      %vm797 = vcmp.ge.f32.partialorder %v761, 0.0
      %vm798 = vcmp.ge.f32.partialorder %v762, 0.0
      %vm799 = vcmp.ge.f32.partialorder %v763, 0.0
      %vm800 = vcmp.ge.f32.partialorder %v764, 0.0
      %vm801 = vcmp.ge.f32.partialorder %v765, 0.0
      %vm802 = vcmp.ge.f32.partialorder %v766, 0.0
      %vm803 = vcmp.ge.f32.partialorder %v767, 0.0
      %vm804 = vcmp.ge.f32.partialorder %v768, 0.0
      %vm805 = vcmp.ge.f32.partialorder %v769, 0.0
      %vm806 = vcmp.ge.f32.partialorder %v770, 0.0
      %vm807 = vcmp.ge.f32.partialorder %v771, 0.0
      %vm808 = vcmp.ge.f32.partialorder %v772, 0.0
      %vm809 = vcmp.ge.f32.partialorder %v773, 0.0
      %vm810 = vcmp.ge.f32.partialorder %v774, 0.0
      %vm811 = vcmp.ge.f32.partialorder %v775, 0.0
      %v812 = vmul.f32 %v740, 0.2
      %v813 = vmul.f32 %v741, 0.2
      %v814 = vmul.f32 %v742, 0.2
      %v815 = vmul.f32 %v743, 0.2
      %v816 = vmul.f32 %v744, 0.2
      %v817 = vmul.f32 %v745, 0.2
      %v818 = vmul.f32 %v746, 0.2
      %v819 = vmul.f32 %v747, 0.2
      %v820 = vmul.f32 %v748, 0.2
      %v821 = vmul.f32 %v749, 0.2
      %v822 = vmul.f32 %v750, 0.2
      %v823 = vmul.f32 %v751, 0.2
      %v824 = vmul.f32 %v752, 0.2
      %v825 = vmul.f32 %v753, 0.2
      %v826 = vmul.f32 %v754, 0.2
      %v827 = vmul.f32 %v755, 0.2
      %v828 = vmul.f32 %v756, 0.2
      %v829 = vmul.f32 %v757, 0.2
      %v830 = vmul.f32 %v758, 0.2
      %v831 = vmul.f32 %v759, 0.2
      %v832 = vmul.f32 %v760, 0.2
      %v833 = vmul.f32 %v761, 0.2
      %v834 = vmul.f32 %v762, 0.2
      %v835 = vmul.f32 %v763, 0.2
      %v836 = vmul.f32 %v764, 0.2
      %v837 = vmul.f32 %v765, 0.2
      %v838 = vmul.f32 %v766, 0.2
      %v839 = vmul.f32 %v767, 0.2
      %v840 = vmul.f32 %v768, 0.2
      %v841 = vmul.f32 %v769, 0.2
      %v842 = vmul.f32 %v770, 0.2
      %v843 = vmul.f32 %v771, 0.2
      %v844 = vmul.f32 %v772, 0.2
      %v845 = vmul.f32 %v773, 0.2
      %v846 = vmul.f32 %v774, 0.2
      %v847 = vmul.f32 %v775, 0.2
      %v848 = vsel %vm776, %v740, %v812
      %v849 = vsel %vm777, %v741, %v813
      %v850 = vsel %vm778, %v742, %v814
      %v851 = vsel %vm779, %v743, %v815
      %v852 = vsel %vm780, %v744, %v816
      %v853 = vsel %vm781, %v745, %v817
      %v854 = vsel %vm782, %v746, %v818
      %v855 = vsel %vm783, %v747, %v819
      %v856 = vsel %vm784, %v748, %v820
      %v857 = vsel %vm785, %v749, %v821
      %v858 = vsel %vm786, %v750, %v822
      %v859 = vsel %vm787, %v751, %v823
      %v860 = vsel %vm788, %v752, %v824
      %v861 = vsel %vm789, %v753, %v825
      %v862 = vsel %vm790, %v754, %v826
      %v863 = vsel %vm791, %v755, %v827
      %v864 = vsel %vm792, %v756, %v828
      %v865 = vsel %vm793, %v757, %v829
      %v866 = vsel %vm794, %v758, %v830
      %v867 = vsel %vm795, %v759, %v831
      %v868 = vsel %vm796, %v760, %v832
      %v869 = vsel %vm797, %v761, %v833
      %v870 = vsel %vm798, %v762, %v834
      %v871 = vsel %vm799, %v763, %v835
      %v872 = vsel %vm800, %v764, %v836
      %v873 = vsel %vm801, %v765, %v837
      %v874 = vsel %vm802, %v766, %v838
      %v875 = vsel %vm803, %v767, %v839
      %v876 = vsel %vm804, %v768, %v840
      %v877 = vsel %vm805, %v769, %v841
      %v878 = vsel %vm806, %v770, %v842
      %v879 = vsel %vm807, %v771, %v843
      %v880 = vsel %vm808, %v772, %v844
      %v881 = vsel %vm809, %v773, %v845
      %v882 = vsel %vm810, %v774, %v846
      %v883 = vsel %vm811, %v775, %v847
      %v884 = vmax.f32 %v848, %v852
      %v885 = vmax.f32 %v849, %v853
      %v886 = vmax.f32 %v850, %v854
      %v887 = vmax.f32 %v851, %v855
      %v888 = vmax.f32 %v884, %v856
      %v889 = vmax.f32 %v885, %v857
      %v890 = vmax.f32 %v886, %v858
      %v891 = vmax.f32 %v887, %v859
      %v892 = vmax.f32 %v888, %v860
      %v893 = vmax.f32 %v889, %v861
      %v894 = vmax.f32 %v890, %v862
      %v895 = vmax.f32 %v891, %v863
      %v896 = vmax.f32 %v892, %v864
      %v897 = vmax.f32 %v893, %v865
      %v898 = vmax.f32 %v894, %v866
      %v899 = vmax.f32 %v895, %v867
      %v900 = vmax.f32 %v896, %v868
      %v901 = vmax.f32 %v897, %v869
      %v902 = vmax.f32 %v898, %v870
      %v903 = vmax.f32 %v899, %v871
      %v904 = vmax.f32 %v900, %v872
      %v905 = vmax.f32 %v901, %v873
      %v906 = vmax.f32 %v902, %v874
      %v907 = vmax.f32 %v903, %v875
      %v908 = vmax.f32 %v904, %v876
      %v909 = vmax.f32 %v905, %v877
      %v910 = vmax.f32 %v906, %v878
      %v911 = vmax.f32 %v907, %v879
      %v912 = vmax.f32 %v908, %v880
      %v913 = vmax.f32 %v909, %v881
      %v914 = vmax.f32 %v910, %v882
      %v915 = vmax.f32 %v911, %v883
      %v916 = vpack.c.bf16 %v914, %v912
      %v917 = vpack.c.bf16 %v915, %v913
      %v920 = vunpack.c.l.b16 %v916
      %v921 = vunpack.c.l.b16 %v917
      %v922 = vunpack.c.h.b16 %v916
      %v923 = vunpack.c.h.b16 %v917
      %v924 = vpack.c.b16 %v921, %v920
      %v925 = vpack.c.b16 %v923, %v922
      %928 = vst [vmem:[%s143] sm:$0xff] %v924
      %929 = vst [vmem:[%s143 + $0x8] sm:$0xff] %v925
      %p930 = scmp.lt.s32.totalorder %s13, 1
      %s931 = scalar_select %p930, %s13, 1
      %s932 = smul.addr %s931, 4
      %s933 = smul.addr %s932, 4
      %s934 = scalar_lea.vmem %s2, %s933
      // Predicated region
      $region29: #{_lambda_.24} parent=27 // pred_check
        %p935 = pneg %p78
      $region30: #{_lambda_.24} parent=27 // pred_check_branch
        %937 = sbr.rel (%p935) target = $region32
      $region31: #{_lambda_.24} parent=27 // pred_region
        _
      $region32: #{_lambda_.24} parent=27 // pred_fallthru
        _
    $region28: #{_lambda_.24} parent=5 // pred_fallthru
      _
    %p938 = scmp.le.s32.totalorder 2, %s8
    // Predicated region
    $region33: #{_lambda_.24} parent=5 // pred_check
      %p939 = pneg %p938
    $region34: #{_lambda_.24} parent=5 // pred_check_branch
      %941 = sbr.rel (%p939) target = $region36
    $region35: #{_lambda_.24} parent=5 // pred_region
      %s942 = ssub.s32 %s8, 2
      // Predicated region
      $region37: #{_lambda_.24} parent=35 // pred_check
        %p943 = pneg %p84
      $region38: #{_lambda_.24} parent=35 // pred_check_branch
        %945 = sbr.rel (%p943) target = $region40
      $region39: #{_lambda_.24} parent=35 // pred_region
        %p946 = scmp.lt.s32.totalorder %s14, 1
        %s947 = scalar_select %p946, %s14, 1
        %s948 = smul.addr %s947, 4
        %s949 = smul.addr %s948, 4
        %s950 = scalar_lea.vmem %s2, %s949
      $region40: #{_lambda_.24} parent=35 // pred_fallthru
        _
    $region36: #{_lambda_.24} parent=5 // pred_fallthru
      _
  $region6: #{_lambda_.24} parent=0 // loop_footer
    %s12 = sadd.s32 1, %s8
  $region7: #{_lambda_.24} parent=0 // loop_footer_branch
    %7 = sbr.rel target = $region3
  $region8: #{_lambda_.24} parent=0 // loop_exit
    _

// kernel: _lambda_.21
$region0: #{_lambda_.21}
  #allocation0 [shape = 'u32[]', space=smem, size = 0x4, offset = 0x4, fixed_abs, tag = 'smem constant byte address 0x4 - core index']
  #allocation1 [shape = 'u32[144,128]{1,0:T(1,128)}', space=vmem, size = 0x12000, scoped, tag = 'internal scratch']
  %s0 = inlined_call_operand.vmem [shape: bf16[2,48,768], index: 0, kind: input, shape index: {}]
  %s1 = inlined_call_operand.vmem [shape: bf16[768,128], index: 1, kind: input, shape index: {}]
  %s2 = inlined_call_operand.vmem [shape: f32[1,128], index: 2, kind: input, shape index: {}]
  %s3 = inlined_call_operand.vmem [shape: bf16[3,128,128], index: 3, kind: input, shape index: {}]
  %s4 = inlined_call_operand.vmem [shape: f32[1,128], index: 4, kind: input, shape index: {}]
  %s5 = inlined_call_operand.vmem [shape: bf16[2,16,128], index: 5, kind: output, shape index: {}]
  %s6 = sld [smem:[#allocation0]]
  $region53: #{_lambda_.21} parent=0
    _
  %s8 = ssub.s32 1, %s6
  %s9 = scalar_select 0, %s8, %s6
  loop: start=0, step=1, limit=4
  $region2: #{_lambda_.21} parent=0 // loop_pre_header
    _
  $region3: #{_lambda_.21} parent=0 // loop_header
    %s11 = sphi 0, %s15
    %p12 = scmp.ge.s32.totalorder %s11, 4
    %s21 = sphi 0, %s23
    %s24 = sphi 0, %s21
    %s25 = sphi 0, %s24
    %s41 = sphi 0, %s25
    %s45 = sphi 0, %s45
    %s47 = sphi 0, %s45
    %s48 = sphi 0, %s47
    %s62 = sphi 0, %s48
    %s66 = sphi 0, %s66
    %s68 = sphi 0, %s66
    %s69 = sphi 0, %s68
    %s83 = sphi 0, %s69
    %s87 = sphi 0, %s87
    %s89 = sphi 0, %s87
    %s90 = sphi 0, %s89
    %s104 = sphi 0, %s90
    %s108 = sphi 0, %s108
    %s110 = sphi 0, %s108
    %s111 = sphi 0, %s110
    %s125 = sphi 0, %s111
    %s131 = sphi 0, %s133
    %s134 = sphi 0, %s131
    %s135 = sphi 0, %s134
    %s151 = sphi 0, %s135
  $region4: #{_lambda_.21} parent=0 // loop_header_branch
    %14 = sbr.rel (%p12) target = $region8
  $region5: #{_lambda_.21} parent=0 // loop_body
    %s16 = ssub.s32 %s11, 1
    %s17 = ssub.s32 %s11, 2
    %s18 = sadd.s32 %s11, 1
    %s19 = ssub.s32 %s11, %s18
    %p20 = scmp.eq.s32.totalorder %s19, 0
    %s22 = sadd.s32 %s21, 1
    %s23 = scalar_select %p20, %s21, %s22
    %p26 = pneg %p20
    %p27 = scmp.eq.s32.totalorder %s11, 1
    %p28 = por %p26, %p27
    %p29 = scmp.ne.s32.totalorder %s21, %s24
    %p30 = scmp.eq.s32.totalorder %s11, 0
    %p31 = por %p29, %p30
    %p32 = scmp.ne.s32.totalorder %s21, %s24
    %p33 = scmp.eq.s32.totalorder %s16, 1
    %p34 = por %p32, %p33
    %p35 = scmp.ne.s32.totalorder %s24, %s25
    %p36 = scmp.eq.s32.totalorder %s16, 0
    %p37 = por %p35, %p36
    %p38 = scmp.ne.s32.totalorder %s24, %s25
    %p39 = scmp.eq.s32.totalorder %s17, 1
    %p40 = por %p38, %p39
    %p42 = scmp.ne.s32.totalorder %s25, %s41
    %p43 = scmp.eq.s32.totalorder %s17, 0
    %p44 = por %p42, %p43
    %s46 = sadd.s32 %s45, 1
    %p49 = scmp.eq.s32.totalorder %s11, 1
    %p50 = scmp.ne.s32.totalorder %s45, %s47
    %p51 = scmp.eq.s32.totalorder %s11, 0
    %p52 = por %p50, %p51
    %p53 = scmp.ne.s32.totalorder %s45, %s47
    %p54 = scmp.eq.s32.totalorder %s16, 1
    %p55 = por %p53, %p54
    %p56 = scmp.ne.s32.totalorder %s47, %s48
    %p57 = scmp.eq.s32.totalorder %s16, 0
    %p58 = por %p56, %p57
    %p59 = scmp.ne.s32.totalorder %s47, %s48
    %p60 = scmp.eq.s32.totalorder %s17, 1
    %p61 = por %p59, %p60
    %p63 = scmp.ne.s32.totalorder %s48, %s62
    %p64 = scmp.eq.s32.totalorder %s17, 0
    %p65 = por %p63, %p64
    %s67 = sadd.s32 %s66, 1
    %p70 = scmp.eq.s32.totalorder %s11, 1
    %p71 = scmp.ne.s32.totalorder %s66, %s68
    %p72 = scmp.eq.s32.totalorder %s11, 0
    %p73 = por %p71, %p72
    %p74 = scmp.ne.s32.totalorder %s66, %s68
    %p75 = scmp.eq.s32.totalorder %s16, 1
    %p76 = por %p74, %p75
    %p77 = scmp.ne.s32.totalorder %s68, %s69
    %p78 = scmp.eq.s32.totalorder %s16, 0
    %p79 = por %p77, %p78
    %p80 = scmp.ne.s32.totalorder %s68, %s69
    %p81 = scmp.eq.s32.totalorder %s17, 1
    %p82 = por %p80, %p81
    %p84 = scmp.ne.s32.totalorder %s69, %s83
    %p85 = scmp.eq.s32.totalorder %s17, 0
    %p86 = por %p84, %p85
    %s88 = sadd.s32 %s87, 1
    %p91 = scmp.eq.s32.totalorder %s11, 1
    %p92 = scmp.ne.s32.totalorder %s87, %s89
    %p93 = scmp.eq.s32.totalorder %s11, 0
    %p94 = por %p92, %p93
    %p95 = scmp.ne.s32.totalorder %s87, %s89
    %p96 = scmp.eq.s32.totalorder %s16, 1
    %p97 = por %p95, %p96
    %p98 = scmp.ne.s32.totalorder %s89, %s90
    %p99 = scmp.eq.s32.totalorder %s16, 0
    %p100 = por %p98, %p99
    %p101 = scmp.ne.s32.totalorder %s89, %s90
    %p102 = scmp.eq.s32.totalorder %s17, 1
    %p103 = por %p101, %p102
    %p105 = scmp.ne.s32.totalorder %s90, %s104
    %p106 = scmp.eq.s32.totalorder %s17, 0
    %p107 = por %p105, %p106
    %s109 = sadd.s32 %s108, 1
    %p112 = scmp.eq.s32.totalorder %s11, 1
    %p113 = scmp.ne.s32.totalorder %s108, %s110
    %p114 = scmp.eq.s32.totalorder %s11, 0
    %p115 = por %p113, %p114
    %p116 = scmp.ne.s32.totalorder %s108, %s110
    %p117 = scmp.eq.s32.totalorder %s16, 1
    %p118 = por %p116, %p117
    %p119 = scmp.ne.s32.totalorder %s110, %s111
    %p120 = scmp.eq.s32.totalorder %s16, 0
    %p121 = por %p119, %p120
    %p122 = scmp.ne.s32.totalorder %s110, %s111
    %p123 = scmp.eq.s32.totalorder %s17, 1
    %p124 = por %p122, %p123
    %p126 = scmp.ne.s32.totalorder %s111, %s125
    %p127 = scmp.eq.s32.totalorder %s17, 0
    %p128 = por %p126, %p127
    %s129 = ssub.s32 %s11, %s18
    %p130 = scmp.eq.s32.totalorder %s129, 0
    %s132 = sadd.s32 %s131, 1
    %s133 = scalar_select %p130, %s131, %s132
    %p136 = pneg %p130
    %p137 = scmp.eq.s32.totalorder %s11, 1
    %p138 = por %p136, %p137
    %p139 = scmp.ne.s32.totalorder %s131, %s134
    %p140 = scmp.eq.s32.totalorder %s11, 0
    %p141 = por %p139, %p140
    %p142 = scmp.ne.s32.totalorder %s131, %s134
    %p143 = scmp.eq.s32.totalorder %s16, 1
    %p144 = por %p142, %p143
    %p145 = scmp.ne.s32.totalorder %s134, %s135
    %p146 = scmp.eq.s32.totalorder %s16, 0
    %p147 = por %p145, %p146
    %p148 = scmp.ne.s32.totalorder %s134, %s135
    %p149 = scmp.eq.s32.totalorder %s17, 1
    %p150 = por %p148, %p149
    %p152 = scmp.ne.s32.totalorder %s135, %s151
    %p153 = scmp.eq.s32.totalorder %s17, 0
    %p154 = por %p152, %p153
    %p155 = scmp.le.s32.totalorder 1, %s11
    %p156 = scmp.lt.s32.totalorder %s11, 3
    %p157 = pnand %p155, %p156
    %p158 = pneg %p157
    // Predicated region
    $region9: #{_lambda_.21} parent=5 // pred_check
      _
    $region10: #{_lambda_.21} parent=5 // pred_check_branch
      %160 = sbr.rel (%p157) target = $region12
    $region11: #{_lambda_.21} parent=5 // pred_region
      %s161 = ssub.s32 %s11, 1
      // Predicated region
      $region13: #{_lambda_.21} parent=11 // pred_check
        %p162 = pneg %p58
      $region14: #{_lambda_.21} parent=11 // pred_check_branch
        %164 = sbr.rel (%p162) target = $region16
      $region15: #{_lambda_.21} parent=11 // pred_region
        _
      $region16: #{_lambda_.21} parent=11 // pred_fallthru
        _
      // Predicated region
      $region17: #{_lambda_.21} parent=11 // pred_check
        %p165 = pneg %p79
      $region18: #{_lambda_.21} parent=11 // pred_check_branch
        %167 = sbr.rel (%p165) target = $region20
      $region19: #{_lambda_.21} parent=11 // pred_region
        _
      $region20: #{_lambda_.21} parent=11 // pred_fallthru
        _
      // Predicated region
      $region21: #{_lambda_.21} parent=11 // pred_check
        %p168 = pneg %p100
      $region22: #{_lambda_.21} parent=11 // pred_check_branch
        %170 = sbr.rel (%p168) target = $region24
      $region23: #{_lambda_.21} parent=11 // pred_region
        _
      $region24: #{_lambda_.21} parent=11 // pred_fallthru
        _
      // Predicated region
      $region25: #{_lambda_.21} parent=11 // pred_check
        %p171 = pneg %p121
      $region26: #{_lambda_.21} parent=11 // pred_check_branch
        %173 = sbr.rel (%p171) target = $region28
      $region27: #{_lambda_.21} parent=11 // pred_region
        _
      $region28: #{_lambda_.21} parent=11 // pred_fallthru
        _
    $region12: #{_lambda_.21} parent=5 // pred_fallthru
      _
    %p174 = scmp.lt.s32.totalorder %s11, 2
    // Predicated region
    $region29: #{_lambda_.21} parent=5 // pred_check
      %p175 = pneg %p174
    $region30: #{_lambda_.21} parent=5 // pred_check_branch
      %177 = sbr.rel (%p175) target = $region32
    $region31: #{_lambda_.21} parent=5 // pred_region
      // Predicated region
      $region33: #{_lambda_.21} parent=31 // pred_check
        %p178 = pneg %p31
      $region34: #{_lambda_.21} parent=31 // pred_check_branch
        %180 = sbr.rel (%p178) target = $region36
      $region35: #{_lambda_.21} parent=31 // pred_region
        %p181 = scmp.lt.s32.totalorder %s11, 1
        %s182 = scalar_select %p181, %s11, 1
        %s183 = smul.addr %s182, 36
        %s184 = smul.addr %s183, 4
        %s185 = scalar_lea.vmem %s0, %s184
      $region36: #{_lambda_.21} parent=31 // pred_fallthru
        _
    $region32: #{_lambda_.21} parent=5 // pred_fallthru
      _
    %p186 = scmp.le.s32.totalorder 1, %s11
    %p187 = scmp.lt.s32.totalorder %s11, 3
    %p188 = pnand %p186, %p187
    %p189 = pneg %p188
    // Predicated region
    $region37: #{_lambda_.21} parent=5 // pred_check
      _
    $region38: #{_lambda_.21} parent=5 // pred_check_branch
      %191 = sbr.rel (%p188) target = $region40
    $region39: #{_lambda_.21} parent=5 // pred_region
      %s192 = ssub.s32 %s11, 1
      %p193 = scmp.lt.s32.totalorder %s16, 1
      %s194 = scalar_select %p193, %s16, 1
      %s195 = smul.addr %s194, 36
      %s196 = smul.addr %s195, 4
      %s197 = scalar_lea.vmem %s0, %s196
      %p198 = pneg %p37
      %p199 = pneg %p34
      %p200 = pneg %p58
      %p201 = pneg %p55
      %p202 = pneg %p79
      %p203 = pneg %p76
      %p204 = pneg %p100
      %p205 = pneg %p97
      %p206 = pneg %p121
      %p207 = pneg %p118
      %p208 = pneg %p147
      %p209 = pneg %p144
      %p210 = scmp.lt.s32.totalorder %s16, 1
      %s211 = scalar_select %p210, %s16, 1
      %s212 = smul.addr %s211, 2
      %s213 = smul.addr %s212, 4
      %s214 = scalar_lea.vmem %s5, %s213
      %p215 = scmp.lt.s32.totalorder %s16, 1
      %s216 = scalar_select %p215, %s16, 1
      %s217 = smul.addr %s216, 36
      %s218 = smul.addr %s217, 4
      %s219 = scalar_lea.vmem %s0, %s218
      %p220 = scmp.lt.s32.totalorder %s16, 1
      %s221 = scalar_select %p220, %s16, 1
      %s222 = smul.addr %s221, 2
      %s223 = smul.addr %s222, 4
      %s224 = scalar_lea.vmem %s5, %s223
      %v226 = vld [vmem:[%s219] sm:$0xff]
      %v227 = vld [vmem:[%s219 + $0x8] sm:$0xff]
      %v228 = vld [vmem:[%s219 + $0x10] sm:$0xff]
      %v229 = vld [vmem:[%s219 + $0x18] sm:$0xff]
      %v230 = vld [vmem:[%s219 + $0x20] sm:$0xff]
      %v231 = vld [vmem:[%s219 + $0x28] sm:$0xff]
      %v232 = vld [vmem:[%s219 + $0x30] sm:$0xff]
      %v233 = vld [vmem:[%s219 + $0x38] sm:$0xff]
      %v234 = vld [vmem:[%s219 + $0x40] sm:$0xff]
      %v235 = vld [vmem:[%s219 + $0x48] sm:$0xff]
      %v236 = vld [vmem:[%s219 + $0x50] sm:$0xff]
      %v237 = vld [vmem:[%s219 + $0x58] sm:$0xff]
      %v238 = vld [vmem:[%s219 + $0x60] sm:$0xff]
      %v239 = vld [vmem:[%s219 + $0x68] sm:$0xff]
      %v240 = vld [vmem:[%s219 + $0x70] sm:$0xff]
      %v241 = vld [vmem:[%s219 + $0x78] sm:$0xff]
      %v242 = vld [vmem:[%s219 + $0x80] sm:$0xff]
      %v243 = vld [vmem:[%s219 + $0x88] sm:$0xff]
      %v244 = vld [vmem:[%s1] sm:$0xf]
      %v245 = vld [vmem:[%s1 + $0x4] sm:$0xf]
      %v246 = vld [vmem:[%s1 + $0x8] sm:$0xf]
      %v247 = vld [vmem:[%s1 + $0xc] sm:$0xf]
      %v248 = vld [vmem:[%s1 + $0x10] sm:$0xf]
      %v249 = vld [vmem:[%s1 + $0x14] sm:$0xf]
      %v250 = vld [vmem:[%s1 + $0x18] sm:$0xf]
      %v251 = vld [vmem:[%s1 + $0x1c] sm:$0xf]
      %v252 = vld [vmem:[%s1 + $0x20] sm:$0xf]
      %v253 = vld [vmem:[%s1 + $0x24] sm:$0xf]
      %v254 = vld [vmem:[%s1 + $0x28] sm:$0xf]
      %v255 = vld [vmem:[%s1 + $0x2c] sm:$0xf]
      %v256 = vld [vmem:[%s1 + $0x30] sm:$0xf]
      %v257 = vld [vmem:[%s1 + $0x34] sm:$0xf]
      %v258 = vld [vmem:[%s1 + $0x38] sm:$0xf]
      %v259 = vld [vmem:[%s1 + $0x3c] sm:$0xf]
      %v260 = vld [vmem:[%s1 + $0x40] sm:$0xf]
      %v261 = vld [vmem:[%s1 + $0x44] sm:$0xf]
      %v262 = vld [vmem:[%s1 + $0x48] sm:$0xf]
      %v263 = vld [vmem:[%s1 + $0x4c] sm:$0xf]
      %v264 = vld [vmem:[%s1 + $0x50] sm:$0xf]
      %v265 = vld [vmem:[%s1 + $0x54] sm:$0xf]
      %v266 = vld [vmem:[%s1 + $0x58] sm:$0xf]
      %v267 = vld [vmem:[%s1 + $0x5c] sm:$0xf]
      %v268 = vld [vmem:[%s1 + $0x60] sm:$0xf]
      %v269 = vld [vmem:[%s1 + $0x64] sm:$0xf]
      %v270 = vld [vmem:[%s1 + $0x68] sm:$0xf]
      %v271 = vld [vmem:[%s1 + $0x6c] sm:$0xf]
      %v272 = vld [vmem:[%s1 + $0x70] sm:$0xf]
      %v273 = vld [vmem:[%s1 + $0x74] sm:$0xf]
      %v274 = vld [vmem:[%s1 + $0x78] sm:$0xf]
      %v275 = vld [vmem:[%s1 + $0x7c] sm:$0xf]
      %v276 = vld [vmem:[%s1 + $0x80] sm:$0xf]
      %v277 = vld [vmem:[%s1 + $0x84] sm:$0xf]
      %v278 = vld [vmem:[%s1 + $0x88] sm:$0xf]
      %v279 = vld [vmem:[%s1 + $0x8c] sm:$0xf]
      %v280 = vld [vmem:[%s1 + $0x90] sm:$0xf]
      %v281 = vld [vmem:[%s1 + $0x94] sm:$0xf]
      %v282 = vld [vmem:[%s1 + $0x98] sm:$0xf]
      %v283 = vld [vmem:[%s1 + $0x9c] sm:$0xf]
      %v284 = vld [vmem:[%s1 + $0xa0] sm:$0xf]
      %v285 = vld [vmem:[%s1 + $0xa4] sm:$0xf]
      %v286 = vld [vmem:[%s1 + $0xa8] sm:$0xf]
      %v287 = vld [vmem:[%s1 + $0xac] sm:$0xf]
      %v288 = vld [vmem:[%s1 + $0xb0] sm:$0xf]
      %v289 = vld [vmem:[%s1 + $0xb4] sm:$0xf]
      %v290 = vld [vmem:[%s1 + $0xb8] sm:$0xf]
      %v291 = vld [vmem:[%s1 + $0xbc] sm:$0xf]
      %v292 = vld [vmem:[%s1 + $0xc0] sm:$0xf]
      %v293 = vld [vmem:[%s1 + $0xc4] sm:$0xf]
      %v294 = vld [vmem:[%s1 + $0xc8] sm:$0xf]
      %v295 = vld [vmem:[%s1 + $0xcc] sm:$0xf]
      %v296 = vld [vmem:[%s1 + $0xd0] sm:$0xf]
      %v297 = vld [vmem:[%s1 + $0xd4] sm:$0xf]
      %v298 = vld [vmem:[%s1 + $0xd8] sm:$0xf]
      %v299 = vld [vmem:[%s1 + $0xdc] sm:$0xf]
      %v300 = vld [vmem:[%s1 + $0xe0] sm:$0xf]
      %v301 = vld [vmem:[%s1 + $0xe4] sm:$0xf]
      %v302 = vld [vmem:[%s1 + $0xe8] sm:$0xf]
      %v303 = vld [vmem:[%s1 + $0xec] sm:$0xf]
      %v304 = vld [vmem:[%s1 + $0xf0] sm:$0xf]
      %v305 = vld [vmem:[%s1 + $0xf4] sm:$0xf]
      %v306 = vld [vmem:[%s1 + $0xf8] sm:$0xf]
      %v307 = vld [vmem:[%s1 + $0xfc] sm:$0xf]
      %v308 = vld [vmem:[%s1 + $0x100] sm:$0xf]
      %v309 = vld [vmem:[%s1 + $0x104] sm:$0xf]
      %v310 = vld [vmem:[%s1 + $0x108] sm:$0xf]
      %v311 = vld [vmem:[%s1 + $0x10c] sm:$0xf]
      %v312 = vld [vmem:[%s1 + $0x110] sm:$0xf]
      %v313 = vld [vmem:[%s1 + $0x114] sm:$0xf]
      %v314 = vld [vmem:[%s1 + $0x118] sm:$0xf]
      %v315 = vld [vmem:[%s1 + $0x11c] sm:$0xf]
      %v316 = vld [vmem:[%s1 + $0x120] sm:$0xf]
      %v317 = vld [vmem:[%s1 + $0x124] sm:$0xf]
      %v318 = vld [vmem:[%s1 + $0x128] sm:$0xf]
      %v319 = vld [vmem:[%s1 + $0x12c] sm:$0xf]
      %v320 = vld [vmem:[%s1 + $0x130] sm:$0xf]
      %v321 = vld [vmem:[%s1 + $0x134] sm:$0xf]
      %v322 = vld [vmem:[%s1 + $0x138] sm:$0xf]
      %v323 = vld [vmem:[%s1 + $0x13c] sm:$0xf]
      %v324 = vld [vmem:[%s1 + $0x140] sm:$0xf]
      %v325 = vld [vmem:[%s1 + $0x144] sm:$0xf]
      %v326 = vld [vmem:[%s1 + $0x148] sm:$0xf]
      %v327 = vld [vmem:[%s1 + $0x14c] sm:$0xf]
      %v328 = vld [vmem:[%s1 + $0x150] sm:$0xf]
      %v329 = vld [vmem:[%s1 + $0x154] sm:$0xf]
      %v330 = vld [vmem:[%s1 + $0x158] sm:$0xf]
      %v331 = vld [vmem:[%s1 + $0x15c] sm:$0xf]
      %v332 = vld [vmem:[%s1 + $0x160] sm:$0xf]
      %v333 = vld [vmem:[%s1 + $0x164] sm:$0xf]
      %v334 = vld [vmem:[%s1 + $0x168] sm:$0xf]
      %v335 = vld [vmem:[%s1 + $0x16c] sm:$0xf]
      %v336 = vld [vmem:[%s1 + $0x170] sm:$0xf]
      %v337 = vld [vmem:[%s1 + $0x174] sm:$0xf]
      %v338 = vld [vmem:[%s1 + $0x178] sm:$0xf]
      %v339 = vld [vmem:[%s1 + $0x17c] sm:$0xf]
      %v340 = vld [vmem:[%s2] sm:$0x1]
      %v342 = vlaneseq
      %v343 = vshrl.u32 %v342, 7
      %v344 = vsub.s32 0, %v343
      %v345 = vrot.slane %v340, %v344
      %v365 = vunpack.c.l.b16 %v226
      %v366 = vunpack.c.h.b16 %v226
      %v367 = vunpack.c.l.b16 %v227
      %v368 = vunpack.c.h.b16 %v227
      %v369 = vunpack.c.l.b16 %v228
      %v370 = vunpack.c.h.b16 %v228
      %v371 = vunpack.c.l.b16 %v229
      %v372 = vunpack.c.h.b16 %v229
      %v373 = vunpack.c.l.b16 %v230
      %v374 = vunpack.c.h.b16 %v230
      %v375 = vunpack.c.l.b16 %v231
      %v376 = vunpack.c.h.b16 %v231
      %v377 = vunpack.c.l.b16 %v232
      %v378 = vunpack.c.h.b16 %v232
      %v379 = vunpack.c.l.b16 %v233
      %v380 = vunpack.c.h.b16 %v233
      %v381 = vunpack.c.l.b16 %v234
      %v382 = vunpack.c.h.b16 %v234
      %v383 = vunpack.c.l.b16 %v235
      %v384 = vunpack.c.h.b16 %v235
      %v385 = vunpack.c.l.b16 %v236
      %v386 = vunpack.c.h.b16 %v236
      %v387 = vunpack.c.l.b16 %v237
      %v388 = vunpack.c.h.b16 %v237
      %v389 = vunpack.c.l.b16 %v238
      %v390 = vunpack.c.h.b16 %v238
      %v391 = vunpack.c.l.b16 %v239
      %v392 = vunpack.c.h.b16 %v239
      %v393 = vunpack.c.l.b16 %v240
      %v394 = vunpack.c.h.b16 %v240
      %v395 = vunpack.c.l.b16 %v241
      %v396 = vunpack.c.h.b16 %v241
      %v397 = vunpack.c.l.b16 %v242
      %v398 = vunpack.c.h.b16 %v242
      %v399 = vunpack.c.l.b16 %v243
      %v400 = vunpack.c.h.b16 %v243
      %v401 = vpack.c.b16 %v371, %v365
      %v402 = vpack.c.b16 %v372, %v366
      %v403 = vpack.c.b16 %v373, %v367
      %v404 = vpack.c.b16 %v374, %v368
      %v405 = vpack.c.b16 %v375, %v369
      %v406 = vpack.c.b16 %v376, %v370
      %v407 = vpack.c.b16 %v383, %v377
      %v408 = vpack.c.b16 %v384, %v378
      %v409 = vpack.c.b16 %v385, %v379
      %v410 = vpack.c.b16 %v386, %v380
      %v411 = vpack.c.b16 %v387, %v381
      %v412 = vpack.c.b16 %v388, %v382
      %v413 = vpack.c.b16 %v395, %v389
      %v414 = vpack.c.b16 %v396, %v390
      %v415 = vpack.c.b16 %v397, %v391
      %v416 = vpack.c.b16 %v398, %v392
      %v417 = vpack.c.b16 %v399, %v393
      %v418 = vpack.c.b16 %v400, %v394
      %v533 = vunpack.c.l.b16 %v244
      %v534 = vunpack.c.l.b16 %v245
      %v535 = vunpack.c.l.b16 %v246
      %v536 = vunpack.c.l.b16 %v247
      %v537 = vunpack.c.l.b16 %v248
      %v538 = vunpack.c.l.b16 %v249
      %v539 = vunpack.c.l.b16 %v250
      %v540 = vunpack.c.l.b16 %v251
      %v541 = vunpack.c.l.b16 %v252
      %v542 = vunpack.c.l.b16 %v253
      %v543 = vunpack.c.l.b16 %v254
      %v544 = vunpack.c.l.b16 %v255
      %v545 = vunpack.c.l.b16 %v256
      %v546 = vunpack.c.l.b16 %v257
      %v547 = vunpack.c.l.b16 %v258
      %v548 = vunpack.c.l.b16 %v259
      %v549 = vunpack.c.l.b16 %v260
      %v550 = vunpack.c.l.b16 %v261
      %v551 = vunpack.c.l.b16 %v262
      %v552 = vunpack.c.l.b16 %v263
      %v553 = vunpack.c.l.b16 %v264
      %v554 = vunpack.c.l.b16 %v265
      %v555 = vunpack.c.l.b16 %v266
      %v556 = vunpack.c.l.b16 %v267
      %v557 = vunpack.c.l.b16 %v268
      %v558 = vunpack.c.l.b16 %v269
      %v559 = vunpack.c.l.b16 %v270
      %v560 = vunpack.c.l.b16 %v271
      %v561 = vunpack.c.l.b16 %v272
      %v562 = vunpack.c.l.b16 %v273
      %v563 = vunpack.c.l.b16 %v274
      %v564 = vunpack.c.l.b16 %v275
      %v565 = vunpack.c.l.b16 %v276
      %v566 = vunpack.c.l.b16 %v277
      %v567 = vunpack.c.l.b16 %v278
      %v568 = vunpack.c.l.b16 %v279
      %v569 = vunpack.c.l.b16 %v280
      %v570 = vunpack.c.l.b16 %v281
      %v571 = vunpack.c.l.b16 %v282
      %v572 = vunpack.c.l.b16 %v283
      %v573 = vunpack.c.l.b16 %v284
      %v574 = vunpack.c.l.b16 %v285
      %v575 = vunpack.c.l.b16 %v286
      %v576 = vunpack.c.l.b16 %v287
      %v577 = vunpack.c.l.b16 %v288
      %v578 = vunpack.c.l.b16 %v289
      %v579 = vunpack.c.l.b16 %v290
      %v580 = vunpack.c.l.b16 %v291
      %v581 = vunpack.c.l.b16 %v292
      %v582 = vunpack.c.l.b16 %v293
      %v583 = vunpack.c.l.b16 %v294
      %v584 = vunpack.c.l.b16 %v295
      %v585 = vunpack.c.l.b16 %v296
      %v586 = vunpack.c.l.b16 %v297
      %v587 = vunpack.c.l.b16 %v298
      %v588 = vunpack.c.l.b16 %v299
      %v589 = vunpack.c.l.b16 %v300
      %v590 = vunpack.c.l.b16 %v301
      %v591 = vunpack.c.l.b16 %v302
      %v592 = vunpack.c.l.b16 %v303
      %v593 = vunpack.c.l.b16 %v304
      %v594 = vunpack.c.l.b16 %v305
      %v595 = vunpack.c.l.b16 %v306
      %v596 = vunpack.c.l.b16 %v307
      %v597 = vunpack.c.l.b16 %v308
      %v598 = vunpack.c.l.b16 %v309
      %v599 = vunpack.c.l.b16 %v310
      %v600 = vunpack.c.l.b16 %v311
      %v601 = vunpack.c.l.b16 %v312
      %v602 = vunpack.c.l.b16 %v313
      %v603 = vunpack.c.l.b16 %v314
      %v604 = vunpack.c.l.b16 %v315
      %v605 = vunpack.c.l.b16 %v316
      %v606 = vunpack.c.l.b16 %v317
      %v607 = vunpack.c.l.b16 %v318
      %v608 = vunpack.c.l.b16 %v319
      %v609 = vunpack.c.l.b16 %v320
      %v610 = vunpack.c.l.b16 %v321
      %v611 = vunpack.c.l.b16 %v322
      %v612 = vunpack.c.l.b16 %v323
      %v613 = vunpack.c.l.b16 %v324
      %v614 = vunpack.c.l.b16 %v325
      %v615 = vunpack.c.l.b16 %v326
      %v616 = vunpack.c.l.b16 %v327
      %v617 = vunpack.c.l.b16 %v328
      %v618 = vunpack.c.l.b16 %v329
      %v619 = vunpack.c.l.b16 %v330
      %v620 = vunpack.c.l.b16 %v331
      %v621 = vunpack.c.l.b16 %v332
      %v622 = vunpack.c.l.b16 %v333
      %v623 = vunpack.c.l.b16 %v334
      %v624 = vunpack.c.l.b16 %v335
      %v625 = vunpack.c.l.b16 %v336
      %v626 = vunpack.c.l.b16 %v337
      %v627 = vunpack.c.l.b16 %v338
      %v628 = vunpack.c.l.b16 %v339
      %v629 = vpack.c.b16 %v534, %v533
      %v630 = vpack.c.b16 %v536, %v535
      %v631 = vpack.c.b16 %v538, %v537
      %v632 = vpack.c.b16 %v540, %v539
      %v633 = vpack.c.b16 %v542, %v541
      %v634 = vpack.c.b16 %v544, %v543
      %v635 = vpack.c.b16 %v546, %v545
      %v636 = vpack.c.b16 %v548, %v547
      %v637 = vpack.c.b16 %v550, %v549
      %v638 = vpack.c.b16 %v552, %v551
      %v639 = vpack.c.b16 %v554, %v553
      %v640 = vpack.c.b16 %v556, %v555
      %v641 = vpack.c.b16 %v558, %v557
      %v642 = vpack.c.b16 %v560, %v559
      %v643 = vpack.c.b16 %v562, %v561
      %v644 = vpack.c.b16 %v564, %v563
      %v645 = vpack.c.b16 %v566, %v565
      %v646 = vpack.c.b16 %v568, %v567
      %v647 = vpack.c.b16 %v570, %v569
      %v648 = vpack.c.b16 %v572, %v571
      %v649 = vpack.c.b16 %v574, %v573
      %v650 = vpack.c.b16 %v576, %v575
      %v651 = vpack.c.b16 %v578, %v577
      %v652 = vpack.c.b16 %v580, %v579
      %v653 = vpack.c.b16 %v582, %v581
      %v654 = vpack.c.b16 %v584, %v583
      %v655 = vpack.c.b16 %v586, %v585
      %v656 = vpack.c.b16 %v588, %v587
      %v657 = vpack.c.b16 %v590, %v589
      %v658 = vpack.c.b16 %v592, %v591
      %v659 = vpack.c.b16 %v594, %v593
      %v660 = vpack.c.b16 %v596, %v595
      %v661 = vpack.c.b16 %v598, %v597
      %v662 = vpack.c.b16 %v600, %v599
      %v663 = vpack.c.b16 %v602, %v601
      %v664 = vpack.c.b16 %v604, %v603
      %v665 = vpack.c.b16 %v606, %v605
      %v666 = vpack.c.b16 %v608, %v607
      %v667 = vpack.c.b16 %v610, %v609
      %v668 = vpack.c.b16 %v612, %v611
      %v669 = vpack.c.b16 %v614, %v613
      %v670 = vpack.c.b16 %v616, %v615
      %v671 = vpack.c.b16 %v618, %v617
      %v672 = vpack.c.b16 %v620, %v619
      %v673 = vpack.c.b16 %v622, %v621
      %v674 = vpack.c.b16 %v624, %v623
      %v675 = vpack.c.b16 %v626, %v625
      %v676 = vpack.c.b16 %v628, %v627
      %725 = vmatprep.subr.bf16.mxu0 0
      %726 = vmatpush1.bf16.msra.mxu0 %v629
      %727 = vmatprep.subr.bf16.mxu0 0
      %728 = vmatpush1.bf16.msra.mxu0 %v630
      %729 = vmatprep.subr.bf16.mxu0 0
      %730 = vmatpush1.bf16.msra.mxu0 %v631
      %731 = vmatprep.subr.bf16.mxu0 0
      %732 = vmatpush1.bf16.msra.mxu0 %v632
      %733 = vmatprep.subr.bf16.mxu0 0
      %734 = vmatpush1.bf16.msra.mxu0 %v633
      %735 = vmatprep.subr.bf16.mxu0 0
      %736 = vmatpush1.bf16.msra.mxu0 %v634
      %737 = vmatprep.subr.bf16.mxu0 0
      %738 = vmatpush1.bf16.msra.mxu0 %v635
      %739 = vmatprep.subr.bf16.mxu0 0
      %740 = vmatpush1.bf16.msra.mxu0 %v636
      %741 = vmatprep.subr.bf16.mxu0 0
      %742 = vmatpush1.bf16.msra.mxu0 %v637
      %743 = vmatprep.subr.bf16.mxu0 0
      %744 = vmatpush1.bf16.msra.mxu0 %v638
      %745 = vmatprep.subr.bf16.mxu0 0
      %746 = vmatpush1.bf16.msra.mxu0 %v639
      %747 = vmatprep.subr.bf16.mxu0 0
      %748 = vmatpush1.bf16.msra.mxu0 %v640
      %749 = vmatprep.subr.bf16.mxu0 0
      %750 = vmatpush1.bf16.msra.mxu0 %v641
      %751 = vmatprep.subr.bf16.mxu0 0
      %752 = vmatpush1.bf16.msra.mxu0 %v642
      %753 = vmatprep.subr.bf16.mxu0 0
      %754 = vmatpush1.bf16.msra.mxu0 %v643
      %755 = vmatprep.subr.bf16.mxu0 0
      %756 = vmatpush1.bf16.msra.mxu0 %v644
      %757 = vmatprep.mubr.bf16.mxu0 %v402
      %758 = vmatmul.mubr.bf16.gmra.mrb[0].mxu0 %v401
      %v759 = vpop.f32.mrb[0].mxu0
      %v760 = vadd.f32 %v345, %v759
      %v761 = vpop.f32.mrb[0].mxu0
      %v762 = vpop.f32.mrb[0].mxu0
      %v763 = vadd.f32 %v345, %v762
      %v764 = vpop.f32.mrb[0].mxu0
      %765 = vmatprep.mubr.bf16.mxu0 %v408
      %766 = vmatmul.mubr.bf16.gmra.mrb[0].mxu0 %v407
      %v767 = vpop.f32.mrb[0].mxu0
      %v768 = vadd.f32 %v345, %v767
      %v769 = vpop.f32.mrb[0].mxu0
      %v770 = vpop.f32.mrb[0].mxu0
      %v771 = vadd.f32 %v345, %v770
      %v772 = vpop.f32.mrb[0].mxu0
      %773 = vmatprep.mubr.bf16.mxu0 %v414
      %774 = vmatmul.mubr.bf16.gmra.mrb[0].mxu0 %v413
      %v775 = vpop.f32.mrb[0].mxu0
      %v776 = vadd.f32 %v345, %v775
      %v777 = vpop.f32.mrb[0].mxu0
      %v778 = vpop.f32.mrb[0].mxu0
      %v779 = vadd.f32 %v345, %v778
      %v780 = vpop.f32.mrb[0].mxu0
      %781 = vdwg.mxu0
      %782 = vmatprep.subr.bf16.mxu0 0
      %783 = vmatpush1.bf16.msra.mxu0 %v645
      %784 = vmatprep.subr.bf16.mxu0 0
      %785 = vmatpush1.bf16.msra.mxu0 %v646
      %786 = vmatprep.subr.bf16.mxu0 0
      %787 = vmatpush1.bf16.msra.mxu0 %v647
      %788 = vmatprep.subr.bf16.mxu0 0
      %789 = vmatpush1.bf16.msra.mxu0 %v648
      %790 = vmatprep.subr.bf16.mxu0 0
      %791 = vmatpush1.bf16.msra.mxu0 %v649
      %792 = vmatprep.subr.bf16.mxu0 0
      %793 = vmatpush1.bf16.msra.mxu0 %v650
      %794 = vmatprep.subr.bf16.mxu0 0
      %795 = vmatpush1.bf16.msra.mxu0 %v651
      %796 = vmatprep.subr.bf16.mxu0 0
      %797 = vmatpush1.bf16.msra.mxu0 %v652
      %798 = vmatprep.subr.bf16.mxu0 0
      %799 = vmatpush1.bf16.msra.mxu0 %v653
      %800 = vmatprep.subr.bf16.mxu0 0
      %801 = vmatpush1.bf16.msra.mxu0 %v654
      %802 = vmatprep.subr.bf16.mxu0 0
      %803 = vmatpush1.bf16.msra.mxu0 %v655
      %804 = vmatprep.subr.bf16.mxu0 0
      %805 = vmatpush1.bf16.msra.mxu0 %v656
      %806 = vmatprep.subr.bf16.mxu0 0
      %807 = vmatpush1.bf16.msra.mxu0 %v657
      %808 = vmatprep.subr.bf16.mxu0 0
      %809 = vmatpush1.bf16.msra.mxu0 %v658
      %810 = vmatprep.subr.bf16.mxu0 0
      %811 = vmatpush1.bf16.msra.mxu0 %v659
      %812 = vmatprep.subr.bf16.mxu0 0
      %813 = vmatpush1.bf16.msra.mxu0 %v660
      %814 = vmatprep.mubr.bf16.mxu0 %v404
      %815 = vmatmul.mubr.bf16.gmra.mrb[0].mxu0 %v403
      %v816 = vpop.f32.mrb[0].mxu0
      %v817 = vadd.f32 %v760, %v816
      %v818 = vpop.f32.mrb[0].mxu0
      %v819 = vpop.f32.mrb[0].mxu0
      %v820 = vadd.f32 %v763, %v819
      %v821 = vpop.f32.mrb[0].mxu0
      %822 = vmatprep.mubr.bf16.mxu0 %v410
      %823 = vmatmul.mubr.bf16.gmra.mrb[0].mxu0 %v409
      %v824 = vpop.f32.mrb[0].mxu0
      %v825 = vadd.f32 %v768, %v824
      %v826 = vpop.f32.mrb[0].mxu0
      %v827 = vpop.f32.mrb[0].mxu0
      %v828 = vadd.f32 %v771, %v827
      %v829 = vpop.f32.mrb[0].mxu0
      %830 = vmatprep.mubr.bf16.mxu0 %v416
      %831 = vmatmul.mubr.bf16.gmra.mrb[0].mxu0 %v415
      %v832 = vpop.f32.mrb[0].mxu0
      %v833 = vadd.f32 %v776, %v832
      %v834 = vpop.f32.mrb[0].mxu0
      %v835 = vpop.f32.mrb[0].mxu0
      %v836 = vadd.f32 %v779, %v835
      %v837 = vpop.f32.mrb[0].mxu0
      %838 = vdwg.mxu0
      %839 = vmatprep.subr.bf16.mxu0 0
      %840 = vmatpush1.bf16.msra.mxu0 %v661
      %841 = vmatprep.subr.bf16.mxu0 0
      %842 = vmatpush1.bf16.msra.mxu0 %v662
      %843 = vmatprep.subr.bf16.mxu0 0
      %844 = vmatpush1.bf16.msra.mxu0 %v663
      %845 = vmatprep.subr.bf16.mxu0 0
      %846 = vmatpush1.bf16.msra.mxu0 %v664
      %847 = vmatprep.subr.bf16.mxu0 0
      %848 = vmatpush1.bf16.msra.mxu0 %v665
      %849 = vmatprep.subr.bf16.mxu0 0
      %850 = vmatpush1.bf16.msra.mxu0 %v666
      %851 = vmatprep.subr.bf16.mxu0 0
      %852 = vmatpush1.bf16.msra.mxu0 %v667
      %853 = vmatprep.subr.bf16.mxu0 0
      %854 = vmatpush1.bf16.msra.mxu0 %v668
      %855 = vmatprep.subr.bf16.mxu0 0
      %856 = vmatpush1.bf16.msra.mxu0 %v669
      %857 = vmatprep.subr.bf16.mxu0 0
      %858 = vmatpush1.bf16.msra.mxu0 %v670
      %859 = vmatprep.subr.bf16.mxu0 0
      %860 = vmatpush1.bf16.msra.mxu0 %v671
      %861 = vmatprep.subr.bf16.mxu0 0
      %862 = vmatpush1.bf16.msra.mxu0 %v672
      %863 = vmatprep.subr.bf16.mxu0 0
      %864 = vmatpush1.bf16.msra.mxu0 %v673
      %865 = vmatprep.subr.bf16.mxu0 0
      %866 = vmatpush1.bf16.msra.mxu0 %v674
      %867 = vmatprep.subr.bf16.mxu0 0
      %868 = vmatpush1.bf16.msra.mxu0 %v675
      %869 = vmatprep.subr.bf16.mxu0 0
      %870 = vmatpush1.bf16.msra.mxu0 %v676
      %871 = vmatprep.mubr.bf16.mxu0 %v406
      %872 = vmatmul.mubr.bf16.gmra.mrb[0].mxu0 %v405
      %v873 = vpop.f32.mrb[0].mxu0
      %v874 = vadd.f32 %v817, %v873
      %v875 = vpop.f32.mrb[0].mxu0
      %v876 = vpop.f32.mrb[0].mxu0
      %v877 = vadd.f32 %v820, %v876
      %v878 = vpop.f32.mrb[0].mxu0
      %879 = vmatprep.mubr.bf16.mxu0 %v412
      %880 = vmatmul.mubr.bf16.gmra.mrb[0].mxu0 %v411
      %v881 = vpop.f32.mrb[0].mxu0
      %v882 = vadd.f32 %v825, %v881
      %v883 = vpop.f32.mrb[0].mxu0
      %v884 = vpop.f32.mrb[0].mxu0
      %v885 = vadd.f32 %v828, %v884
      %v886 = vpop.f32.mrb[0].mxu0
      %887 = vmatprep.mubr.bf16.mxu0 %v418
      %888 = vmatmul.mubr.bf16.gmra.mrb[0].mxu0 %v417
      %v889 = vpop.f32.mrb[0].mxu0
      %v890 = vadd.f32 %v833, %v889
      %v891 = vpop.f32.mrb[0].mxu0
      %v892 = vpop.f32.mrb[0].mxu0
      %v893 = vadd.f32 %v836, %v892
      %v894 = vpop.f32.mrb[0].mxu0
      %895 = vdwg.mxu0
      %v896 = vadd.f32 %v874, %v877
      %v897 = vadd.f32 %v896, %v882
      %v898 = vadd.f32 %v897, %v885
      %v899 = vadd.f32 %v898, %v890
      %v900 = vadd.f32 %v899, %v893
      %v901 = vrot.slane %v900, 4
      %v902 = vadd.f32 %v900, %v901
      %v903 = vrot.slane %v902, 2
      %v904 = vadd.f32 %v902, %v903
      %v905 = vrot.slane %v904, 1
      %v906 = vadd.f32 %v904, %v905
      %v907 = vrcp.pop 48.0
      %v908 = vmul.f32 %v906, %v907
      %v909 = vsub.f32 %v874, %v908
      %v910 = vsub.f32 %v877, %v908
      %v911 = vsub.f32 %v882, %v908
      %v912 = vsub.f32 %v885, %v908
      %v913 = vsub.f32 %v890, %v908
      %v914 = vsub.f32 %v893, %v908
      %v915 = vmul.f32 %v909, %v909
      %v916 = vmul.f32 %v910, %v910
      %v917 = vmul.f32 %v911, %v911
      %v918 = vmul.f32 %v912, %v912
      %v919 = vmul.f32 %v913, %v913
      %v920 = vmul.f32 %v914, %v914
      %v921 = vadd.f32 %v915, %v916
      %v922 = vadd.f32 %v921, %v917
      %v923 = vadd.f32 %v922, %v918
      %v924 = vadd.f32 %v923, %v919
      %v925 = vadd.f32 %v924, %v920
      %v926 = vrot.slane %v925, 4
      %v927 = vadd.f32 %v925, %v926
      %v928 = vrot.slane %v927, 2
      %v929 = vadd.f32 %v927, %v928
      %v930 = vrot.slane %v929, 1
      %v931 = vadd.f32 %v929, %v930
      %v932 = vmul.f32 %v931, %v907
      %v933 = vadd.f32 %v932, 1e-05
      %v934 = vrsqrt.pop %v933
      %v935 = vmul.f32 %v909, %v934
      %v936 = vmul.f32 %v910, %v934
      %v937 = vmul.f32 %v911, %v934
      %v938 = vmul.f32 %v912, %v934
      %v939 = vmul.f32 %v913, %v934
      %v940 = vmul.f32 %v914, %v934
      %v941 = vmax.f32 %v935, 0.0
      %v942 = vmax.f32 %v936, 0.0
      %v943 = vmax.f32 %v937, 0.0
      %v944 = vmax.f32 %v938, 0.0
      %v945 = vmax.f32 %v939, 0.0
      %v946 = vmax.f32 %v940, 0.0
      %v947 = vpack.c.bf16 %v942, %v941
      %v948 = vld [vmem:[%s3] sm:$0xf]
      %v949 = vld [vmem:[%s3 + $0x4] sm:$0xf]
      %v950 = vld [vmem:[%s3 + $0x8] sm:$0xf]
      %v951 = vld [vmem:[%s3 + $0xc] sm:$0xf]
      %v952 = vld [vmem:[%s3 + $0x10] sm:$0xf]
      %v953 = vld [vmem:[%s3 + $0x14] sm:$0xf]
      %v954 = vld [vmem:[%s3 + $0x18] sm:$0xf]
      %v955 = vld [vmem:[%s3 + $0x1c] sm:$0xf]
      %v956 = vld [vmem:[%s3 + $0x20] sm:$0xf]
      %v957 = vld [vmem:[%s3 + $0x24] sm:$0xf]
      %v958 = vld [vmem:[%s3 + $0x28] sm:$0xf]
      %v959 = vld [vmem:[%s3 + $0x2c] sm:$0xf]
      %v960 = vld [vmem:[%s3 + $0x30] sm:$0xf]
      %v961 = vld [vmem:[%s3 + $0x34] sm:$0xf]
      %v962 = vld [vmem:[%s3 + $0x38] sm:$0xf]
      %v963 = vld [vmem:[%s3 + $0x3c] sm:$0xf]
      %v964 = vpack.c.bf16 %v944, %v943
      %s965 = scalar_lea.vmem %s3, 64
      %v966 = vld [vmem:[%s965] sm:$0xf]
      %v967 = vld [vmem:[%s965 + $0x4] sm:$0xf]
      %v968 = vld [vmem:[%s965 + $0x8] sm:$0xf]
      %v969 = vld [vmem:[%s965 + $0xc] sm:$0xf]
      %v970 = vld [vmem:[%s965 + $0x10] sm:$0xf]
      %v971 = vld [vmem:[%s965 + $0x14] sm:$0xf]
      %v972 = vld [vmem:[%s965 + $0x18] sm:$0xf]
      %v973 = vld [vmem:[%s965 + $0x1c] sm:$0xf]
      %v974 = vld [vmem:[%s965 + $0x20] sm:$0xf]
      %v975 = vld [vmem:[%s965 + $0x24] sm:$0xf]
      %v976 = vld [vmem:[%s965 + $0x28] sm:$0xf]
      %v977 = vld [vmem:[%s965 + $0x2c] sm:$0xf]
      %v978 = vld [vmem:[%s965 + $0x30] sm:$0xf]
      %v979 = vld [vmem:[%s965 + $0x34] sm:$0xf]
      %v980 = vld [vmem:[%s965 + $0x38] sm:$0xf]
      %v981 = vld [vmem:[%s965 + $0x3c] sm:$0xf]
      %v998 = vunpack.c.l.b16 %v966
      %v999 = vunpack.c.l.b16 %v967
      %v1000 = vunpack.c.l.b16 %v968
      %v1001 = vunpack.c.l.b16 %v969
      %v1002 = vunpack.c.l.b16 %v970
      %v1003 = vunpack.c.l.b16 %v971
      %v1004 = vunpack.c.l.b16 %v972
      %v1005 = vunpack.c.l.b16 %v973
      %v1006 = vunpack.c.l.b16 %v974
      %v1007 = vunpack.c.l.b16 %v975
      %v1008 = vunpack.c.l.b16 %v976
      %v1009 = vunpack.c.l.b16 %v977
      %v1010 = vunpack.c.l.b16 %v978
      %v1011 = vunpack.c.l.b16 %v979
      %v1012 = vunpack.c.l.b16 %v980
      %v1013 = vunpack.c.l.b16 %v981
      %v1014 = vpack.c.b16 %v999, %v998
      %v1015 = vpack.c.b16 %v1001, %v1000
      %v1016 = vpack.c.b16 %v1003, %v1002
      %v1017 = vpack.c.b16 %v1005, %v1004
      %v1018 = vpack.c.b16 %v1007, %v1006
      %v1019 = vpack.c.b16 %v1009, %v1008
      %v1020 = vpack.c.b16 %v1011, %v1010
      %v1021 = vpack.c.b16 %v1013, %v1012
      %1030 = vmatprep.subr.bf16.mxu0 0
      %1031 = vmatpush1.bf16.msra.mxu0 %v1014
      %1032 = vmatprep.subr.bf16.mxu0 0
      %1033 = vmatpush1.bf16.msra.mxu0 %v1015
      %1034 = vmatprep.subr.bf16.mxu0 0
      %1035 = vmatpush1.bf16.msra.mxu0 %v1016
      %1036 = vmatprep.subr.bf16.mxu0 0
      %1037 = vmatpush1.bf16.msra.mxu0 %v1017
      %1038 = vmatprep.subr.bf16.mxu0 0
      %1039 = vmatpush1.bf16.msra.mxu0 %v1018
      %1040 = vmatprep.subr.bf16.mxu0 0
      %1041 = vmatpush1.bf16.msra.mxu0 %v1019
      %1042 = vmatprep.subr.bf16.mxu0 0
      %1043 = vmatpush1.bf16.msra.mxu0 %v1020
      %1044 = vmatprep.subr.bf16.mxu0 0
      %1045 = vmatpush1.bf16.msra.mxu0 %v1021
      %1046 = vmatprep.subr.bf16.mxu0 0
      %1047 = vmatpush1.bf16.msra.mxu0 0
      %1048 = vmatprep.subr.bf16.mxu0 0
      %1049 = vmatpush1.bf16.msra.mxu0 0
      %1050 = vmatprep.subr.bf16.mxu0 0
      %1051 = vmatpush1.bf16.msra.mxu0 0
      %1052 = vmatprep.subr.bf16.mxu0 0
      %1053 = vmatpush1.bf16.msra.mxu0 0
      %1054 = vmatprep.subr.bf16.mxu0 0
      %1055 = vmatpush1.bf16.msra.mxu0 0
      %1056 = vmatprep.subr.bf16.mxu0 0
      %1057 = vmatpush1.bf16.msra.mxu0 0
      %1058 = vmatprep.subr.bf16.mxu0 0
      %1059 = vmatpush1.bf16.msra.mxu0 0
      %1060 = vmatprep.subr.bf16.mxu0 0
      %1061 = vmatpush1.bf16.msra.mxu0 0
      %1062 = vmatprep.mubr.bf16.mxu0 0
      %1063 = vmatmul.mubr.bf16.gmra.mrb[0].mxu0 %v964
      %v1064 = vpop.f32.mrb[0].mxu0
      %v1065 = vadd.f32 0.0, %v1064
      %v1066 = vpop.f32.mrb[0].mxu0
      %v1067 = vpop.f32.mrb[0].mxu0
      %v1068 = vadd.f32 0.0, %v1067
      %v1069 = vpop.f32.mrb[0].mxu0
      %1070 = vdwg.mxu0
      %v1087 = vunpack.c.l.b16 %v948
      %v1088 = vunpack.c.l.b16 %v949
      %v1089 = vunpack.c.l.b16 %v950
      %v1090 = vunpack.c.l.b16 %v951
      %v1091 = vunpack.c.l.b16 %v952
      %v1092 = vunpack.c.l.b16 %v953
      %v1093 = vunpack.c.l.b16 %v954
      %v1094 = vunpack.c.l.b16 %v955
      %v1095 = vunpack.c.l.b16 %v956
      %v1096 = vunpack.c.l.b16 %v957
      %v1097 = vunpack.c.l.b16 %v958
      %v1098 = vunpack.c.l.b16 %v959
      %v1099 = vunpack.c.l.b16 %v960
      %v1100 = vunpack.c.l.b16 %v961
      %v1101 = vunpack.c.l.b16 %v962
      %v1102 = vunpack.c.l.b16 %v963
      %v1103 = vpack.c.b16 %v1088, %v1087
      %v1104 = vpack.c.b16 %v1090, %v1089
      %v1105 = vpack.c.b16 %v1092, %v1091
      %v1106 = vpack.c.b16 %v1094, %v1093
      %v1107 = vpack.c.b16 %v1096, %v1095
      %v1108 = vpack.c.b16 %v1098, %v1097
      %v1109 = vpack.c.b16 %v1100, %v1099
      %v1110 = vpack.c.b16 %v1102, %v1101
      %1119 = vmatprep.subr.bf16.mxu0 0
      %1120 = vmatpush1.bf16.msra.mxu0 %v1103
      %1121 = vmatprep.subr.bf16.mxu0 0
      %1122 = vmatpush1.bf16.msra.mxu0 %v1104
      %1123 = vmatprep.subr.bf16.mxu0 0
      %1124 = vmatpush1.bf16.msra.mxu0 %v1105
      %1125 = vmatprep.subr.bf16.mxu0 0
      %1126 = vmatpush1.bf16.msra.mxu0 %v1106
      %1127 = vmatprep.subr.bf16.mxu0 0
      %1128 = vmatpush1.bf16.msra.mxu0 %v1107
      %1129 = vmatprep.subr.bf16.mxu0 0
      %1130 = vmatpush1.bf16.msra.mxu0 %v1108
      %1131 = vmatprep.subr.bf16.mxu0 0
      %1132 = vmatpush1.bf16.msra.mxu0 %v1109
      %1133 = vmatprep.subr.bf16.mxu0 0
      %1134 = vmatpush1.bf16.msra.mxu0 %v1110
      %1135 = vmatprep.subr.bf16.mxu0 0
      %1136 = vmatpush1.bf16.msra.mxu0 0
      %1137 = vmatprep.subr.bf16.mxu0 0
      %1138 = vmatpush1.bf16.msra.mxu0 0
      %1139 = vmatprep.subr.bf16.mxu0 0
      %1140 = vmatpush1.bf16.msra.mxu0 0
      %1141 = vmatprep.subr.bf16.mxu0 0
      %1142 = vmatpush1.bf16.msra.mxu0 0
      %1143 = vmatprep.subr.bf16.mxu0 0
      %1144 = vmatpush1.bf16.msra.mxu0 0
      %1145 = vmatprep.subr.bf16.mxu0 0
      %1146 = vmatpush1.bf16.msra.mxu0 0
      %1147 = vmatprep.subr.bf16.mxu0 0
      %1148 = vmatpush1.bf16.msra.mxu0 0
      %1149 = vmatprep.subr.bf16.mxu0 0
      %1150 = vmatpush1.bf16.msra.mxu0 0
      %1151 = vmatprep.mubr.bf16.mxu0 0
      %1152 = vmatmul.mubr.bf16.gmra.mrb[0].mxu0 %v947
      %v1153 = vpop.f32.mrb[0].mxu0
      %v1154 = vadd.f32 %v1065, %v1153
      %v1155 = vpop.f32.mrb[0].mxu0
      %v1156 = vpop.f32.mrb[0].mxu0
      %v1157 = vadd.f32 %v1068, %v1156
      %v1158 = vpop.f32.mrb[0].mxu0
      %1159 = vdwg.mxu0
      %v1160 = vpack.c.bf16 %v946, %v945
      %s1161 = scalar_lea.vmem %s3, 128
      %v1162 = vld [vmem:[%s1161] sm:$0xf]
      %v1163 = vld [vmem:[%s1161 + $0x4] sm:$0xf]
      %v1164 = vld [vmem:[%s1161 + $0x8] sm:$0xf]
      %v1165 = vld [vmem:[%s1161 + $0xc] sm:$0xf]
      %v1166 = vld [vmem:[%s1161 + $0x10] sm:$0xf]
      %v1167 = vld [vmem:[%s1161 + $0x14] sm:$0xf]
      %v1168 = vld [vmem:[%s1161 + $0x18] sm:$0xf]
      %v1169 = vld [vmem:[%s1161 + $0x1c] sm:$0xf]
      %v1170 = vld [vmem:[%s1161 + $0x20] sm:$0xf]
      %v1171 = vld [vmem:[%s1161 + $0x24] sm:$0xf]
      %v1172 = vld [vmem:[%s1161 + $0x28] sm:$0xf]
      %v1173 = vld [vmem:[%s1161 + $0x2c] sm:$0xf]
      %v1174 = vld [vmem:[%s1161 + $0x30] sm:$0xf]
      %v1175 = vld [vmem:[%s1161 + $0x34] sm:$0xf]
      %v1176 = vld [vmem:[%s1161 + $0x38] sm:$0xf]
      %v1177 = vld [vmem:[%s1161 + $0x3c] sm:$0xf]
      %v1194 = vunpack.c.l.b16 %v1162
      %v1195 = vunpack.c.l.b16 %v1163
      %v1196 = vunpack.c.l.b16 %v1164
      %v1197 = vunpack.c.l.b16 %v1165
      %v1198 = vunpack.c.l.b16 %v1166
      %v1199 = vunpack.c.l.b16 %v1167
      %v1200 = vunpack.c.l.b16 %v1168
      %v1201 = vunpack.c.l.b16 %v1169
      %v1202 = vunpack.c.l.b16 %v1170
      %v1203 = vunpack.c.l.b16 %v1171
      %v1204 = vunpack.c.l.b16 %v1172
      %v1205 = vunpack.c.l.b16 %v1173
      %v1206 = vunpack.c.l.b16 %v1174
      %v1207 = vunpack.c.l.b16 %v1175
      %v1208 = vunpack.c.l.b16 %v1176
      %v1209 = vunpack.c.l.b16 %v1177
      %v1210 = vpack.c.b16 %v1195, %v1194
      %v1211 = vpack.c.b16 %v1197, %v1196
      %v1212 = vpack.c.b16 %v1199, %v1198
      %v1213 = vpack.c.b16 %v1201, %v1200
      %v1214 = vpack.c.b16 %v1203, %v1202
      %v1215 = vpack.c.b16 %v1205, %v1204
      %v1216 = vpack.c.b16 %v1207, %v1206
      %v1217 = vpack.c.b16 %v1209, %v1208
      %1226 = vmatprep.subr.bf16.mxu0 0
      %1227 = vmatpush1.bf16.msra.mxu0 %v1210
      %1228 = vmatprep.subr.bf16.mxu0 0
      %1229 = vmatpush1.bf16.msra.mxu0 %v1211
      %1230 = vmatprep.subr.bf16.mxu0 0
      %1231 = vmatpush1.bf16.msra.mxu0 %v1212
      %1232 = vmatprep.subr.bf16.mxu0 0
      %1233 = vmatpush1.bf16.msra.mxu0 %v1213
      %1234 = vmatprep.subr.bf16.mxu0 0
      %1235 = vmatpush1.bf16.msra.mxu0 %v1214
      %1236 = vmatprep.subr.bf16.mxu0 0
      %1237 = vmatpush1.bf16.msra.mxu0 %v1215
      %1238 = vmatprep.subr.bf16.mxu0 0
      %1239 = vmatpush1.bf16.msra.mxu0 %v1216
      %1240 = vmatprep.subr.bf16.mxu0 0
      %1241 = vmatpush1.bf16.msra.mxu0 %v1217
      %1242 = vmatprep.subr.bf16.mxu0 0
      %1243 = vmatpush1.bf16.msra.mxu0 0
      %1244 = vmatprep.subr.bf16.mxu0 0
      %1245 = vmatpush1.bf16.msra.mxu0 0
      %1246 = vmatprep.subr.bf16.mxu0 0
      %1247 = vmatpush1.bf16.msra.mxu0 0
      %1248 = vmatprep.subr.bf16.mxu0 0
      %1249 = vmatpush1.bf16.msra.mxu0 0
      %1250 = vmatprep.subr.bf16.mxu0 0
      %1251 = vmatpush1.bf16.msra.mxu0 0
      %1252 = vmatprep.subr.bf16.mxu0 0
      %1253 = vmatpush1.bf16.msra.mxu0 0
      %1254 = vmatprep.subr.bf16.mxu0 0
      %1255 = vmatpush1.bf16.msra.mxu0 0
      %1256 = vmatprep.subr.bf16.mxu0 0
      %1257 = vmatpush1.bf16.msra.mxu0 0
      %1258 = vmatprep.mubr.bf16.mxu0 0
      %1259 = vmatmul.mubr.bf16.gmra.mrb[0].mxu0 %v1160
      %v1260 = vpop.f32.mrb[0].mxu0
      %v1261 = vadd.f32 0.0, %v1260
      %v1262 = vpop.f32.mrb[0].mxu0
      %v1263 = vpop.f32.mrb[0].mxu0
      %v1264 = vadd.f32 0.0, %v1263
      %v1265 = vpop.f32.mrb[0].mxu0
      %1266 = vdwg.mxu0
      %v1267 = vadd.f32 %v1154, %v1261
      %v1268 = vadd.f32 %v1157, %v1264
      %v1269 = vld [vmem:[%s4] sm:$0x1]
      %v1271 = vlaneseq
      %v1272 = vshrl.u32 %v1271, 7
      %v1273 = vsub.s32 0, %v1272
      %v1274 = vrot.slane %v1269, %v1273
      %v1276 = vadd.f32 %v1267, %v1274
      %v1277 = vadd.f32 %v1268, %v1274
      %v1278 = vadd.f32 %v1276, %v1277
      %v1279 = vrot.slane %v1278, 4
      %v1280 = vadd.f32 %v1278, %v1279
      %v1281 = vrot.slane %v1280, 2
      %v1282 = vadd.f32 %v1280, %v1281
      %v1283 = vrot.slane %v1282, 1
      %v1284 = vadd.f32 %v1282, %v1283
      %v1285 = vrcp.pop 16.0
      %v1286 = vmul.f32 %v1284, %v1285
      %v1287 = vsub.f32 %v1276, %v1286
      %v1288 = vsub.f32 %v1277, %v1286
      %v1289 = vmul.f32 %v1287, %v1287
      %v1290 = vmul.f32 %v1288, %v1288
      %v1291 = vadd.f32 %v1289, %v1290
      %v1292 = vrot.slane %v1291, 4
      %v1293 = vadd.f32 %v1291, %v1292
      %v1294 = vrot.slane %v1293, 2
      %v1295 = vadd.f32 %v1293, %v1294
      %v1296 = vrot.slane %v1295, 1
      %v1297 = vadd.f32 %v1295, %v1296
      %v1298 = vmul.f32 %v1297, %v1285
      %v1299 = vadd.f32 %v1298, 1e-05
      %v1300 = vrsqrt.pop %v1299
      %v1301 = vmul.f32 %v1287, %v1300
      %v1302 = vmul.f32 %v1288, %v1300
      %v1303 = vmax.f32 %v1301, 0.0
      %v1304 = vmax.f32 %v1302, 0.0
      %v1305 = vpack.c.bf16 %v1304, %v1303
      %v1307 = vunpack.c.l.b16 %v1305
      %v1308 = vunpack.c.h.b16 %v1305
      %v1309 = vpack.c.b16 %v1307, %v1307
      %v1310 = vpack.c.b16 %v1308, %v1308
      %1313 = vst [vmem:[%s224] sm:$0xf] %v1309
      %1314 = vst [vmem:[%s224 + $0x4] sm:$0xf] %v1310
      %p1315 = scmp.lt.s32.totalorder %s16, 1
      %s1316 = scalar_select %p1315, %s16, 1
      %s1317 = smul.addr %s1316, 2
      %s1318 = smul.addr %s1317, 4
      %s1319 = scalar_lea.vmem %s5, %s1318
      // Predicated region
      $region41: #{_lambda_.21} parent=39 // pred_check
        %p1320 = pneg %p144
      $region42: #{_lambda_.21} parent=39 // pred_check_branch
        %1322 = sbr.rel (%p1320) target = $region44
      $region43: #{_lambda_.21} parent=39 // pred_region
        _
      $region44: #{_lambda_.21} parent=39 // pred_fallthru
        _
    $region40: #{_lambda_.21} parent=5 // pred_fallthru
      _
    %p1323 = scmp.le.s32.totalorder 2, %s11
    // Predicated region
    $region45: #{_lambda_.21} parent=5 // pred_check
      %p1324 = pneg %p1323
    $region46: #{_lambda_.21} parent=5 // pred_check_branch
      %1326 = sbr.rel (%p1324) target = $region48
    $region47: #{_lambda_.21} parent=5 // pred_region
      %s1327 = ssub.s32 %s11, 2
      // Predicated region
      $region49: #{_lambda_.21} parent=47 // pred_check
        %p1328 = pneg %p150
      $region50: #{_lambda_.21} parent=47 // pred_check_branch
        %1330 = sbr.rel (%p1328) target = $region52
      $region51: #{_lambda_.21} parent=47 // pred_region
        %p1331 = scmp.lt.s32.totalorder %s17, 1
        %s1332 = scalar_select %p1331, %s17, 1
        %s1333 = smul.addr %s1332, 2
        %s1334 = smul.addr %s1333, 4
        %s1335 = scalar_lea.vmem %s5, %s1334
      $region52: #{_lambda_.21} parent=47 // pred_fallthru
        _
    $region48: #{_lambda_.21} parent=5 // pred_fallthru
      _
  $region6: #{_lambda_.21} parent=0 // loop_footer
    %s15 = sadd.s32 1, %s11
  $region7: #{_lambda_.21} parent=0 // loop_footer_branch
    %10 = sbr.rel target = $region3
  $region8: #{_lambda_.21} parent=0 // loop_exit
    _

// kernel: _lambda_.14
$region0: #{_lambda_.14}
  #allocation0 [shape = 'u32[]', space=smem, size = 0x4, offset = 0x4, fixed_abs, tag = 'smem constant byte address 0x4 - core index']
  #allocation1 [shape = 'u32[144,128]{1,0:T(1,128)}', space=vmem, size = 0x12000, scoped, tag = 'internal scratch']
  %s0 = inlined_call_operand.vmem [shape: bf16[2,48,16], index: 0, kind: input, shape index: {}]
  %s1 = inlined_call_operand.vmem [shape: bf16[16,128], index: 1, kind: input, shape index: {}]
  %s2 = inlined_call_operand.vmem [shape: f32[1,128], index: 2, kind: input, shape index: {}]
  %s3 = inlined_call_operand.vmem [shape: bf16[3,128,128], index: 3, kind: input, shape index: {}]
  %s4 = inlined_call_operand.vmem [shape: f32[1,128], index: 4, kind: input, shape index: {}]
  %s5 = inlined_call_operand.vmem [shape: bf16[2,16,128], index: 5, kind: output, shape index: {}]
  %s6 = sld [smem:[#allocation0]]
  $region53: #{_lambda_.14} parent=0
    _
  %s8 = ssub.s32 1, %s6
  %s9 = scalar_select 0, %s8, %s6
  loop: start=0, step=1, limit=4
  $region2: #{_lambda_.14} parent=0 // loop_pre_header
    _
  $region3: #{_lambda_.14} parent=0 // loop_header
    %s11 = sphi 0, %s15
    %p12 = scmp.ge.s32.totalorder %s11, 4
    %s21 = sphi 0, %s23
    %s24 = sphi 0, %s21
    %s25 = sphi 0, %s24
    %s41 = sphi 0, %s25
    %s45 = sphi 0, %s45
    %s47 = sphi 0, %s45
    %s48 = sphi 0, %s47
    %s62 = sphi 0, %s48
    %s66 = sphi 0, %s66
    %s68 = sphi 0, %s66
    %s69 = sphi 0, %s68
    %s83 = sphi 0, %s69
    %s87 = sphi 0, %s87
    %s89 = sphi 0, %s87
    %s90 = sphi 0, %s89
    %s104 = sphi 0, %s90
    %s108 = sphi 0, %s108
    %s110 = sphi 0, %s108
    %s111 = sphi 0, %s110
    %s125 = sphi 0, %s111
    %s131 = sphi 0, %s133
    %s134 = sphi 0, %s131
    %s135 = sphi 0, %s134
    %s151 = sphi 0, %s135
  $region4: #{_lambda_.14} parent=0 // loop_header_branch
    %14 = sbr.rel (%p12) target = $region8
  $region5: #{_lambda_.14} parent=0 // loop_body
    %s16 = ssub.s32 %s11, 1
    %s17 = ssub.s32 %s11, 2
    %s18 = sadd.s32 %s11, 1
    %s19 = ssub.s32 %s11, %s18
    %p20 = scmp.eq.s32.totalorder %s19, 0
    %s22 = sadd.s32 %s21, 1
    %s23 = scalar_select %p20, %s21, %s22
    %p26 = pneg %p20
    %p27 = scmp.eq.s32.totalorder %s11, 1
    %p28 = por %p26, %p27
    %p29 = scmp.ne.s32.totalorder %s21, %s24
    %p30 = scmp.eq.s32.totalorder %s11, 0
    %p31 = por %p29, %p30
    %p32 = scmp.ne.s32.totalorder %s21, %s24
    %p33 = scmp.eq.s32.totalorder %s16, 1
    %p34 = por %p32, %p33
    %p35 = scmp.ne.s32.totalorder %s24, %s25
    %p36 = scmp.eq.s32.totalorder %s16, 0
    %p37 = por %p35, %p36
    %p38 = scmp.ne.s32.totalorder %s24, %s25
    %p39 = scmp.eq.s32.totalorder %s17, 1
    %p40 = por %p38, %p39
    %p42 = scmp.ne.s32.totalorder %s25, %s41
    %p43 = scmp.eq.s32.totalorder %s17, 0
    %p44 = por %p42, %p43
    %s46 = sadd.s32 %s45, 1
    %p49 = scmp.eq.s32.totalorder %s11, 1
    %p50 = scmp.ne.s32.totalorder %s45, %s47
    %p51 = scmp.eq.s32.totalorder %s11, 0
    %p52 = por %p50, %p51
    %p53 = scmp.ne.s32.totalorder %s45, %s47
    %p54 = scmp.eq.s32.totalorder %s16, 1
    %p55 = por %p53, %p54
    %p56 = scmp.ne.s32.totalorder %s47, %s48
    %p57 = scmp.eq.s32.totalorder %s16, 0
    %p58 = por %p56, %p57
    %p59 = scmp.ne.s32.totalorder %s47, %s48
    %p60 = scmp.eq.s32.totalorder %s17, 1
    %p61 = por %p59, %p60
    %p63 = scmp.ne.s32.totalorder %s48, %s62
    %p64 = scmp.eq.s32.totalorder %s17, 0
    %p65 = por %p63, %p64
    %s67 = sadd.s32 %s66, 1
    %p70 = scmp.eq.s32.totalorder %s11, 1
    %p71 = scmp.ne.s32.totalorder %s66, %s68
    %p72 = scmp.eq.s32.totalorder %s11, 0
    %p73 = por %p71, %p72
    %p74 = scmp.ne.s32.totalorder %s66, %s68
    %p75 = scmp.eq.s32.totalorder %s16, 1
    %p76 = por %p74, %p75
    %p77 = scmp.ne.s32.totalorder %s68, %s69
    %p78 = scmp.eq.s32.totalorder %s16, 0
    %p79 = por %p77, %p78
    %p80 = scmp.ne.s32.totalorder %s68, %s69
    %p81 = scmp.eq.s32.totalorder %s17, 1
    %p82 = por %p80, %p81
    %p84 = scmp.ne.s32.totalorder %s69, %s83
    %p85 = scmp.eq.s32.totalorder %s17, 0
    %p86 = por %p84, %p85
    %s88 = sadd.s32 %s87, 1
    %p91 = scmp.eq.s32.totalorder %s11, 1
    %p92 = scmp.ne.s32.totalorder %s87, %s89
    %p93 = scmp.eq.s32.totalorder %s11, 0
    %p94 = por %p92, %p93
    %p95 = scmp.ne.s32.totalorder %s87, %s89
    %p96 = scmp.eq.s32.totalorder %s16, 1
    %p97 = por %p95, %p96
    %p98 = scmp.ne.s32.totalorder %s89, %s90
    %p99 = scmp.eq.s32.totalorder %s16, 0
    %p100 = por %p98, %p99
    %p101 = scmp.ne.s32.totalorder %s89, %s90
    %p102 = scmp.eq.s32.totalorder %s17, 1
    %p103 = por %p101, %p102
    %p105 = scmp.ne.s32.totalorder %s90, %s104
    %p106 = scmp.eq.s32.totalorder %s17, 0
    %p107 = por %p105, %p106
    %s109 = sadd.s32 %s108, 1
    %p112 = scmp.eq.s32.totalorder %s11, 1
    %p113 = scmp.ne.s32.totalorder %s108, %s110
    %p114 = scmp.eq.s32.totalorder %s11, 0
    %p115 = por %p113, %p114
    %p116 = scmp.ne.s32.totalorder %s108, %s110
    %p117 = scmp.eq.s32.totalorder %s16, 1
    %p118 = por %p116, %p117
    %p119 = scmp.ne.s32.totalorder %s110, %s111
    %p120 = scmp.eq.s32.totalorder %s16, 0
    %p121 = por %p119, %p120
    %p122 = scmp.ne.s32.totalorder %s110, %s111
    %p123 = scmp.eq.s32.totalorder %s17, 1
    %p124 = por %p122, %p123
    %p126 = scmp.ne.s32.totalorder %s111, %s125
    %p127 = scmp.eq.s32.totalorder %s17, 0
    %p128 = por %p126, %p127
    %s129 = ssub.s32 %s11, %s18
    %p130 = scmp.eq.s32.totalorder %s129, 0
    %s132 = sadd.s32 %s131, 1
    %s133 = scalar_select %p130, %s131, %s132
    %p136 = pneg %p130
    %p137 = scmp.eq.s32.totalorder %s11, 1
    %p138 = por %p136, %p137
    %p139 = scmp.ne.s32.totalorder %s131, %s134
    %p140 = scmp.eq.s32.totalorder %s11, 0
    %p141 = por %p139, %p140
    %p142 = scmp.ne.s32.totalorder %s131, %s134
    %p143 = scmp.eq.s32.totalorder %s16, 1
    %p144 = por %p142, %p143
    %p145 = scmp.ne.s32.totalorder %s134, %s135
    %p146 = scmp.eq.s32.totalorder %s16, 0
    %p147 = por %p145, %p146
    %p148 = scmp.ne.s32.totalorder %s134, %s135
    %p149 = scmp.eq.s32.totalorder %s17, 1
    %p150 = por %p148, %p149
    %p152 = scmp.ne.s32.totalorder %s135, %s151
    %p153 = scmp.eq.s32.totalorder %s17, 0
    %p154 = por %p152, %p153
    %p155 = scmp.le.s32.totalorder 1, %s11
    %p156 = scmp.lt.s32.totalorder %s11, 3
    %p157 = pnand %p155, %p156
    %p158 = pneg %p157
    // Predicated region
    $region9: #{_lambda_.14} parent=5 // pred_check
      _
    $region10: #{_lambda_.14} parent=5 // pred_check_branch
      %160 = sbr.rel (%p157) target = $region12
    $region11: #{_lambda_.14} parent=5 // pred_region
      %s161 = ssub.s32 %s11, 1
      // Predicated region
      $region13: #{_lambda_.14} parent=11 // pred_check
        %p162 = pneg %p58
      $region14: #{_lambda_.14} parent=11 // pred_check_branch
        %164 = sbr.rel (%p162) target = $region16
      $region15: #{_lambda_.14} parent=11 // pred_region
        _
      $region16: #{_lambda_.14} parent=11 // pred_fallthru
        _
      // Predicated region
      $region17: #{_lambda_.14} parent=11 // pred_check
        %p165 = pneg %p79
      $region18: #{_lambda_.14} parent=11 // pred_check_branch
        %167 = sbr.rel (%p165) target = $region20
      $region19: #{_lambda_.14} parent=11 // pred_region
        _
      $region20: #{_lambda_.14} parent=11 // pred_fallthru
        _
      // Predicated region
      $region21: #{_lambda_.14} parent=11 // pred_check
        %p168 = pneg %p100
      $region22: #{_lambda_.14} parent=11 // pred_check_branch
        %170 = sbr.rel (%p168) target = $region24
      $region23: #{_lambda_.14} parent=11 // pred_region
        _
      $region24: #{_lambda_.14} parent=11 // pred_fallthru
        _
      // Predicated region
      $region25: #{_lambda_.14} parent=11 // pred_check
        %p171 = pneg %p121
      $region26: #{_lambda_.14} parent=11 // pred_check_branch
        %173 = sbr.rel (%p171) target = $region28
      $region27: #{_lambda_.14} parent=11 // pred_region
        _
      $region28: #{_lambda_.14} parent=11 // pred_fallthru
        _
    $region12: #{_lambda_.14} parent=5 // pred_fallthru
      _
    %p174 = scmp.lt.s32.totalorder %s11, 2
    // Predicated region
    $region29: #{_lambda_.14} parent=5 // pred_check
      %p175 = pneg %p174
    $region30: #{_lambda_.14} parent=5 // pred_check_branch
      %177 = sbr.rel (%p175) target = $region32
    $region31: #{_lambda_.14} parent=5 // pred_region
      // Predicated region
      $region33: #{_lambda_.14} parent=31 // pred_check
        %p178 = pneg %p31
      $region34: #{_lambda_.14} parent=31 // pred_check_branch
        %180 = sbr.rel (%p178) target = $region36
      $region35: #{_lambda_.14} parent=31 // pred_region
        %p181 = scmp.lt.s32.totalorder %s11, 1
        %s182 = scalar_select %p181, %s11, 1
        %s183 = smul.addr %s182, 6
        %s184 = smul.addr %s183, 4
        %s185 = scalar_lea.vmem %s0, %s184
      $region36: #{_lambda_.14} parent=31 // pred_fallthru
        _
    $region32: #{_lambda_.14} parent=5 // pred_fallthru
      _
    %p186 = scmp.le.s32.totalorder 1, %s11
    %p187 = scmp.lt.s32.totalorder %s11, 3
    %p188 = pnand %p186, %p187
    %p189 = pneg %p188
    // Predicated region
    $region37: #{_lambda_.14} parent=5 // pred_check
      _
    $region38: #{_lambda_.14} parent=5 // pred_check_branch
      %191 = sbr.rel (%p188) target = $region40
    $region39: #{_lambda_.14} parent=5 // pred_region
      %s192 = ssub.s32 %s11, 1
      %p193 = scmp.lt.s32.totalorder %s16, 1
      %s194 = scalar_select %p193, %s16, 1
      %s195 = smul.addr %s194, 6
      %s196 = smul.addr %s195, 4
      %s197 = scalar_lea.vmem %s0, %s196
      %p198 = pneg %p37
      %p199 = pneg %p34
      %p200 = pneg %p58
      %p201 = pneg %p55
      %p202 = pneg %p79
      %p203 = pneg %p76
      %p204 = pneg %p100
      %p205 = pneg %p97
      %p206 = pneg %p121
      %p207 = pneg %p118
      %p208 = pneg %p147
      %p209 = pneg %p144
      %p210 = scmp.lt.s32.totalorder %s16, 1
      %s211 = scalar_select %p210, %s16, 1
      %s212 = smul.addr %s211, 2
      %s213 = smul.addr %s212, 4
      %s214 = scalar_lea.vmem %s5, %s213
      %p215 = scmp.lt.s32.totalorder %s16, 1
      %s216 = scalar_select %p215, %s16, 1
      %s217 = smul.addr %s216, 6
      %s218 = smul.addr %s217, 4
      %s219 = scalar_lea.vmem %s0, %s218
      %p220 = scmp.lt.s32.totalorder %s16, 1
      %s221 = scalar_select %p220, %s16, 1
      %s222 = smul.addr %s221, 2
      %s223 = smul.addr %s222, 4
      %s224 = scalar_lea.vmem %s5, %s223
      %v226 = vld [vmem:[%s219] sm:$0xf]
      %v227 = vld [vmem:[%s219 + $0x4] sm:$0xf]
      %v228 = vld [vmem:[%s219 + $0x8] sm:$0xf]
      %v229 = vld [vmem:[%s219 + $0xc] sm:$0xf]
      %v230 = vld [vmem:[%s219 + $0x10] sm:$0xf]
      %v231 = vld [vmem:[%s219 + $0x14] sm:$0xf]
      %v232 = vld [vmem:[%s1] sm:$0xf]
      %v233 = vld [vmem:[%s1 + $0x4] sm:$0xf]
      %v234 = vld [vmem:[%s2] sm:$0x1]
      %v236 = vlaneseq
      %v237 = vshrl.u32 %v236, 7
      %v238 = vsub.s32 0, %v237
      %v239 = vrot.slane %v234, %v238
      %v247 = vunpack.c.l.b16 %v226
      %v248 = vunpack.c.l.b16 %v227
      %v249 = vunpack.c.l.b16 %v228
      %v250 = vunpack.c.l.b16 %v229
      %v251 = vunpack.c.l.b16 %v230
      %v252 = vunpack.c.l.b16 %v231
      %v253 = vpack.c.b16 %v248, %v247
      %v254 = vpack.c.b16 %v250, %v249
      %v255 = vpack.c.b16 %v252, %v251
      %v258 = vunpack.c.l.b16 %v232
      %v259 = vunpack.c.l.b16 %v233
      %v260 = vpack.c.b16 %v259, %v258
      %vm262 = vcmask 130048
      %v264 = vsel %vm262, %v253, 0
      %v267 = vsel %vm262, %v254, 0
      %v270 = vsel %vm262, %v255, 0
      %272 = vmatprep.subr.bf16.mxu0 0
      %273 = vmatpush1.bf16.msra.mxu0 %v260
      %274 = vmatprep.subr.bf16.mxu0 0
      %275 = vmatpush1.bf16.msra.mxu0 0
      %276 = vmatprep.subr.bf16.mxu0 0
      %277 = vmatpush1.bf16.msra.mxu0 0
      %278 = vmatprep.subr.bf16.mxu0 0
      %279 = vmatpush1.bf16.msra.mxu0 0
      %280 = vmatprep.subr.bf16.mxu0 0
      %281 = vmatpush1.bf16.msra.mxu0 0
      %282 = vmatprep.subr.bf16.mxu0 0
      %283 = vmatpush1.bf16.msra.mxu0 0
      %284 = vmatprep.subr.bf16.mxu0 0
      %285 = vmatpush1.bf16.msra.mxu0 0
      %286 = vmatprep.subr.bf16.mxu0 0
      %287 = vmatpush1.bf16.msra.mxu0 0
      %288 = vmatprep.subr.bf16.mxu0 0
      %289 = vmatpush1.bf16.msra.mxu0 0
      %290 = vmatprep.subr.bf16.mxu0 0
      %291 = vmatpush1.bf16.msra.mxu0 0
      %292 = vmatprep.subr.bf16.mxu0 0
      %293 = vmatpush1.bf16.msra.mxu0 0
      %294 = vmatprep.subr.bf16.mxu0 0
      %295 = vmatpush1.bf16.msra.mxu0 0
      %296 = vmatprep.subr.bf16.mxu0 0
      %297 = vmatpush1.bf16.msra.mxu0 0
      %298 = vmatprep.subr.bf16.mxu0 0
      %299 = vmatpush1.bf16.msra.mxu0 0
      %300 = vmatprep.subr.bf16.mxu0 0
      %301 = vmatpush1.bf16.msra.mxu0 0
      %302 = vmatprep.subr.bf16.mxu0 0
      %303 = vmatpush1.bf16.msra.mxu0 0
      %304 = vmatprep.mubr.bf16.mxu0 0
      %305 = vmatmul.mubr.bf16.gmra.mrb[0].mxu0 %v264
      %v306 = vpop.f32.mrb[0].mxu0
      %v307 = vadd.f32 %v239, %v306
      %v308 = vpop.f32.mrb[0].mxu0
      %v309 = vpop.f32.mrb[0].mxu0
      %v310 = vadd.f32 %v239, %v309
      %v311 = vpop.f32.mrb[0].mxu0
      %312 = vmatprep.mubr.bf16.mxu0 0
      %313 = vmatmul.mubr.bf16.gmra.mrb[0].mxu0 %v267
      %v314 = vpop.f32.mrb[0].mxu0
      %v315 = vadd.f32 %v239, %v314
      %v316 = vpop.f32.mrb[0].mxu0
      %v317 = vpop.f32.mrb[0].mxu0
      %v318 = vadd.f32 %v239, %v317
      %v319 = vpop.f32.mrb[0].mxu0
      %320 = vmatprep.mubr.bf16.mxu0 0
      %321 = vmatmul.mubr.bf16.gmra.mrb[0].mxu0 %v270
      %v322 = vpop.f32.mrb[0].mxu0
      %v323 = vadd.f32 %v239, %v322
      %v324 = vpop.f32.mrb[0].mxu0
      %v325 = vpop.f32.mrb[0].mxu0
      %v326 = vadd.f32 %v239, %v325
      %v327 = vpop.f32.mrb[0].mxu0
      %328 = vdwg.mxu0
      %v329 = vadd.f32 %v307, %v310
      %v330 = vadd.f32 %v329, %v315
      %v331 = vadd.f32 %v330, %v318
      %v332 = vadd.f32 %v331, %v323
      %v333 = vadd.f32 %v332, %v326
      %v334 = vrot.slane %v333, 4
      %v335 = vadd.f32 %v333, %v334
      %v336 = vrot.slane %v335, 2
      %v337 = vadd.f32 %v335, %v336
      %v338 = vrot.slane %v337, 1
      %v339 = vadd.f32 %v337, %v338
      %v340 = vrcp.pop 48.0
      %v341 = vmul.f32 %v339, %v340
      %v342 = vsub.f32 %v307, %v341
      %v343 = vsub.f32 %v310, %v341
      %v344 = vsub.f32 %v315, %v341
      %v345 = vsub.f32 %v318, %v341
      %v346 = vsub.f32 %v323, %v341
      %v347 = vsub.f32 %v326, %v341
      %v348 = vmul.f32 %v342, %v342
      %v349 = vmul.f32 %v343, %v343
      %v350 = vmul.f32 %v344, %v344
      %v351 = vmul.f32 %v345, %v345
      %v352 = vmul.f32 %v346, %v346
      %v353 = vmul.f32 %v347, %v347
      %v354 = vadd.f32 %v348, %v349
      %v355 = vadd.f32 %v354, %v350
      %v356 = vadd.f32 %v355, %v351
      %v357 = vadd.f32 %v356, %v352
      %v358 = vadd.f32 %v357, %v353
      %v359 = vrot.slane %v358, 4
      %v360 = vadd.f32 %v358, %v359
      %v361 = vrot.slane %v360, 2
      %v362 = vadd.f32 %v360, %v361
      %v363 = vrot.slane %v362, 1
      %v364 = vadd.f32 %v362, %v363
      %v365 = vmul.f32 %v364, %v340
      %v366 = vadd.f32 %v365, 1e-05
      %v367 = vrsqrt.pop %v366
      %v368 = vmul.f32 %v342, %v367
      %v369 = vmul.f32 %v343, %v367
      %v370 = vmul.f32 %v344, %v367
      %v371 = vmul.f32 %v345, %v367
      %v372 = vmul.f32 %v346, %v367
      %v373 = vmul.f32 %v347, %v367
      %v374 = vmax.f32 %v368, 0.0
      %v375 = vmax.f32 %v369, 0.0
      %v376 = vmax.f32 %v370, 0.0
      %v377 = vmax.f32 %v371, 0.0
      %v378 = vmax.f32 %v372, 0.0
      %v379 = vmax.f32 %v373, 0.0
      %v380 = vpack.c.bf16 %v375, %v374
      %v381 = vld [vmem:[%s3] sm:$0xf]
      %v382 = vld [vmem:[%s3 + $0x4] sm:$0xf]
      %v383 = vld [vmem:[%s3 + $0x8] sm:$0xf]
      %v384 = vld [vmem:[%s3 + $0xc] sm:$0xf]
      %v385 = vld [vmem:[%s3 + $0x10] sm:$0xf]
      %v386 = vld [vmem:[%s3 + $0x14] sm:$0xf]
      %v387 = vld [vmem:[%s3 + $0x18] sm:$0xf]
      %v388 = vld [vmem:[%s3 + $0x1c] sm:$0xf]
      %v389 = vld [vmem:[%s3 + $0x20] sm:$0xf]
      %v390 = vld [vmem:[%s3 + $0x24] sm:$0xf]
      %v391 = vld [vmem:[%s3 + $0x28] sm:$0xf]
      %v392 = vld [vmem:[%s3 + $0x2c] sm:$0xf]
      %v393 = vld [vmem:[%s3 + $0x30] sm:$0xf]
      %v394 = vld [vmem:[%s3 + $0x34] sm:$0xf]
      %v395 = vld [vmem:[%s3 + $0x38] sm:$0xf]
      %v396 = vld [vmem:[%s3 + $0x3c] sm:$0xf]
      %v397 = vpack.c.bf16 %v377, %v376
      %s398 = scalar_lea.vmem %s3, 64
      %v399 = vld [vmem:[%s398] sm:$0xf]
      %v400 = vld [vmem:[%s398 + $0x4] sm:$0xf]
      %v401 = vld [vmem:[%s398 + $0x8] sm:$0xf]
      %v402 = vld [vmem:[%s398 + $0xc] sm:$0xf]
      %v403 = vld [vmem:[%s398 + $0x10] sm:$0xf]
      %v404 = vld [vmem:[%s398 + $0x14] sm:$0xf]
      %v405 = vld [vmem:[%s398 + $0x18] sm:$0xf]
      %v406 = vld [vmem:[%s398 + $0x1c] sm:$0xf]
      %v407 = vld [vmem:[%s398 + $0x20] sm:$0xf]
      %v408 = vld [vmem:[%s398 + $0x24] sm:$0xf]
      %v409 = vld [vmem:[%s398 + $0x28] sm:$0xf]
      %v410 = vld [vmem:[%s398 + $0x2c] sm:$0xf]
      %v411 = vld [vmem:[%s398 + $0x30] sm:$0xf]
      %v412 = vld [vmem:[%s398 + $0x34] sm:$0xf]
      %v413 = vld [vmem:[%s398 + $0x38] sm:$0xf]
      %v414 = vld [vmem:[%s398 + $0x3c] sm:$0xf]
      %v431 = vunpack.c.l.b16 %v399
      %v432 = vunpack.c.l.b16 %v400
      %v433 = vunpack.c.l.b16 %v401
      %v434 = vunpack.c.l.b16 %v402
      %v435 = vunpack.c.l.b16 %v403
      %v436 = vunpack.c.l.b16 %v404
      %v437 = vunpack.c.l.b16 %v405
      %v438 = vunpack.c.l.b16 %v406
      %v439 = vunpack.c.l.b16 %v407
      %v440 = vunpack.c.l.b16 %v408
      %v441 = vunpack.c.l.b16 %v409
      %v442 = vunpack.c.l.b16 %v410
      %v443 = vunpack.c.l.b16 %v411
      %v444 = vunpack.c.l.b16 %v412
      %v445 = vunpack.c.l.b16 %v413
      %v446 = vunpack.c.l.b16 %v414
      %v447 = vpack.c.b16 %v432, %v431
      %v448 = vpack.c.b16 %v434, %v433
      %v449 = vpack.c.b16 %v436, %v435
      %v450 = vpack.c.b16 %v438, %v437
      %v451 = vpack.c.b16 %v440, %v439
      %v452 = vpack.c.b16 %v442, %v441
      %v453 = vpack.c.b16 %v444, %v443
      %v454 = vpack.c.b16 %v446, %v445
      %463 = vmatprep.subr.bf16.mxu0 0
      %464 = vmatpush1.bf16.msra.mxu0 %v447
      %465 = vmatprep.subr.bf16.mxu0 0
      %466 = vmatpush1.bf16.msra.mxu0 %v448
      %467 = vmatprep.subr.bf16.mxu0 0
      %468 = vmatpush1.bf16.msra.mxu0 %v449
      %469 = vmatprep.subr.bf16.mxu0 0
      %470 = vmatpush1.bf16.msra.mxu0 %v450
      %471 = vmatprep.subr.bf16.mxu0 0
      %472 = vmatpush1.bf16.msra.mxu0 %v451
      %473 = vmatprep.subr.bf16.mxu0 0
      %474 = vmatpush1.bf16.msra.mxu0 %v452
      %475 = vmatprep.subr.bf16.mxu0 0
      %476 = vmatpush1.bf16.msra.mxu0 %v453
      %477 = vmatprep.subr.bf16.mxu0 0
      %478 = vmatpush1.bf16.msra.mxu0 %v454
      %479 = vmatprep.subr.bf16.mxu0 0
      %480 = vmatpush1.bf16.msra.mxu0 0
      %481 = vmatprep.subr.bf16.mxu0 0
      %482 = vmatpush1.bf16.msra.mxu0 0
      %483 = vmatprep.subr.bf16.mxu0 0
      %484 = vmatpush1.bf16.msra.mxu0 0
      %485 = vmatprep.subr.bf16.mxu0 0
      %486 = vmatpush1.bf16.msra.mxu0 0
      %487 = vmatprep.subr.bf16.mxu0 0
      %488 = vmatpush1.bf16.msra.mxu0 0
      %489 = vmatprep.subr.bf16.mxu0 0
      %490 = vmatpush1.bf16.msra.mxu0 0
      %491 = vmatprep.subr.bf16.mxu0 0
      %492 = vmatpush1.bf16.msra.mxu0 0
      %493 = vmatprep.subr.bf16.mxu0 0
      %494 = vmatpush1.bf16.msra.mxu0 0
      %495 = vmatprep.mubr.bf16.mxu0 0
      %496 = vmatmul.mubr.bf16.gmra.mrb[0].mxu0 %v397
      %v497 = vpop.f32.mrb[0].mxu0
      %v498 = vadd.f32 0.0, %v497
      %v499 = vpop.f32.mrb[0].mxu0
      %v500 = vpop.f32.mrb[0].mxu0
      %v501 = vadd.f32 0.0, %v500
      %v502 = vpop.f32.mrb[0].mxu0
      %503 = vdwg.mxu0
      %v520 = vunpack.c.l.b16 %v381
      %v521 = vunpack.c.l.b16 %v382
      %v522 = vunpack.c.l.b16 %v383
      %v523 = vunpack.c.l.b16 %v384
      %v524 = vunpack.c.l.b16 %v385
      %v525 = vunpack.c.l.b16 %v386
      %v526 = vunpack.c.l.b16 %v387
      %v527 = vunpack.c.l.b16 %v388
      %v528 = vunpack.c.l.b16 %v389
      %v529 = vunpack.c.l.b16 %v390
      %v530 = vunpack.c.l.b16 %v391
      %v531 = vunpack.c.l.b16 %v392
      %v532 = vunpack.c.l.b16 %v393
      %v533 = vunpack.c.l.b16 %v394
      %v534 = vunpack.c.l.b16 %v395
      %v535 = vunpack.c.l.b16 %v396
      %v536 = vpack.c.b16 %v521, %v520
      %v537 = vpack.c.b16 %v523, %v522
      %v538 = vpack.c.b16 %v525, %v524
      %v539 = vpack.c.b16 %v527, %v526
      %v540 = vpack.c.b16 %v529, %v528
      %v541 = vpack.c.b16 %v531, %v530
      %v542 = vpack.c.b16 %v533, %v532
      %v543 = vpack.c.b16 %v535, %v534
      %552 = vmatprep.subr.bf16.mxu0 0
      %553 = vmatpush1.bf16.msra.mxu0 %v536
      %554 = vmatprep.subr.bf16.mxu0 0
      %555 = vmatpush1.bf16.msra.mxu0 %v537
      %556 = vmatprep.subr.bf16.mxu0 0
      %557 = vmatpush1.bf16.msra.mxu0 %v538
      %558 = vmatprep.subr.bf16.mxu0 0
      %559 = vmatpush1.bf16.msra.mxu0 %v539
      %560 = vmatprep.subr.bf16.mxu0 0
      %561 = vmatpush1.bf16.msra.mxu0 %v540
      %562 = vmatprep.subr.bf16.mxu0 0
      %563 = vmatpush1.bf16.msra.mxu0 %v541
      %564 = vmatprep.subr.bf16.mxu0 0
      %565 = vmatpush1.bf16.msra.mxu0 %v542
      %566 = vmatprep.subr.bf16.mxu0 0
      %567 = vmatpush1.bf16.msra.mxu0 %v543
      %568 = vmatprep.subr.bf16.mxu0 0
      %569 = vmatpush1.bf16.msra.mxu0 0
      %570 = vmatprep.subr.bf16.mxu0 0
      %571 = vmatpush1.bf16.msra.mxu0 0
      %572 = vmatprep.subr.bf16.mxu0 0
      %573 = vmatpush1.bf16.msra.mxu0 0
      %574 = vmatprep.subr.bf16.mxu0 0
      %575 = vmatpush1.bf16.msra.mxu0 0
      %576 = vmatprep.subr.bf16.mxu0 0
      %577 = vmatpush1.bf16.msra.mxu0 0
      %578 = vmatprep.subr.bf16.mxu0 0
      %579 = vmatpush1.bf16.msra.mxu0 0
      %580 = vmatprep.subr.bf16.mxu0 0
      %581 = vmatpush1.bf16.msra.mxu0 0
      %582 = vmatprep.subr.bf16.mxu0 0
      %583 = vmatpush1.bf16.msra.mxu0 0
      %584 = vmatprep.mubr.bf16.mxu0 0
      %585 = vmatmul.mubr.bf16.gmra.mrb[0].mxu0 %v380
      %v586 = vpop.f32.mrb[0].mxu0
      %v587 = vadd.f32 %v498, %v586
      %v588 = vpop.f32.mrb[0].mxu0
      %v589 = vpop.f32.mrb[0].mxu0
      %v590 = vadd.f32 %v501, %v589
      %v591 = vpop.f32.mrb[0].mxu0
      %592 = vdwg.mxu0
      %v593 = vpack.c.bf16 %v379, %v378
      %s594 = scalar_lea.vmem %s3, 128
      %v595 = vld [vmem:[%s594] sm:$0xf]
      %v596 = vld [vmem:[%s594 + $0x4] sm:$0xf]
      %v597 = vld [vmem:[%s594 + $0x8] sm:$0xf]
      %v598 = vld [vmem:[%s594 + $0xc] sm:$0xf]
      %v599 = vld [vmem:[%s594 + $0x10] sm:$0xf]
      %v600 = vld [vmem:[%s594 + $0x14] sm:$0xf]
      %v601 = vld [vmem:[%s594 + $0x18] sm:$0xf]
      %v602 = vld [vmem:[%s594 + $0x1c] sm:$0xf]
      %v603 = vld [vmem:[%s594 + $0x20] sm:$0xf]
      %v604 = vld [vmem:[%s594 + $0x24] sm:$0xf]
      %v605 = vld [vmem:[%s594 + $0x28] sm:$0xf]
      %v606 = vld [vmem:[%s594 + $0x2c] sm:$0xf]
      %v607 = vld [vmem:[%s594 + $0x30] sm:$0xf]
      %v608 = vld [vmem:[%s594 + $0x34] sm:$0xf]
      %v609 = vld [vmem:[%s594 + $0x38] sm:$0xf]
      %v610 = vld [vmem:[%s594 + $0x3c] sm:$0xf]
      %v627 = vunpack.c.l.b16 %v595
      %v628 = vunpack.c.l.b16 %v596
      %v629 = vunpack.c.l.b16 %v597
      %v630 = vunpack.c.l.b16 %v598
      %v631 = vunpack.c.l.b16 %v599
      %v632 = vunpack.c.l.b16 %v600
      %v633 = vunpack.c.l.b16 %v601
      %v634 = vunpack.c.l.b16 %v602
      %v635 = vunpack.c.l.b16 %v603
      %v636 = vunpack.c.l.b16 %v604
      %v637 = vunpack.c.l.b16 %v605
      %v638 = vunpack.c.l.b16 %v606
      %v639 = vunpack.c.l.b16 %v607
      %v640 = vunpack.c.l.b16 %v608
      %v641 = vunpack.c.l.b16 %v609
      %v642 = vunpack.c.l.b16 %v610
      %v643 = vpack.c.b16 %v628, %v627
      %v644 = vpack.c.b16 %v630, %v629
      %v645 = vpack.c.b16 %v632, %v631
      %v646 = vpack.c.b16 %v634, %v633
      %v647 = vpack.c.b16 %v636, %v635
      %v648 = vpack.c.b16 %v638, %v637
      %v649 = vpack.c.b16 %v640, %v639
      %v650 = vpack.c.b16 %v642, %v641
      %659 = vmatprep.subr.bf16.mxu0 0
      %660 = vmatpush1.bf16.msra.mxu0 %v643
      %661 = vmatprep.subr.bf16.mxu0 0
      %662 = vmatpush1.bf16.msra.mxu0 %v644
      %663 = vmatprep.subr.bf16.mxu0 0
      %664 = vmatpush1.bf16.msra.mxu0 %v645
      %665 = vmatprep.subr.bf16.mxu0 0
      %666 = vmatpush1.bf16.msra.mxu0 %v646
      %667 = vmatprep.subr.bf16.mxu0 0
      %668 = vmatpush1.bf16.msra.mxu0 %v647
      %669 = vmatprep.subr.bf16.mxu0 0
      %670 = vmatpush1.bf16.msra.mxu0 %v648
      %671 = vmatprep.subr.bf16.mxu0 0
      %672 = vmatpush1.bf16.msra.mxu0 %v649
      %673 = vmatprep.subr.bf16.mxu0 0
      %674 = vmatpush1.bf16.msra.mxu0 %v650
      %675 = vmatprep.subr.bf16.mxu0 0
      %676 = vmatpush1.bf16.msra.mxu0 0
      %677 = vmatprep.subr.bf16.mxu0 0
      %678 = vmatpush1.bf16.msra.mxu0 0
      %679 = vmatprep.subr.bf16.mxu0 0
      %680 = vmatpush1.bf16.msra.mxu0 0
      %681 = vmatprep.subr.bf16.mxu0 0
      %682 = vmatpush1.bf16.msra.mxu0 0
      %683 = vmatprep.subr.bf16.mxu0 0
      %684 = vmatpush1.bf16.msra.mxu0 0
      %685 = vmatprep.subr.bf16.mxu0 0
      %686 = vmatpush1.bf16.msra.mxu0 0
      %687 = vmatprep.subr.bf16.mxu0 0
      %688 = vmatpush1.bf16.msra.mxu0 0
      %689 = vmatprep.subr.bf16.mxu0 0
      %690 = vmatpush1.bf16.msra.mxu0 0
      %691 = vmatprep.mubr.bf16.mxu0 0
      %692 = vmatmul.mubr.bf16.gmra.mrb[0].mxu0 %v593
      %v693 = vpop.f32.mrb[0].mxu0
      %v694 = vadd.f32 0.0, %v693
      %v695 = vpop.f32.mrb[0].mxu0
      %v696 = vpop.f32.mrb[0].mxu0
      %v697 = vadd.f32 0.0, %v696
      %v698 = vpop.f32.mrb[0].mxu0
      %699 = vdwg.mxu0
      %v700 = vadd.f32 %v587, %v694
      %v701 = vadd.f32 %v590, %v697
      %v702 = vld [vmem:[%s4] sm:$0x1]
      %v704 = vlaneseq
      %v705 = vshrl.u32 %v704, 7
      %v706 = vsub.s32 0, %v705
      %v707 = vrot.slane %v702, %v706
      %v709 = vadd.f32 %v700, %v707
      %v710 = vadd.f32 %v701, %v707
      %v711 = vadd.f32 %v709, %v710
      %v712 = vrot.slane %v711, 4
      %v713 = vadd.f32 %v711, %v712
      %v714 = vrot.slane %v713, 2
      %v715 = vadd.f32 %v713, %v714
      %v716 = vrot.slane %v715, 1
      %v717 = vadd.f32 %v715, %v716
      %v718 = vrcp.pop 16.0
      %v719 = vmul.f32 %v717, %v718
      %v720 = vsub.f32 %v709, %v719
      %v721 = vsub.f32 %v710, %v719
      %v722 = vmul.f32 %v720, %v720
      %v723 = vmul.f32 %v721, %v721
      %v724 = vadd.f32 %v722, %v723
      %v725 = vrot.slane %v724, 4
      %v726 = vadd.f32 %v724, %v725
      %v727 = vrot.slane %v726, 2
      %v728 = vadd.f32 %v726, %v727
      %v729 = vrot.slane %v728, 1
      %v730 = vadd.f32 %v728, %v729
      %v731 = vmul.f32 %v730, %v718
      %v732 = vadd.f32 %v731, 1e-05
      %v733 = vrsqrt.pop %v732
      %v734 = vmul.f32 %v720, %v733
      %v735 = vmul.f32 %v721, %v733
      %v736 = vmax.f32 %v734, 0.0
      %v737 = vmax.f32 %v735, 0.0
      %v738 = vpack.c.bf16 %v737, %v736
      %v740 = vunpack.c.l.b16 %v738
      %v741 = vunpack.c.h.b16 %v738
      %v742 = vpack.c.b16 %v740, %v740
      %v743 = vpack.c.b16 %v741, %v741
      %746 = vst [vmem:[%s224] sm:$0xf] %v742
      %747 = vst [vmem:[%s224 + $0x4] sm:$0xf] %v743
      %p748 = scmp.lt.s32.totalorder %s16, 1
      %s749 = scalar_select %p748, %s16, 1
      %s750 = smul.addr %s749, 2
      %s751 = smul.addr %s750, 4
      %s752 = scalar_lea.vmem %s5, %s751
      // Predicated region
      $region41: #{_lambda_.14} parent=39 // pred_check
        %p753 = pneg %p144
      $region42: #{_lambda_.14} parent=39 // pred_check_branch
        %755 = sbr.rel (%p753) target = $region44
      $region43: #{_lambda_.14} parent=39 // pred_region
        _
      $region44: #{_lambda_.14} parent=39 // pred_fallthru
        _
    $region40: #{_lambda_.14} parent=5 // pred_fallthru
      _
    %p756 = scmp.le.s32.totalorder 2, %s11
    // Predicated region
    $region45: #{_lambda_.14} parent=5 // pred_check
      %p757 = pneg %p756
    $region46: #{_lambda_.14} parent=5 // pred_check_branch
      %759 = sbr.rel (%p757) target = $region48
    $region47: #{_lambda_.14} parent=5 // pred_region
      %s760 = ssub.s32 %s11, 2
      // Predicated region
      $region49: #{_lambda_.14} parent=47 // pred_check
        %p761 = pneg %p150
      $region50: #{_lambda_.14} parent=47 // pred_check_branch
        %763 = sbr.rel (%p761) target = $region52
      $region51: #{_lambda_.14} parent=47 // pred_region
        %p764 = scmp.lt.s32.totalorder %s17, 1
        %s765 = scalar_select %p764, %s17, 1
        %s766 = smul.addr %s765, 2
        %s767 = smul.addr %s766, 4
        %s768 = scalar_lea.vmem %s5, %s767
      $region52: #{_lambda_.14} parent=47 // pred_fallthru
        _
    $region48: #{_lambda_.14} parent=5 // pred_fallthru
      _
  $region6: #{_lambda_.14} parent=0 // loop_footer
    %s15 = sadd.s32 1, %s11
  $region7: #{_lambda_.14} parent=0 // loop_footer_branch
    %10 = sbr.rel target = $region3
  $region8: #{_lambda_.14} parent=0 // loop_exit
    _

// kernel: _lambda_.25
$region0: #{_lambda_.25}
  #allocation0 [shape = 'u32[]', space=smem, size = 0x4, offset = 0x4, fixed_abs, tag = 'smem constant byte address 0x4 - core index']
  #allocation1 [shape = 'u32[144,128]{1,0:T(1,128)}', space=vmem, size = 0x12000, scoped, tag = 'internal scratch']
  %s0 = inlined_call_operand.vmem [shape: bf16[2,16,128], index: 0, kind: input, shape index: {}]
  %s1 = inlined_call_operand.vmem [shape: bf16[2,16,128], index: 1, kind: input, shape index: {}]
  %s2 = inlined_call_operand.vmem [shape: bf16[2,16,128], index: 2, kind: input, shape index: {}]
  %s3 = inlined_call_operand.vmem [shape: bf16[2,16,128], index: 3, kind: input, shape index: {}]
  %s4 = inlined_call_operand.vmem [shape: bf16[2,16,128], index: 4, kind: input, shape index: {}]
  %s5 = inlined_call_operand.vmem [shape: bf16[2,16,256], index: 5, kind: input, shape index: {}]
  %s6 = inlined_call_operand.vmem [shape: bf16[128,128], index: 6, kind: input, shape index: {}]
  %s7 = inlined_call_operand.vmem [shape: bf16[128,128], index: 7, kind: input, shape index: {}]
  %s8 = inlined_call_operand.vmem [shape: bf16[128,128], index: 8, kind: input, shape index: {}]
  %s9 = inlined_call_operand.vmem [shape: bf16[128,128], index: 9, kind: input, shape index: {}]
  %s10 = inlined_call_operand.vmem [shape: bf16[128,128], index: 10, kind: input, shape index: {}]
  %s11 = inlined_call_operand.vmem [shape: bf16[128,128], index: 11, kind: input, shape index: {}]
  %s12 = inlined_call_operand.vmem [shape: bf16[256,128], index: 12, kind: input, shape index: {}]
  %s13 = inlined_call_operand.vmem [shape: f32[2,16,128], index: 13, kind: output, shape index: {}]
  %s14 = sld [smem:[#allocation0]]
  $region85: #{_lambda_.25} parent=0
    _
  %s16 = ssub.s32 1, %s14
  %s17 = scalar_select 0, %s16, %s14
  loop: start=0, step=1, limit=4
  $region2: #{_lambda_.25} parent=0 // loop_pre_header
    _
  $region3: #{_lambda_.25} parent=0 // loop_header
    %s19 = sphi 0, %s23
    %p20 = scmp.ge.s32.totalorder %s19, 4
    %s29 = sphi 0, %s31
    %s32 = sphi 0, %s29
    %s33 = sphi 0, %s32
    %s49 = sphi 0, %s33
    %s55 = sphi 0, %s57
    %s58 = sphi 0, %s55
    %s59 = sphi 0, %s58
    %s75 = sphi 0, %s59
    %s81 = sphi 0, %s83
    %s84 = sphi 0, %s81
    %s85 = sphi 0, %s84
    %s101 = sphi 0, %s85
    %s107 = sphi 0, %s109
    %s110 = sphi 0, %s107
    %s111 = sphi 0, %s110
    %s127 = sphi 0, %s111
    %s133 = sphi 0, %s135
    %s136 = sphi 0, %s133
    %s137 = sphi 0, %s136
    %s153 = sphi 0, %s137
    %s159 = sphi 0, %s161
    %s162 = sphi 0, %s159
    %s163 = sphi 0, %s162
    %s179 = sphi 0, %s163
    %s183 = sphi 0, %s183
    %s185 = sphi 0, %s183
    %s186 = sphi 0, %s185
    %s200 = sphi 0, %s186
    %s204 = sphi 0, %s204
    %s206 = sphi 0, %s204
    %s207 = sphi 0, %s206
    %s221 = sphi 0, %s207
    %s225 = sphi 0, %s225
    %s227 = sphi 0, %s225
    %s228 = sphi 0, %s227
    %s242 = sphi 0, %s228
    %s246 = sphi 0, %s246
    %s248 = sphi 0, %s246
    %s249 = sphi 0, %s248
    %s263 = sphi 0, %s249
    %s267 = sphi 0, %s267
    %s269 = sphi 0, %s267
    %s270 = sphi 0, %s269
    %s284 = sphi 0, %s270
    %s288 = sphi 0, %s288
    %s290 = sphi 0, %s288
    %s291 = sphi 0, %s290
    %s305 = sphi 0, %s291
    %s309 = sphi 0, %s309
    %s311 = sphi 0, %s309
    %s312 = sphi 0, %s311
    %s326 = sphi 0, %s312
    %s332 = sphi 0, %s334
    %s335 = sphi 0, %s332
    %s336 = sphi 0, %s335
    %s352 = sphi 0, %s336
  $region4: #{_lambda_.25} parent=0 // loop_header_branch
    %22 = sbr.rel (%p20) target = $region8
  $region5: #{_lambda_.25} parent=0 // loop_body
    %s24 = ssub.s32 %s19, 1
    %s25 = ssub.s32 %s19, 2
    %s26 = sadd.s32 %s19, 1
    %s27 = ssub.s32 %s19, %s26
    %p28 = scmp.eq.s32.totalorder %s27, 0
    %s30 = sadd.s32 %s29, 1
    %s31 = scalar_select %p28, %s29, %s30
    %p34 = pneg %p28
    %p35 = scmp.eq.s32.totalorder %s19, 1
    %p36 = por %p34, %p35
    %p37 = scmp.ne.s32.totalorder %s29, %s32
    %p38 = scmp.eq.s32.totalorder %s19, 0
    %p39 = por %p37, %p38
    %p40 = scmp.ne.s32.totalorder %s29, %s32
    %p41 = scmp.eq.s32.totalorder %s24, 1
    %p42 = por %p40, %p41
    %p43 = scmp.ne.s32.totalorder %s32, %s33
    %p44 = scmp.eq.s32.totalorder %s24, 0
    %p45 = por %p43, %p44
    %p46 = scmp.ne.s32.totalorder %s32, %s33
    %p47 = scmp.eq.s32.totalorder %s25, 1
    %p48 = por %p46, %p47
    %p50 = scmp.ne.s32.totalorder %s33, %s49
    %p51 = scmp.eq.s32.totalorder %s25, 0
    %p52 = por %p50, %p51
    %s53 = ssub.s32 %s19, %s26
    %p54 = scmp.eq.s32.totalorder %s53, 0
    %s56 = sadd.s32 %s55, 1
    %s57 = scalar_select %p54, %s55, %s56
    %p60 = pneg %p54
    %p61 = scmp.eq.s32.totalorder %s19, 1
    %p62 = por %p60, %p61
    %p63 = scmp.ne.s32.totalorder %s55, %s58
    %p64 = scmp.eq.s32.totalorder %s19, 0
    %p65 = por %p63, %p64
    %p66 = scmp.ne.s32.totalorder %s55, %s58
    %p67 = scmp.eq.s32.totalorder %s24, 1
    %p68 = por %p66, %p67
    %p69 = scmp.ne.s32.totalorder %s58, %s59
    %p70 = scmp.eq.s32.totalorder %s24, 0
    %p71 = por %p69, %p70
    %p72 = scmp.ne.s32.totalorder %s58, %s59
    %p73 = scmp.eq.s32.totalorder %s25, 1
    %p74 = por %p72, %p73
    %p76 = scmp.ne.s32.totalorder %s59, %s75
    %p77 = scmp.eq.s32.totalorder %s25, 0
    %p78 = por %p76, %p77
    %s79 = ssub.s32 %s19, %s26
    %p80 = scmp.eq.s32.totalorder %s79, 0
    %s82 = sadd.s32 %s81, 1
    %s83 = scalar_select %p80, %s81, %s82
    %p86 = pneg %p80
    %p87 = scmp.eq.s32.totalorder %s19, 1
    %p88 = por %p86, %p87
    %p89 = scmp.ne.s32.totalorder %s81, %s84
    %p90 = scmp.eq.s32.totalorder %s19, 0
    %p91 = por %p89, %p90
    %p92 = scmp.ne.s32.totalorder %s81, %s84
    %p93 = scmp.eq.s32.totalorder %s24, 1
    %p94 = por %p92, %p93
    %p95 = scmp.ne.s32.totalorder %s84, %s85
    %p96 = scmp.eq.s32.totalorder %s24, 0
    %p97 = por %p95, %p96
    %p98 = scmp.ne.s32.totalorder %s84, %s85
    %p99 = scmp.eq.s32.totalorder %s25, 1
    %p100 = por %p98, %p99
    %p102 = scmp.ne.s32.totalorder %s85, %s101
    %p103 = scmp.eq.s32.totalorder %s25, 0
    %p104 = por %p102, %p103
    %s105 = ssub.s32 %s19, %s26
    %p106 = scmp.eq.s32.totalorder %s105, 0
    %s108 = sadd.s32 %s107, 1
    %s109 = scalar_select %p106, %s107, %s108
    %p112 = pneg %p106
    %p113 = scmp.eq.s32.totalorder %s19, 1
    %p114 = por %p112, %p113
    %p115 = scmp.ne.s32.totalorder %s107, %s110
    %p116 = scmp.eq.s32.totalorder %s19, 0
    %p117 = por %p115, %p116
    %p118 = scmp.ne.s32.totalorder %s107, %s110
    %p119 = scmp.eq.s32.totalorder %s24, 1
    %p120 = por %p118, %p119
    %p121 = scmp.ne.s32.totalorder %s110, %s111
    %p122 = scmp.eq.s32.totalorder %s24, 0
    %p123 = por %p121, %p122
    %p124 = scmp.ne.s32.totalorder %s110, %s111
    %p125 = scmp.eq.s32.totalorder %s25, 1
    %p126 = por %p124, %p125
    %p128 = scmp.ne.s32.totalorder %s111, %s127
    %p129 = scmp.eq.s32.totalorder %s25, 0
    %p130 = por %p128, %p129
    %s131 = ssub.s32 %s19, %s26
    %p132 = scmp.eq.s32.totalorder %s131, 0
    %s134 = sadd.s32 %s133, 1
    %s135 = scalar_select %p132, %s133, %s134
    %p138 = pneg %p132
    %p139 = scmp.eq.s32.totalorder %s19, 1
    %p140 = por %p138, %p139
    %p141 = scmp.ne.s32.totalorder %s133, %s136
    %p142 = scmp.eq.s32.totalorder %s19, 0
    %p143 = por %p141, %p142
    %p144 = scmp.ne.s32.totalorder %s133, %s136
    %p145 = scmp.eq.s32.totalorder %s24, 1
    %p146 = por %p144, %p145
    %p147 = scmp.ne.s32.totalorder %s136, %s137
    %p148 = scmp.eq.s32.totalorder %s24, 0
    %p149 = por %p147, %p148
    %p150 = scmp.ne.s32.totalorder %s136, %s137
    %p151 = scmp.eq.s32.totalorder %s25, 1
    %p152 = por %p150, %p151
    %p154 = scmp.ne.s32.totalorder %s137, %s153
    %p155 = scmp.eq.s32.totalorder %s25, 0
    %p156 = por %p154, %p155
    %s157 = ssub.s32 %s19, %s26
    %p158 = scmp.eq.s32.totalorder %s157, 0
    %s160 = sadd.s32 %s159, 1
    %s161 = scalar_select %p158, %s159, %s160
    %p164 = pneg %p158
    %p165 = scmp.eq.s32.totalorder %s19, 1
    %p166 = por %p164, %p165
    %p167 = scmp.ne.s32.totalorder %s159, %s162
    %p168 = scmp.eq.s32.totalorder %s19, 0
    %p169 = por %p167, %p168
    %p170 = scmp.ne.s32.totalorder %s159, %s162
    %p171 = scmp.eq.s32.totalorder %s24, 1
    %p172 = por %p170, %p171
    %p173 = scmp.ne.s32.totalorder %s162, %s163
    %p174 = scmp.eq.s32.totalorder %s24, 0
    %p175 = por %p173, %p174
    %p176 = scmp.ne.s32.totalorder %s162, %s163
    %p177 = scmp.eq.s32.totalorder %s25, 1
    %p178 = por %p176, %p177
    %p180 = scmp.ne.s32.totalorder %s163, %s179
    %p181 = scmp.eq.s32.totalorder %s25, 0
    %p182 = por %p180, %p181
    %s184 = sadd.s32 %s183, 1
    %p187 = scmp.eq.s32.totalorder %s19, 1
    %p188 = scmp.ne.s32.totalorder %s183, %s185
    %p189 = scmp.eq.s32.totalorder %s19, 0
    %p190 = por %p188, %p189
    %p191 = scmp.ne.s32.totalorder %s183, %s185
    %p192 = scmp.eq.s32.totalorder %s24, 1
    %p193 = por %p191, %p192
    %p194 = scmp.ne.s32.totalorder %s185, %s186
    %p195 = scmp.eq.s32.totalorder %s24, 0
    %p196 = por %p194, %p195
    %p197 = scmp.ne.s32.totalorder %s185, %s186
    %p198 = scmp.eq.s32.totalorder %s25, 1
    %p199 = por %p197, %p198
    %p201 = scmp.ne.s32.totalorder %s186, %s200
    %p202 = scmp.eq.s32.totalorder %s25, 0
    %p203 = por %p201, %p202
    %s205 = sadd.s32 %s204, 1
    %p208 = scmp.eq.s32.totalorder %s19, 1
    %p209 = scmp.ne.s32.totalorder %s204, %s206
    %p210 = scmp.eq.s32.totalorder %s19, 0
    %p211 = por %p209, %p210
    %p212 = scmp.ne.s32.totalorder %s204, %s206
    %p213 = scmp.eq.s32.totalorder %s24, 1
    %p214 = por %p212, %p213
    %p215 = scmp.ne.s32.totalorder %s206, %s207
    %p216 = scmp.eq.s32.totalorder %s24, 0
    %p217 = por %p215, %p216
    %p218 = scmp.ne.s32.totalorder %s206, %s207
    %p219 = scmp.eq.s32.totalorder %s25, 1
    %p220 = por %p218, %p219
    %p222 = scmp.ne.s32.totalorder %s207, %s221
    %p223 = scmp.eq.s32.totalorder %s25, 0
    %p224 = por %p222, %p223
    %s226 = sadd.s32 %s225, 1
    %p229 = scmp.eq.s32.totalorder %s19, 1
    %p230 = scmp.ne.s32.totalorder %s225, %s227
    %p231 = scmp.eq.s32.totalorder %s19, 0
    %p232 = por %p230, %p231
    %p233 = scmp.ne.s32.totalorder %s225, %s227
    %p234 = scmp.eq.s32.totalorder %s24, 1
    %p235 = por %p233, %p234
    %p236 = scmp.ne.s32.totalorder %s227, %s228
    %p237 = scmp.eq.s32.totalorder %s24, 0
    %p238 = por %p236, %p237
    %p239 = scmp.ne.s32.totalorder %s227, %s228
    %p240 = scmp.eq.s32.totalorder %s25, 1
    %p241 = por %p239, %p240
    %p243 = scmp.ne.s32.totalorder %s228, %s242
    %p244 = scmp.eq.s32.totalorder %s25, 0
    %p245 = por %p243, %p244
    %s247 = sadd.s32 %s246, 1
    %p250 = scmp.eq.s32.totalorder %s19, 1
    %p251 = scmp.ne.s32.totalorder %s246, %s248
    %p252 = scmp.eq.s32.totalorder %s19, 0
    %p253 = por %p251, %p252
    %p254 = scmp.ne.s32.totalorder %s246, %s248
    %p255 = scmp.eq.s32.totalorder %s24, 1
    %p256 = por %p254, %p255
    %p257 = scmp.ne.s32.totalorder %s248, %s249
    %p258 = scmp.eq.s32.totalorder %s24, 0
    %p259 = por %p257, %p258
    %p260 = scmp.ne.s32.totalorder %s248, %s249
    %p261 = scmp.eq.s32.totalorder %s25, 1
    %p262 = por %p260, %p261
    %p264 = scmp.ne.s32.totalorder %s249, %s263
    %p265 = scmp.eq.s32.totalorder %s25, 0
    %p266 = por %p264, %p265
    %s268 = sadd.s32 %s267, 1
    %p271 = scmp.eq.s32.totalorder %s19, 1
    %p272 = scmp.ne.s32.totalorder %s267, %s269
    %p273 = scmp.eq.s32.totalorder %s19, 0
    %p274 = por %p272, %p273
    %p275 = scmp.ne.s32.totalorder %s267, %s269
    %p276 = scmp.eq.s32.totalorder %s24, 1
    %p277 = por %p275, %p276
    %p278 = scmp.ne.s32.totalorder %s269, %s270
    %p279 = scmp.eq.s32.totalorder %s24, 0
    %p280 = por %p278, %p279
    %p281 = scmp.ne.s32.totalorder %s269, %s270
    %p282 = scmp.eq.s32.totalorder %s25, 1
    %p283 = por %p281, %p282
    %p285 = scmp.ne.s32.totalorder %s270, %s284
    %p286 = scmp.eq.s32.totalorder %s25, 0
    %p287 = por %p285, %p286
    %s289 = sadd.s32 %s288, 1
    %p292 = scmp.eq.s32.totalorder %s19, 1
    %p293 = scmp.ne.s32.totalorder %s288, %s290
    %p294 = scmp.eq.s32.totalorder %s19, 0
    %p295 = por %p293, %p294
    %p296 = scmp.ne.s32.totalorder %s288, %s290
    %p297 = scmp.eq.s32.totalorder %s24, 1
    %p298 = por %p296, %p297
    %p299 = scmp.ne.s32.totalorder %s290, %s291
    %p300 = scmp.eq.s32.totalorder %s24, 0
    %p301 = por %p299, %p300
    %p302 = scmp.ne.s32.totalorder %s290, %s291
    %p303 = scmp.eq.s32.totalorder %s25, 1
    %p304 = por %p302, %p303
    %p306 = scmp.ne.s32.totalorder %s291, %s305
    %p307 = scmp.eq.s32.totalorder %s25, 0
    %p308 = por %p306, %p307
    %s310 = sadd.s32 %s309, 1
    %p313 = scmp.eq.s32.totalorder %s19, 1
    %p314 = scmp.ne.s32.totalorder %s309, %s311
    %p315 = scmp.eq.s32.totalorder %s19, 0
    %p316 = por %p314, %p315
    %p317 = scmp.ne.s32.totalorder %s309, %s311
    %p318 = scmp.eq.s32.totalorder %s24, 1
    %p319 = por %p317, %p318
    %p320 = scmp.ne.s32.totalorder %s311, %s312
    %p321 = scmp.eq.s32.totalorder %s24, 0
    %p322 = por %p320, %p321
    %p323 = scmp.ne.s32.totalorder %s311, %s312
    %p324 = scmp.eq.s32.totalorder %s25, 1
    %p325 = por %p323, %p324
    %p327 = scmp.ne.s32.totalorder %s312, %s326
    %p328 = scmp.eq.s32.totalorder %s25, 0
    %p329 = por %p327, %p328
    %s330 = ssub.s32 %s19, %s26
    %p331 = scmp.eq.s32.totalorder %s330, 0
    %s333 = sadd.s32 %s332, 1
    %s334 = scalar_select %p331, %s332, %s333
    %p337 = pneg %p331
    %p338 = scmp.eq.s32.totalorder %s19, 1
    %p339 = por %p337, %p338
    %p340 = scmp.ne.s32.totalorder %s332, %s335
    %p341 = scmp.eq.s32.totalorder %s19, 0
    %p342 = por %p340, %p341
    %p343 = scmp.ne.s32.totalorder %s332, %s335
    %p344 = scmp.eq.s32.totalorder %s24, 1
    %p345 = por %p343, %p344
    %p346 = scmp.ne.s32.totalorder %s335, %s336
    %p347 = scmp.eq.s32.totalorder %s24, 0
    %p348 = por %p346, %p347
    %p349 = scmp.ne.s32.totalorder %s335, %s336
    %p350 = scmp.eq.s32.totalorder %s25, 1
    %p351 = por %p349, %p350
    %p353 = scmp.ne.s32.totalorder %s336, %s352
    %p354 = scmp.eq.s32.totalorder %s25, 0
    %p355 = por %p353, %p354
    %p356 = scmp.le.s32.totalorder 1, %s19
    %p357 = scmp.lt.s32.totalorder %s19, 3
    %p358 = pnand %p356, %p357
    %p359 = pneg %p358
    // Predicated region
    $region9: #{_lambda_.25} parent=5 // pred_check
      _
    $region10: #{_lambda_.25} parent=5 // pred_check_branch
      %361 = sbr.rel (%p358) target = $region12
    $region11: #{_lambda_.25} parent=5 // pred_region
      %s362 = ssub.s32 %s19, 1
      // Predicated region
      $region13: #{_lambda_.25} parent=11 // pred_check
        %p363 = pneg %p196
      $region14: #{_lambda_.25} parent=11 // pred_check_branch
        %365 = sbr.rel (%p363) target = $region16
      $region15: #{_lambda_.25} parent=11 // pred_region
        _
      $region16: #{_lambda_.25} parent=11 // pred_fallthru
        _
      // Predicated region
      $region17: #{_lambda_.25} parent=11 // pred_check
        %p366 = pneg %p217
      $region18: #{_lambda_.25} parent=11 // pred_check_branch
        %368 = sbr.rel (%p366) target = $region20
      $region19: #{_lambda_.25} parent=11 // pred_region
        _
      $region20: #{_lambda_.25} parent=11 // pred_fallthru
        _
      // Predicated region
      $region21: #{_lambda_.25} parent=11 // pred_check
        %p369 = pneg %p238
      $region22: #{_lambda_.25} parent=11 // pred_check_branch
        %371 = sbr.rel (%p369) target = $region24
      $region23: #{_lambda_.25} parent=11 // pred_region
        _
      $region24: #{_lambda_.25} parent=11 // pred_fallthru
        _
      // Predicated region
      $region25: #{_lambda_.25} parent=11 // pred_check
        %p372 = pneg %p259
      $region26: #{_lambda_.25} parent=11 // pred_check_branch
        %374 = sbr.rel (%p372) target = $region28
      $region27: #{_lambda_.25} parent=11 // pred_region
        _
      $region28: #{_lambda_.25} parent=11 // pred_fallthru
        _
      // Predicated region
      $region29: #{_lambda_.25} parent=11 // pred_check
        %p375 = pneg %p280
      $region30: #{_lambda_.25} parent=11 // pred_check_branch
        %377 = sbr.rel (%p375) target = $region32
      $region31: #{_lambda_.25} parent=11 // pred_region
        _
      $region32: #{_lambda_.25} parent=11 // pred_fallthru
        _
      // Predicated region
      $region33: #{_lambda_.25} parent=11 // pred_check
        %p378 = pneg %p301
      $region34: #{_lambda_.25} parent=11 // pred_check_branch
        %380 = sbr.rel (%p378) target = $region36
      $region35: #{_lambda_.25} parent=11 // pred_region
        _
      $region36: #{_lambda_.25} parent=11 // pred_fallthru
        _
      // Predicated region
      $region37: #{_lambda_.25} parent=11 // pred_check
        %p381 = pneg %p322
      $region38: #{_lambda_.25} parent=11 // pred_check_branch
        %383 = sbr.rel (%p381) target = $region40
      $region39: #{_lambda_.25} parent=11 // pred_region
        _
      $region40: #{_lambda_.25} parent=11 // pred_fallthru
        _
    $region12: #{_lambda_.25} parent=5 // pred_fallthru
      _
    %p384 = scmp.lt.s32.totalorder %s19, 2
    // Predicated region
    $region41: #{_lambda_.25} parent=5 // pred_check
      %p385 = pneg %p384
    $region42: #{_lambda_.25} parent=5 // pred_check_branch
      %387 = sbr.rel (%p385) target = $region44
    $region43: #{_lambda_.25} parent=5 // pred_region
      // Predicated region
      $region45: #{_lambda_.25} parent=43 // pred_check
        %p388 = pneg %p39
      $region46: #{_lambda_.25} parent=43 // pred_check_branch
        %390 = sbr.rel (%p388) target = $region48
      $region47: #{_lambda_.25} parent=43 // pred_region
        %p391 = scmp.lt.s32.totalorder %s19, 1
        %s392 = scalar_select %p391, %s19, 1
        %s393 = smul.addr %s392, 2
        %s394 = smul.addr %s393, 4
        %s395 = scalar_lea.vmem %s0, %s394
      $region48: #{_lambda_.25} parent=43 // pred_fallthru
        _
      // Predicated region
      $region49: #{_lambda_.25} parent=43 // pred_check
        %p396 = pneg %p65
      $region50: #{_lambda_.25} parent=43 // pred_check_branch
        %398 = sbr.rel (%p396) target = $region52
      $region51: #{_lambda_.25} parent=43 // pred_region
        %p399 = scmp.lt.s32.totalorder %s19, 1
        %s400 = scalar_select %p399, %s19, 1
        %s401 = smul.addr %s400, 2
        %s402 = smul.addr %s401, 4
        %s403 = scalar_lea.vmem %s1, %s402
      $region52: #{_lambda_.25} parent=43 // pred_fallthru
        _
      // Predicated region
      $region53: #{_lambda_.25} parent=43 // pred_check
        %p404 = pneg %p91
      $region54: #{_lambda_.25} parent=43 // pred_check_branch
        %406 = sbr.rel (%p404) target = $region56
      $region55: #{_lambda_.25} parent=43 // pred_region
        %p407 = scmp.lt.s32.totalorder %s19, 1
        %s408 = scalar_select %p407, %s19, 1
        %s409 = smul.addr %s408, 2
        %s410 = smul.addr %s409, 4
        %s411 = scalar_lea.vmem %s2, %s410
      $region56: #{_lambda_.25} parent=43 // pred_fallthru
        _
      // Predicated region
      $region57: #{_lambda_.25} parent=43 // pred_check
        %p412 = pneg %p117
      $region58: #{_lambda_.25} parent=43 // pred_check_branch
        %414 = sbr.rel (%p412) target = $region60
      $region59: #{_lambda_.25} parent=43 // pred_region
        %p415 = scmp.lt.s32.totalorder %s19, 1
        %s416 = scalar_select %p415, %s19, 1
        %s417 = smul.addr %s416, 2
        %s418 = smul.addr %s417, 4
        %s419 = scalar_lea.vmem %s3, %s418
      $region60: #{_lambda_.25} parent=43 // pred_fallthru
        _
      // Predicated region
      $region61: #{_lambda_.25} parent=43 // pred_check
        %p420 = pneg %p143
      $region62: #{_lambda_.25} parent=43 // pred_check_branch
        %422 = sbr.rel (%p420) target = $region64
      $region63: #{_lambda_.25} parent=43 // pred_region
        %p423 = scmp.lt.s32.totalorder %s19, 1
        %s424 = scalar_select %p423, %s19, 1
        %s425 = smul.addr %s424, 2
        %s426 = smul.addr %s425, 4
        %s427 = scalar_lea.vmem %s4, %s426
      $region64: #{_lambda_.25} parent=43 // pred_fallthru
        _
      // Predicated region
      $region65: #{_lambda_.25} parent=43 // pred_check
        %p428 = pneg %p169
      $region66: #{_lambda_.25} parent=43 // pred_check_branch
        %430 = sbr.rel (%p428) target = $region68
      $region67: #{_lambda_.25} parent=43 // pred_region
        %p431 = scmp.lt.s32.totalorder %s19, 1
        %s432 = scalar_select %p431, %s19, 1
        %s433 = smul.addr %s432, 4
        %s434 = smul.addr %s433, 4
        %s435 = scalar_lea.vmem %s5, %s434
      $region68: #{_lambda_.25} parent=43 // pred_fallthru
        _
    $region44: #{_lambda_.25} parent=5 // pred_fallthru
      _
    %p436 = scmp.le.s32.totalorder 1, %s19
    %p437 = scmp.lt.s32.totalorder %s19, 3
    %p438 = pnand %p436, %p437
    %p439 = pneg %p438
    // Predicated region
    $region69: #{_lambda_.25} parent=5 // pred_check
      _
    $region70: #{_lambda_.25} parent=5 // pred_check_branch
      %441 = sbr.rel (%p438) target = $region72
    $region71: #{_lambda_.25} parent=5 // pred_region
      %s442 = ssub.s32 %s19, 1
      %p443 = scmp.lt.s32.totalorder %s24, 1
      %s444 = scalar_select %p443, %s24, 1
      %s445 = smul.addr %s444, 2
      %s446 = smul.addr %s445, 4
      %s447 = scalar_lea.vmem %s0, %s446
      %p448 = pneg %p45
      %p449 = pneg %p42
      %p450 = scmp.lt.s32.totalorder %s24, 1
      %s451 = scalar_select %p450, %s24, 1
      %s452 = smul.addr %s451, 2
      %s453 = smul.addr %s452, 4
      %s454 = scalar_lea.vmem %s1, %s453
      %p455 = pneg %p71
      %p456 = pneg %p68
      %p457 = scmp.lt.s32.totalorder %s24, 1
      %s458 = scalar_select %p457, %s24, 1
      %s459 = smul.addr %s458, 2
      %s460 = smul.addr %s459, 4
      %s461 = scalar_lea.vmem %s2, %s460
      %p462 = pneg %p97
      %p463 = pneg %p94
      %p464 = scmp.lt.s32.totalorder %s24, 1
      %s465 = scalar_select %p464, %s24, 1
      %s466 = smul.addr %s465, 2
      %s467 = smul.addr %s466, 4
      %s468 = scalar_lea.vmem %s3, %s467
      %p469 = pneg %p123
      %p470 = pneg %p120
      %p471 = scmp.lt.s32.totalorder %s24, 1
      %s472 = scalar_select %p471, %s24, 1
      %s473 = smul.addr %s472, 2
      %s474 = smul.addr %s473, 4
      %s475 = scalar_lea.vmem %s4, %s474
      %p476 = pneg %p149
      %p477 = pneg %p146
      %p478 = scmp.lt.s32.totalorder %s24, 1
      %s479 = scalar_select %p478, %s24, 1
      %s480 = smul.addr %s479, 4
      %s481 = smul.addr %s480, 4
      %s482 = scalar_lea.vmem %s5, %s481
      %p483 = pneg %p175
      %p484 = pneg %p172
      %p485 = pneg %p196
      %p486 = pneg %p193
      %p487 = pneg %p217
      %p488 = pneg %p214
      %p489 = pneg %p238
      %p490 = pneg %p235
      %p491 = pneg %p259
      %p492 = pneg %p256
      %p493 = pneg %p280
      %p494 = pneg %p277
      %p495 = pneg %p301
      %p496 = pneg %p298
      %p497 = pneg %p322
      %p498 = pneg %p319
      %p499 = pneg %p348
      %p500 = pneg %p345
      %p501 = scmp.lt.s32.totalorder %s24, 1
      %s502 = scalar_select %p501, %s24, 1
      %s503 = smul.addr %s502, 2
      %s504 = smul.addr %s503, 8
      %s505 = scalar_lea.vmem %s13, %s504
      %p506 = scmp.lt.s32.totalorder %s24, 1
      %s507 = scalar_select %p506, %s24, 1
      %s508 = smul.addr %s507, 2
      %s509 = smul.addr %s508, 4
      %s510 = scalar_lea.vmem %s0, %s509
      %p511 = scmp.lt.s32.totalorder %s24, 1
      %s512 = scalar_select %p511, %s24, 1
      %s513 = smul.addr %s512, 2
      %s514 = smul.addr %s513, 4
      %s515 = scalar_lea.vmem %s1, %s514
      %p516 = scmp.lt.s32.totalorder %s24, 1
      %s517 = scalar_select %p516, %s24, 1
      %s518 = smul.addr %s517, 2
      %s519 = smul.addr %s518, 4
      %s520 = scalar_lea.vmem %s2, %s519
      %p521 = scmp.lt.s32.totalorder %s24, 1
      %s522 = scalar_select %p521, %s24, 1
      %s523 = smul.addr %s522, 2
      %s524 = smul.addr %s523, 4
      %s525 = scalar_lea.vmem %s3, %s524
      %p526 = scmp.lt.s32.totalorder %s24, 1
      %s527 = scalar_select %p526, %s24, 1
      %s528 = smul.addr %s527, 2
      %s529 = smul.addr %s528, 4
      %s530 = scalar_lea.vmem %s4, %s529
      %p531 = scmp.lt.s32.totalorder %s24, 1
      %s532 = scalar_select %p531, %s24, 1
      %s533 = smul.addr %s532, 4
      %s534 = smul.addr %s533, 4
      %s535 = scalar_lea.vmem %s5, %s534
      %p536 = scmp.lt.s32.totalorder %s24, 1
      %s537 = scalar_select %p536, %s24, 1
      %s538 = smul.addr %s537, 2
      %s539 = smul.addr %s538, 8
      %s540 = scalar_lea.vmem %s13, %s539
      %v542 = vld [vmem:[%s510] sm:$0xf]
      %v543 = vld [vmem:[%s510 + $0x4] sm:$0xf]
      %v544 = vld [vmem:[%s6] sm:$0xf]
      %v545 = vld [vmem:[%s6 + $0x4] sm:$0xf]
      %v546 = vld [vmem:[%s6 + $0x8] sm:$0xf]
      %v547 = vld [vmem:[%s6 + $0xc] sm:$0xf]
      %v548 = vld [vmem:[%s6 + $0x10] sm:$0xf]
      %v549 = vld [vmem:[%s6 + $0x14] sm:$0xf]
      %v550 = vld [vmem:[%s6 + $0x18] sm:$0xf]
      %v551 = vld [vmem:[%s6 + $0x1c] sm:$0xf]
      %v552 = vld [vmem:[%s6 + $0x20] sm:$0xf]
      %v553 = vld [vmem:[%s6 + $0x24] sm:$0xf]
      %v554 = vld [vmem:[%s6 + $0x28] sm:$0xf]
      %v555 = vld [vmem:[%s6 + $0x2c] sm:$0xf]
      %v556 = vld [vmem:[%s6 + $0x30] sm:$0xf]
      %v557 = vld [vmem:[%s6 + $0x34] sm:$0xf]
      %v558 = vld [vmem:[%s6 + $0x38] sm:$0xf]
      %v559 = vld [vmem:[%s6 + $0x3c] sm:$0xf]
      %v560 = vld [vmem:[%s515] sm:$0xf]
      %v561 = vld [vmem:[%s515 + $0x4] sm:$0xf]
      %v562 = vld [vmem:[%s7] sm:$0xf]
      %v563 = vld [vmem:[%s7 + $0x4] sm:$0xf]
      %v564 = vld [vmem:[%s7 + $0x8] sm:$0xf]
      %v565 = vld [vmem:[%s7 + $0xc] sm:$0xf]
      %v566 = vld [vmem:[%s7 + $0x10] sm:$0xf]
      %v567 = vld [vmem:[%s7 + $0x14] sm:$0xf]
      %v568 = vld [vmem:[%s7 + $0x18] sm:$0xf]
      %v569 = vld [vmem:[%s7 + $0x1c] sm:$0xf]
      %v570 = vld [vmem:[%s7 + $0x20] sm:$0xf]
      %v571 = vld [vmem:[%s7 + $0x24] sm:$0xf]
      %v572 = vld [vmem:[%s7 + $0x28] sm:$0xf]
      %v573 = vld [vmem:[%s7 + $0x2c] sm:$0xf]
      %v574 = vld [vmem:[%s7 + $0x30] sm:$0xf]
      %v575 = vld [vmem:[%s7 + $0x34] sm:$0xf]
      %v576 = vld [vmem:[%s7 + $0x38] sm:$0xf]
      %v577 = vld [vmem:[%s7 + $0x3c] sm:$0xf]
      %v580 = vunpack.c.l.b16 %v560
      %v581 = vunpack.c.l.b16 %v561
      %v582 = vpack.c.b16 %v581, %v580
      %v600 = vunpack.c.l.b16 %v562
      %v601 = vunpack.c.l.b16 %v563
      %v602 = vunpack.c.l.b16 %v564
      %v603 = vunpack.c.l.b16 %v565
      %v604 = vunpack.c.l.b16 %v566
      %v605 = vunpack.c.l.b16 %v567
      %v606 = vunpack.c.l.b16 %v568
      %v607 = vunpack.c.l.b16 %v569
      %v608 = vunpack.c.l.b16 %v570
      %v609 = vunpack.c.l.b16 %v571
      %v610 = vunpack.c.l.b16 %v572
      %v611 = vunpack.c.l.b16 %v573
      %v612 = vunpack.c.l.b16 %v574
      %v613 = vunpack.c.l.b16 %v575
      %v614 = vunpack.c.l.b16 %v576
      %v615 = vunpack.c.l.b16 %v577
      %v616 = vpack.c.b16 %v601, %v600
      %v617 = vpack.c.b16 %v603, %v602
      %v618 = vpack.c.b16 %v605, %v604
      %v619 = vpack.c.b16 %v607, %v606
      %v620 = vpack.c.b16 %v609, %v608
      %v621 = vpack.c.b16 %v611, %v610
      %v622 = vpack.c.b16 %v613, %v612
      %v623 = vpack.c.b16 %v615, %v614
      %632 = vmatprep.subr.bf16.mxu0 0
      %633 = vmatpush1.bf16.msra.mxu0 %v616
      %634 = vmatprep.subr.bf16.mxu0 0
      %635 = vmatpush1.bf16.msra.mxu0 %v617
      %636 = vmatprep.subr.bf16.mxu0 0
      %637 = vmatpush1.bf16.msra.mxu0 %v618
      %638 = vmatprep.subr.bf16.mxu0 0
      %639 = vmatpush1.bf16.msra.mxu0 %v619
      %640 = vmatprep.subr.bf16.mxu0 0
      %641 = vmatpush1.bf16.msra.mxu0 %v620
      %642 = vmatprep.subr.bf16.mxu0 0
      %643 = vmatpush1.bf16.msra.mxu0 %v621
      %644 = vmatprep.subr.bf16.mxu0 0
      %645 = vmatpush1.bf16.msra.mxu0 %v622
      %646 = vmatprep.subr.bf16.mxu0 0
      %647 = vmatpush1.bf16.msra.mxu0 %v623
      %648 = vmatprep.subr.bf16.mxu0 0
      %649 = vmatpush1.bf16.msra.mxu0 0
      %650 = vmatprep.subr.bf16.mxu0 0
      %651 = vmatpush1.bf16.msra.mxu0 0
      %652 = vmatprep.subr.bf16.mxu0 0
      %653 = vmatpush1.bf16.msra.mxu0 0
      %654 = vmatprep.subr.bf16.mxu0 0
      %655 = vmatpush1.bf16.msra.mxu0 0
      %656 = vmatprep.subr.bf16.mxu0 0
      %657 = vmatpush1.bf16.msra.mxu0 0
      %658 = vmatprep.subr.bf16.mxu0 0
      %659 = vmatpush1.bf16.msra.mxu0 0
      %660 = vmatprep.subr.bf16.mxu0 0
      %661 = vmatpush1.bf16.msra.mxu0 0
      %662 = vmatprep.subr.bf16.mxu0 0
      %663 = vmatpush1.bf16.msra.mxu0 0
      %664 = vmatprep.mubr.bf16.mxu0 0
      %665 = vmatmul.mubr.bf16.gmra.mrb[0].mxu0 %v582
      %v666 = vpop.f32.mrb[0].mxu0
      %v667 = vadd.f32 0.0, %v666
      %v668 = vpop.f32.mrb[0].mxu0
      %v669 = vpop.f32.mrb[0].mxu0
      %v670 = vadd.f32 0.0, %v669
      %v671 = vpop.f32.mrb[0].mxu0
      %672 = vdwg.mxu0
      %v675 = vunpack.c.l.b16 %v542
      %v676 = vunpack.c.l.b16 %v543
      %v677 = vpack.c.b16 %v676, %v675
      %v695 = vunpack.c.l.b16 %v544
      %v696 = vunpack.c.l.b16 %v545
      %v697 = vunpack.c.l.b16 %v546
      %v698 = vunpack.c.l.b16 %v547
      %v699 = vunpack.c.l.b16 %v548
      %v700 = vunpack.c.l.b16 %v549
      %v701 = vunpack.c.l.b16 %v550
      %v702 = vunpack.c.l.b16 %v551
      %v703 = vunpack.c.l.b16 %v552
      %v704 = vunpack.c.l.b16 %v553
      %v705 = vunpack.c.l.b16 %v554
      %v706 = vunpack.c.l.b16 %v555
      %v707 = vunpack.c.l.b16 %v556
      %v708 = vunpack.c.l.b16 %v557
      %v709 = vunpack.c.l.b16 %v558
      %v710 = vunpack.c.l.b16 %v559
      %v711 = vpack.c.b16 %v696, %v695
      %v712 = vpack.c.b16 %v698, %v697
      %v713 = vpack.c.b16 %v700, %v699
      %v714 = vpack.c.b16 %v702, %v701
      %v715 = vpack.c.b16 %v704, %v703
      %v716 = vpack.c.b16 %v706, %v705
      %v717 = vpack.c.b16 %v708, %v707
      %v718 = vpack.c.b16 %v710, %v709
      %727 = vmatprep.subr.bf16.mxu0 0
      %728 = vmatpush1.bf16.msra.mxu0 %v711
      %729 = vmatprep.subr.bf16.mxu0 0
      %730 = vmatpush1.bf16.msra.mxu0 %v712
      %731 = vmatprep.subr.bf16.mxu0 0
      %732 = vmatpush1.bf16.msra.mxu0 %v713
      %733 = vmatprep.subr.bf16.mxu0 0
      %734 = vmatpush1.bf16.msra.mxu0 %v714
      %735 = vmatprep.subr.bf16.mxu0 0
      %736 = vmatpush1.bf16.msra.mxu0 %v715
      %737 = vmatprep.subr.bf16.mxu0 0
      %738 = vmatpush1.bf16.msra.mxu0 %v716
      %739 = vmatprep.subr.bf16.mxu0 0
      %740 = vmatpush1.bf16.msra.mxu0 %v717
      %741 = vmatprep.subr.bf16.mxu0 0
      %742 = vmatpush1.bf16.msra.mxu0 %v718
      %743 = vmatprep.subr.bf16.mxu0 0
      %744 = vmatpush1.bf16.msra.mxu0 0
      %745 = vmatprep.subr.bf16.mxu0 0
      %746 = vmatpush1.bf16.msra.mxu0 0
      %747 = vmatprep.subr.bf16.mxu0 0
      %748 = vmatpush1.bf16.msra.mxu0 0
      %749 = vmatprep.subr.bf16.mxu0 0
      %750 = vmatpush1.bf16.msra.mxu0 0
      %751 = vmatprep.subr.bf16.mxu0 0
      %752 = vmatpush1.bf16.msra.mxu0 0
      %753 = vmatprep.subr.bf16.mxu0 0
      %754 = vmatpush1.bf16.msra.mxu0 0
      %755 = vmatprep.subr.bf16.mxu0 0
      %756 = vmatpush1.bf16.msra.mxu0 0
      %757 = vmatprep.subr.bf16.mxu0 0
      %758 = vmatpush1.bf16.msra.mxu0 0
      %759 = vmatprep.mubr.bf16.mxu0 0
      %760 = vmatmul.mubr.bf16.gmra.mrb[0].mxu0 %v677
      %v761 = vpop.f32.mrb[0].mxu0
      %v762 = vadd.f32 %v667, %v761
      %v763 = vpop.f32.mrb[0].mxu0
      %v764 = vpop.f32.mrb[0].mxu0
      %v765 = vadd.f32 %v670, %v764
      %v766 = vpop.f32.mrb[0].mxu0
      %767 = vdwg.mxu0
      %v768 = vld [vmem:[%s520] sm:$0xf]
      %v769 = vld [vmem:[%s520 + $0x4] sm:$0xf]
      %v770 = vld [vmem:[%s8] sm:$0xf]
      %v771 = vld [vmem:[%s8 + $0x4] sm:$0xf]
      %v772 = vld [vmem:[%s8 + $0x8] sm:$0xf]
      %v773 = vld [vmem:[%s8 + $0xc] sm:$0xf]
      %v774 = vld [vmem:[%s8 + $0x10] sm:$0xf]
      %v775 = vld [vmem:[%s8 + $0x14] sm:$0xf]
      %v776 = vld [vmem:[%s8 + $0x18] sm:$0xf]
      %v777 = vld [vmem:[%s8 + $0x1c] sm:$0xf]
      %v778 = vld [vmem:[%s8 + $0x20] sm:$0xf]
      %v779 = vld [vmem:[%s8 + $0x24] sm:$0xf]
      %v780 = vld [vmem:[%s8 + $0x28] sm:$0xf]
      %v781 = vld [vmem:[%s8 + $0x2c] sm:$0xf]
      %v782 = vld [vmem:[%s8 + $0x30] sm:$0xf]
      %v783 = vld [vmem:[%s8 + $0x34] sm:$0xf]
      %v784 = vld [vmem:[%s8 + $0x38] sm:$0xf]
      %v785 = vld [vmem:[%s8 + $0x3c] sm:$0xf]
      %v788 = vunpack.c.l.b16 %v768
      %v789 = vunpack.c.l.b16 %v769
      %v790 = vpack.c.b16 %v789, %v788
      %v808 = vunpack.c.l.b16 %v770
      %v809 = vunpack.c.l.b16 %v771
      %v810 = vunpack.c.l.b16 %v772
      %v811 = vunpack.c.l.b16 %v773
      %v812 = vunpack.c.l.b16 %v774
      %v813 = vunpack.c.l.b16 %v775
      %v814 = vunpack.c.l.b16 %v776
      %v815 = vunpack.c.l.b16 %v777
      %v816 = vunpack.c.l.b16 %v778
      %v817 = vunpack.c.l.b16 %v779
      %v818 = vunpack.c.l.b16 %v780
      %v819 = vunpack.c.l.b16 %v781
      %v820 = vunpack.c.l.b16 %v782
      %v821 = vunpack.c.l.b16 %v783
      %v822 = vunpack.c.l.b16 %v784
      %v823 = vunpack.c.l.b16 %v785
      %v824 = vpack.c.b16 %v809, %v808
      %v825 = vpack.c.b16 %v811, %v810
      %v826 = vpack.c.b16 %v813, %v812
      %v827 = vpack.c.b16 %v815, %v814
      %v828 = vpack.c.b16 %v817, %v816
      %v829 = vpack.c.b16 %v819, %v818
      %v830 = vpack.c.b16 %v821, %v820
      %v831 = vpack.c.b16 %v823, %v822
      %840 = vmatprep.subr.bf16.mxu0 0
      %841 = vmatpush1.bf16.msra.mxu0 %v824
      %842 = vmatprep.subr.bf16.mxu0 0
      %843 = vmatpush1.bf16.msra.mxu0 %v825
      %844 = vmatprep.subr.bf16.mxu0 0
      %845 = vmatpush1.bf16.msra.mxu0 %v826
      %846 = vmatprep.subr.bf16.mxu0 0
      %847 = vmatpush1.bf16.msra.mxu0 %v827
      %848 = vmatprep.subr.bf16.mxu0 0
      %849 = vmatpush1.bf16.msra.mxu0 %v828
      %850 = vmatprep.subr.bf16.mxu0 0
      %851 = vmatpush1.bf16.msra.mxu0 %v829
      %852 = vmatprep.subr.bf16.mxu0 0
      %853 = vmatpush1.bf16.msra.mxu0 %v830
      %854 = vmatprep.subr.bf16.mxu0 0
      %855 = vmatpush1.bf16.msra.mxu0 %v831
      %856 = vmatprep.subr.bf16.mxu0 0
      %857 = vmatpush1.bf16.msra.mxu0 0
      %858 = vmatprep.subr.bf16.mxu0 0
      %859 = vmatpush1.bf16.msra.mxu0 0
      %860 = vmatprep.subr.bf16.mxu0 0
      %861 = vmatpush1.bf16.msra.mxu0 0
      %862 = vmatprep.subr.bf16.mxu0 0
      %863 = vmatpush1.bf16.msra.mxu0 0
      %864 = vmatprep.subr.bf16.mxu0 0
      %865 = vmatpush1.bf16.msra.mxu0 0
      %866 = vmatprep.subr.bf16.mxu0 0
      %867 = vmatpush1.bf16.msra.mxu0 0
      %868 = vmatprep.subr.bf16.mxu0 0
      %869 = vmatpush1.bf16.msra.mxu0 0
      %870 = vmatprep.subr.bf16.mxu0 0
      %871 = vmatpush1.bf16.msra.mxu0 0
      %872 = vmatprep.mubr.bf16.mxu0 0
      %873 = vmatmul.mubr.bf16.gmra.mrb[0].mxu0 %v790
      %v874 = vpop.f32.mrb[0].mxu0
      %v875 = vadd.f32 0.0, %v874
      %v876 = vpop.f32.mrb[0].mxu0
      %v877 = vpop.f32.mrb[0].mxu0
      %v878 = vadd.f32 0.0, %v877
      %v879 = vpop.f32.mrb[0].mxu0
      %880 = vdwg.mxu0
      %v881 = vadd.f32 %v762, %v875
      %v882 = vadd.f32 %v765, %v878
      %v883 = vld [vmem:[%s525] sm:$0xf]
      %v884 = vld [vmem:[%s525 + $0x4] sm:$0xf]
      %v885 = vld [vmem:[%s9] sm:$0xf]
      %v886 = vld [vmem:[%s9 + $0x4] sm:$0xf]
      %v887 = vld [vmem:[%s9 + $0x8] sm:$0xf]
      %v888 = vld [vmem:[%s9 + $0xc] sm:$0xf]
      %v889 = vld [vmem:[%s9 + $0x10] sm:$0xf]
      %v890 = vld [vmem:[%s9 + $0x14] sm:$0xf]
      %v891 = vld [vmem:[%s9 + $0x18] sm:$0xf]
      %v892 = vld [vmem:[%s9 + $0x1c] sm:$0xf]
      %v893 = vld [vmem:[%s9 + $0x20] sm:$0xf]
      %v894 = vld [vmem:[%s9 + $0x24] sm:$0xf]
      %v895 = vld [vmem:[%s9 + $0x28] sm:$0xf]
      %v896 = vld [vmem:[%s9 + $0x2c] sm:$0xf]
      %v897 = vld [vmem:[%s9 + $0x30] sm:$0xf]
      %v898 = vld [vmem:[%s9 + $0x34] sm:$0xf]
      %v899 = vld [vmem:[%s9 + $0x38] sm:$0xf]
      %v900 = vld [vmem:[%s9 + $0x3c] sm:$0xf]
      %v903 = vunpack.c.l.b16 %v883
      %v904 = vunpack.c.l.b16 %v884
      %v905 = vpack.c.b16 %v904, %v903
      %v923 = vunpack.c.l.b16 %v885
      %v924 = vunpack.c.l.b16 %v886
      %v925 = vunpack.c.l.b16 %v887
      %v926 = vunpack.c.l.b16 %v888
      %v927 = vunpack.c.l.b16 %v889
      %v928 = vunpack.c.l.b16 %v890
      %v929 = vunpack.c.l.b16 %v891
      %v930 = vunpack.c.l.b16 %v892
      %v931 = vunpack.c.l.b16 %v893
      %v932 = vunpack.c.l.b16 %v894
      %v933 = vunpack.c.l.b16 %v895
      %v934 = vunpack.c.l.b16 %v896
      %v935 = vunpack.c.l.b16 %v897
      %v936 = vunpack.c.l.b16 %v898
      %v937 = vunpack.c.l.b16 %v899
      %v938 = vunpack.c.l.b16 %v900
      %v939 = vpack.c.b16 %v924, %v923
      %v940 = vpack.c.b16 %v926, %v925
      %v941 = vpack.c.b16 %v928, %v927
      %v942 = vpack.c.b16 %v930, %v929
      %v943 = vpack.c.b16 %v932, %v931
      %v944 = vpack.c.b16 %v934, %v933
      %v945 = vpack.c.b16 %v936, %v935
      %v946 = vpack.c.b16 %v938, %v937
      %955 = vmatprep.subr.bf16.mxu0 0
      %956 = vmatpush1.bf16.msra.mxu0 %v939
      %957 = vmatprep.subr.bf16.mxu0 0
      %958 = vmatpush1.bf16.msra.mxu0 %v940
      %959 = vmatprep.subr.bf16.mxu0 0
      %960 = vmatpush1.bf16.msra.mxu0 %v941
      %961 = vmatprep.subr.bf16.mxu0 0
      %962 = vmatpush1.bf16.msra.mxu0 %v942
      %963 = vmatprep.subr.bf16.mxu0 0
      %964 = vmatpush1.bf16.msra.mxu0 %v943
      %965 = vmatprep.subr.bf16.mxu0 0
      %966 = vmatpush1.bf16.msra.mxu0 %v944
      %967 = vmatprep.subr.bf16.mxu0 0
      %968 = vmatpush1.bf16.msra.mxu0 %v945
      %969 = vmatprep.subr.bf16.mxu0 0
      %970 = vmatpush1.bf16.msra.mxu0 %v946
      %971 = vmatprep.subr.bf16.mxu0 0
      %972 = vmatpush1.bf16.msra.mxu0 0
      %973 = vmatprep.subr.bf16.mxu0 0
      %974 = vmatpush1.bf16.msra.mxu0 0
      %975 = vmatprep.subr.bf16.mxu0 0
      %976 = vmatpush1.bf16.msra.mxu0 0
      %977 = vmatprep.subr.bf16.mxu0 0
      %978 = vmatpush1.bf16.msra.mxu0 0
      %979 = vmatprep.subr.bf16.mxu0 0
      %980 = vmatpush1.bf16.msra.mxu0 0
      %981 = vmatprep.subr.bf16.mxu0 0
      %982 = vmatpush1.bf16.msra.mxu0 0
      %983 = vmatprep.subr.bf16.mxu0 0
      %984 = vmatpush1.bf16.msra.mxu0 0
      %985 = vmatprep.subr.bf16.mxu0 0
      %986 = vmatpush1.bf16.msra.mxu0 0
      %987 = vmatprep.mubr.bf16.mxu0 0
      %988 = vmatmul.mubr.bf16.gmra.mrb[0].mxu0 %v905
      %v989 = vpop.f32.mrb[0].mxu0
      %v990 = vadd.f32 0.0, %v989
      %v991 = vpop.f32.mrb[0].mxu0
      %v992 = vpop.f32.mrb[0].mxu0
      %v993 = vadd.f32 0.0, %v992
      %v994 = vpop.f32.mrb[0].mxu0
      %995 = vdwg.mxu0
      %v996 = vadd.f32 %v881, %v990
      %v997 = vadd.f32 %v882, %v993
      %v998 = vld [vmem:[%s10] sm:$0xf]
      %v999 = vld [vmem:[%s10 + $0x4] sm:$0xf]
      %v1000 = vld [vmem:[%s10 + $0x8] sm:$0xf]
      %v1001 = vld [vmem:[%s10 + $0xc] sm:$0xf]
      %v1002 = vld [vmem:[%s10 + $0x10] sm:$0xf]
      %v1003 = vld [vmem:[%s10 + $0x14] sm:$0xf]
      %v1004 = vld [vmem:[%s10 + $0x18] sm:$0xf]
      %v1005 = vld [vmem:[%s10 + $0x1c] sm:$0xf]
      %v1006 = vld [vmem:[%s10 + $0x20] sm:$0xf]
      %v1007 = vld [vmem:[%s10 + $0x24] sm:$0xf]
      %v1008 = vld [vmem:[%s10 + $0x28] sm:$0xf]
      %v1009 = vld [vmem:[%s10 + $0x2c] sm:$0xf]
      %v1010 = vld [vmem:[%s10 + $0x30] sm:$0xf]
      %v1011 = vld [vmem:[%s10 + $0x34] sm:$0xf]
      %v1012 = vld [vmem:[%s10 + $0x38] sm:$0xf]
      %v1013 = vld [vmem:[%s10 + $0x3c] sm:$0xf]
      %v1014 = vld [vmem:[%s530] sm:$0xf]
      %v1015 = vld [vmem:[%s530 + $0x4] sm:$0xf]
      %v1016 = vld [vmem:[%s11] sm:$0xf]
      %v1017 = vld [vmem:[%s11 + $0x4] sm:$0xf]
      %v1018 = vld [vmem:[%s11 + $0x8] sm:$0xf]
      %v1019 = vld [vmem:[%s11 + $0xc] sm:$0xf]
      %v1020 = vld [vmem:[%s11 + $0x10] sm:$0xf]
      %v1021 = vld [vmem:[%s11 + $0x14] sm:$0xf]
      %v1022 = vld [vmem:[%s11 + $0x18] sm:$0xf]
      %v1023 = vld [vmem:[%s11 + $0x1c] sm:$0xf]
      %v1024 = vld [vmem:[%s11 + $0x20] sm:$0xf]
      %v1025 = vld [vmem:[%s11 + $0x24] sm:$0xf]
      %v1026 = vld [vmem:[%s11 + $0x28] sm:$0xf]
      %v1027 = vld [vmem:[%s11 + $0x2c] sm:$0xf]
      %v1028 = vld [vmem:[%s11 + $0x30] sm:$0xf]
      %v1029 = vld [vmem:[%s11 + $0x34] sm:$0xf]
      %v1030 = vld [vmem:[%s11 + $0x38] sm:$0xf]
      %v1031 = vld [vmem:[%s11 + $0x3c] sm:$0xf]
      %v1034 = vunpack.c.l.b16 %v1014
      %v1035 = vunpack.c.l.b16 %v1015
      %v1036 = vpack.c.b16 %v1035, %v1034
      %v1054 = vunpack.c.l.b16 %v1016
      %v1055 = vunpack.c.l.b16 %v1017
      %v1056 = vunpack.c.l.b16 %v1018
      %v1057 = vunpack.c.l.b16 %v1019
      %v1058 = vunpack.c.l.b16 %v1020
      %v1059 = vunpack.c.l.b16 %v1021
      %v1060 = vunpack.c.l.b16 %v1022
      %v1061 = vunpack.c.l.b16 %v1023
      %v1062 = vunpack.c.l.b16 %v1024
      %v1063 = vunpack.c.l.b16 %v1025
      %v1064 = vunpack.c.l.b16 %v1026
      %v1065 = vunpack.c.l.b16 %v1027
      %v1066 = vunpack.c.l.b16 %v1028
      %v1067 = vunpack.c.l.b16 %v1029
      %v1068 = vunpack.c.l.b16 %v1030
      %v1069 = vunpack.c.l.b16 %v1031
      %v1070 = vpack.c.b16 %v1055, %v1054
      %v1071 = vpack.c.b16 %v1057, %v1056
      %v1072 = vpack.c.b16 %v1059, %v1058
      %v1073 = vpack.c.b16 %v1061, %v1060
      %v1074 = vpack.c.b16 %v1063, %v1062
      %v1075 = vpack.c.b16 %v1065, %v1064
      %v1076 = vpack.c.b16 %v1067, %v1066
      %v1077 = vpack.c.b16 %v1069, %v1068
      %1086 = vmatprep.subr.bf16.mxu0 0
      %1087 = vmatpush1.bf16.msra.mxu0 %v1070
      %1088 = vmatprep.subr.bf16.mxu0 0
      %1089 = vmatpush1.bf16.msra.mxu0 %v1071
      %1090 = vmatprep.subr.bf16.mxu0 0
      %1091 = vmatpush1.bf16.msra.mxu0 %v1072
      %1092 = vmatprep.subr.bf16.mxu0 0
      %1093 = vmatpush1.bf16.msra.mxu0 %v1073
      %1094 = vmatprep.subr.bf16.mxu0 0
      %1095 = vmatpush1.bf16.msra.mxu0 %v1074
      %1096 = vmatprep.subr.bf16.mxu0 0
      %1097 = vmatpush1.bf16.msra.mxu0 %v1075
      %1098 = vmatprep.subr.bf16.mxu0 0
      %1099 = vmatpush1.bf16.msra.mxu0 %v1076
      %1100 = vmatprep.subr.bf16.mxu0 0
      %1101 = vmatpush1.bf16.msra.mxu0 %v1077
      %1102 = vmatprep.subr.bf16.mxu0 0
      %1103 = vmatpush1.bf16.msra.mxu0 0
      %1104 = vmatprep.subr.bf16.mxu0 0
      %1105 = vmatpush1.bf16.msra.mxu0 0
      %1106 = vmatprep.subr.bf16.mxu0 0
      %1107 = vmatpush1.bf16.msra.mxu0 0
      %1108 = vmatprep.subr.bf16.mxu0 0
      %1109 = vmatpush1.bf16.msra.mxu0 0
      %1110 = vmatprep.subr.bf16.mxu0 0
      %1111 = vmatpush1.bf16.msra.mxu0 0
      %1112 = vmatprep.subr.bf16.mxu0 0
      %1113 = vmatpush1.bf16.msra.mxu0 0
      %1114 = vmatprep.subr.bf16.mxu0 0
      %1115 = vmatpush1.bf16.msra.mxu0 0
      %1116 = vmatprep.subr.bf16.mxu0 0
      %1117 = vmatpush1.bf16.msra.mxu0 0
      %1118 = vmatprep.mubr.bf16.mxu0 0
      %1119 = vmatmul.mubr.bf16.gmra.mrb[0].mxu0 %v1036
      %v1120 = vpop.f32.mrb[0].mxu0
      %v1121 = vadd.f32 0.0, %v1120
      %v1122 = vpop.f32.mrb[0].mxu0
      %v1123 = vpop.f32.mrb[0].mxu0
      %v1124 = vadd.f32 0.0, %v1123
      %v1125 = vpop.f32.mrb[0].mxu0
      %1126 = vdwg.mxu0
      %v1143 = vunpack.c.l.b16 %v998
      %v1144 = vunpack.c.l.b16 %v999
      %v1145 = vunpack.c.l.b16 %v1000
      %v1146 = vunpack.c.l.b16 %v1001
      %v1147 = vunpack.c.l.b16 %v1002
      %v1148 = vunpack.c.l.b16 %v1003
      %v1149 = vunpack.c.l.b16 %v1004
      %v1150 = vunpack.c.l.b16 %v1005
      %v1151 = vunpack.c.l.b16 %v1006
      %v1152 = vunpack.c.l.b16 %v1007
      %v1153 = vunpack.c.l.b16 %v1008
      %v1154 = vunpack.c.l.b16 %v1009
      %v1155 = vunpack.c.l.b16 %v1010
      %v1156 = vunpack.c.l.b16 %v1011
      %v1157 = vunpack.c.l.b16 %v1012
      %v1158 = vunpack.c.l.b16 %v1013
      %v1159 = vpack.c.b16 %v1144, %v1143
      %v1160 = vpack.c.b16 %v1146, %v1145
      %v1161 = vpack.c.b16 %v1148, %v1147
      %v1162 = vpack.c.b16 %v1150, %v1149
      %v1163 = vpack.c.b16 %v1152, %v1151
      %v1164 = vpack.c.b16 %v1154, %v1153
      %v1165 = vpack.c.b16 %v1156, %v1155
      %v1166 = vpack.c.b16 %v1158, %v1157
      %1175 = vmatprep.subr.bf16.mxu0 0
      %1176 = vmatpush1.bf16.msra.mxu0 %v1159
      %1177 = vmatprep.subr.bf16.mxu0 0
      %1178 = vmatpush1.bf16.msra.mxu0 %v1160
      %1179 = vmatprep.subr.bf16.mxu0 0
      %1180 = vmatpush1.bf16.msra.mxu0 %v1161
      %1181 = vmatprep.subr.bf16.mxu0 0
      %1182 = vmatpush1.bf16.msra.mxu0 %v1162
      %1183 = vmatprep.subr.bf16.mxu0 0
      %1184 = vmatpush1.bf16.msra.mxu0 %v1163
      %1185 = vmatprep.subr.bf16.mxu0 0
      %1186 = vmatpush1.bf16.msra.mxu0 %v1164
      %1187 = vmatprep.subr.bf16.mxu0 0
      %1188 = vmatpush1.bf16.msra.mxu0 %v1165
      %1189 = vmatprep.subr.bf16.mxu0 0
      %1190 = vmatpush1.bf16.msra.mxu0 %v1166
      %1191 = vmatprep.subr.bf16.mxu0 0
      %1192 = vmatpush1.bf16.msra.mxu0 0
      %1193 = vmatprep.subr.bf16.mxu0 0
      %1194 = vmatpush1.bf16.msra.mxu0 0
      %1195 = vmatprep.subr.bf16.mxu0 0
      %1196 = vmatpush1.bf16.msra.mxu0 0
      %1197 = vmatprep.subr.bf16.mxu0 0
      %1198 = vmatpush1.bf16.msra.mxu0 0
      %1199 = vmatprep.subr.bf16.mxu0 0
      %1200 = vmatpush1.bf16.msra.mxu0 0
      %1201 = vmatprep.subr.bf16.mxu0 0
      %1202 = vmatpush1.bf16.msra.mxu0 0
      %1203 = vmatprep.subr.bf16.mxu0 0
      %1204 = vmatpush1.bf16.msra.mxu0 0
      %1205 = vmatprep.subr.bf16.mxu0 0
      %1206 = vmatpush1.bf16.msra.mxu0 0
      %1207 = vmatprep.mubr.bf16.mxu0 0
      %1208 = vmatmul.mubr.bf16.gmra.mrb[0].mxu0 %v677
      %v1209 = vpop.f32.mrb[0].mxu0
      %v1210 = vadd.f32 %v1121, %v1209
      %v1211 = vpop.f32.mrb[0].mxu0
      %v1212 = vpop.f32.mrb[0].mxu0
      %v1213 = vadd.f32 %v1124, %v1212
      %v1214 = vpop.f32.mrb[0].mxu0
      %1215 = vdwg.mxu0
      %v1216 = vld [vmem:[%s535] sm:$0xff]
      %v1217 = vld [vmem:[%s535 + $0x8] sm:$0xff]
      %v1218 = vld [vmem:[%s12] sm:$0xf]
      %v1219 = vld [vmem:[%s12 + $0x4] sm:$0xf]
      %v1220 = vld [vmem:[%s12 + $0x8] sm:$0xf]
      %v1221 = vld [vmem:[%s12 + $0xc] sm:$0xf]
      %v1222 = vld [vmem:[%s12 + $0x10] sm:$0xf]
      %v1223 = vld [vmem:[%s12 + $0x14] sm:$0xf]
      %v1224 = vld [vmem:[%s12 + $0x18] sm:$0xf]
      %v1225 = vld [vmem:[%s12 + $0x1c] sm:$0xf]
      %v1226 = vld [vmem:[%s12 + $0x20] sm:$0xf]
      %v1227 = vld [vmem:[%s12 + $0x24] sm:$0xf]
      %v1228 = vld [vmem:[%s12 + $0x28] sm:$0xf]
      %v1229 = vld [vmem:[%s12 + $0x2c] sm:$0xf]
      %v1230 = vld [vmem:[%s12 + $0x30] sm:$0xf]
      %v1231 = vld [vmem:[%s12 + $0x34] sm:$0xf]
      %v1232 = vld [vmem:[%s12 + $0x38] sm:$0xf]
      %v1233 = vld [vmem:[%s12 + $0x3c] sm:$0xf]
      %v1234 = vld [vmem:[%s12 + $0x40] sm:$0xf]
      %v1235 = vld [vmem:[%s12 + $0x44] sm:$0xf]
      %v1236 = vld [vmem:[%s12 + $0x48] sm:$0xf]
      %v1237 = vld [vmem:[%s12 + $0x4c] sm:$0xf]
      %v1238 = vld [vmem:[%s12 + $0x50] sm:$0xf]
      %v1239 = vld [vmem:[%s12 + $0x54] sm:$0xf]
      %v1240 = vld [vmem:[%s12 + $0x58] sm:$0xf]
      %v1241 = vld [vmem:[%s12 + $0x5c] sm:$0xf]
      %v1242 = vld [vmem:[%s12 + $0x60] sm:$0xf]
      %v1243 = vld [vmem:[%s12 + $0x64] sm:$0xf]
      %v1244 = vld [vmem:[%s12 + $0x68] sm:$0xf]
      %v1245 = vld [vmem:[%s12 + $0x6c] sm:$0xf]
      %v1246 = vld [vmem:[%s12 + $0x70] sm:$0xf]
      %v1247 = vld [vmem:[%s12 + $0x74] sm:$0xf]
      %v1248 = vld [vmem:[%s12 + $0x78] sm:$0xf]
      %v1249 = vld [vmem:[%s12 + $0x7c] sm:$0xf]
      %v1252 = vunpack.c.l.b16 %v1216
      %v1253 = vunpack.c.h.b16 %v1216
      %v1254 = vunpack.c.l.b16 %v1217
      %v1255 = vunpack.c.h.b16 %v1217
      %v1256 = vpack.c.b16 %v1254, %v1252
      %v1257 = vpack.c.b16 %v1255, %v1253
      %v1292 = vunpack.c.l.b16 %v1218
      %v1293 = vunpack.c.l.b16 %v1219
      %v1294 = vunpack.c.l.b16 %v1220
      %v1295 = vunpack.c.l.b16 %v1221
      %v1296 = vunpack.c.l.b16 %v1222
      %v1297 = vunpack.c.l.b16 %v1223
      %v1298 = vunpack.c.l.b16 %v1224
      %v1299 = vunpack.c.l.b16 %v1225
      %v1300 = vunpack.c.l.b16 %v1226
      %v1301 = vunpack.c.l.b16 %v1227
      %v1302 = vunpack.c.l.b16 %v1228
      %v1303 = vunpack.c.l.b16 %v1229
      %v1304 = vunpack.c.l.b16 %v1230
      %v1305 = vunpack.c.l.b16 %v1231
      %v1306 = vunpack.c.l.b16 %v1232
      %v1307 = vunpack.c.l.b16 %v1233
      %v1308 = vunpack.c.l.b16 %v1234
      %v1309 = vunpack.c.l.b16 %v1235
      %v1310 = vunpack.c.l.b16 %v1236
      %v1311 = vunpack.c.l.b16 %v1237
      %v1312 = vunpack.c.l.b16 %v1238
      %v1313 = vunpack.c.l.b16 %v1239
      %v1314 = vunpack.c.l.b16 %v1240
      %v1315 = vunpack.c.l.b16 %v1241
      %v1316 = vunpack.c.l.b16 %v1242
      %v1317 = vunpack.c.l.b16 %v1243
      %v1318 = vunpack.c.l.b16 %v1244
      %v1319 = vunpack.c.l.b16 %v1245
      %v1320 = vunpack.c.l.b16 %v1246
      %v1321 = vunpack.c.l.b16 %v1247
      %v1322 = vunpack.c.l.b16 %v1248
      %v1323 = vunpack.c.l.b16 %v1249
      %v1324 = vpack.c.b16 %v1293, %v1292
      %v1325 = vpack.c.b16 %v1295, %v1294
      %v1326 = vpack.c.b16 %v1297, %v1296
      %v1327 = vpack.c.b16 %v1299, %v1298
      %v1328 = vpack.c.b16 %v1301, %v1300
      %v1329 = vpack.c.b16 %v1303, %v1302
      %v1330 = vpack.c.b16 %v1305, %v1304
      %v1331 = vpack.c.b16 %v1307, %v1306
      %v1332 = vpack.c.b16 %v1309, %v1308
      %v1333 = vpack.c.b16 %v1311, %v1310
      %v1334 = vpack.c.b16 %v1313, %v1312
      %v1335 = vpack.c.b16 %v1315, %v1314
      %v1336 = vpack.c.b16 %v1317, %v1316
      %v1337 = vpack.c.b16 %v1319, %v1318
      %v1338 = vpack.c.b16 %v1321, %v1320
      %v1339 = vpack.c.b16 %v1323, %v1322
      %1356 = vmatprep.subr.bf16.mxu0 0
      %1357 = vmatpush1.bf16.msra.mxu0 %v1324
      %1358 = vmatprep.subr.bf16.mxu0 0
      %1359 = vmatpush1.bf16.msra.mxu0 %v1325
      %1360 = vmatprep.subr.bf16.mxu0 0
      %1361 = vmatpush1.bf16.msra.mxu0 %v1326
      %1362 = vmatprep.subr.bf16.mxu0 0
      %1363 = vmatpush1.bf16.msra.mxu0 %v1327
      %1364 = vmatprep.subr.bf16.mxu0 0
      %1365 = vmatpush1.bf16.msra.mxu0 %v1328
      %1366 = vmatprep.subr.bf16.mxu0 0
      %1367 = vmatpush1.bf16.msra.mxu0 %v1329
      %1368 = vmatprep.subr.bf16.mxu0 0
      %1369 = vmatpush1.bf16.msra.mxu0 %v1330
      %1370 = vmatprep.subr.bf16.mxu0 0
      %1371 = vmatpush1.bf16.msra.mxu0 %v1331
      %1372 = vmatprep.subr.bf16.mxu0 0
      %1373 = vmatpush1.bf16.msra.mxu0 %v1332
      %1374 = vmatprep.subr.bf16.mxu0 0
      %1375 = vmatpush1.bf16.msra.mxu0 %v1333
      %1376 = vmatprep.subr.bf16.mxu0 0
      %1377 = vmatpush1.bf16.msra.mxu0 %v1334
      %1378 = vmatprep.subr.bf16.mxu0 0
      %1379 = vmatpush1.bf16.msra.mxu0 %v1335
      %1380 = vmatprep.subr.bf16.mxu0 0
      %1381 = vmatpush1.bf16.msra.mxu0 %v1336
      %1382 = vmatprep.subr.bf16.mxu0 0
      %1383 = vmatpush1.bf16.msra.mxu0 %v1337
      %1384 = vmatprep.subr.bf16.mxu0 0
      %1385 = vmatpush1.bf16.msra.mxu0 %v1338
      %1386 = vmatprep.subr.bf16.mxu0 0
      %1387 = vmatpush1.bf16.msra.mxu0 %v1339
      %1388 = vmatprep.mubr.bf16.mxu0 %v1257
      %1389 = vmatmul.mubr.bf16.gmra.mrb[0].mxu0 %v1256
      %v1390 = vpop.f32.mrb[0].mxu0
      %v1391 = vadd.f32 0.0, %v1390
      %v1392 = vpop.f32.mrb[0].mxu0
      %v1393 = vpop.f32.mrb[0].mxu0
      %v1394 = vadd.f32 0.0, %v1393
      %v1395 = vpop.f32.mrb[0].mxu0
      %1396 = vdwg.mxu0
      %v1397 = vadd.f32 %v1210, %v1391
      %v1398 = vadd.f32 %v1213, %v1394
      %v1399 = vadd.f32 %v996, %v997
      %v1400 = vrot.slane %v1399, 4
      %v1401 = vadd.f32 %v1399, %v1400
      %v1402 = vrot.slane %v1401, 2
      %v1403 = vadd.f32 %v1401, %v1402
      %v1404 = vrot.slane %v1403, 1
      %v1405 = vadd.f32 %v1403, %v1404
      %v1406 = vrcp.pop 16.0
      %v1407 = vmul.f32 %v1405, %v1406
      %v1408 = vsub.f32 %v996, %v1407
      %v1409 = vsub.f32 %v997, %v1407
      %v1410 = vmul.f32 %v1408, %v1408
      %v1411 = vmul.f32 %v1409, %v1409
      %v1412 = vadd.f32 %v1410, %v1411
      %v1413 = vrot.slane %v1412, 4
      %v1414 = vadd.f32 %v1412, %v1413
      %v1415 = vrot.slane %v1414, 2
      %v1416 = vadd.f32 %v1414, %v1415
      %v1417 = vrot.slane %v1416, 1
      %v1418 = vadd.f32 %v1416, %v1417
      %v1419 = vmul.f32 %v1418, %v1406
      %v1420 = vadd.f32 %v1419, 1e-05
      %v1421 = vrsqrt.pop %v1420
      %v1422 = vmul.f32 %v1408, %v1421
      %v1423 = vmul.f32 %v1409, %v1421
      %vm1424 = vcmp.ge.f32.partialorder %v1422, 0.0
      %vm1425 = vcmp.ge.f32.partialorder %v1423, 0.0
      %v1426 = vmul.f32 %v1422, 0.2
      %v1427 = vmul.f32 %v1423, 0.2
      %v1428 = vsel %vm1424, %v1422, %v1426
      %v1429 = vsel %vm1425, %v1423, %v1427
      %v1430 = vadd.f32 %v1397, %v1398
      %v1431 = vrot.slane %v1430, 4
      %v1432 = vadd.f32 %v1430, %v1431
      %v1433 = vrot.slane %v1432, 2
      %v1434 = vadd.f32 %v1432, %v1433
      %v1435 = vrot.slane %v1434, 1
      %v1436 = vadd.f32 %v1434, %v1435
      %v1437 = vmul.f32 %v1436, %v1406
      %v1438 = vsub.f32 %v1397, %v1437
      %v1439 = vsub.f32 %v1398, %v1437
      %v1440 = vmul.f32 %v1438, %v1438
      %v1441 = vmul.f32 %v1439, %v1439
      %v1442 = vadd.f32 %v1440, %v1441
      %v1443 = vrot.slane %v1442, 4
      %v1444 = vadd.f32 %v1442, %v1443
      %v1445 = vrot.slane %v1444, 2
      %v1446 = vadd.f32 %v1444, %v1445
      %v1447 = vrot.slane %v1446, 1
      %v1448 = vadd.f32 %v1446, %v1447
      %v1449 = vmul.f32 %v1448, %v1406
      %v1450 = vadd.f32 %v1449, 1e-05
      %v1451 = vrsqrt.pop %v1450
      %v1452 = vmul.f32 %v1438, %v1451
      %v1453 = vmul.f32 %v1439, %v1451
      %vm1454 = vcmp.ge.f32.partialorder %v1452, 0.0
      %vm1455 = vcmp.ge.f32.partialorder %v1453, 0.0
      %v1456 = vmul.f32 %v1452, 0.2
      %v1457 = vmul.f32 %v1453, 0.2
      %v1458 = vsel %vm1454, %v1452, %v1456
      %v1459 = vsel %vm1455, %v1453, %v1457
      %v1460 = vadd.f32 %v1428, %v1458
      %v1461 = vadd.f32 %v1429, %v1459
      %1462 = vst [vmem:[%s540] sm:$0xff] %v1460
      %1463 = vst [vmem:[%s540 + $0x8] sm:$0xff] %v1461
      %p1464 = scmp.lt.s32.totalorder %s24, 1
      %s1465 = scalar_select %p1464, %s24, 1
      %s1466 = smul.addr %s1465, 2
      %s1467 = smul.addr %s1466, 8
      %s1468 = scalar_lea.vmem %s13, %s1467
      // Predicated region
      $region73: #{_lambda_.25} parent=71 // pred_check
        %p1469 = pneg %p345
      $region74: #{_lambda_.25} parent=71 // pred_check_branch
        %1471 = sbr.rel (%p1469) target = $region76
      $region75: #{_lambda_.25} parent=71 // pred_region
        _
      $region76: #{_lambda_.25} parent=71 // pred_fallthru
        _
    $region72: #{_lambda_.25} parent=5 // pred_fallthru
      _
    %p1472 = scmp.le.s32.totalorder 2, %s19
    // Predicated region
    $region77: #{_lambda_.25} parent=5 // pred_check
      %p1473 = pneg %p1472
    $region78: #{_lambda_.25} parent=5 // pred_check_branch
      %1475 = sbr.rel (%p1473) target = $region80
    $region79: #{_lambda_.25} parent=5 // pred_region
      %s1476 = ssub.s32 %s19, 2
      // Predicated region
      $region81: #{_lambda_.25} parent=79 // pred_check
        %p1477 = pneg %p351
      $region82: #{_lambda_.25} parent=79 // pred_check_branch
        %1479 = sbr.rel (%p1477) target = $region84
      $region83: #{_lambda_.25} parent=79 // pred_region
        %p1480 = scmp.lt.s32.totalorder %s25, 1
        %s1481 = scalar_select %p1480, %s25, 1
        %s1482 = smul.addr %s1481, 2
        %s1483 = smul.addr %s1482, 8
        %s1484 = scalar_lea.vmem %s13, %s1483
      $region84: #{_lambda_.25} parent=79 // pred_fallthru
        _
    $region80: #{_lambda_.25} parent=5 // pred_fallthru
      _
  $region6: #{_lambda_.25} parent=0 // loop_footer
    %s23 = sadd.s32 1, %s19
  $region7: #{_lambda_.25} parent=0 // loop_footer_branch
    %18 = sbr.rel target = $region3
  $region8: #{_lambda_.25} parent=0 // loop_exit
    _

// kernel: _lambda_.26
$region0: #{_lambda_.26}
  #allocation0 [shape = 'u32[]', space=smem, size = 0x4, offset = 0x4, fixed_abs, tag = 'smem constant byte address 0x4 - core index']
  #allocation1 [shape = 'u32[144,128]{1,0:T(1,128)}', space=vmem, size = 0x12000, scoped, tag = 'internal scratch']
  %s0 = inlined_call_operand.vmem [shape: f32[2,16,128], index: 0, kind: input, shape index: {}]
  %s1 = inlined_call_operand.vmem [shape: f32[2,16,128], index: 1, kind: input, shape index: {}]
  %s2 = inlined_call_operand.vmem [shape: bf16[128,128], index: 2, kind: input, shape index: {}]
  %s3 = inlined_call_operand.vmem [shape: f32[1,128], index: 3, kind: input, shape index: {}]
  %s4 = inlined_call_operand.vmem [shape: bf16[128,256], index: 4, kind: input, shape index: {}]
  %s5 = inlined_call_operand.vmem [shape: f32[1,256], index: 5, kind: input, shape index: {}]
  %s6 = inlined_call_operand.vmem [shape: bf16[128,128], index: 6, kind: input, shape index: {}]
  %s7 = inlined_call_operand.vmem [shape: f32[1,128], index: 7, kind: input, shape index: {}]
  %s8 = inlined_call_operand.vmem [shape: bf16[128,256], index: 8, kind: input, shape index: {}]
  %s9 = inlined_call_operand.vmem [shape: bf16[128,256], index: 9, kind: input, shape index: {}]
  %s10 = inlined_call_operand.vmem [shape: f32[1,256], index: 10, kind: input, shape index: {}]
  %s11 = inlined_call_operand.vmem [shape: bf16[256,128], index: 11, kind: input, shape index: {}]
  %s12 = inlined_call_operand.vmem [shape: f32[1,128], index: 12, kind: input, shape index: {}]
  %s13 = inlined_call_operand.vmem [shape: f32[2,16,128], index: 13, kind: output, shape index: {}]
  %s14 = sld [smem:[#allocation0]]
  $region85: #{_lambda_.26} parent=0
    _
  %s16 = ssub.s32 1, %s14
  %s17 = scalar_select 0, %s16, %s14
  loop: start=0, step=1, limit=4
  $region2: #{_lambda_.26} parent=0 // loop_pre_header
    _
  $region3: #{_lambda_.26} parent=0 // loop_header
    %s19 = sphi 0, %s23
    %p20 = scmp.ge.s32.totalorder %s19, 4
    %s29 = sphi 0, %s31
    %s32 = sphi 0, %s29
    %s33 = sphi 0, %s32
    %s49 = sphi 0, %s33
    %s55 = sphi 0, %s57
    %s58 = sphi 0, %s55
    %s59 = sphi 0, %s58
    %s75 = sphi 0, %s59
    %s79 = sphi 0, %s79
    %s81 = sphi 0, %s79
    %s82 = sphi 0, %s81
    %s96 = sphi 0, %s82
    %s100 = sphi 0, %s100
    %s102 = sphi 0, %s100
    %s103 = sphi 0, %s102
    %s117 = sphi 0, %s103
    %s121 = sphi 0, %s121
    %s123 = sphi 0, %s121
    %s124 = sphi 0, %s123
    %s138 = sphi 0, %s124
    %s142 = sphi 0, %s142
    %s144 = sphi 0, %s142
    %s145 = sphi 0, %s144
    %s159 = sphi 0, %s145
    %s163 = sphi 0, %s163
    %s165 = sphi 0, %s163
    %s166 = sphi 0, %s165
    %s180 = sphi 0, %s166
    %s184 = sphi 0, %s184
    %s186 = sphi 0, %s184
    %s187 = sphi 0, %s186
    %s201 = sphi 0, %s187
    %s205 = sphi 0, %s205
    %s207 = sphi 0, %s205
    %s208 = sphi 0, %s207
    %s222 = sphi 0, %s208
    %s226 = sphi 0, %s226
    %s228 = sphi 0, %s226
    %s229 = sphi 0, %s228
    %s243 = sphi 0, %s229
    %s247 = sphi 0, %s247
    %s249 = sphi 0, %s247
    %s250 = sphi 0, %s249
    %s264 = sphi 0, %s250
    %s268 = sphi 0, %s268
    %s270 = sphi 0, %s268
    %s271 = sphi 0, %s270
    %s285 = sphi 0, %s271
    %s289 = sphi 0, %s289
    %s291 = sphi 0, %s289
    %s292 = sphi 0, %s291
    %s306 = sphi 0, %s292
    %s312 = sphi 0, %s314
    %s315 = sphi 0, %s312
    %s316 = sphi 0, %s315
    %s332 = sphi 0, %s316
  $region4: #{_lambda_.26} parent=0 // loop_header_branch
    %22 = sbr.rel (%p20) target = $region8
  $region5: #{_lambda_.26} parent=0 // loop_body
    %s24 = ssub.s32 %s19, 1
    %s25 = ssub.s32 %s19, 2
    %s26 = sadd.s32 %s19, 1
    %s27 = ssub.s32 %s19, %s26
    %p28 = scmp.eq.s32.totalorder %s27, 0
    %s30 = sadd.s32 %s29, 1
    %s31 = scalar_select %p28, %s29, %s30
    %p34 = pneg %p28
    %p35 = scmp.eq.s32.totalorder %s19, 1
    %p36 = por %p34, %p35
    %p37 = scmp.ne.s32.totalorder %s29, %s32
    %p38 = scmp.eq.s32.totalorder %s19, 0
    %p39 = por %p37, %p38
    %p40 = scmp.ne.s32.totalorder %s29, %s32
    %p41 = scmp.eq.s32.totalorder %s24, 1
    %p42 = por %p40, %p41
    %p43 = scmp.ne.s32.totalorder %s32, %s33
    %p44 = scmp.eq.s32.totalorder %s24, 0
    %p45 = por %p43, %p44
    %p46 = scmp.ne.s32.totalorder %s32, %s33
    %p47 = scmp.eq.s32.totalorder %s25, 1
    %p48 = por %p46, %p47
    %p50 = scmp.ne.s32.totalorder %s33, %s49
    %p51 = scmp.eq.s32.totalorder %s25, 0
    %p52 = por %p50, %p51
    %s53 = ssub.s32 %s19, %s26
    %p54 = scmp.eq.s32.totalorder %s53, 0
    %s56 = sadd.s32 %s55, 1
    %s57 = scalar_select %p54, %s55, %s56
    %p60 = pneg %p54
    %p61 = scmp.eq.s32.totalorder %s19, 1
    %p62 = por %p60, %p61
    %p63 = scmp.ne.s32.totalorder %s55, %s58
    %p64 = scmp.eq.s32.totalorder %s19, 0
    %p65 = por %p63, %p64
    %p66 = scmp.ne.s32.totalorder %s55, %s58
    %p67 = scmp.eq.s32.totalorder %s24, 1
    %p68 = por %p66, %p67
    %p69 = scmp.ne.s32.totalorder %s58, %s59
    %p70 = scmp.eq.s32.totalorder %s24, 0
    %p71 = por %p69, %p70
    %p72 = scmp.ne.s32.totalorder %s58, %s59
    %p73 = scmp.eq.s32.totalorder %s25, 1
    %p74 = por %p72, %p73
    %p76 = scmp.ne.s32.totalorder %s59, %s75
    %p77 = scmp.eq.s32.totalorder %s25, 0
    %p78 = por %p76, %p77
    %s80 = sadd.s32 %s79, 1
    %p83 = scmp.eq.s32.totalorder %s19, 1
    %p84 = scmp.ne.s32.totalorder %s79, %s81
    %p85 = scmp.eq.s32.totalorder %s19, 0
    %p86 = por %p84, %p85
    %p87 = scmp.ne.s32.totalorder %s79, %s81
    %p88 = scmp.eq.s32.totalorder %s24, 1
    %p89 = por %p87, %p88
    %p90 = scmp.ne.s32.totalorder %s81, %s82
    %p91 = scmp.eq.s32.totalorder %s24, 0
    %p92 = por %p90, %p91
    %p93 = scmp.ne.s32.totalorder %s81, %s82
    %p94 = scmp.eq.s32.totalorder %s25, 1
    %p95 = por %p93, %p94
    %p97 = scmp.ne.s32.totalorder %s82, %s96
    %p98 = scmp.eq.s32.totalorder %s25, 0
    %p99 = por %p97, %p98
    %s101 = sadd.s32 %s100, 1
    %p104 = scmp.eq.s32.totalorder %s19, 1
    %p105 = scmp.ne.s32.totalorder %s100, %s102
    %p106 = scmp.eq.s32.totalorder %s19, 0
    %p107 = por %p105, %p106
    %p108 = scmp.ne.s32.totalorder %s100, %s102
    %p109 = scmp.eq.s32.totalorder %s24, 1
    %p110 = por %p108, %p109
    %p111 = scmp.ne.s32.totalorder %s102, %s103
    %p112 = scmp.eq.s32.totalorder %s24, 0
    %p113 = por %p111, %p112
    %p114 = scmp.ne.s32.totalorder %s102, %s103
    %p115 = scmp.eq.s32.totalorder %s25, 1
    %p116 = por %p114, %p115
    %p118 = scmp.ne.s32.totalorder %s103, %s117
    %p119 = scmp.eq.s32.totalorder %s25, 0
    %p120 = por %p118, %p119
    %s122 = sadd.s32 %s121, 1
    %p125 = scmp.eq.s32.totalorder %s19, 1
    %p126 = scmp.ne.s32.totalorder %s121, %s123
    %p127 = scmp.eq.s32.totalorder %s19, 0
    %p128 = por %p126, %p127
    %p129 = scmp.ne.s32.totalorder %s121, %s123
    %p130 = scmp.eq.s32.totalorder %s24, 1
    %p131 = por %p129, %p130
    %p132 = scmp.ne.s32.totalorder %s123, %s124
    %p133 = scmp.eq.s32.totalorder %s24, 0
    %p134 = por %p132, %p133
    %p135 = scmp.ne.s32.totalorder %s123, %s124
    %p136 = scmp.eq.s32.totalorder %s25, 1
    %p137 = por %p135, %p136
    %p139 = scmp.ne.s32.totalorder %s124, %s138
    %p140 = scmp.eq.s32.totalorder %s25, 0
    %p141 = por %p139, %p140
    %s143 = sadd.s32 %s142, 1
    %p146 = scmp.eq.s32.totalorder %s19, 1
    %p147 = scmp.ne.s32.totalorder %s142, %s144
    %p148 = scmp.eq.s32.totalorder %s19, 0
    %p149 = por %p147, %p148
    %p150 = scmp.ne.s32.totalorder %s142, %s144
    %p151 = scmp.eq.s32.totalorder %s24, 1
    %p152 = por %p150, %p151
    %p153 = scmp.ne.s32.totalorder %s144, %s145
    %p154 = scmp.eq.s32.totalorder %s24, 0
    %p155 = por %p153, %p154
    %p156 = scmp.ne.s32.totalorder %s144, %s145
    %p157 = scmp.eq.s32.totalorder %s25, 1
    %p158 = por %p156, %p157
    %p160 = scmp.ne.s32.totalorder %s145, %s159
    %p161 = scmp.eq.s32.totalorder %s25, 0
    %p162 = por %p160, %p161
    %s164 = sadd.s32 %s163, 1
    %p167 = scmp.eq.s32.totalorder %s19, 1
    %p168 = scmp.ne.s32.totalorder %s163, %s165
    %p169 = scmp.eq.s32.totalorder %s19, 0
    %p170 = por %p168, %p169
    %p171 = scmp.ne.s32.totalorder %s163, %s165
    %p172 = scmp.eq.s32.totalorder %s24, 1
    %p173 = por %p171, %p172
    %p174 = scmp.ne.s32.totalorder %s165, %s166
    %p175 = scmp.eq.s32.totalorder %s24, 0
    %p176 = por %p174, %p175
    %p177 = scmp.ne.s32.totalorder %s165, %s166
    %p178 = scmp.eq.s32.totalorder %s25, 1
    %p179 = por %p177, %p178
    %p181 = scmp.ne.s32.totalorder %s166, %s180
    %p182 = scmp.eq.s32.totalorder %s25, 0
    %p183 = por %p181, %p182
    %s185 = sadd.s32 %s184, 1
    %p188 = scmp.eq.s32.totalorder %s19, 1
    %p189 = scmp.ne.s32.totalorder %s184, %s186
    %p190 = scmp.eq.s32.totalorder %s19, 0
    %p191 = por %p189, %p190
    %p192 = scmp.ne.s32.totalorder %s184, %s186
    %p193 = scmp.eq.s32.totalorder %s24, 1
    %p194 = por %p192, %p193
    %p195 = scmp.ne.s32.totalorder %s186, %s187
    %p196 = scmp.eq.s32.totalorder %s24, 0
    %p197 = por %p195, %p196
    %p198 = scmp.ne.s32.totalorder %s186, %s187
    %p199 = scmp.eq.s32.totalorder %s25, 1
    %p200 = por %p198, %p199
    %p202 = scmp.ne.s32.totalorder %s187, %s201
    %p203 = scmp.eq.s32.totalorder %s25, 0
    %p204 = por %p202, %p203
    %s206 = sadd.s32 %s205, 1
    %p209 = scmp.eq.s32.totalorder %s19, 1
    %p210 = scmp.ne.s32.totalorder %s205, %s207
    %p211 = scmp.eq.s32.totalorder %s19, 0
    %p212 = por %p210, %p211
    %p213 = scmp.ne.s32.totalorder %s205, %s207
    %p214 = scmp.eq.s32.totalorder %s24, 1
    %p215 = por %p213, %p214
    %p216 = scmp.ne.s32.totalorder %s207, %s208
    %p217 = scmp.eq.s32.totalorder %s24, 0
    %p218 = por %p216, %p217
    %p219 = scmp.ne.s32.totalorder %s207, %s208
    %p220 = scmp.eq.s32.totalorder %s25, 1
    %p221 = por %p219, %p220
    %p223 = scmp.ne.s32.totalorder %s208, %s222
    %p224 = scmp.eq.s32.totalorder %s25, 0
    %p225 = por %p223, %p224
    %s227 = sadd.s32 %s226, 1
    %p230 = scmp.eq.s32.totalorder %s19, 1
    %p231 = scmp.ne.s32.totalorder %s226, %s228
    %p232 = scmp.eq.s32.totalorder %s19, 0
    %p233 = por %p231, %p232
    %p234 = scmp.ne.s32.totalorder %s226, %s228
    %p235 = scmp.eq.s32.totalorder %s24, 1
    %p236 = por %p234, %p235
    %p237 = scmp.ne.s32.totalorder %s228, %s229
    %p238 = scmp.eq.s32.totalorder %s24, 0
    %p239 = por %p237, %p238
    %p240 = scmp.ne.s32.totalorder %s228, %s229
    %p241 = scmp.eq.s32.totalorder %s25, 1
    %p242 = por %p240, %p241
    %p244 = scmp.ne.s32.totalorder %s229, %s243
    %p245 = scmp.eq.s32.totalorder %s25, 0
    %p246 = por %p244, %p245
    %s248 = sadd.s32 %s247, 1
    %p251 = scmp.eq.s32.totalorder %s19, 1
    %p252 = scmp.ne.s32.totalorder %s247, %s249
    %p253 = scmp.eq.s32.totalorder %s19, 0
    %p254 = por %p252, %p253
    %p255 = scmp.ne.s32.totalorder %s247, %s249
    %p256 = scmp.eq.s32.totalorder %s24, 1
    %p257 = por %p255, %p256
    %p258 = scmp.ne.s32.totalorder %s249, %s250
    %p259 = scmp.eq.s32.totalorder %s24, 0
    %p260 = por %p258, %p259
    %p261 = scmp.ne.s32.totalorder %s249, %s250
    %p262 = scmp.eq.s32.totalorder %s25, 1
    %p263 = por %p261, %p262
    %p265 = scmp.ne.s32.totalorder %s250, %s264
    %p266 = scmp.eq.s32.totalorder %s25, 0
    %p267 = por %p265, %p266
    %s269 = sadd.s32 %s268, 1
    %p272 = scmp.eq.s32.totalorder %s19, 1
    %p273 = scmp.ne.s32.totalorder %s268, %s270
    %p274 = scmp.eq.s32.totalorder %s19, 0
    %p275 = por %p273, %p274
    %p276 = scmp.ne.s32.totalorder %s268, %s270
    %p277 = scmp.eq.s32.totalorder %s24, 1
    %p278 = por %p276, %p277
    %p279 = scmp.ne.s32.totalorder %s270, %s271
    %p280 = scmp.eq.s32.totalorder %s24, 0
    %p281 = por %p279, %p280
    %p282 = scmp.ne.s32.totalorder %s270, %s271
    %p283 = scmp.eq.s32.totalorder %s25, 1
    %p284 = por %p282, %p283
    %p286 = scmp.ne.s32.totalorder %s271, %s285
    %p287 = scmp.eq.s32.totalorder %s25, 0
    %p288 = por %p286, %p287
    %s290 = sadd.s32 %s289, 1
    %p293 = scmp.eq.s32.totalorder %s19, 1
    %p294 = scmp.ne.s32.totalorder %s289, %s291
    %p295 = scmp.eq.s32.totalorder %s19, 0
    %p296 = por %p294, %p295
    %p297 = scmp.ne.s32.totalorder %s289, %s291
    %p298 = scmp.eq.s32.totalorder %s24, 1
    %p299 = por %p297, %p298
    %p300 = scmp.ne.s32.totalorder %s291, %s292
    %p301 = scmp.eq.s32.totalorder %s24, 0
    %p302 = por %p300, %p301
    %p303 = scmp.ne.s32.totalorder %s291, %s292
    %p304 = scmp.eq.s32.totalorder %s25, 1
    %p305 = por %p303, %p304
    %p307 = scmp.ne.s32.totalorder %s292, %s306
    %p308 = scmp.eq.s32.totalorder %s25, 0
    %p309 = por %p307, %p308
    %s310 = ssub.s32 %s19, %s26
    %p311 = scmp.eq.s32.totalorder %s310, 0
    %s313 = sadd.s32 %s312, 1
    %s314 = scalar_select %p311, %s312, %s313
    %p317 = pneg %p311
    %p318 = scmp.eq.s32.totalorder %s19, 1
    %p319 = por %p317, %p318
    %p320 = scmp.ne.s32.totalorder %s312, %s315
    %p321 = scmp.eq.s32.totalorder %s19, 0
    %p322 = por %p320, %p321
    %p323 = scmp.ne.s32.totalorder %s312, %s315
    %p324 = scmp.eq.s32.totalorder %s24, 1
    %p325 = por %p323, %p324
    %p326 = scmp.ne.s32.totalorder %s315, %s316
    %p327 = scmp.eq.s32.totalorder %s24, 0
    %p328 = por %p326, %p327
    %p329 = scmp.ne.s32.totalorder %s315, %s316
    %p330 = scmp.eq.s32.totalorder %s25, 1
    %p331 = por %p329, %p330
    %p333 = scmp.ne.s32.totalorder %s316, %s332
    %p334 = scmp.eq.s32.totalorder %s25, 0
    %p335 = por %p333, %p334
    %p336 = scmp.le.s32.totalorder 1, %s19
    %p337 = scmp.lt.s32.totalorder %s19, 3
    %p338 = pnand %p336, %p337
    %p339 = pneg %p338
    // Predicated region
    $region9: #{_lambda_.26} parent=5 // pred_check
      _
    $region10: #{_lambda_.26} parent=5 // pred_check_branch
      %341 = sbr.rel (%p338) target = $region12
    $region11: #{_lambda_.26} parent=5 // pred_region
      %s342 = ssub.s32 %s19, 1
      // Predicated region
      $region13: #{_lambda_.26} parent=11 // pred_check
        %p343 = pneg %p92
      $region14: #{_lambda_.26} parent=11 // pred_check_branch
        %345 = sbr.rel (%p343) target = $region16
      $region15: #{_lambda_.26} parent=11 // pred_region
        _
      $region16: #{_lambda_.26} parent=11 // pred_fallthru
        _
      // Predicated region
      $region17: #{_lambda_.26} parent=11 // pred_check
        %p346 = pneg %p113
      $region18: #{_lambda_.26} parent=11 // pred_check_branch
        %348 = sbr.rel (%p346) target = $region20
      $region19: #{_lambda_.26} parent=11 // pred_region
        _
      $region20: #{_lambda_.26} parent=11 // pred_fallthru
        _
      // Predicated region
      $region21: #{_lambda_.26} parent=11 // pred_check
        %p349 = pneg %p134
      $region22: #{_lambda_.26} parent=11 // pred_check_branch
        %351 = sbr.rel (%p349) target = $region24
      $region23: #{_lambda_.26} parent=11 // pred_region
        _
      $region24: #{_lambda_.26} parent=11 // pred_fallthru
        _
      // Predicated region
      $region25: #{_lambda_.26} parent=11 // pred_check
        %p352 = pneg %p155
      $region26: #{_lambda_.26} parent=11 // pred_check_branch
        %354 = sbr.rel (%p352) target = $region28
      $region27: #{_lambda_.26} parent=11 // pred_region
        _
      $region28: #{_lambda_.26} parent=11 // pred_fallthru
        _
      // Predicated region
      $region29: #{_lambda_.26} parent=11 // pred_check
        %p355 = pneg %p176
      $region30: #{_lambda_.26} parent=11 // pred_check_branch
        %357 = sbr.rel (%p355) target = $region32
      $region31: #{_lambda_.26} parent=11 // pred_region
        _
      $region32: #{_lambda_.26} parent=11 // pred_fallthru
        _
      // Predicated region
      $region33: #{_lambda_.26} parent=11 // pred_check
        %p358 = pneg %p197
      $region34: #{_lambda_.26} parent=11 // pred_check_branch
        %360 = sbr.rel (%p358) target = $region36
      $region35: #{_lambda_.26} parent=11 // pred_region
        _
      $region36: #{_lambda_.26} parent=11 // pred_fallthru
        _
      // Predicated region
      $region37: #{_lambda_.26} parent=11 // pred_check
        %p361 = pneg %p218
      $region38: #{_lambda_.26} parent=11 // pred_check_branch
        %363 = sbr.rel (%p361) target = $region40
      $region39: #{_lambda_.26} parent=11 // pred_region
        _
      $region40: #{_lambda_.26} parent=11 // pred_fallthru
        _
      // Predicated region
      $region41: #{_lambda_.26} parent=11 // pred_check
        %p364 = pneg %p239
      $region42: #{_lambda_.26} parent=11 // pred_check_branch
        %366 = sbr.rel (%p364) target = $region44
      $region43: #{_lambda_.26} parent=11 // pred_region
        _
      $region44: #{_lambda_.26} parent=11 // pred_fallthru
        _
      // Predicated region
      $region45: #{_lambda_.26} parent=11 // pred_check
        %p367 = pneg %p260
      $region46: #{_lambda_.26} parent=11 // pred_check_branch
        %369 = sbr.rel (%p367) target = $region48
      $region47: #{_lambda_.26} parent=11 // pred_region
        _
      $region48: #{_lambda_.26} parent=11 // pred_fallthru
        _
      // Predicated region
      $region49: #{_lambda_.26} parent=11 // pred_check
        %p370 = pneg %p281
      $region50: #{_lambda_.26} parent=11 // pred_check_branch
        %372 = sbr.rel (%p370) target = $region52
      $region51: #{_lambda_.26} parent=11 // pred_region
        _
      $region52: #{_lambda_.26} parent=11 // pred_fallthru
        _
      // Predicated region
      $region53: #{_lambda_.26} parent=11 // pred_check
        %p373 = pneg %p302
      $region54: #{_lambda_.26} parent=11 // pred_check_branch
        %375 = sbr.rel (%p373) target = $region56
      $region55: #{_lambda_.26} parent=11 // pred_region
        _
      $region56: #{_lambda_.26} parent=11 // pred_fallthru
        _
    $region12: #{_lambda_.26} parent=5 // pred_fallthru
      _
    %p376 = scmp.lt.s32.totalorder %s19, 2
    // Predicated region
    $region57: #{_lambda_.26} parent=5 // pred_check
      %p377 = pneg %p376
    $region58: #{_lambda_.26} parent=5 // pred_check_branch
      %379 = sbr.rel (%p377) target = $region60
    $region59: #{_lambda_.26} parent=5 // pred_region
      // Predicated region
      $region61: #{_lambda_.26} parent=59 // pred_check
        %p380 = pneg %p39
      $region62: #{_lambda_.26} parent=59 // pred_check_branch
        %382 = sbr.rel (%p380) target = $region64
      $region63: #{_lambda_.26} parent=59 // pred_region
        %p383 = scmp.lt.s32.totalorder %s19, 1
        %s384 = scalar_select %p383, %s19, 1
        %s385 = smul.addr %s384, 2
        %s386 = smul.addr %s385, 8
        %s387 = scalar_lea.vmem %s0, %s386
      $region64: #{_lambda_.26} parent=59 // pred_fallthru
        _
      // Predicated region
      $region65: #{_lambda_.26} parent=59 // pred_check
        %p388 = pneg %p65
      $region66: #{_lambda_.26} parent=59 // pred_check_branch
        %390 = sbr.rel (%p388) target = $region68
      $region67: #{_lambda_.26} parent=59 // pred_region
        %p391 = scmp.lt.s32.totalorder %s19, 1
        %s392 = scalar_select %p391, %s19, 1
        %s393 = smul.addr %s392, 2
        %s394 = smul.addr %s393, 8
        %s395 = scalar_lea.vmem %s1, %s394
      $region68: #{_lambda_.26} parent=59 // pred_fallthru
        _
    $region60: #{_lambda_.26} parent=5 // pred_fallthru
      _
    %p396 = scmp.le.s32.totalorder 1, %s19
    %p397 = scmp.lt.s32.totalorder %s19, 3
    %p398 = pnand %p396, %p397
    %p399 = pneg %p398
    // Predicated region
    $region69: #{_lambda_.26} parent=5 // pred_check
      _
    $region70: #{_lambda_.26} parent=5 // pred_check_branch
      %401 = sbr.rel (%p398) target = $region72
    $region71: #{_lambda_.26} parent=5 // pred_region
      %s402 = ssub.s32 %s19, 1
      %p403 = scmp.lt.s32.totalorder %s24, 1
      %s404 = scalar_select %p403, %s24, 1
      %s405 = smul.addr %s404, 2
      %s406 = smul.addr %s405, 8
      %s407 = scalar_lea.vmem %s0, %s406
      %p408 = pneg %p45
      %p409 = pneg %p42
      %p410 = scmp.lt.s32.totalorder %s24, 1
      %s411 = scalar_select %p410, %s24, 1
      %s412 = smul.addr %s411, 2
      %s413 = smul.addr %s412, 8
      %s414 = scalar_lea.vmem %s1, %s413
      %p415 = pneg %p71
      %p416 = pneg %p68
      %p417 = pneg %p92
      %p418 = pneg %p89
      %p419 = pneg %p113
      %p420 = pneg %p110
      %p421 = pneg %p134
      %p422 = pneg %p131
      %p423 = pneg %p155
      %p424 = pneg %p152
      %p425 = pneg %p176
      %p426 = pneg %p173
      %p427 = pneg %p197
      %p428 = pneg %p194
      %p429 = pneg %p218
      %p430 = pneg %p215
      %p431 = pneg %p239
      %p432 = pneg %p236
      %p433 = pneg %p260
      %p434 = pneg %p257
      %p435 = pneg %p281
      %p436 = pneg %p278
      %p437 = pneg %p302
      %p438 = pneg %p299
      %p439 = pneg %p328
      %p440 = pneg %p325
      %p441 = scmp.lt.s32.totalorder %s24, 1
      %s442 = scalar_select %p441, %s24, 1
      %s443 = smul.addr %s442, 2
      %s444 = smul.addr %s443, 8
      %s445 = scalar_lea.vmem %s13, %s444
      %p446 = scmp.lt.s32.totalorder %s24, 1
      %s447 = scalar_select %p446, %s24, 1
      %s448 = smul.addr %s447, 2
      %s449 = smul.addr %s448, 8
      %s450 = scalar_lea.vmem %s0, %s449
      %p451 = scmp.lt.s32.totalorder %s24, 1
      %s452 = scalar_select %p451, %s24, 1
      %s453 = smul.addr %s452, 2
      %s454 = smul.addr %s453, 8
      %s455 = scalar_lea.vmem %s1, %s454
      %p456 = scmp.lt.s32.totalorder %s24, 1
      %s457 = scalar_select %p456, %s24, 1
      %s458 = smul.addr %s457, 2
      %s459 = smul.addr %s458, 8
      %s460 = scalar_lea.vmem %s13, %s459
      %v462 = vld [vmem:[%s450] sm:$0xff]
      %v463 = vld [vmem:[%s450 + $0x8] sm:$0xff]
      %v464 = vpack.c.bf16 %v463, %v462
      %v465 = vld [vmem:[%s455] sm:$0xff]
      %v466 = vld [vmem:[%s455 + $0x8] sm:$0xff]
      %v467 = vpack.c.bf16 %v466, %v465
      %v468 = vld [vmem:[%s2] sm:$0xf]
      %v469 = vld [vmem:[%s2 + $0x4] sm:$0xf]
      %v470 = vld [vmem:[%s2 + $0x8] sm:$0xf]
      %v471 = vld [vmem:[%s2 + $0xc] sm:$0xf]
      %v472 = vld [vmem:[%s2 + $0x10] sm:$0xf]
      %v473 = vld [vmem:[%s2 + $0x14] sm:$0xf]
      %v474 = vld [vmem:[%s2 + $0x18] sm:$0xf]
      %v475 = vld [vmem:[%s2 + $0x1c] sm:$0xf]
      %v476 = vld [vmem:[%s2 + $0x20] sm:$0xf]
      %v477 = vld [vmem:[%s2 + $0x24] sm:$0xf]
      %v478 = vld [vmem:[%s2 + $0x28] sm:$0xf]
      %v479 = vld [vmem:[%s2 + $0x2c] sm:$0xf]
      %v480 = vld [vmem:[%s2 + $0x30] sm:$0xf]
      %v481 = vld [vmem:[%s2 + $0x34] sm:$0xf]
      %v482 = vld [vmem:[%s2 + $0x38] sm:$0xf]
      %v483 = vld [vmem:[%s2 + $0x3c] sm:$0xf]
      %v484 = vld [vmem:[%s3] sm:$0x1]
      %v486 = vlaneseq
      %v487 = vshrl.u32 %v486, 7
      %v488 = vsub.s32 0, %v487
      %v489 = vrot.slane %v484, %v488
      %v507 = vunpack.c.l.b16 %v468
      %v508 = vunpack.c.l.b16 %v469
      %v509 = vunpack.c.l.b16 %v470
      %v510 = vunpack.c.l.b16 %v471
      %v511 = vunpack.c.l.b16 %v472
      %v512 = vunpack.c.l.b16 %v473
      %v513 = vunpack.c.l.b16 %v474
      %v514 = vunpack.c.l.b16 %v475
      %v515 = vunpack.c.l.b16 %v476
      %v516 = vunpack.c.l.b16 %v477
      %v517 = vunpack.c.l.b16 %v478
      %v518 = vunpack.c.l.b16 %v479
      %v519 = vunpack.c.l.b16 %v480
      %v520 = vunpack.c.l.b16 %v481
      %v521 = vunpack.c.l.b16 %v482
      %v522 = vunpack.c.l.b16 %v483
      %v523 = vpack.c.b16 %v508, %v507
      %v524 = vpack.c.b16 %v510, %v509
      %v525 = vpack.c.b16 %v512, %v511
      %v526 = vpack.c.b16 %v514, %v513
      %v527 = vpack.c.b16 %v516, %v515
      %v528 = vpack.c.b16 %v518, %v517
      %v529 = vpack.c.b16 %v520, %v519
      %v530 = vpack.c.b16 %v522, %v521
      %539 = vmatprep.subr.bf16.mxu0 0
      %540 = vmatpush1.bf16.msra.mxu0 %v523
      %541 = vmatprep.subr.bf16.mxu0 0
      %542 = vmatpush1.bf16.msra.mxu0 %v524
      %543 = vmatprep.subr.bf16.mxu0 0
      %544 = vmatpush1.bf16.msra.mxu0 %v525
      %545 = vmatprep.subr.bf16.mxu0 0
      %546 = vmatpush1.bf16.msra.mxu0 %v526
      %547 = vmatprep.subr.bf16.mxu0 0
      %548 = vmatpush1.bf16.msra.mxu0 %v527
      %549 = vmatprep.subr.bf16.mxu0 0
      %550 = vmatpush1.bf16.msra.mxu0 %v528
      %551 = vmatprep.subr.bf16.mxu0 0
      %552 = vmatpush1.bf16.msra.mxu0 %v529
      %553 = vmatprep.subr.bf16.mxu0 0
      %554 = vmatpush1.bf16.msra.mxu0 %v530
      %555 = vmatprep.subr.bf16.mxu0 0
      %556 = vmatpush1.bf16.msra.mxu0 0
      %557 = vmatprep.subr.bf16.mxu0 0
      %558 = vmatpush1.bf16.msra.mxu0 0
      %559 = vmatprep.subr.bf16.mxu0 0
      %560 = vmatpush1.bf16.msra.mxu0 0
      %561 = vmatprep.subr.bf16.mxu0 0
      %562 = vmatpush1.bf16.msra.mxu0 0
      %563 = vmatprep.subr.bf16.mxu0 0
      %564 = vmatpush1.bf16.msra.mxu0 0
      %565 = vmatprep.subr.bf16.mxu0 0
      %566 = vmatpush1.bf16.msra.mxu0 0
      %567 = vmatprep.subr.bf16.mxu0 0
      %568 = vmatpush1.bf16.msra.mxu0 0
      %569 = vmatprep.subr.bf16.mxu0 0
      %570 = vmatpush1.bf16.msra.mxu0 0
      %571 = vmatprep.mubr.bf16.mxu0 0
      %572 = vmatmul.mubr.bf16.gmra.mrb[0].mxu0 %v464
      %v573 = vpop.f32.mrb[0].mxu0
      %v574 = vadd.f32 %v489, %v573
      %v575 = vpop.f32.mrb[0].mxu0
      %v576 = vpop.f32.mrb[0].mxu0
      %v577 = vadd.f32 %v489, %v576
      %v578 = vpop.f32.mrb[0].mxu0
      %579 = vdwg.mxu0
      %v580 = vld [vmem:[%s4] sm:$0xff]
      %v581 = vld [vmem:[%s4 + $0x8] sm:$0xff]
      %v582 = vld [vmem:[%s4 + $0x10] sm:$0xff]
      %v583 = vld [vmem:[%s4 + $0x18] sm:$0xff]
      %v584 = vld [vmem:[%s4 + $0x20] sm:$0xff]
      %v585 = vld [vmem:[%s4 + $0x28] sm:$0xff]
      %v586 = vld [vmem:[%s4 + $0x30] sm:$0xff]
      %v587 = vld [vmem:[%s4 + $0x38] sm:$0xff]
      %v588 = vld [vmem:[%s4 + $0x40] sm:$0xff]
      %v589 = vld [vmem:[%s4 + $0x48] sm:$0xff]
      %v590 = vld [vmem:[%s4 + $0x50] sm:$0xff]
      %v591 = vld [vmem:[%s4 + $0x58] sm:$0xff]
      %v592 = vld [vmem:[%s4 + $0x60] sm:$0xff]
      %v593 = vld [vmem:[%s4 + $0x68] sm:$0xff]
      %v594 = vld [vmem:[%s4 + $0x70] sm:$0xff]
      %v595 = vld [vmem:[%s4 + $0x78] sm:$0xff]
      %v596 = vld [vmem:[%s5] sm:$0x3]
      %v598 = vlaneseq
      %v599 = vshrl.u32 %v598, 7
      %v600 = vsub.s32 0, %v599
      %v601 = vrot.slane %v596, %v600
      %v602 = vlaneseq
      %v603 = vshrl.u32 %v602, 7
      %v604 = vsub.s32 1, %v603
      %v605 = vrot.slane %v596, %v604
      %v624 = vunpack.c.l.b16 %v580
      %v625 = vunpack.c.h.b16 %v580
      %v626 = vunpack.c.l.b16 %v581
      %v627 = vunpack.c.h.b16 %v581
      %v628 = vunpack.c.l.b16 %v582
      %v629 = vunpack.c.h.b16 %v582
      %v630 = vunpack.c.l.b16 %v583
      %v631 = vunpack.c.h.b16 %v583
      %v632 = vunpack.c.l.b16 %v584
      %v633 = vunpack.c.h.b16 %v584
      %v634 = vunpack.c.l.b16 %v585
      %v635 = vunpack.c.h.b16 %v585
      %v636 = vunpack.c.l.b16 %v586
      %v637 = vunpack.c.h.b16 %v586
      %v638 = vunpack.c.l.b16 %v587
      %v639 = vunpack.c.h.b16 %v587
      %v640 = vunpack.c.l.b16 %v588
      %v641 = vunpack.c.h.b16 %v588
      %v642 = vunpack.c.l.b16 %v589
      %v643 = vunpack.c.h.b16 %v589
      %v644 = vunpack.c.l.b16 %v590
      %v645 = vunpack.c.h.b16 %v590
      %v646 = vunpack.c.l.b16 %v591
      %v647 = vunpack.c.h.b16 %v591
      %v648 = vunpack.c.l.b16 %v592
      %v649 = vunpack.c.h.b16 %v592
      %v650 = vunpack.c.l.b16 %v593
      %v651 = vunpack.c.h.b16 %v593
      %v652 = vunpack.c.l.b16 %v594
      %v653 = vunpack.c.h.b16 %v594
      %v654 = vunpack.c.l.b16 %v595
      %v655 = vunpack.c.h.b16 %v595
      %v656 = vpack.c.b16 %v626, %v624
      %v657 = vpack.c.b16 %v627, %v625
      %v658 = vpack.c.b16 %v630, %v628
      %v659 = vpack.c.b16 %v631, %v629
      %v660 = vpack.c.b16 %v634, %v632
      %v661 = vpack.c.b16 %v635, %v633
      %v662 = vpack.c.b16 %v638, %v636
      %v663 = vpack.c.b16 %v639, %v637
      %v664 = vpack.c.b16 %v642, %v640
      %v665 = vpack.c.b16 %v643, %v641
      %v666 = vpack.c.b16 %v646, %v644
      %v667 = vpack.c.b16 %v647, %v645
      %v668 = vpack.c.b16 %v650, %v648
      %v669 = vpack.c.b16 %v651, %v649
      %v670 = vpack.c.b16 %v654, %v652
      %v671 = vpack.c.b16 %v655, %v653
      %688 = vmatprep.subr.bf16.mxu0 %v657
      %689 = vmatpush1.bf16.msra.mxu0 %v656
      %690 = vmatprep.subr.bf16.mxu0 %v659
      %691 = vmatpush1.bf16.msra.mxu0 %v658
      %692 = vmatprep.subr.bf16.mxu0 %v661
      %693 = vmatpush1.bf16.msra.mxu0 %v660
      %694 = vmatprep.subr.bf16.mxu0 %v663
      %695 = vmatpush1.bf16.msra.mxu0 %v662
      %696 = vmatprep.subr.bf16.mxu0 %v665
      %697 = vmatpush1.bf16.msra.mxu0 %v664
      %698 = vmatprep.subr.bf16.mxu0 %v667
      %699 = vmatpush1.bf16.msra.mxu0 %v666
      %700 = vmatprep.subr.bf16.mxu0 %v669
      %701 = vmatpush1.bf16.msra.mxu0 %v668
      %702 = vmatprep.subr.bf16.mxu0 %v671
      %703 = vmatpush1.bf16.msra.mxu0 %v670
      %704 = vmatprep.subr.bf16.mxu0 0
      %705 = vmatpush1.bf16.msra.mxu0 0
      %706 = vmatprep.subr.bf16.mxu0 0
      %707 = vmatpush1.bf16.msra.mxu0 0
      %708 = vmatprep.subr.bf16.mxu0 0
      %709 = vmatpush1.bf16.msra.mxu0 0
      %710 = vmatprep.subr.bf16.mxu0 0
      %711 = vmatpush1.bf16.msra.mxu0 0
      %712 = vmatprep.subr.bf16.mxu0 0
      %713 = vmatpush1.bf16.msra.mxu0 0
      %714 = vmatprep.subr.bf16.mxu0 0
      %715 = vmatpush1.bf16.msra.mxu0 0
      %716 = vmatprep.subr.bf16.mxu0 0
      %717 = vmatpush1.bf16.msra.mxu0 0
      %718 = vmatprep.subr.bf16.mxu0 0
      %719 = vmatpush1.bf16.msra.mxu0 0
      %720 = vmatprep.mubr.bf16.mxu0 0
      %721 = vmatmul.mubr.bf16.gmra.mrb[0].mxu0 %v467
      %v722 = vpop.f32.mrb[0].mxu0
      %v723 = vadd.f32 %v601, %v722
      %v724 = vpop.f32.mrb[0].mxu0
      %v725 = vadd.f32 %v605, %v724
      %v726 = vpop.f32.mrb[0].mxu0
      %v727 = vadd.f32 %v601, %v726
      %v728 = vpop.f32.mrb[0].mxu0
      %v729 = vadd.f32 %v605, %v728
      %730 = vdwg.mxu0
      %v731 = vld [vmem:[%s6] sm:$0xf]
      %v732 = vld [vmem:[%s6 + $0x4] sm:$0xf]
      %v733 = vld [vmem:[%s6 + $0x8] sm:$0xf]
      %v734 = vld [vmem:[%s6 + $0xc] sm:$0xf]
      %v735 = vld [vmem:[%s6 + $0x10] sm:$0xf]
      %v736 = vld [vmem:[%s6 + $0x14] sm:$0xf]
      %v737 = vld [vmem:[%s6 + $0x18] sm:$0xf]
      %v738 = vld [vmem:[%s6 + $0x1c] sm:$0xf]
      %v739 = vld [vmem:[%s6 + $0x20] sm:$0xf]
      %v740 = vld [vmem:[%s6 + $0x24] sm:$0xf]
      %v741 = vld [vmem:[%s6 + $0x28] sm:$0xf]
      %v742 = vld [vmem:[%s6 + $0x2c] sm:$0xf]
      %v743 = vld [vmem:[%s6 + $0x30] sm:$0xf]
      %v744 = vld [vmem:[%s6 + $0x34] sm:$0xf]
      %v745 = vld [vmem:[%s6 + $0x38] sm:$0xf]
      %v746 = vld [vmem:[%s6 + $0x3c] sm:$0xf]
      %v747 = vld [vmem:[%s7] sm:$0x1]
      %v748 = vpack.c.bf16 %v577, %v574
      %v749 = vpack.c.bf16 %v727, %v723
      %v750 = vpack.c.bf16 %v729, %v725
      %vm751 = vcmask 261120
      %v753 = vsel %vm751, %v748, 0
      %v756 = vsel %vm751, %v749, 0
      %758 = vmatprep.subr.bf16.mxu0 0
      %759 = vmatpush1.bf16.xpose.msra.mxu0 %v756
      %760 = vmatprep.subr.bf16.mxu0 0
      %761 = vmatpush1.bf16.xpose.msra.mxu0 0
      %762 = vmatprep.subr.bf16.mxu0 0
      %763 = vmatpush1.bf16.xpose.msra.mxu0 0
      %764 = vmatprep.subr.bf16.mxu0 0
      %765 = vmatpush1.bf16.xpose.msra.mxu0 0
      %766 = vmatprep.subr.bf16.mxu0 0
      %767 = vmatpush1.bf16.xpose.msra.mxu0 0
      %768 = vmatprep.subr.bf16.mxu0 0
      %769 = vmatpush1.bf16.xpose.msra.mxu0 0
      %770 = vmatprep.subr.bf16.mxu0 0
      %771 = vmatpush1.bf16.xpose.msra.mxu0 0
      %772 = vmatprep.subr.bf16.mxu0 0
      %773 = vmatpush1.bf16.xpose.msra.mxu0 0
      %774 = vmatprep.subr.bf16.mxu0 0
      %775 = vmatpush1.bf16.xpose.msra.mxu0 0
      %776 = vmatprep.subr.bf16.mxu0 0
      %777 = vmatpush1.bf16.xpose.msra.mxu0 0
      %778 = vmatprep.subr.bf16.mxu0 0
      %779 = vmatpush1.bf16.xpose.msra.mxu0 0
      %780 = vmatprep.subr.bf16.mxu0 0
      %781 = vmatpush1.bf16.xpose.msra.mxu0 0
      %782 = vmatprep.subr.bf16.mxu0 0
      %783 = vmatpush1.bf16.xpose.msra.mxu0 0
      %784 = vmatprep.subr.bf16.mxu0 0
      %785 = vmatpush1.bf16.xpose.msra.mxu0 0
      %786 = vmatprep.subr.bf16.mxu0 0
      %787 = vmatpush1.bf16.xpose.msra.mxu0 0
      %788 = vmatprep.subr.bf16.mxu0 0
      %789 = vmatpush1.bf16.xpose.msra.mxu0 0
      %790 = vmatprep.mubr.bf16.mxu0 0
      %791 = vmatmul.mubr.bf16.gmra.mrb[0].mxu0 %v753
      %v792 = vpop.f32.mrb[0].mxu0
      %v793 = vadd.f32 0.0, %v792
      %v794 = vpop.f32.mrb[0].mxu0
      %v795 = vpop.f32.mrb[0].mxu0
      %v796 = vadd.f32 0.0, %v795
      %v797 = vpop.f32.mrb[0].mxu0
      %798 = vdwg.mxu0
      %vm799 = vcmask 130048
      %v800 = vsel %vm799, %v793, -inf
      %801 = vmax.xlane.f32.xlu0 %v800
      %v802 = vpop.xlane.xlu0 %801
      %v803 = vsel %vm799, %v796, -inf
      %804 = vmax.xlane.f32.xlu0 %v803
      %v805 = vpop.xlane.xlu0 %804
      %v806 = vsub.f32 %v793, %v802
      %v807 = vsub.f32 %v796, %v805
      %v808 = vmul.f32 %v806, 1.442695
      %v809 = vpow.pop %v808
      %v810 = vmul.f32 %v807, 1.442695
      %v811 = vpow.pop %v810
      %v812 = vsel %vm799, %v809, 0.0
      %813 = vadd.xlane.f32.xlu0 %v812
      %v814 = vpop.xlane.xlu0 %813
      %v815 = vsel %vm799, %v811, 0.0
      %816 = vadd.xlane.f32.xlu0 %v815
      %v817 = vpop.xlane.xlu0 %816
      %v818 = vrcp.pop %v814
      %v819 = vrcp.pop %v817
      %v820 = vmul.f32 %v809, %v818
      %v821 = vmul.f32 %v811, %v819
      %v822 = vpack.c.bf16 %v821, %v820
      %v824 = vsel %vm799, %v822, 0
      %826 = vmatprep.subr.bf16.mxu0 0
      %827 = vmatpush1.bf16.msra.mxu0 %v750
      %828 = vmatprep.subr.bf16.mxu0 0
      %829 = vmatpush1.bf16.msra.mxu0 0
      %830 = vmatprep.subr.bf16.mxu0 0
      %831 = vmatpush1.bf16.msra.mxu0 0
      %832 = vmatprep.subr.bf16.mxu0 0
      %833 = vmatpush1.bf16.msra.mxu0 0
      %834 = vmatprep.subr.bf16.mxu0 0
      %835 = vmatpush1.bf16.msra.mxu0 0
      %836 = vmatprep.subr.bf16.mxu0 0
      %837 = vmatpush1.bf16.msra.mxu0 0
      %838 = vmatprep.subr.bf16.mxu0 0
      %839 = vmatpush1.bf16.msra.mxu0 0
      %840 = vmatprep.subr.bf16.mxu0 0
      %841 = vmatpush1.bf16.msra.mxu0 0
      %842 = vmatprep.subr.bf16.mxu0 0
      %843 = vmatpush1.bf16.msra.mxu0 0
      %844 = vmatprep.subr.bf16.mxu0 0
      %845 = vmatpush1.bf16.msra.mxu0 0
      %846 = vmatprep.subr.bf16.mxu0 0
      %847 = vmatpush1.bf16.msra.mxu0 0
      %848 = vmatprep.subr.bf16.mxu0 0
      %849 = vmatpush1.bf16.msra.mxu0 0
      %850 = vmatprep.subr.bf16.mxu0 0
      %851 = vmatpush1.bf16.msra.mxu0 0
      %852 = vmatprep.subr.bf16.mxu0 0
      %853 = vmatpush1.bf16.msra.mxu0 0
      %854 = vmatprep.subr.bf16.mxu0 0
      %855 = vmatpush1.bf16.msra.mxu0 0
      %856 = vmatprep.subr.bf16.mxu0 0
      %857 = vmatpush1.bf16.msra.mxu0 0
      %858 = vmatprep.mubr.bf16.mxu0 0
      %859 = vmatmul.mubr.bf16.gmra.mrb[0].mxu0 %v824
      %v860 = vpop.f32.mrb[0].mxu0
      %v861 = vadd.f32 0.0, %v860
      %v862 = vpop.f32.mrb[0].mxu0
      %v863 = vpop.f32.mrb[0].mxu0
      %v864 = vadd.f32 0.0, %v863
      %v865 = vpop.f32.mrb[0].mxu0
      %866 = vdwg.mxu0
      %v867 = vpack.c.bf16 %v864, %v861
      %v872 = vunpack.c.l.b16 %v731
      %v873 = vunpack.c.l.b16 %v732
      %v874 = vunpack.c.l.b16 %v733
      %v875 = vunpack.c.l.b16 %v734
      %v876 = vpack.c.b16 %v873, %v872
      %v877 = vpack.c.b16 %v875, %v874
      %v881 = vsel %vm751, %v867, 0
      %883 = vmatprep.subr.bf16.mxu0 0
      %884 = vmatpush1.bf16.msra.mxu0 %v876
      %885 = vmatprep.subr.bf16.mxu0 0
      %886 = vmatpush1.bf16.msra.mxu0 %v877
      %887 = vmatprep.subr.bf16.mxu0 0
      %888 = vmatpush1.bf16.msra.mxu0 0
      %889 = vmatprep.subr.bf16.mxu0 0
      %890 = vmatpush1.bf16.msra.mxu0 0
      %891 = vmatprep.subr.bf16.mxu0 0
      %892 = vmatpush1.bf16.msra.mxu0 0
      %893 = vmatprep.subr.bf16.mxu0 0
      %894 = vmatpush1.bf16.msra.mxu0 0
      %895 = vmatprep.subr.bf16.mxu0 0
      %896 = vmatpush1.bf16.msra.mxu0 0
      %897 = vmatprep.subr.bf16.mxu0 0
      %898 = vmatpush1.bf16.msra.mxu0 0
      %899 = vmatprep.subr.bf16.mxu0 0
      %900 = vmatpush1.bf16.msra.mxu0 0
      %901 = vmatprep.subr.bf16.mxu0 0
      %902 = vmatpush1.bf16.msra.mxu0 0
      %903 = vmatprep.subr.bf16.mxu0 0
      %904 = vmatpush1.bf16.msra.mxu0 0
      %905 = vmatprep.subr.bf16.mxu0 0
      %906 = vmatpush1.bf16.msra.mxu0 0
      %907 = vmatprep.subr.bf16.mxu0 0
      %908 = vmatpush1.bf16.msra.mxu0 0
      %909 = vmatprep.subr.bf16.mxu0 0
      %910 = vmatpush1.bf16.msra.mxu0 0
      %911 = vmatprep.subr.bf16.mxu0 0
      %912 = vmatpush1.bf16.msra.mxu0 0
      %913 = vmatprep.subr.bf16.mxu0 0
      %914 = vmatpush1.bf16.msra.mxu0 0
      %915 = vmatprep.mubr.bf16.mxu0 0
      %916 = vmatmul.mubr.bf16.gmra.mrb[0].mxu0 %v881
      %v917 = vpop.f32.mrb[0].mxu0
      %v918 = vadd.f32 0.0, %v917
      %v919 = vpop.f32.mrb[0].mxu0
      %v920 = vpop.f32.mrb[0].mxu0
      %v921 = vadd.f32 0.0, %v920
      %v922 = vpop.f32.mrb[0].mxu0
      %923 = vdwg.mxu0
      %v925 = vlaneseq
      %v926 = vshrl.u32 %v925, 7
      %v927 = vsub.s32 0, %v926
      %v928 = vrot.slane %v747, %v927
      %v930 = vadd.f32 %v928, %v918
      %v931 = vadd.f32 %v928, %v921
      %933 = vrot.lane.b32.xlu0 %v748, 96
      %v934 = vpop.permute.xlu0 %933
      %936 = vrot.lane.b32.xlu0 %v749, 96
      %v937 = vpop.permute.xlu0 %936
      %v939 = vsel %vm751, %v934, 0
      %v942 = vsel %vm751, %v937, 0
      %944 = vmatprep.subr.bf16.mxu0 0
      %945 = vmatpush1.bf16.xpose.msra.mxu0 %v942
      %946 = vmatprep.subr.bf16.mxu0 0
      %947 = vmatpush1.bf16.xpose.msra.mxu0 0
      %948 = vmatprep.subr.bf16.mxu0 0
      %949 = vmatpush1.bf16.xpose.msra.mxu0 0
      %950 = vmatprep.subr.bf16.mxu0 0
      %951 = vmatpush1.bf16.xpose.msra.mxu0 0
      %952 = vmatprep.subr.bf16.mxu0 0
      %953 = vmatpush1.bf16.xpose.msra.mxu0 0
      %954 = vmatprep.subr.bf16.mxu0 0
      %955 = vmatpush1.bf16.xpose.msra.mxu0 0
      %956 = vmatprep.subr.bf16.mxu0 0
      %957 = vmatpush1.bf16.xpose.msra.mxu0 0
      %958 = vmatprep.subr.bf16.mxu0 0
      %959 = vmatpush1.bf16.xpose.msra.mxu0 0
      %960 = vmatprep.subr.bf16.mxu0 0
      %961 = vmatpush1.bf16.xpose.msra.mxu0 0
      %962 = vmatprep.subr.bf16.mxu0 0
      %963 = vmatpush1.bf16.xpose.msra.mxu0 0
      %964 = vmatprep.subr.bf16.mxu0 0
      %965 = vmatpush1.bf16.xpose.msra.mxu0 0
      %966 = vmatprep.subr.bf16.mxu0 0
      %967 = vmatpush1.bf16.xpose.msra.mxu0 0
      %968 = vmatprep.subr.bf16.mxu0 0
      %969 = vmatpush1.bf16.xpose.msra.mxu0 0
      %970 = vmatprep.subr.bf16.mxu0 0
      %971 = vmatpush1.bf16.xpose.msra.mxu0 0
      %972 = vmatprep.subr.bf16.mxu0 0
      %973 = vmatpush1.bf16.xpose.msra.mxu0 0
      %974 = vmatprep.subr.bf16.mxu0 0
      %975 = vmatpush1.bf16.xpose.msra.mxu0 0
      %976 = vmatprep.mubr.bf16.mxu0 0
      %977 = vmatmul.mubr.bf16.gmra.mrb[0].mxu0 %v939
      %v978 = vpop.f32.mrb[0].mxu0
      %v979 = vadd.f32 0.0, %v978
      %v980 = vpop.f32.mrb[0].mxu0
      %v981 = vpop.f32.mrb[0].mxu0
      %v982 = vadd.f32 0.0, %v981
      %v983 = vpop.f32.mrb[0].mxu0
      %984 = vdwg.mxu0
      %v985 = vsel %vm799, %v979, -inf
      %986 = vmax.xlane.f32.xlu0 %v985
      %v987 = vpop.xlane.xlu0 %986
      %v988 = vsel %vm799, %v982, -inf
      %989 = vmax.xlane.f32.xlu0 %v988
      %v990 = vpop.xlane.xlu0 %989
      %v991 = vsub.f32 %v979, %v987
      %v992 = vsub.f32 %v982, %v990
      %v993 = vmul.f32 %v991, 1.442695
      %v994 = vpow.pop %v993
      %v995 = vmul.f32 %v992, 1.442695
      %v996 = vpow.pop %v995
      %v997 = vsel %vm799, %v994, 0.0
      %998 = vadd.xlane.f32.xlu0 %v997
      %v999 = vpop.xlane.xlu0 %998
      %v1000 = vsel %vm799, %v996, 0.0
      %1001 = vadd.xlane.f32.xlu0 %v1000
      %v1002 = vpop.xlane.xlu0 %1001
      %v1003 = vrcp.pop %v999
      %v1004 = vrcp.pop %v1002
      %v1005 = vmul.f32 %v994, %v1003
      %v1006 = vmul.f32 %v996, %v1004
      %v1007 = vpack.c.bf16 %v1006, %v1005
      %1009 = vrot.lane.b32.xlu0 %v750, 96
      %v1010 = vpop.permute.xlu0 %1009
      %v1013 = vsel %vm799, %v1007, 0
      %1015 = vmatprep.subr.bf16.mxu0 0
      %1016 = vmatpush1.bf16.msra.mxu0 %v1010
      %1017 = vmatprep.subr.bf16.mxu0 0
      %1018 = vmatpush1.bf16.msra.mxu0 0
      %1019 = vmatprep.subr.bf16.mxu0 0
      %1020 = vmatpush1.bf16.msra.mxu0 0
      %1021 = vmatprep.subr.bf16.mxu0 0
      %1022 = vmatpush1.bf16.msra.mxu0 0
      %1023 = vmatprep.subr.bf16.mxu0 0
      %1024 = vmatpush1.bf16.msra.mxu0 0
      %1025 = vmatprep.subr.bf16.mxu0 0
      %1026 = vmatpush1.bf16.msra.mxu0 0
      %1027 = vmatprep.subr.bf16.mxu0 0
      %1028 = vmatpush1.bf16.msra.mxu0 0
      %1029 = vmatprep.subr.bf16.mxu0 0
      %1030 = vmatpush1.bf16.msra.mxu0 0
      %1031 = vmatprep.subr.bf16.mxu0 0
      %1032 = vmatpush1.bf16.msra.mxu0 0
      %1033 = vmatprep.subr.bf16.mxu0 0
      %1034 = vmatpush1.bf16.msra.mxu0 0
      %1035 = vmatprep.subr.bf16.mxu0 0
      %1036 = vmatpush1.bf16.msra.mxu0 0
      %1037 = vmatprep.subr.bf16.mxu0 0
      %1038 = vmatpush1.bf16.msra.mxu0 0
      %1039 = vmatprep.subr.bf16.mxu0 0
      %1040 = vmatpush1.bf16.msra.mxu0 0
      %1041 = vmatprep.subr.bf16.mxu0 0
      %1042 = vmatpush1.bf16.msra.mxu0 0
      %1043 = vmatprep.subr.bf16.mxu0 0
      %1044 = vmatpush1.bf16.msra.mxu0 0
      %1045 = vmatprep.subr.bf16.mxu0 0
      %1046 = vmatpush1.bf16.msra.mxu0 0
      %1047 = vmatprep.mubr.bf16.mxu0 0
      %1048 = vmatmul.mubr.bf16.gmra.mrb[0].mxu0 %v1013
      %v1049 = vpop.f32.mrb[0].mxu0
      %v1050 = vadd.f32 0.0, %v1049
      %v1051 = vpop.f32.mrb[0].mxu0
      %v1052 = vpop.f32.mrb[0].mxu0
      %v1053 = vadd.f32 0.0, %v1052
      %v1054 = vpop.f32.mrb[0].mxu0
      %1055 = vdwg.mxu0
      %v1056 = vpack.c.bf16 %v1053, %v1050
      %v1061 = vunpack.c.l.b16 %v735
      %v1062 = vunpack.c.l.b16 %v736
      %v1063 = vunpack.c.l.b16 %v737
      %v1064 = vunpack.c.l.b16 %v738
      %v1065 = vpack.c.b16 %v1062, %v1061
      %v1066 = vpack.c.b16 %v1064, %v1063
      %v1070 = vsel %vm751, %v1056, 0
      %1072 = vmatprep.subr.bf16.mxu0 0
      %1073 = vmatpush1.bf16.msra.mxu0 %v1065
      %1074 = vmatprep.subr.bf16.mxu0 0
      %1075 = vmatpush1.bf16.msra.mxu0 %v1066
      %1076 = vmatprep.subr.bf16.mxu0 0
      %1077 = vmatpush1.bf16.msra.mxu0 0
      %1078 = vmatprep.subr.bf16.mxu0 0
      %1079 = vmatpush1.bf16.msra.mxu0 0
      %1080 = vmatprep.subr.bf16.mxu0 0
      %1081 = vmatpush1.bf16.msra.mxu0 0
      %1082 = vmatprep.subr.bf16.mxu0 0
      %1083 = vmatpush1.bf16.msra.mxu0 0
      %1084 = vmatprep.subr.bf16.mxu0 0
      %1085 = vmatpush1.bf16.msra.mxu0 0
      %1086 = vmatprep.subr.bf16.mxu0 0
      %1087 = vmatpush1.bf16.msra.mxu0 0
      %1088 = vmatprep.subr.bf16.mxu0 0
      %1089 = vmatpush1.bf16.msra.mxu0 0
      %1090 = vmatprep.subr.bf16.mxu0 0
      %1091 = vmatpush1.bf16.msra.mxu0 0
      %1092 = vmatprep.subr.bf16.mxu0 0
      %1093 = vmatpush1.bf16.msra.mxu0 0
      %1094 = vmatprep.subr.bf16.mxu0 0
      %1095 = vmatpush1.bf16.msra.mxu0 0
      %1096 = vmatprep.subr.bf16.mxu0 0
      %1097 = vmatpush1.bf16.msra.mxu0 0
      %1098 = vmatprep.subr.bf16.mxu0 0
      %1099 = vmatpush1.bf16.msra.mxu0 0
      %1100 = vmatprep.subr.bf16.mxu0 0
      %1101 = vmatpush1.bf16.msra.mxu0 0
      %1102 = vmatprep.subr.bf16.mxu0 0
      %1103 = vmatpush1.bf16.msra.mxu0 0
      %1104 = vmatprep.mubr.bf16.mxu0 0
      %1105 = vmatmul.mubr.bf16.gmra.mrb[0].mxu0 %v1070
      %v1106 = vpop.f32.mrb[0].mxu0
      %v1107 = vadd.f32 0.0, %v1106
      %v1108 = vpop.f32.mrb[0].mxu0
      %v1109 = vpop.f32.mrb[0].mxu0
      %v1110 = vadd.f32 0.0, %v1109
      %v1111 = vpop.f32.mrb[0].mxu0
      %1112 = vdwg.mxu0
      %v1113 = vadd.f32 %v930, %v1107
      %v1114 = vadd.f32 %v931, %v1110
      %1115 = vrot.lane.b32.xlu0 %v748, 64
      %v1116 = vpop.permute.xlu0 %1115
      %1117 = vrot.lane.b32.xlu0 %v749, 64
      %v1118 = vpop.permute.xlu0 %1117
      %v1120 = vsel %vm751, %v1116, 0
      %v1123 = vsel %vm751, %v1118, 0
      %1125 = vmatprep.subr.bf16.mxu0 0
      %1126 = vmatpush1.bf16.xpose.msra.mxu0 %v1123
      %1127 = vmatprep.subr.bf16.mxu0 0
      %1128 = vmatpush1.bf16.xpose.msra.mxu0 0
      %1129 = vmatprep.subr.bf16.mxu0 0
      %1130 = vmatpush1.bf16.xpose.msra.mxu0 0
      %1131 = vmatprep.subr.bf16.mxu0 0
      %1132 = vmatpush1.bf16.xpose.msra.mxu0 0
      %1133 = vmatprep.subr.bf16.mxu0 0
      %1134 = vmatpush1.bf16.xpose.msra.mxu0 0
      %1135 = vmatprep.subr.bf16.mxu0 0
      %1136 = vmatpush1.bf16.xpose.msra.mxu0 0
      %1137 = vmatprep.subr.bf16.mxu0 0
      %1138 = vmatpush1.bf16.xpose.msra.mxu0 0
      %1139 = vmatprep.subr.bf16.mxu0 0
      %1140 = vmatpush1.bf16.xpose.msra.mxu0 0
      %1141 = vmatprep.subr.bf16.mxu0 0
      %1142 = vmatpush1.bf16.xpose.msra.mxu0 0
      %1143 = vmatprep.subr.bf16.mxu0 0
      %1144 = vmatpush1.bf16.xpose.msra.mxu0 0
      %1145 = vmatprep.subr.bf16.mxu0 0
      %1146 = vmatpush1.bf16.xpose.msra.mxu0 0
      %1147 = vmatprep.subr.bf16.mxu0 0
      %1148 = vmatpush1.bf16.xpose.msra.mxu0 0
      %1149 = vmatprep.subr.bf16.mxu0 0
      %1150 = vmatpush1.bf16.xpose.msra.mxu0 0
      %1151 = vmatprep.subr.bf16.mxu0 0
      %1152 = vmatpush1.bf16.xpose.msra.mxu0 0
      %1153 = vmatprep.subr.bf16.mxu0 0
      %1154 = vmatpush1.bf16.xpose.msra.mxu0 0
      %1155 = vmatprep.subr.bf16.mxu0 0
      %1156 = vmatpush1.bf16.xpose.msra.mxu0 0
      %1157 = vmatprep.mubr.bf16.mxu0 0
      %1158 = vmatmul.mubr.bf16.gmra.mrb[0].mxu0 %v1120
      %v1159 = vpop.f32.mrb[0].mxu0
      %v1160 = vadd.f32 0.0, %v1159
      %v1161 = vpop.f32.mrb[0].mxu0
      %v1162 = vpop.f32.mrb[0].mxu0
      %v1163 = vadd.f32 0.0, %v1162
      %v1164 = vpop.f32.mrb[0].mxu0
      %1165 = vdwg.mxu0
      %v1166 = vsel %vm799, %v1160, -inf
      %1167 = vmax.xlane.f32.xlu0 %v1166
      %v1168 = vpop.xlane.xlu0 %1167
      %v1169 = vsel %vm799, %v1163, -inf
      %1170 = vmax.xlane.f32.xlu0 %v1169
      %v1171 = vpop.xlane.xlu0 %1170
      %v1172 = vsub.f32 %v1160, %v1168
      %v1173 = vsub.f32 %v1163, %v1171
      %v1174 = vmul.f32 %v1172, 1.442695
      %v1175 = vpow.pop %v1174
      %v1176 = vmul.f32 %v1173, 1.442695
      %v1177 = vpow.pop %v1176
      %v1178 = vsel %vm799, %v1175, 0.0
      %1179 = vadd.xlane.f32.xlu0 %v1178
      %v1180 = vpop.xlane.xlu0 %1179
      %v1181 = vsel %vm799, %v1177, 0.0
      %1182 = vadd.xlane.f32.xlu0 %v1181
      %v1183 = vpop.xlane.xlu0 %1182
      %v1184 = vrcp.pop %v1180
      %v1185 = vrcp.pop %v1183
      %v1186 = vmul.f32 %v1175, %v1184
      %v1187 = vmul.f32 %v1177, %v1185
      %v1188 = vpack.c.bf16 %v1187, %v1186
      %1189 = vrot.lane.b32.xlu0 %v750, 64
      %v1190 = vpop.permute.xlu0 %1189
      %v1193 = vsel %vm799, %v1188, 0
      %1195 = vmatprep.subr.bf16.mxu0 0
      %1196 = vmatpush1.bf16.msra.mxu0 %v1190
      %1197 = vmatprep.subr.bf16.mxu0 0
      %1198 = vmatpush1.bf16.msra.mxu0 0
      %1199 = vmatprep.subr.bf16.mxu0 0
      %1200 = vmatpush1.bf16.msra.mxu0 0
      %1201 = vmatprep.subr.bf16.mxu0 0
      %1202 = vmatpush1.bf16.msra.mxu0 0
      %1203 = vmatprep.subr.bf16.mxu0 0
      %1204 = vmatpush1.bf16.msra.mxu0 0
      %1205 = vmatprep.subr.bf16.mxu0 0
      %1206 = vmatpush1.bf16.msra.mxu0 0
      %1207 = vmatprep.subr.bf16.mxu0 0
      %1208 = vmatpush1.bf16.msra.mxu0 0
      %1209 = vmatprep.subr.bf16.mxu0 0
      %1210 = vmatpush1.bf16.msra.mxu0 0
      %1211 = vmatprep.subr.bf16.mxu0 0
      %1212 = vmatpush1.bf16.msra.mxu0 0
      %1213 = vmatprep.subr.bf16.mxu0 0
      %1214 = vmatpush1.bf16.msra.mxu0 0
      %1215 = vmatprep.subr.bf16.mxu0 0
      %1216 = vmatpush1.bf16.msra.mxu0 0
      %1217 = vmatprep.subr.bf16.mxu0 0
      %1218 = vmatpush1.bf16.msra.mxu0 0
      %1219 = vmatprep.subr.bf16.mxu0 0
      %1220 = vmatpush1.bf16.msra.mxu0 0
      %1221 = vmatprep.subr.bf16.mxu0 0
      %1222 = vmatpush1.bf16.msra.mxu0 0
      %1223 = vmatprep.subr.bf16.mxu0 0
      %1224 = vmatpush1.bf16.msra.mxu0 0
      %1225 = vmatprep.subr.bf16.mxu0 0
      %1226 = vmatpush1.bf16.msra.mxu0 0
      %1227 = vmatprep.mubr.bf16.mxu0 0
      %1228 = vmatmul.mubr.bf16.gmra.mrb[0].mxu0 %v1193
      %v1229 = vpop.f32.mrb[0].mxu0
      %v1230 = vadd.f32 0.0, %v1229
      %v1231 = vpop.f32.mrb[0].mxu0
      %v1232 = vpop.f32.mrb[0].mxu0
      %v1233 = vadd.f32 0.0, %v1232
      %v1234 = vpop.f32.mrb[0].mxu0
      %1235 = vdwg.mxu0
      %v1236 = vpack.c.bf16 %v1233, %v1230
      %v1241 = vunpack.c.l.b16 %v739
      %v1242 = vunpack.c.l.b16 %v740
      %v1243 = vunpack.c.l.b16 %v741
      %v1244 = vunpack.c.l.b16 %v742
      %v1245 = vpack.c.b16 %v1242, %v1241
      %v1246 = vpack.c.b16 %v1244, %v1243
      %v1250 = vsel %vm751, %v1236, 0
      %1252 = vmatprep.subr.bf16.mxu0 0
      %1253 = vmatpush1.bf16.msra.mxu0 %v1245
      %1254 = vmatprep.subr.bf16.mxu0 0
      %1255 = vmatpush1.bf16.msra.mxu0 %v1246
      %1256 = vmatprep.subr.bf16.mxu0 0
      %1257 = vmatpush1.bf16.msra.mxu0 0
      %1258 = vmatprep.subr.bf16.mxu0 0
      %1259 = vmatpush1.bf16.msra.mxu0 0
      %1260 = vmatprep.subr.bf16.mxu0 0
      %1261 = vmatpush1.bf16.msra.mxu0 0
      %1262 = vmatprep.subr.bf16.mxu0 0
      %1263 = vmatpush1.bf16.msra.mxu0 0
      %1264 = vmatprep.subr.bf16.mxu0 0
      %1265 = vmatpush1.bf16.msra.mxu0 0
      %1266 = vmatprep.subr.bf16.mxu0 0
      %1267 = vmatpush1.bf16.msra.mxu0 0
      %1268 = vmatprep.subr.bf16.mxu0 0
      %1269 = vmatpush1.bf16.msra.mxu0 0
      %1270 = vmatprep.subr.bf16.mxu0 0
      %1271 = vmatpush1.bf16.msra.mxu0 0
      %1272 = vmatprep.subr.bf16.mxu0 0
      %1273 = vmatpush1.bf16.msra.mxu0 0
      %1274 = vmatprep.subr.bf16.mxu0 0
      %1275 = vmatpush1.bf16.msra.mxu0 0
      %1276 = vmatprep.subr.bf16.mxu0 0
      %1277 = vmatpush1.bf16.msra.mxu0 0
      %1278 = vmatprep.subr.bf16.mxu0 0
      %1279 = vmatpush1.bf16.msra.mxu0 0
      %1280 = vmatprep.subr.bf16.mxu0 0
      %1281 = vmatpush1.bf16.msra.mxu0 0
      %1282 = vmatprep.subr.bf16.mxu0 0
      %1283 = vmatpush1.bf16.msra.mxu0 0
      %1284 = vmatprep.mubr.bf16.mxu0 0
      %1285 = vmatmul.mubr.bf16.gmra.mrb[0].mxu0 %v1250
      %v1286 = vpop.f32.mrb[0].mxu0
      %v1287 = vadd.f32 0.0, %v1286
      %v1288 = vpop.f32.mrb[0].mxu0
      %v1289 = vpop.f32.mrb[0].mxu0
      %v1290 = vadd.f32 0.0, %v1289
      %v1291 = vpop.f32.mrb[0].mxu0
      %1292 = vdwg.mxu0
      %v1293 = vadd.f32 %v1113, %v1287
      %v1294 = vadd.f32 %v1114, %v1290
      %1295 = vrot.lane.b32.xlu0 %v748, 32
      %v1296 = vpop.permute.xlu0 %1295
      %1297 = vrot.lane.b32.xlu0 %v749, 32
      %v1298 = vpop.permute.xlu0 %1297
      %v1300 = vsel %vm751, %v1296, 0
      %v1303 = vsel %vm751, %v1298, 0
      %1305 = vmatprep.subr.bf16.mxu0 0
      %1306 = vmatpush1.bf16.xpose.msra.mxu0 %v1303
      %1307 = vmatprep.subr.bf16.mxu0 0
      %1308 = vmatpush1.bf16.xpose.msra.mxu0 0
      %1309 = vmatprep.subr.bf16.mxu0 0
      %1310 = vmatpush1.bf16.xpose.msra.mxu0 0
      %1311 = vmatprep.subr.bf16.mxu0 0
      %1312 = vmatpush1.bf16.xpose.msra.mxu0 0
      %1313 = vmatprep.subr.bf16.mxu0 0
      %1314 = vmatpush1.bf16.xpose.msra.mxu0 0
      %1315 = vmatprep.subr.bf16.mxu0 0
      %1316 = vmatpush1.bf16.xpose.msra.mxu0 0
      %1317 = vmatprep.subr.bf16.mxu0 0
      %1318 = vmatpush1.bf16.xpose.msra.mxu0 0
      %1319 = vmatprep.subr.bf16.mxu0 0
      %1320 = vmatpush1.bf16.xpose.msra.mxu0 0
      %1321 = vmatprep.subr.bf16.mxu0 0
      %1322 = vmatpush1.bf16.xpose.msra.mxu0 0
      %1323 = vmatprep.subr.bf16.mxu0 0
      %1324 = vmatpush1.bf16.xpose.msra.mxu0 0
      %1325 = vmatprep.subr.bf16.mxu0 0
      %1326 = vmatpush1.bf16.xpose.msra.mxu0 0
      %1327 = vmatprep.subr.bf16.mxu0 0
      %1328 = vmatpush1.bf16.xpose.msra.mxu0 0
      %1329 = vmatprep.subr.bf16.mxu0 0
      %1330 = vmatpush1.bf16.xpose.msra.mxu0 0
      %1331 = vmatprep.subr.bf16.mxu0 0
      %1332 = vmatpush1.bf16.xpose.msra.mxu0 0
      %1333 = vmatprep.subr.bf16.mxu0 0
      %1334 = vmatpush1.bf16.xpose.msra.mxu0 0
      %1335 = vmatprep.subr.bf16.mxu0 0
      %1336 = vmatpush1.bf16.xpose.msra.mxu0 0
      %1337 = vmatprep.mubr.bf16.mxu0 0
      %1338 = vmatmul.mubr.bf16.gmra.mrb[0].mxu0 %v1300
      %v1339 = vpop.f32.mrb[0].mxu0
      %v1340 = vadd.f32 0.0, %v1339
      %v1341 = vpop.f32.mrb[0].mxu0
      %v1342 = vpop.f32.mrb[0].mxu0
      %v1343 = vadd.f32 0.0, %v1342
      %v1344 = vpop.f32.mrb[0].mxu0
      %1345 = vdwg.mxu0
      %v1346 = vsel %vm799, %v1340, -inf
      %1347 = vmax.xlane.f32.xlu0 %v1346
      %v1348 = vpop.xlane.xlu0 %1347
      %v1349 = vsel %vm799, %v1343, -inf
      %1350 = vmax.xlane.f32.xlu0 %v1349
      %v1351 = vpop.xlane.xlu0 %1350
      %v1352 = vsub.f32 %v1340, %v1348
      %v1353 = vsub.f32 %v1343, %v1351
      %v1354 = vmul.f32 %v1352, 1.442695
      %v1355 = vpow.pop %v1354
      %v1356 = vmul.f32 %v1353, 1.442695
      %v1357 = vpow.pop %v1356
      %v1358 = vsel %vm799, %v1355, 0.0
      %1359 = vadd.xlane.f32.xlu0 %v1358
      %v1360 = vpop.xlane.xlu0 %1359
      %v1361 = vsel %vm799, %v1357, 0.0
      %1362 = vadd.xlane.f32.xlu0 %v1361
      %v1363 = vpop.xlane.xlu0 %1362
      %v1364 = vrcp.pop %v1360
      %v1365 = vrcp.pop %v1363
      %v1366 = vmul.f32 %v1355, %v1364
      %v1367 = vmul.f32 %v1357, %v1365
      %v1368 = vpack.c.bf16 %v1367, %v1366
      %1369 = vrot.lane.b32.xlu0 %v750, 32
      %v1370 = vpop.permute.xlu0 %1369
      %v1373 = vsel %vm799, %v1368, 0
      %1375 = vmatprep.subr.bf16.mxu0 0
      %1376 = vmatpush1.bf16.msra.mxu0 %v1370
      %1377 = vmatprep.subr.bf16.mxu0 0
      %1378 = vmatpush1.bf16.msra.mxu0 0
      %1379 = vmatprep.subr.bf16.mxu0 0
      %1380 = vmatpush1.bf16.msra.mxu0 0
      %1381 = vmatprep.subr.bf16.mxu0 0
      %1382 = vmatpush1.bf16.msra.mxu0 0
      %1383 = vmatprep.subr.bf16.mxu0 0
      %1384 = vmatpush1.bf16.msra.mxu0 0
      %1385 = vmatprep.subr.bf16.mxu0 0
      %1386 = vmatpush1.bf16.msra.mxu0 0
      %1387 = vmatprep.subr.bf16.mxu0 0
      %1388 = vmatpush1.bf16.msra.mxu0 0
      %1389 = vmatprep.subr.bf16.mxu0 0
      %1390 = vmatpush1.bf16.msra.mxu0 0
      %1391 = vmatprep.subr.bf16.mxu0 0
      %1392 = vmatpush1.bf16.msra.mxu0 0
      %1393 = vmatprep.subr.bf16.mxu0 0
      %1394 = vmatpush1.bf16.msra.mxu0 0
      %1395 = vmatprep.subr.bf16.mxu0 0
      %1396 = vmatpush1.bf16.msra.mxu0 0
      %1397 = vmatprep.subr.bf16.mxu0 0
      %1398 = vmatpush1.bf16.msra.mxu0 0
      %1399 = vmatprep.subr.bf16.mxu0 0
      %1400 = vmatpush1.bf16.msra.mxu0 0
      %1401 = vmatprep.subr.bf16.mxu0 0
      %1402 = vmatpush1.bf16.msra.mxu0 0
      %1403 = vmatprep.subr.bf16.mxu0 0
      %1404 = vmatpush1.bf16.msra.mxu0 0
      %1405 = vmatprep.subr.bf16.mxu0 0
      %1406 = vmatpush1.bf16.msra.mxu0 0
      %1407 = vmatprep.mubr.bf16.mxu0 0
      %1408 = vmatmul.mubr.bf16.gmra.mrb[0].mxu0 %v1373
      %v1409 = vpop.f32.mrb[0].mxu0
      %v1410 = vadd.f32 0.0, %v1409
      %v1411 = vpop.f32.mrb[0].mxu0
      %v1412 = vpop.f32.mrb[0].mxu0
      %v1413 = vadd.f32 0.0, %v1412
      %v1414 = vpop.f32.mrb[0].mxu0
      %1415 = vdwg.mxu0
      %v1416 = vpack.c.bf16 %v1413, %v1410
      %v1421 = vunpack.c.l.b16 %v743
      %v1422 = vunpack.c.l.b16 %v744
      %v1423 = vunpack.c.l.b16 %v745
      %v1424 = vunpack.c.l.b16 %v746
      %v1425 = vpack.c.b16 %v1422, %v1421
      %v1426 = vpack.c.b16 %v1424, %v1423
      %v1430 = vsel %vm751, %v1416, 0
      %1432 = vmatprep.subr.bf16.mxu0 0
      %1433 = vmatpush1.bf16.msra.mxu0 %v1425
      %1434 = vmatprep.subr.bf16.mxu0 0
      %1435 = vmatpush1.bf16.msra.mxu0 %v1426
      %1436 = vmatprep.subr.bf16.mxu0 0
      %1437 = vmatpush1.bf16.msra.mxu0 0
      %1438 = vmatprep.subr.bf16.mxu0 0
      %1439 = vmatpush1.bf16.msra.mxu0 0
      %1440 = vmatprep.subr.bf16.mxu0 0
      %1441 = vmatpush1.bf16.msra.mxu0 0
      %1442 = vmatprep.subr.bf16.mxu0 0
      %1443 = vmatpush1.bf16.msra.mxu0 0
      %1444 = vmatprep.subr.bf16.mxu0 0
      %1445 = vmatpush1.bf16.msra.mxu0 0
      %1446 = vmatprep.subr.bf16.mxu0 0
      %1447 = vmatpush1.bf16.msra.mxu0 0
      %1448 = vmatprep.subr.bf16.mxu0 0
      %1449 = vmatpush1.bf16.msra.mxu0 0
      %1450 = vmatprep.subr.bf16.mxu0 0
      %1451 = vmatpush1.bf16.msra.mxu0 0
      %1452 = vmatprep.subr.bf16.mxu0 0
      %1453 = vmatpush1.bf16.msra.mxu0 0
      %1454 = vmatprep.subr.bf16.mxu0 0
      %1455 = vmatpush1.bf16.msra.mxu0 0
      %1456 = vmatprep.subr.bf16.mxu0 0
      %1457 = vmatpush1.bf16.msra.mxu0 0
      %1458 = vmatprep.subr.bf16.mxu0 0
      %1459 = vmatpush1.bf16.msra.mxu0 0
      %1460 = vmatprep.subr.bf16.mxu0 0
      %1461 = vmatpush1.bf16.msra.mxu0 0
      %1462 = vmatprep.subr.bf16.mxu0 0
      %1463 = vmatpush1.bf16.msra.mxu0 0
      %1464 = vmatprep.mubr.bf16.mxu0 0
      %1465 = vmatmul.mubr.bf16.gmra.mrb[0].mxu0 %v1430
      %v1466 = vpop.f32.mrb[0].mxu0
      %v1467 = vadd.f32 0.0, %v1466
      %v1468 = vpop.f32.mrb[0].mxu0
      %v1469 = vpop.f32.mrb[0].mxu0
      %v1470 = vadd.f32 0.0, %v1469
      %v1471 = vpop.f32.mrb[0].mxu0
      %1472 = vdwg.mxu0
      %v1473 = vadd.f32 %v1293, %v1467
      %v1474 = vadd.f32 %v1294, %v1470
      %v1475 = vld [vmem:[%s8] sm:$0xff]
      %v1476 = vld [vmem:[%s8 + $0x8] sm:$0xff]
      %v1477 = vld [vmem:[%s8 + $0x10] sm:$0xff]
      %v1478 = vld [vmem:[%s8 + $0x18] sm:$0xff]
      %v1479 = vld [vmem:[%s8 + $0x20] sm:$0xff]
      %v1480 = vld [vmem:[%s8 + $0x28] sm:$0xff]
      %v1481 = vld [vmem:[%s8 + $0x30] sm:$0xff]
      %v1482 = vld [vmem:[%s8 + $0x38] sm:$0xff]
      %v1483 = vld [vmem:[%s8 + $0x40] sm:$0xff]
      %v1484 = vld [vmem:[%s8 + $0x48] sm:$0xff]
      %v1485 = vld [vmem:[%s8 + $0x50] sm:$0xff]
      %v1486 = vld [vmem:[%s8 + $0x58] sm:$0xff]
      %v1487 = vld [vmem:[%s8 + $0x60] sm:$0xff]
      %v1488 = vld [vmem:[%s8 + $0x68] sm:$0xff]
      %v1489 = vld [vmem:[%s8 + $0x70] sm:$0xff]
      %v1490 = vld [vmem:[%s8 + $0x78] sm:$0xff]
      %v1491 = vpack.c.bf16 %v1474, %v1473
      %v1492 = vld [vmem:[%s9] sm:$0xff]
      %v1493 = vld [vmem:[%s9 + $0x8] sm:$0xff]
      %v1494 = vld [vmem:[%s9 + $0x10] sm:$0xff]
      %v1495 = vld [vmem:[%s9 + $0x18] sm:$0xff]
      %v1496 = vld [vmem:[%s9 + $0x20] sm:$0xff]
      %v1497 = vld [vmem:[%s9 + $0x28] sm:$0xff]
      %v1498 = vld [vmem:[%s9 + $0x30] sm:$0xff]
      %v1499 = vld [vmem:[%s9 + $0x38] sm:$0xff]
      %v1500 = vld [vmem:[%s9 + $0x40] sm:$0xff]
      %v1501 = vld [vmem:[%s9 + $0x48] sm:$0xff]
      %v1502 = vld [vmem:[%s9 + $0x50] sm:$0xff]
      %v1503 = vld [vmem:[%s9 + $0x58] sm:$0xff]
      %v1504 = vld [vmem:[%s9 + $0x60] sm:$0xff]
      %v1505 = vld [vmem:[%s9 + $0x68] sm:$0xff]
      %v1506 = vld [vmem:[%s9 + $0x70] sm:$0xff]
      %v1507 = vld [vmem:[%s9 + $0x78] sm:$0xff]
      %v1524 = vunpack.c.l.b16 %v1492
      %v1525 = vunpack.c.h.b16 %v1492
      %v1526 = vunpack.c.l.b16 %v1493
      %v1527 = vunpack.c.h.b16 %v1493
      %v1528 = vunpack.c.l.b16 %v1494
      %v1529 = vunpack.c.h.b16 %v1494
      %v1530 = vunpack.c.l.b16 %v1495
      %v1531 = vunpack.c.h.b16 %v1495
      %v1532 = vunpack.c.l.b16 %v1496
      %v1533 = vunpack.c.h.b16 %v1496
      %v1534 = vunpack.c.l.b16 %v1497
      %v1535 = vunpack.c.h.b16 %v1497
      %v1536 = vunpack.c.l.b16 %v1498
      %v1537 = vunpack.c.h.b16 %v1498
      %v1538 = vunpack.c.l.b16 %v1499
      %v1539 = vunpack.c.h.b16 %v1499
      %v1540 = vunpack.c.l.b16 %v1500
      %v1541 = vunpack.c.h.b16 %v1500
      %v1542 = vunpack.c.l.b16 %v1501
      %v1543 = vunpack.c.h.b16 %v1501
      %v1544 = vunpack.c.l.b16 %v1502
      %v1545 = vunpack.c.h.b16 %v1502
      %v1546 = vunpack.c.l.b16 %v1503
      %v1547 = vunpack.c.h.b16 %v1503
      %v1548 = vunpack.c.l.b16 %v1504
      %v1549 = vunpack.c.h.b16 %v1504
      %v1550 = vunpack.c.l.b16 %v1505
      %v1551 = vunpack.c.h.b16 %v1505
      %v1552 = vunpack.c.l.b16 %v1506
      %v1553 = vunpack.c.h.b16 %v1506
      %v1554 = vunpack.c.l.b16 %v1507
      %v1555 = vunpack.c.h.b16 %v1507
      %v1556 = vpack.c.b16 %v1526, %v1524
      %v1557 = vpack.c.b16 %v1527, %v1525
      %v1558 = vpack.c.b16 %v1530, %v1528
      %v1559 = vpack.c.b16 %v1531, %v1529
      %v1560 = vpack.c.b16 %v1534, %v1532
      %v1561 = vpack.c.b16 %v1535, %v1533
      %v1562 = vpack.c.b16 %v1538, %v1536
      %v1563 = vpack.c.b16 %v1539, %v1537
      %v1564 = vpack.c.b16 %v1542, %v1540
      %v1565 = vpack.c.b16 %v1543, %v1541
      %v1566 = vpack.c.b16 %v1546, %v1544
      %v1567 = vpack.c.b16 %v1547, %v1545
      %v1568 = vpack.c.b16 %v1550, %v1548
      %v1569 = vpack.c.b16 %v1551, %v1549
      %v1570 = vpack.c.b16 %v1554, %v1552
      %v1571 = vpack.c.b16 %v1555, %v1553
      %1588 = vmatprep.subr.bf16.mxu0 %v1557
      %1589 = vmatpush1.bf16.msra.mxu0 %v1556
      %1590 = vmatprep.subr.bf16.mxu0 %v1559
      %1591 = vmatpush1.bf16.msra.mxu0 %v1558
      %1592 = vmatprep.subr.bf16.mxu0 %v1561
      %1593 = vmatpush1.bf16.msra.mxu0 %v1560
      %1594 = vmatprep.subr.bf16.mxu0 %v1563
      %1595 = vmatpush1.bf16.msra.mxu0 %v1562
      %1596 = vmatprep.subr.bf16.mxu0 %v1565
      %1597 = vmatpush1.bf16.msra.mxu0 %v1564
      %1598 = vmatprep.subr.bf16.mxu0 %v1567
      %1599 = vmatpush1.bf16.msra.mxu0 %v1566
      %1600 = vmatprep.subr.bf16.mxu0 %v1569
      %1601 = vmatpush1.bf16.msra.mxu0 %v1568
      %1602 = vmatprep.subr.bf16.mxu0 %v1571
      %1603 = vmatpush1.bf16.msra.mxu0 %v1570
      %1604 = vmatprep.subr.bf16.mxu0 0
      %1605 = vmatpush1.bf16.msra.mxu0 0
      %1606 = vmatprep.subr.bf16.mxu0 0
      %1607 = vmatpush1.bf16.msra.mxu0 0
      %1608 = vmatprep.subr.bf16.mxu0 0
      %1609 = vmatpush1.bf16.msra.mxu0 0
      %1610 = vmatprep.subr.bf16.mxu0 0
      %1611 = vmatpush1.bf16.msra.mxu0 0
      %1612 = vmatprep.subr.bf16.mxu0 0
      %1613 = vmatpush1.bf16.msra.mxu0 0
      %1614 = vmatprep.subr.bf16.mxu0 0
      %1615 = vmatpush1.bf16.msra.mxu0 0
      %1616 = vmatprep.subr.bf16.mxu0 0
      %1617 = vmatpush1.bf16.msra.mxu0 0
      %1618 = vmatprep.subr.bf16.mxu0 0
      %1619 = vmatpush1.bf16.msra.mxu0 0
      %1620 = vmatprep.mubr.bf16.mxu0 0
      %1621 = vmatmul.mubr.bf16.gmra.mrb[0].mxu0 %v1491
      %v1622 = vpop.f32.mrb[0].mxu0
      %v1623 = vadd.f32 0.0, %v1622
      %v1624 = vpop.f32.mrb[0].mxu0
      %v1625 = vadd.f32 0.0, %v1624
      %v1626 = vpop.f32.mrb[0].mxu0
      %v1627 = vadd.f32 0.0, %v1626
      %v1628 = vpop.f32.mrb[0].mxu0
      %v1629 = vadd.f32 0.0, %v1628
      %1630 = vdwg.mxu0
      %v1647 = vunpack.c.l.b16 %v1475
      %v1648 = vunpack.c.h.b16 %v1475
      %v1649 = vunpack.c.l.b16 %v1476
      %v1650 = vunpack.c.h.b16 %v1476
      %v1651 = vunpack.c.l.b16 %v1477
      %v1652 = vunpack.c.h.b16 %v1477
      %v1653 = vunpack.c.l.b16 %v1478
      %v1654 = vunpack.c.h.b16 %v1478
      %v1655 = vunpack.c.l.b16 %v1479
      %v1656 = vunpack.c.h.b16 %v1479
      %v1657 = vunpack.c.l.b16 %v1480
      %v1658 = vunpack.c.h.b16 %v1480
      %v1659 = vunpack.c.l.b16 %v1481
      %v1660 = vunpack.c.h.b16 %v1481
      %v1661 = vunpack.c.l.b16 %v1482
      %v1662 = vunpack.c.h.b16 %v1482
      %v1663 = vunpack.c.l.b16 %v1483
      %v1664 = vunpack.c.h.b16 %v1483
      %v1665 = vunpack.c.l.b16 %v1484
      %v1666 = vunpack.c.h.b16 %v1484
      %v1667 = vunpack.c.l.b16 %v1485
      %v1668 = vunpack.c.h.b16 %v1485
      %v1669 = vunpack.c.l.b16 %v1486
      %v1670 = vunpack.c.h.b16 %v1486
      %v1671 = vunpack.c.l.b16 %v1487
      %v1672 = vunpack.c.h.b16 %v1487
      %v1673 = vunpack.c.l.b16 %v1488
      %v1674 = vunpack.c.h.b16 %v1488
      %v1675 = vunpack.c.l.b16 %v1489
      %v1676 = vunpack.c.h.b16 %v1489
      %v1677 = vunpack.c.l.b16 %v1490
      %v1678 = vunpack.c.h.b16 %v1490
      %v1679 = vpack.c.b16 %v1649, %v1647
      %v1680 = vpack.c.b16 %v1650, %v1648
      %v1681 = vpack.c.b16 %v1653, %v1651
      %v1682 = vpack.c.b16 %v1654, %v1652
      %v1683 = vpack.c.b16 %v1657, %v1655
      %v1684 = vpack.c.b16 %v1658, %v1656
      %v1685 = vpack.c.b16 %v1661, %v1659
      %v1686 = vpack.c.b16 %v1662, %v1660
      %v1687 = vpack.c.b16 %v1665, %v1663
      %v1688 = vpack.c.b16 %v1666, %v1664
      %v1689 = vpack.c.b16 %v1669, %v1667
      %v1690 = vpack.c.b16 %v1670, %v1668
      %v1691 = vpack.c.b16 %v1673, %v1671
      %v1692 = vpack.c.b16 %v1674, %v1672
      %v1693 = vpack.c.b16 %v1677, %v1675
      %v1694 = vpack.c.b16 %v1678, %v1676
      %1711 = vmatprep.subr.bf16.mxu0 %v1680
      %1712 = vmatpush1.bf16.msra.mxu0 %v1679
      %1713 = vmatprep.subr.bf16.mxu0 %v1682
      %1714 = vmatpush1.bf16.msra.mxu0 %v1681
      %1715 = vmatprep.subr.bf16.mxu0 %v1684
      %1716 = vmatpush1.bf16.msra.mxu0 %v1683
      %1717 = vmatprep.subr.bf16.mxu0 %v1686
      %1718 = vmatpush1.bf16.msra.mxu0 %v1685
      %1719 = vmatprep.subr.bf16.mxu0 %v1688
      %1720 = vmatpush1.bf16.msra.mxu0 %v1687
      %1721 = vmatprep.subr.bf16.mxu0 %v1690
      %1722 = vmatpush1.bf16.msra.mxu0 %v1689
      %1723 = vmatprep.subr.bf16.mxu0 %v1692
      %1724 = vmatpush1.bf16.msra.mxu0 %v1691
      %1725 = vmatprep.subr.bf16.mxu0 %v1694
      %1726 = vmatpush1.bf16.msra.mxu0 %v1693
      %1727 = vmatprep.subr.bf16.mxu0 0
      %1728 = vmatpush1.bf16.msra.mxu0 0
      %1729 = vmatprep.subr.bf16.mxu0 0
      %1730 = vmatpush1.bf16.msra.mxu0 0
      %1731 = vmatprep.subr.bf16.mxu0 0
      %1732 = vmatpush1.bf16.msra.mxu0 0
      %1733 = vmatprep.subr.bf16.mxu0 0
      %1734 = vmatpush1.bf16.msra.mxu0 0
      %1735 = vmatprep.subr.bf16.mxu0 0
      %1736 = vmatpush1.bf16.msra.mxu0 0
      %1737 = vmatprep.subr.bf16.mxu0 0
      %1738 = vmatpush1.bf16.msra.mxu0 0
      %1739 = vmatprep.subr.bf16.mxu0 0
      %1740 = vmatpush1.bf16.msra.mxu0 0
      %1741 = vmatprep.subr.bf16.mxu0 0
      %1742 = vmatpush1.bf16.msra.mxu0 0
      %1743 = vmatprep.mubr.bf16.mxu0 0
      %1744 = vmatmul.mubr.bf16.gmra.mrb[0].mxu0 %v464
      %v1745 = vpop.f32.mrb[0].mxu0
      %v1746 = vadd.f32 %v1623, %v1745
      %v1747 = vpop.f32.mrb[0].mxu0
      %v1748 = vadd.f32 %v1625, %v1747
      %v1749 = vpop.f32.mrb[0].mxu0
      %v1750 = vadd.f32 %v1627, %v1749
      %v1751 = vpop.f32.mrb[0].mxu0
      %v1752 = vadd.f32 %v1629, %v1751
      %1753 = vdwg.mxu0
      %v1754 = vld [vmem:[%s10] sm:$0x3]
      %v1756 = vlaneseq
      %v1757 = vshrl.u32 %v1756, 7
      %v1758 = vsub.s32 0, %v1757
      %v1759 = vrot.slane %v1754, %v1758
      %v1760 = vlaneseq
      %v1761 = vshrl.u32 %v1760, 7
      %v1762 = vsub.s32 1, %v1761
      %v1763 = vrot.slane %v1754, %v1762
      %v1766 = vadd.f32 %v1746, %v1759
      %v1767 = vadd.f32 %v1748, %v1763
      %v1768 = vadd.f32 %v1750, %v1759
      %v1769 = vadd.f32 %v1752, %v1763
      %v1770 = vadd.f32 %v1766, %v1768
      %v1771 = vrot.slane %v1770, 4
      %v1772 = vadd.f32 %v1770, %v1771
      %v1773 = vrot.slane %v1772, 2
      %v1774 = vadd.f32 %v1772, %v1773
      %v1775 = vrot.slane %v1774, 1
      %v1776 = vadd.f32 %v1774, %v1775
      %v1777 = vadd.f32 %v1767, %v1769
      %v1778 = vrot.slane %v1777, 4
      %v1779 = vadd.f32 %v1777, %v1778
      %v1780 = vrot.slane %v1779, 2
      %v1781 = vadd.f32 %v1779, %v1780
      %v1782 = vrot.slane %v1781, 1
      %v1783 = vadd.f32 %v1781, %v1782
      %v1784 = vrcp.pop 16.0
      %v1785 = vmul.f32 %v1776, %v1784
      %v1786 = vmul.f32 %v1783, %v1784
      %v1787 = vsub.f32 %v1766, %v1785
      %v1788 = vsub.f32 %v1767, %v1786
      %v1789 = vsub.f32 %v1768, %v1785
      %v1790 = vsub.f32 %v1769, %v1786
      %v1791 = vmul.f32 %v1787, %v1787
      %v1792 = vmul.f32 %v1788, %v1788
      %v1793 = vmul.f32 %v1789, %v1789
      %v1794 = vmul.f32 %v1790, %v1790
      %v1795 = vadd.f32 %v1791, %v1793
      %v1796 = vrot.slane %v1795, 4
      %v1797 = vadd.f32 %v1795, %v1796
      %v1798 = vrot.slane %v1797, 2
      %v1799 = vadd.f32 %v1797, %v1798
      %v1800 = vrot.slane %v1799, 1
      %v1801 = vadd.f32 %v1799, %v1800
      %v1802 = vadd.f32 %v1792, %v1794
      %v1803 = vrot.slane %v1802, 4
      %v1804 = vadd.f32 %v1802, %v1803
      %v1805 = vrot.slane %v1804, 2
      %v1806 = vadd.f32 %v1804, %v1805
      %v1807 = vrot.slane %v1806, 1
      %v1808 = vadd.f32 %v1806, %v1807
      %v1809 = vmul.f32 %v1801, %v1784
      %v1810 = vmul.f32 %v1808, %v1784
      %v1811 = vadd.f32 %v1809, 1e-05
      %v1812 = vadd.f32 %v1810, 1e-05
      %v1813 = vrsqrt.pop %v1811
      %v1814 = vrsqrt.pop %v1812
      %v1815 = vmul.f32 %v1787, %v1813
      %v1816 = vmul.f32 %v1788, %v1814
      %v1817 = vmul.f32 %v1789, %v1813
      %v1818 = vmul.f32 %v1790, %v1814
      %v1819 = vmax.f32 %v1815, 0.0
      %v1820 = vmax.f32 %v1816, 0.0
      %v1821 = vmax.f32 %v1817, 0.0
      %v1822 = vmax.f32 %v1818, 0.0
      %v1823 = vpack.c.bf16 %v1821, %v1819
      %v1824 = vpack.c.bf16 %v1822, %v1820
      %v1825 = vld [vmem:[%s11] sm:$0xf]
      %v1826 = vld [vmem:[%s11 + $0x4] sm:$0xf]
      %v1827 = vld [vmem:[%s11 + $0x8] sm:$0xf]
      %v1828 = vld [vmem:[%s11 + $0xc] sm:$0xf]
      %v1829 = vld [vmem:[%s11 + $0x10] sm:$0xf]
      %v1830 = vld [vmem:[%s11 + $0x14] sm:$0xf]
      %v1831 = vld [vmem:[%s11 + $0x18] sm:$0xf]
      %v1832 = vld [vmem:[%s11 + $0x1c] sm:$0xf]
      %v1833 = vld [vmem:[%s11 + $0x20] sm:$0xf]
      %v1834 = vld [vmem:[%s11 + $0x24] sm:$0xf]
      %v1835 = vld [vmem:[%s11 + $0x28] sm:$0xf]
      %v1836 = vld [vmem:[%s11 + $0x2c] sm:$0xf]
      %v1837 = vld [vmem:[%s11 + $0x30] sm:$0xf]
      %v1838 = vld [vmem:[%s11 + $0x34] sm:$0xf]
      %v1839 = vld [vmem:[%s11 + $0x38] sm:$0xf]
      %v1840 = vld [vmem:[%s11 + $0x3c] sm:$0xf]
      %v1841 = vld [vmem:[%s11 + $0x40] sm:$0xf]
      %v1842 = vld [vmem:[%s11 + $0x44] sm:$0xf]
      %v1843 = vld [vmem:[%s11 + $0x48] sm:$0xf]
      %v1844 = vld [vmem:[%s11 + $0x4c] sm:$0xf]
      %v1845 = vld [vmem:[%s11 + $0x50] sm:$0xf]
      %v1846 = vld [vmem:[%s11 + $0x54] sm:$0xf]
      %v1847 = vld [vmem:[%s11 + $0x58] sm:$0xf]
      %v1848 = vld [vmem:[%s11 + $0x5c] sm:$0xf]
      %v1849 = vld [vmem:[%s11 + $0x60] sm:$0xf]
      %v1850 = vld [vmem:[%s11 + $0x64] sm:$0xf]
      %v1851 = vld [vmem:[%s11 + $0x68] sm:$0xf]
      %v1852 = vld [vmem:[%s11 + $0x6c] sm:$0xf]
      %v1853 = vld [vmem:[%s11 + $0x70] sm:$0xf]
      %v1854 = vld [vmem:[%s11 + $0x74] sm:$0xf]
      %v1855 = vld [vmem:[%s11 + $0x78] sm:$0xf]
      %v1856 = vld [vmem:[%s11 + $0x7c] sm:$0xf]
      %v1857 = vld [vmem:[%s12] sm:$0x1]
      %v1859 = vlaneseq
      %v1860 = vshrl.u32 %v1859, 7
      %v1861 = vsub.s32 0, %v1860
      %v1862 = vrot.slane %v1857, %v1861
      %v1896 = vunpack.c.l.b16 %v1825
      %v1897 = vunpack.c.l.b16 %v1826
      %v1898 = vunpack.c.l.b16 %v1827
      %v1899 = vunpack.c.l.b16 %v1828
      %v1900 = vunpack.c.l.b16 %v1829
      %v1901 = vunpack.c.l.b16 %v1830
      %v1902 = vunpack.c.l.b16 %v1831
      %v1903 = vunpack.c.l.b16 %v1832
      %v1904 = vunpack.c.l.b16 %v1833
      %v1905 = vunpack.c.l.b16 %v1834
      %v1906 = vunpack.c.l.b16 %v1835
      %v1907 = vunpack.c.l.b16 %v1836
      %v1908 = vunpack.c.l.b16 %v1837
      %v1909 = vunpack.c.l.b16 %v1838
      %v1910 = vunpack.c.l.b16 %v1839
      %v1911 = vunpack.c.l.b16 %v1840
      %v1912 = vunpack.c.l.b16 %v1841
      %v1913 = vunpack.c.l.b16 %v1842
      %v1914 = vunpack.c.l.b16 %v1843
      %v1915 = vunpack.c.l.b16 %v1844
      %v1916 = vunpack.c.l.b16 %v1845
      %v1917 = vunpack.c.l.b16 %v1846
      %v1918 = vunpack.c.l.b16 %v1847
      %v1919 = vunpack.c.l.b16 %v1848
      %v1920 = vunpack.c.l.b16 %v1849
      %v1921 = vunpack.c.l.b16 %v1850
      %v1922 = vunpack.c.l.b16 %v1851
      %v1923 = vunpack.c.l.b16 %v1852
      %v1924 = vunpack.c.l.b16 %v1853
      %v1925 = vunpack.c.l.b16 %v1854
      %v1926 = vunpack.c.l.b16 %v1855
      %v1927 = vunpack.c.l.b16 %v1856
      %v1928 = vpack.c.b16 %v1897, %v1896
      %v1929 = vpack.c.b16 %v1899, %v1898
      %v1930 = vpack.c.b16 %v1901, %v1900
      %v1931 = vpack.c.b16 %v1903, %v1902
      %v1932 = vpack.c.b16 %v1905, %v1904
      %v1933 = vpack.c.b16 %v1907, %v1906
      %v1934 = vpack.c.b16 %v1909, %v1908
      %v1935 = vpack.c.b16 %v1911, %v1910
      %v1936 = vpack.c.b16 %v1913, %v1912
      %v1937 = vpack.c.b16 %v1915, %v1914
      %v1938 = vpack.c.b16 %v1917, %v1916
      %v1939 = vpack.c.b16 %v1919, %v1918
      %v1940 = vpack.c.b16 %v1921, %v1920
      %v1941 = vpack.c.b16 %v1923, %v1922
      %v1942 = vpack.c.b16 %v1925, %v1924
      %v1943 = vpack.c.b16 %v1927, %v1926
      %1960 = vmatprep.subr.bf16.mxu0 0
      %1961 = vmatpush1.bf16.msra.mxu0 %v1928
      %1962 = vmatprep.subr.bf16.mxu0 0
      %1963 = vmatpush1.bf16.msra.mxu0 %v1929
      %1964 = vmatprep.subr.bf16.mxu0 0
      %1965 = vmatpush1.bf16.msra.mxu0 %v1930
      %1966 = vmatprep.subr.bf16.mxu0 0
      %1967 = vmatpush1.bf16.msra.mxu0 %v1931
      %1968 = vmatprep.subr.bf16.mxu0 0
      %1969 = vmatpush1.bf16.msra.mxu0 %v1932
      %1970 = vmatprep.subr.bf16.mxu0 0
      %1971 = vmatpush1.bf16.msra.mxu0 %v1933
      %1972 = vmatprep.subr.bf16.mxu0 0
      %1973 = vmatpush1.bf16.msra.mxu0 %v1934
      %1974 = vmatprep.subr.bf16.mxu0 0
      %1975 = vmatpush1.bf16.msra.mxu0 %v1935
      %1976 = vmatprep.subr.bf16.mxu0 0
      %1977 = vmatpush1.bf16.msra.mxu0 %v1936
      %1978 = vmatprep.subr.bf16.mxu0 0
      %1979 = vmatpush1.bf16.msra.mxu0 %v1937
      %1980 = vmatprep.subr.bf16.mxu0 0
      %1981 = vmatpush1.bf16.msra.mxu0 %v1938
      %1982 = vmatprep.subr.bf16.mxu0 0
      %1983 = vmatpush1.bf16.msra.mxu0 %v1939
      %1984 = vmatprep.subr.bf16.mxu0 0
      %1985 = vmatpush1.bf16.msra.mxu0 %v1940
      %1986 = vmatprep.subr.bf16.mxu0 0
      %1987 = vmatpush1.bf16.msra.mxu0 %v1941
      %1988 = vmatprep.subr.bf16.mxu0 0
      %1989 = vmatpush1.bf16.msra.mxu0 %v1942
      %1990 = vmatprep.subr.bf16.mxu0 0
      %1991 = vmatpush1.bf16.msra.mxu0 %v1943
      %1992 = vmatprep.mubr.bf16.mxu0 %v1824
      %1993 = vmatmul.mubr.bf16.gmra.mrb[0].mxu0 %v1823
      %v1994 = vpop.f32.mrb[0].mxu0
      %v1995 = vadd.f32 %v1862, %v1994
      %v1996 = vpop.f32.mrb[0].mxu0
      %v1997 = vpop.f32.mrb[0].mxu0
      %v1998 = vadd.f32 %v1862, %v1997
      %v1999 = vpop.f32.mrb[0].mxu0
      %2000 = vdwg.mxu0
      %v2001 = vadd.f32 %v462, %v1995
      %v2002 = vadd.f32 %v463, %v1998
      %2003 = vst [vmem:[%s460] sm:$0xff] %v2001
      %2004 = vst [vmem:[%s460 + $0x8] sm:$0xff] %v2002
      %p2005 = scmp.lt.s32.totalorder %s24, 1
      %s2006 = scalar_select %p2005, %s24, 1
      %s2007 = smul.addr %s2006, 2
      %s2008 = smul.addr %s2007, 8
      %s2009 = scalar_lea.vmem %s13, %s2008
      // Predicated region
      $region73: #{_lambda_.26} parent=71 // pred_check
        %p2010 = pneg %p325
      $region74: #{_lambda_.26} parent=71 // pred_check_branch
        %2012 = sbr.rel (%p2010) target = $region76
      $region75: #{_lambda_.26} parent=71 // pred_region
        _
      $region76: #{_lambda_.26} parent=71 // pred_fallthru
        _
    $region72: #{_lambda_.26} parent=5 // pred_fallthru
      _
    %p2013 = scmp.le.s32.totalorder 2, %s19
    // Predicated region
    $region77: #{_lambda_.26} parent=5 // pred_check
      %p2014 = pneg %p2013
    $region78: #{_lambda_.26} parent=5 // pred_check_branch
      %2016 = sbr.rel (%p2014) target = $region80
    $region79: #{_lambda_.26} parent=5 // pred_region
      %s2017 = ssub.s32 %s19, 2
      // Predicated region
      $region81: #{_lambda_.26} parent=79 // pred_check
        %p2018 = pneg %p331
      $region82: #{_lambda_.26} parent=79 // pred_check_branch
        %2020 = sbr.rel (%p2018) target = $region84
      $region83: #{_lambda_.26} parent=79 // pred_region
        %p2021 = scmp.lt.s32.totalorder %s25, 1
        %s2022 = scalar_select %p2021, %s25, 1
        %s2023 = smul.addr %s2022, 2
        %s2024 = smul.addr %s2023, 8
        %s2025 = scalar_lea.vmem %s13, %s2024
      $region84: #{_lambda_.26} parent=79 // pred_fallthru
        _
    $region80: #{_lambda_.26} parent=5 // pred_fallthru
      _
  $region6: #{_lambda_.26} parent=0 // loop_footer
    %s23 = sadd.s32 1, %s19
  $region7: #{_lambda_.26} parent=0 // loop_footer_branch
    %18 = sbr.rel target = $region3
  $region8: #{_lambda_.26} parent=0 // loop_exit
    _

// kernel: _lambda_.27
$region0: #{_lambda_.27}
  #allocation0 [shape = 'u32[]', space=smem, size = 0x4, offset = 0x4, fixed_abs, tag = 'smem constant byte address 0x4 - core index']
  #allocation1 [shape = 'u32[144,128]{1,0:T(1,128)}', space=vmem, size = 0x12000, scoped, tag = 'internal scratch']
  %s0 = inlined_call_operand.vmem [shape: f32[2,16,128], index: 0, kind: input, shape index: {}]
  %s1 = inlined_call_operand.vmem [shape: f32[2,16,128], index: 1, kind: input, shape index: {}]
  %s2 = inlined_call_operand.vmem [shape: bf16[128,128], index: 2, kind: input, shape index: {}]
  %s3 = inlined_call_operand.vmem [shape: f32[1,128], index: 3, kind: input, shape index: {}]
  %s4 = inlined_call_operand.vmem [shape: bf16[128,256], index: 4, kind: input, shape index: {}]
  %s5 = inlined_call_operand.vmem [shape: f32[1,256], index: 5, kind: input, shape index: {}]
  %s6 = inlined_call_operand.vmem [shape: bf16[128,128], index: 6, kind: input, shape index: {}]
  %s7 = inlined_call_operand.vmem [shape: f32[1,128], index: 7, kind: input, shape index: {}]
  %s8 = inlined_call_operand.vmem [shape: bf16[128,256], index: 8, kind: input, shape index: {}]
  %s9 = inlined_call_operand.vmem [shape: bf16[128,256], index: 9, kind: input, shape index: {}]
  %s10 = inlined_call_operand.vmem [shape: f32[1,256], index: 10, kind: input, shape index: {}]
  %s11 = inlined_call_operand.vmem [shape: bf16[256,128], index: 11, kind: input, shape index: {}]
  %s12 = inlined_call_operand.vmem [shape: f32[1,128], index: 12, kind: input, shape index: {}]
  %s13 = inlined_call_operand.hbm [shape: f32[2,16,128], index: 13, kind: output, shape index: {}]
  %s14 = sld [smem:[#allocation0]]
  $region85: #{_lambda_.27} parent=0
    _
  %s16 = ssub.s32 1, %s14
  %s17 = scalar_select 0, %s16, %s14
  $region1: #{_lambda_.27} parent=0
    #allocation2 [shape = 'u8[16384]{0}', space=vmem, size = 0x4000, scoped, tag = 'output window, operand 0']
    #allocation3 [shape = 's32[2]{0}', space=sflag, size = 0x8, scoped, tag = 'scoped memory for _lambda_.27']
    %18 = vsyncpa [#allocation3], 0
    %s19 = scalar_lea.sflag [#allocation3], 1
    %20 = vsyncpa %s19, 0
    loop: start=0, step=1, limit=4
    $region2: #{_lambda_.27} parent=1 // loop_pre_header
      _
    $region3: #{_lambda_.27} parent=1 // loop_header
      %s22 = sphi 0, %s26
      %p23 = scmp.ge.s32.totalorder %s22, 4
      %s32 = sphi 0, %s34
      %s35 = sphi 0, %s32
      %s36 = sphi 0, %s35
      %s52 = sphi 0, %s36
      %s58 = sphi 0, %s60
      %s61 = sphi 0, %s58
      %s62 = sphi 0, %s61
      %s78 = sphi 0, %s62
      %s82 = sphi 0, %s82
      %s84 = sphi 0, %s82
      %s85 = sphi 0, %s84
      %s99 = sphi 0, %s85
      %s103 = sphi 0, %s103
      %s105 = sphi 0, %s103
      %s106 = sphi 0, %s105
      %s120 = sphi 0, %s106
      %s124 = sphi 0, %s124
      %s126 = sphi 0, %s124
      %s127 = sphi 0, %s126
      %s141 = sphi 0, %s127
      %s145 = sphi 0, %s145
      %s147 = sphi 0, %s145
      %s148 = sphi 0, %s147
      %s162 = sphi 0, %s148
      %s166 = sphi 0, %s166
      %s168 = sphi 0, %s166
      %s169 = sphi 0, %s168
      %s183 = sphi 0, %s169
      %s187 = sphi 0, %s187
      %s189 = sphi 0, %s187
      %s190 = sphi 0, %s189
      %s204 = sphi 0, %s190
      %s208 = sphi 0, %s208
      %s210 = sphi 0, %s208
      %s211 = sphi 0, %s210
      %s225 = sphi 0, %s211
      %s229 = sphi 0, %s229
      %s231 = sphi 0, %s229
      %s232 = sphi 0, %s231
      %s246 = sphi 0, %s232
      %s250 = sphi 0, %s250
      %s252 = sphi 0, %s250
      %s253 = sphi 0, %s252
      %s267 = sphi 0, %s253
      %s271 = sphi 0, %s271
      %s273 = sphi 0, %s271
      %s274 = sphi 0, %s273
      %s288 = sphi 0, %s274
      %s292 = sphi 0, %s292
      %s294 = sphi 0, %s292
      %s295 = sphi 0, %s294
      %s309 = sphi 0, %s295
      %s315 = sphi 0, %s317
      %s318 = sphi 0, %s315
      %s319 = sphi 0, %s318
      %s335 = sphi 0, %s319
    $region4: #{_lambda_.27} parent=1 // loop_header_branch
      %25 = sbr.rel (%p23) target = $region8
    $region5: #{_lambda_.27} parent=1 // loop_body
      %s27 = ssub.s32 %s22, 1
      %s28 = ssub.s32 %s22, 2
      %s29 = sadd.s32 %s22, 1
      %s30 = ssub.s32 %s22, %s29
      %p31 = scmp.eq.s32.totalorder %s30, 0
      %s33 = sadd.s32 %s32, 1
      %s34 = scalar_select %p31, %s32, %s33
      %p37 = pneg %p31
      %p38 = scmp.eq.s32.totalorder %s22, 1
      %p39 = por %p37, %p38
      %p40 = scmp.ne.s32.totalorder %s32, %s35
      %p41 = scmp.eq.s32.totalorder %s22, 0
      %p42 = por %p40, %p41
      %p43 = scmp.ne.s32.totalorder %s32, %s35
      %p44 = scmp.eq.s32.totalorder %s27, 1
      %p45 = por %p43, %p44
      %p46 = scmp.ne.s32.totalorder %s35, %s36
      %p47 = scmp.eq.s32.totalorder %s27, 0
      %p48 = por %p46, %p47
      %p49 = scmp.ne.s32.totalorder %s35, %s36
      %p50 = scmp.eq.s32.totalorder %s28, 1
      %p51 = por %p49, %p50
      %p53 = scmp.ne.s32.totalorder %s36, %s52
      %p54 = scmp.eq.s32.totalorder %s28, 0
      %p55 = por %p53, %p54
      %s56 = ssub.s32 %s22, %s29
      %p57 = scmp.eq.s32.totalorder %s56, 0
      %s59 = sadd.s32 %s58, 1
      %s60 = scalar_select %p57, %s58, %s59
      %p63 = pneg %p57
      %p64 = scmp.eq.s32.totalorder %s22, 1
      %p65 = por %p63, %p64
      %p66 = scmp.ne.s32.totalorder %s58, %s61
      %p67 = scmp.eq.s32.totalorder %s22, 0
      %p68 = por %p66, %p67
      %p69 = scmp.ne.s32.totalorder %s58, %s61
      %p70 = scmp.eq.s32.totalorder %s27, 1
      %p71 = por %p69, %p70
      %p72 = scmp.ne.s32.totalorder %s61, %s62
      %p73 = scmp.eq.s32.totalorder %s27, 0
      %p74 = por %p72, %p73
      %p75 = scmp.ne.s32.totalorder %s61, %s62
      %p76 = scmp.eq.s32.totalorder %s28, 1
      %p77 = por %p75, %p76
      %p79 = scmp.ne.s32.totalorder %s62, %s78
      %p80 = scmp.eq.s32.totalorder %s28, 0
      %p81 = por %p79, %p80
      %s83 = sadd.s32 %s82, 1
      %p86 = scmp.eq.s32.totalorder %s22, 1
      %p87 = scmp.ne.s32.totalorder %s82, %s84
      %p88 = scmp.eq.s32.totalorder %s22, 0
      %p89 = por %p87, %p88
      %p90 = scmp.ne.s32.totalorder %s82, %s84
      %p91 = scmp.eq.s32.totalorder %s27, 1
      %p92 = por %p90, %p91
      %p93 = scmp.ne.s32.totalorder %s84, %s85
      %p94 = scmp.eq.s32.totalorder %s27, 0
      %p95 = por %p93, %p94
      %p96 = scmp.ne.s32.totalorder %s84, %s85
      %p97 = scmp.eq.s32.totalorder %s28, 1
      %p98 = por %p96, %p97
      %p100 = scmp.ne.s32.totalorder %s85, %s99
      %p101 = scmp.eq.s32.totalorder %s28, 0
      %p102 = por %p100, %p101
      %s104 = sadd.s32 %s103, 1
      %p107 = scmp.eq.s32.totalorder %s22, 1
      %p108 = scmp.ne.s32.totalorder %s103, %s105
      %p109 = scmp.eq.s32.totalorder %s22, 0
      %p110 = por %p108, %p109
      %p111 = scmp.ne.s32.totalorder %s103, %s105
      %p112 = scmp.eq.s32.totalorder %s27, 1
      %p113 = por %p111, %p112
      %p114 = scmp.ne.s32.totalorder %s105, %s106
      %p115 = scmp.eq.s32.totalorder %s27, 0
      %p116 = por %p114, %p115
      %p117 = scmp.ne.s32.totalorder %s105, %s106
      %p118 = scmp.eq.s32.totalorder %s28, 1
      %p119 = por %p117, %p118
      %p121 = scmp.ne.s32.totalorder %s106, %s120
      %p122 = scmp.eq.s32.totalorder %s28, 0
      %p123 = por %p121, %p122
      %s125 = sadd.s32 %s124, 1
      %p128 = scmp.eq.s32.totalorder %s22, 1
      %p129 = scmp.ne.s32.totalorder %s124, %s126
      %p130 = scmp.eq.s32.totalorder %s22, 0
      %p131 = por %p129, %p130
      %p132 = scmp.ne.s32.totalorder %s124, %s126
      %p133 = scmp.eq.s32.totalorder %s27, 1
      %p134 = por %p132, %p133
      %p135 = scmp.ne.s32.totalorder %s126, %s127
      %p136 = scmp.eq.s32.totalorder %s27, 0
      %p137 = por %p135, %p136
      %p138 = scmp.ne.s32.totalorder %s126, %s127
      %p139 = scmp.eq.s32.totalorder %s28, 1
      %p140 = por %p138, %p139
      %p142 = scmp.ne.s32.totalorder %s127, %s141
      %p143 = scmp.eq.s32.totalorder %s28, 0
      %p144 = por %p142, %p143
      %s146 = sadd.s32 %s145, 1
      %p149 = scmp.eq.s32.totalorder %s22, 1
      %p150 = scmp.ne.s32.totalorder %s145, %s147
      %p151 = scmp.eq.s32.totalorder %s22, 0
      %p152 = por %p150, %p151
      %p153 = scmp.ne.s32.totalorder %s145, %s147
      %p154 = scmp.eq.s32.totalorder %s27, 1
      %p155 = por %p153, %p154
      %p156 = scmp.ne.s32.totalorder %s147, %s148
      %p157 = scmp.eq.s32.totalorder %s27, 0
      %p158 = por %p156, %p157
      %p159 = scmp.ne.s32.totalorder %s147, %s148
      %p160 = scmp.eq.s32.totalorder %s28, 1
      %p161 = por %p159, %p160
      %p163 = scmp.ne.s32.totalorder %s148, %s162
      %p164 = scmp.eq.s32.totalorder %s28, 0
      %p165 = por %p163, %p164
      %s167 = sadd.s32 %s166, 1
      %p170 = scmp.eq.s32.totalorder %s22, 1
      %p171 = scmp.ne.s32.totalorder %s166, %s168
      %p172 = scmp.eq.s32.totalorder %s22, 0
      %p173 = por %p171, %p172
      %p174 = scmp.ne.s32.totalorder %s166, %s168
      %p175 = scmp.eq.s32.totalorder %s27, 1
      %p176 = por %p174, %p175
      %p177 = scmp.ne.s32.totalorder %s168, %s169
      %p178 = scmp.eq.s32.totalorder %s27, 0
      %p179 = por %p177, %p178
      %p180 = scmp.ne.s32.totalorder %s168, %s169
      %p181 = scmp.eq.s32.totalorder %s28, 1
      %p182 = por %p180, %p181
      %p184 = scmp.ne.s32.totalorder %s169, %s183
      %p185 = scmp.eq.s32.totalorder %s28, 0
      %p186 = por %p184, %p185
      %s188 = sadd.s32 %s187, 1
      %p191 = scmp.eq.s32.totalorder %s22, 1
      %p192 = scmp.ne.s32.totalorder %s187, %s189
      %p193 = scmp.eq.s32.totalorder %s22, 0
      %p194 = por %p192, %p193
      %p195 = scmp.ne.s32.totalorder %s187, %s189
      %p196 = scmp.eq.s32.totalorder %s27, 1
      %p197 = por %p195, %p196
      %p198 = scmp.ne.s32.totalorder %s189, %s190
      %p199 = scmp.eq.s32.totalorder %s27, 0
      %p200 = por %p198, %p199
      %p201 = scmp.ne.s32.totalorder %s189, %s190
      %p202 = scmp.eq.s32.totalorder %s28, 1
      %p203 = por %p201, %p202
      %p205 = scmp.ne.s32.totalorder %s190, %s204
      %p206 = scmp.eq.s32.totalorder %s28, 0
      %p207 = por %p205, %p206
      %s209 = sadd.s32 %s208, 1
      %p212 = scmp.eq.s32.totalorder %s22, 1
      %p213 = scmp.ne.s32.totalorder %s208, %s210
      %p214 = scmp.eq.s32.totalorder %s22, 0
      %p215 = por %p213, %p214
      %p216 = scmp.ne.s32.totalorder %s208, %s210
      %p217 = scmp.eq.s32.totalorder %s27, 1
      %p218 = por %p216, %p217
      %p219 = scmp.ne.s32.totalorder %s210, %s211
      %p220 = scmp.eq.s32.totalorder %s27, 0
      %p221 = por %p219, %p220
      %p222 = scmp.ne.s32.totalorder %s210, %s211
      %p223 = scmp.eq.s32.totalorder %s28, 1
      %p224 = por %p222, %p223
      %p226 = scmp.ne.s32.totalorder %s211, %s225
      %p227 = scmp.eq.s32.totalorder %s28, 0
      %p228 = por %p226, %p227
      %s230 = sadd.s32 %s229, 1
      %p233 = scmp.eq.s32.totalorder %s22, 1
      %p234 = scmp.ne.s32.totalorder %s229, %s231
      %p235 = scmp.eq.s32.totalorder %s22, 0
      %p236 = por %p234, %p235
      %p237 = scmp.ne.s32.totalorder %s229, %s231
      %p238 = scmp.eq.s32.totalorder %s27, 1
      %p239 = por %p237, %p238
      %p240 = scmp.ne.s32.totalorder %s231, %s232
      %p241 = scmp.eq.s32.totalorder %s27, 0
      %p242 = por %p240, %p241
      %p243 = scmp.ne.s32.totalorder %s231, %s232
      %p244 = scmp.eq.s32.totalorder %s28, 1
      %p245 = por %p243, %p244
      %p247 = scmp.ne.s32.totalorder %s232, %s246
      %p248 = scmp.eq.s32.totalorder %s28, 0
      %p249 = por %p247, %p248
      %s251 = sadd.s32 %s250, 1
      %p254 = scmp.eq.s32.totalorder %s22, 1
      %p255 = scmp.ne.s32.totalorder %s250, %s252
      %p256 = scmp.eq.s32.totalorder %s22, 0
      %p257 = por %p255, %p256
      %p258 = scmp.ne.s32.totalorder %s250, %s252
      %p259 = scmp.eq.s32.totalorder %s27, 1
      %p260 = por %p258, %p259
      %p261 = scmp.ne.s32.totalorder %s252, %s253
      %p262 = scmp.eq.s32.totalorder %s27, 0
      %p263 = por %p261, %p262
      %p264 = scmp.ne.s32.totalorder %s252, %s253
      %p265 = scmp.eq.s32.totalorder %s28, 1
      %p266 = por %p264, %p265
      %p268 = scmp.ne.s32.totalorder %s253, %s267
      %p269 = scmp.eq.s32.totalorder %s28, 0
      %p270 = por %p268, %p269
      %s272 = sadd.s32 %s271, 1
      %p275 = scmp.eq.s32.totalorder %s22, 1
      %p276 = scmp.ne.s32.totalorder %s271, %s273
      %p277 = scmp.eq.s32.totalorder %s22, 0
      %p278 = por %p276, %p277
      %p279 = scmp.ne.s32.totalorder %s271, %s273
      %p280 = scmp.eq.s32.totalorder %s27, 1
      %p281 = por %p279, %p280
      %p282 = scmp.ne.s32.totalorder %s273, %s274
      %p283 = scmp.eq.s32.totalorder %s27, 0
      %p284 = por %p282, %p283
      %p285 = scmp.ne.s32.totalorder %s273, %s274
      %p286 = scmp.eq.s32.totalorder %s28, 1
      %p287 = por %p285, %p286
      %p289 = scmp.ne.s32.totalorder %s274, %s288
      %p290 = scmp.eq.s32.totalorder %s28, 0
      %p291 = por %p289, %p290
      %s293 = sadd.s32 %s292, 1
      %p296 = scmp.eq.s32.totalorder %s22, 1
      %p297 = scmp.ne.s32.totalorder %s292, %s294
      %p298 = scmp.eq.s32.totalorder %s22, 0
      %p299 = por %p297, %p298
      %p300 = scmp.ne.s32.totalorder %s292, %s294
      %p301 = scmp.eq.s32.totalorder %s27, 1
      %p302 = por %p300, %p301
      %p303 = scmp.ne.s32.totalorder %s294, %s295
      %p304 = scmp.eq.s32.totalorder %s27, 0
      %p305 = por %p303, %p304
      %p306 = scmp.ne.s32.totalorder %s294, %s295
      %p307 = scmp.eq.s32.totalorder %s28, 1
      %p308 = por %p306, %p307
      %p310 = scmp.ne.s32.totalorder %s295, %s309
      %p311 = scmp.eq.s32.totalorder %s28, 0
      %p312 = por %p310, %p311
      %s313 = ssub.s32 %s22, %s29
      %p314 = scmp.eq.s32.totalorder %s313, 0
      %s316 = sadd.s32 %s315, 1
      %s317 = scalar_select %p314, %s315, %s316
      %p320 = pneg %p314
      %p321 = scmp.eq.s32.totalorder %s22, 1
      %p322 = por %p320, %p321
      %p323 = scmp.ne.s32.totalorder %s315, %s318
      %p324 = scmp.eq.s32.totalorder %s22, 0
      %p325 = por %p323, %p324
      %p326 = scmp.ne.s32.totalorder %s315, %s318
      %p327 = scmp.eq.s32.totalorder %s27, 1
      %p328 = por %p326, %p327
      %p329 = scmp.ne.s32.totalorder %s318, %s319
      %p330 = scmp.eq.s32.totalorder %s27, 0
      %p331 = por %p329, %p330
      %p332 = scmp.ne.s32.totalorder %s318, %s319
      %p333 = scmp.eq.s32.totalorder %s28, 1
      %p334 = por %p332, %p333
      %p336 = scmp.ne.s32.totalorder %s319, %s335
      %p337 = scmp.eq.s32.totalorder %s28, 0
      %p338 = por %p336, %p337
      %p339 = scmp.le.s32.totalorder 1, %s22
      %p340 = scmp.lt.s32.totalorder %s22, 3
      %p341 = pnand %p339, %p340
      %p342 = pneg %p341
      // Predicated region
      $region9: #{_lambda_.27} parent=5 // pred_check
        _
      $region10: #{_lambda_.27} parent=5 // pred_check_branch
        %344 = sbr.rel (%p341) target = $region12
      $region11: #{_lambda_.27} parent=5 // pred_region
        %s345 = ssub.s32 %s22, 1
        // Predicated region
        $region13: #{_lambda_.27} parent=11 // pred_check
          %p346 = pneg %p95
        $region14: #{_lambda_.27} parent=11 // pred_check_branch
          %348 = sbr.rel (%p346) target = $region16
        $region15: #{_lambda_.27} parent=11 // pred_region
          _
        $region16: #{_lambda_.27} parent=11 // pred_fallthru
          _
        // Predicated region
        $region17: #{_lambda_.27} parent=11 // pred_check
          %p349 = pneg %p116
        $region18: #{_lambda_.27} parent=11 // pred_check_branch
          %351 = sbr.rel (%p349) target = $region20
        $region19: #{_lambda_.27} parent=11 // pred_region
          _
        $region20: #{_lambda_.27} parent=11 // pred_fallthru
          _
        // Predicated region
        $region21: #{_lambda_.27} parent=11 // pred_check
          %p352 = pneg %p137
        $region22: #{_lambda_.27} parent=11 // pred_check_branch
          %354 = sbr.rel (%p352) target = $region24
        $region23: #{_lambda_.27} parent=11 // pred_region
          _
        $region24: #{_lambda_.27} parent=11 // pred_fallthru
          _
        // Predicated region
        $region25: #{_lambda_.27} parent=11 // pred_check
          %p355 = pneg %p158
        $region26: #{_lambda_.27} parent=11 // pred_check_branch
          %357 = sbr.rel (%p355) target = $region28
        $region27: #{_lambda_.27} parent=11 // pred_region
          _
        $region28: #{_lambda_.27} parent=11 // pred_fallthru
          _
        // Predicated region
        $region29: #{_lambda_.27} parent=11 // pred_check
          %p358 = pneg %p179
        $region30: #{_lambda_.27} parent=11 // pred_check_branch
          %360 = sbr.rel (%p358) target = $region32
        $region31: #{_lambda_.27} parent=11 // pred_region
          _
        $region32: #{_lambda_.27} parent=11 // pred_fallthru
          _
        // Predicated region
        $region33: #{_lambda_.27} parent=11 // pred_check
          %p361 = pneg %p200
        $region34: #{_lambda_.27} parent=11 // pred_check_branch
          %363 = sbr.rel (%p361) target = $region36
        $region35: #{_lambda_.27} parent=11 // pred_region
          _
        $region36: #{_lambda_.27} parent=11 // pred_fallthru
          _
        // Predicated region
        $region37: #{_lambda_.27} parent=11 // pred_check
          %p364 = pneg %p221
        $region38: #{_lambda_.27} parent=11 // pred_check_branch
          %366 = sbr.rel (%p364) target = $region40
        $region39: #{_lambda_.27} parent=11 // pred_region
          _
        $region40: #{_lambda_.27} parent=11 // pred_fallthru
          _
        // Predicated region
        $region41: #{_lambda_.27} parent=11 // pred_check
          %p367 = pneg %p242
        $region42: #{_lambda_.27} parent=11 // pred_check_branch
          %369 = sbr.rel (%p367) target = $region44
        $region43: #{_lambda_.27} parent=11 // pred_region
          _
        $region44: #{_lambda_.27} parent=11 // pred_fallthru
          _
        // Predicated region
        $region45: #{_lambda_.27} parent=11 // pred_check
          %p370 = pneg %p263
        $region46: #{_lambda_.27} parent=11 // pred_check_branch
          %372 = sbr.rel (%p370) target = $region48
        $region47: #{_lambda_.27} parent=11 // pred_region
          _
        $region48: #{_lambda_.27} parent=11 // pred_fallthru
          _
        // Predicated region
        $region49: #{_lambda_.27} parent=11 // pred_check
          %p373 = pneg %p284
        $region50: #{_lambda_.27} parent=11 // pred_check_branch
          %375 = sbr.rel (%p373) target = $region52
        $region51: #{_lambda_.27} parent=11 // pred_region
          _
        $region52: #{_lambda_.27} parent=11 // pred_fallthru
          _
        // Predicated region
        $region53: #{_lambda_.27} parent=11 // pred_check
          %p376 = pneg %p305
        $region54: #{_lambda_.27} parent=11 // pred_check_branch
          %378 = sbr.rel (%p376) target = $region56
        $region55: #{_lambda_.27} parent=11 // pred_region
          _
        $region56: #{_lambda_.27} parent=11 // pred_fallthru
          _
      $region12: #{_lambda_.27} parent=5 // pred_fallthru
        _
      %p379 = scmp.lt.s32.totalorder %s22, 2
      // Predicated region
      $region57: #{_lambda_.27} parent=5 // pred_check
        %p380 = pneg %p379
      $region58: #{_lambda_.27} parent=5 // pred_check_branch
        %382 = sbr.rel (%p380) target = $region60
      $region59: #{_lambda_.27} parent=5 // pred_region
        // Predicated region
        $region61: #{_lambda_.27} parent=59 // pred_check
          %p383 = pneg %p42
        $region62: #{_lambda_.27} parent=59 // pred_check_branch
          %385 = sbr.rel (%p383) target = $region64
        $region63: #{_lambda_.27} parent=59 // pred_region
          %p386 = scmp.lt.s32.totalorder %s22, 1
          %s387 = scalar_select %p386, %s22, 1
          %s388 = smul.addr %s387, 2
          %s389 = smul.addr %s388, 8
          %s390 = scalar_lea.vmem %s0, %s389
        $region64: #{_lambda_.27} parent=59 // pred_fallthru
          _
        // Predicated region
        $region65: #{_lambda_.27} parent=59 // pred_check
          %p391 = pneg %p68
        $region66: #{_lambda_.27} parent=59 // pred_check_branch
          %393 = sbr.rel (%p391) target = $region68
        $region67: #{_lambda_.27} parent=59 // pred_region
          %p394 = scmp.lt.s32.totalorder %s22, 1
          %s395 = scalar_select %p394, %s22, 1
          %s396 = smul.addr %s395, 2
          %s397 = smul.addr %s396, 8
          %s398 = scalar_lea.vmem %s1, %s397
        $region68: #{_lambda_.27} parent=59 // pred_fallthru
          _
      $region60: #{_lambda_.27} parent=5 // pred_fallthru
        _
      %p399 = scmp.le.s32.totalorder 1, %s22
      %p400 = scmp.lt.s32.totalorder %s22, 3
      %p401 = pnand %p399, %p400
      %p402 = pneg %p401
      // Predicated region
      $region69: #{_lambda_.27} parent=5 // pred_check
        _
      $region70: #{_lambda_.27} parent=5 // pred_check_branch
        %404 = sbr.rel (%p401) target = $region72
      $region71: #{_lambda_.27} parent=5 // pred_region
        %s405 = ssub.s32 %s22, 1
        %p406 = scmp.lt.s32.totalorder %s27, 1
        %s407 = scalar_select %p406, %s27, 1
        %s408 = smul.addr %s407, 2
        %s409 = smul.addr %s408, 8
        %s410 = scalar_lea.vmem %s0, %s409
        %p411 = pneg %p48
        %p412 = pneg %p45
        %p413 = scmp.lt.s32.totalorder %s27, 1
        %s414 = scalar_select %p413, %s27, 1
        %s415 = smul.addr %s414, 2
        %s416 = smul.addr %s415, 8
        %s417 = scalar_lea.vmem %s1, %s416
        %p418 = pneg %p74
        %p419 = pneg %p71
        %p420 = pneg %p95
        %p421 = pneg %p92
        %p422 = pneg %p116
        %p423 = pneg %p113
        %p424 = pneg %p137
        %p425 = pneg %p134
        %p426 = pneg %p158
        %p427 = pneg %p155
        %p428 = pneg %p179
        %p429 = pneg %p176
        %p430 = pneg %p200
        %p431 = pneg %p197
        %p432 = pneg %p221
        %p433 = pneg %p218
        %p434 = pneg %p242
        %p435 = pneg %p239
        %p436 = pneg %p263
        %p437 = pneg %p260
        %p438 = pneg %p284
        %p439 = pneg %p281
        %p440 = pneg %p305
        %p441 = pneg %p302
        %p442 = pneg %p331
        %p443 = pneg %p328
        %s444 = sand.u32 %s318, 1
        %s445 = scalar_lea.sflag [#allocation3], %s444
        %s446 = sand.u32 %s318, 1
        %s447 = smul.addr %s446, 16
        %s448 = scalar_lea.vmem [#allocation2], %s447
        %p449 = scmp.lt.s32.totalorder %s27, 1
        %s450 = scalar_select %p449, %s27, 1
        %s451 = smul.addr %s450, 2
        %s452 = smul.addr %s451, 8
        %s453 = scalar_lea.vmem %s0, %s452
        %p454 = scmp.lt.s32.totalorder %s27, 1
        %s455 = scalar_select %p454, %s27, 1
        %s456 = smul.addr %s455, 2
        %s457 = smul.addr %s456, 8
        %s458 = scalar_lea.vmem %s1, %s457
        %v460 = vld [vmem:[%s453] sm:$0xff]
        %v461 = vld [vmem:[%s453 + $0x8] sm:$0xff]
        %v462 = vpack.c.bf16 %v461, %v460
        %v463 = vld [vmem:[%s458] sm:$0xff]
        %v464 = vld [vmem:[%s458 + $0x8] sm:$0xff]
        %v465 = vpack.c.bf16 %v464, %v463
        %v466 = vld [vmem:[%s2] sm:$0xf]
        %v467 = vld [vmem:[%s2 + $0x4] sm:$0xf]
        %v468 = vld [vmem:[%s2 + $0x8] sm:$0xf]
        %v469 = vld [vmem:[%s2 + $0xc] sm:$0xf]
        %v470 = vld [vmem:[%s2 + $0x10] sm:$0xf]
        %v471 = vld [vmem:[%s2 + $0x14] sm:$0xf]
        %v472 = vld [vmem:[%s2 + $0x18] sm:$0xf]
        %v473 = vld [vmem:[%s2 + $0x1c] sm:$0xf]
        %v474 = vld [vmem:[%s2 + $0x20] sm:$0xf]
        %v475 = vld [vmem:[%s2 + $0x24] sm:$0xf]
        %v476 = vld [vmem:[%s2 + $0x28] sm:$0xf]
        %v477 = vld [vmem:[%s2 + $0x2c] sm:$0xf]
        %v478 = vld [vmem:[%s2 + $0x30] sm:$0xf]
        %v479 = vld [vmem:[%s2 + $0x34] sm:$0xf]
        %v480 = vld [vmem:[%s2 + $0x38] sm:$0xf]
        %v481 = vld [vmem:[%s2 + $0x3c] sm:$0xf]
        %v482 = vld [vmem:[%s3] sm:$0x1]
        %v484 = vlaneseq
        %v485 = vshrl.u32 %v484, 7
        %v486 = vsub.s32 0, %v485
        %v487 = vrot.slane %v482, %v486
        %v505 = vunpack.c.l.b16 %v466
        %v506 = vunpack.c.l.b16 %v467
        %v507 = vunpack.c.l.b16 %v468
        %v508 = vunpack.c.l.b16 %v469
        %v509 = vunpack.c.l.b16 %v470
        %v510 = vunpack.c.l.b16 %v471
        %v511 = vunpack.c.l.b16 %v472
        %v512 = vunpack.c.l.b16 %v473
        %v513 = vunpack.c.l.b16 %v474
        %v514 = vunpack.c.l.b16 %v475
        %v515 = vunpack.c.l.b16 %v476
        %v516 = vunpack.c.l.b16 %v477
        %v517 = vunpack.c.l.b16 %v478
        %v518 = vunpack.c.l.b16 %v479
        %v519 = vunpack.c.l.b16 %v480
        %v520 = vunpack.c.l.b16 %v481
        %v521 = vpack.c.b16 %v506, %v505
        %v522 = vpack.c.b16 %v508, %v507
        %v523 = vpack.c.b16 %v510, %v509
        %v524 = vpack.c.b16 %v512, %v511
        %v525 = vpack.c.b16 %v514, %v513
        %v526 = vpack.c.b16 %v516, %v515
        %v527 = vpack.c.b16 %v518, %v517
        %v528 = vpack.c.b16 %v520, %v519
        %537 = vmatprep.subr.bf16.mxu0 0
        %538 = vmatpush1.bf16.msra.mxu0 %v521
        %539 = vmatprep.subr.bf16.mxu0 0
        %540 = vmatpush1.bf16.msra.mxu0 %v522
        %541 = vmatprep.subr.bf16.mxu0 0
        %542 = vmatpush1.bf16.msra.mxu0 %v523
        %543 = vmatprep.subr.bf16.mxu0 0
        %544 = vmatpush1.bf16.msra.mxu0 %v524
        %545 = vmatprep.subr.bf16.mxu0 0
        %546 = vmatpush1.bf16.msra.mxu0 %v525
        %547 = vmatprep.subr.bf16.mxu0 0
        %548 = vmatpush1.bf16.msra.mxu0 %v526
        %549 = vmatprep.subr.bf16.mxu0 0
        %550 = vmatpush1.bf16.msra.mxu0 %v527
        %551 = vmatprep.subr.bf16.mxu0 0
        %552 = vmatpush1.bf16.msra.mxu0 %v528
        %553 = vmatprep.subr.bf16.mxu0 0
        %554 = vmatpush1.bf16.msra.mxu0 0
        %555 = vmatprep.subr.bf16.mxu0 0
        %556 = vmatpush1.bf16.msra.mxu0 0
        %557 = vmatprep.subr.bf16.mxu0 0
        %558 = vmatpush1.bf16.msra.mxu0 0
        %559 = vmatprep.subr.bf16.mxu0 0
        %560 = vmatpush1.bf16.msra.mxu0 0
        %561 = vmatprep.subr.bf16.mxu0 0
        %562 = vmatpush1.bf16.msra.mxu0 0
        %563 = vmatprep.subr.bf16.mxu0 0
        %564 = vmatpush1.bf16.msra.mxu0 0
        %565 = vmatprep.subr.bf16.mxu0 0
        %566 = vmatpush1.bf16.msra.mxu0 0
        %567 = vmatprep.subr.bf16.mxu0 0
        %568 = vmatpush1.bf16.msra.mxu0 0
        %569 = vmatprep.mubr.bf16.mxu0 0
        %570 = vmatmul.mubr.bf16.gmra.mrb[0].mxu0 %v462
        %v571 = vpop.f32.mrb[0].mxu0
        %v572 = vadd.f32 %v487, %v571
        %v573 = vpop.f32.mrb[0].mxu0
        %v574 = vpop.f32.mrb[0].mxu0
        %v575 = vadd.f32 %v487, %v574
        %v576 = vpop.f32.mrb[0].mxu0
        %577 = vdwg.mxu0
        %v578 = vld [vmem:[%s4] sm:$0xff]
        %v579 = vld [vmem:[%s4 + $0x8] sm:$0xff]
        %v580 = vld [vmem:[%s4 + $0x10] sm:$0xff]
        %v581 = vld [vmem:[%s4 + $0x18] sm:$0xff]
        %v582 = vld [vmem:[%s4 + $0x20] sm:$0xff]
        %v583 = vld [vmem:[%s4 + $0x28] sm:$0xff]
        %v584 = vld [vmem:[%s4 + $0x30] sm:$0xff]
        %v585 = vld [vmem:[%s4 + $0x38] sm:$0xff]
        %v586 = vld [vmem:[%s4 + $0x40] sm:$0xff]
        %v587 = vld [vmem:[%s4 + $0x48] sm:$0xff]
        %v588 = vld [vmem:[%s4 + $0x50] sm:$0xff]
        %v589 = vld [vmem:[%s4 + $0x58] sm:$0xff]
        %v590 = vld [vmem:[%s4 + $0x60] sm:$0xff]
        %v591 = vld [vmem:[%s4 + $0x68] sm:$0xff]
        %v592 = vld [vmem:[%s4 + $0x70] sm:$0xff]
        %v593 = vld [vmem:[%s4 + $0x78] sm:$0xff]
        %v594 = vld [vmem:[%s5] sm:$0x3]
        %v596 = vlaneseq
        %v597 = vshrl.u32 %v596, 7
        %v598 = vsub.s32 0, %v597
        %v599 = vrot.slane %v594, %v598
        %v600 = vlaneseq
        %v601 = vshrl.u32 %v600, 7
        %v602 = vsub.s32 1, %v601
        %v603 = vrot.slane %v594, %v602
        %v622 = vunpack.c.l.b16 %v578
        %v623 = vunpack.c.h.b16 %v578
        %v624 = vunpack.c.l.b16 %v579
        %v625 = vunpack.c.h.b16 %v579
        %v626 = vunpack.c.l.b16 %v580
        %v627 = vunpack.c.h.b16 %v580
        %v628 = vunpack.c.l.b16 %v581
        %v629 = vunpack.c.h.b16 %v581
        %v630 = vunpack.c.l.b16 %v582
        %v631 = vunpack.c.h.b16 %v582
        %v632 = vunpack.c.l.b16 %v583
        %v633 = vunpack.c.h.b16 %v583
        %v634 = vunpack.c.l.b16 %v584
        %v635 = vunpack.c.h.b16 %v584
        %v636 = vunpack.c.l.b16 %v585
        %v637 = vunpack.c.h.b16 %v585
        %v638 = vunpack.c.l.b16 %v586
        %v639 = vunpack.c.h.b16 %v586
        %v640 = vunpack.c.l.b16 %v587
        %v641 = vunpack.c.h.b16 %v587
        %v642 = vunpack.c.l.b16 %v588
        %v643 = vunpack.c.h.b16 %v588
        %v644 = vunpack.c.l.b16 %v589
        %v645 = vunpack.c.h.b16 %v589
        %v646 = vunpack.c.l.b16 %v590
        %v647 = vunpack.c.h.b16 %v590
        %v648 = vunpack.c.l.b16 %v591
        %v649 = vunpack.c.h.b16 %v591
        %v650 = vunpack.c.l.b16 %v592
        %v651 = vunpack.c.h.b16 %v592
        %v652 = vunpack.c.l.b16 %v593
        %v653 = vunpack.c.h.b16 %v593
        %v654 = vpack.c.b16 %v624, %v622
        %v655 = vpack.c.b16 %v625, %v623
        %v656 = vpack.c.b16 %v628, %v626
        %v657 = vpack.c.b16 %v629, %v627
        %v658 = vpack.c.b16 %v632, %v630
        %v659 = vpack.c.b16 %v633, %v631
        %v660 = vpack.c.b16 %v636, %v634
        %v661 = vpack.c.b16 %v637, %v635
        %v662 = vpack.c.b16 %v640, %v638
        %v663 = vpack.c.b16 %v641, %v639
        %v664 = vpack.c.b16 %v644, %v642
        %v665 = vpack.c.b16 %v645, %v643
        %v666 = vpack.c.b16 %v648, %v646
        %v667 = vpack.c.b16 %v649, %v647
        %v668 = vpack.c.b16 %v652, %v650
        %v669 = vpack.c.b16 %v653, %v651
        %686 = vmatprep.subr.bf16.mxu0 %v655
        %687 = vmatpush1.bf16.msra.mxu0 %v654
        %688 = vmatprep.subr.bf16.mxu0 %v657
        %689 = vmatpush1.bf16.msra.mxu0 %v656
        %690 = vmatprep.subr.bf16.mxu0 %v659
        %691 = vmatpush1.bf16.msra.mxu0 %v658
        %692 = vmatprep.subr.bf16.mxu0 %v661
        %693 = vmatpush1.bf16.msra.mxu0 %v660
        %694 = vmatprep.subr.bf16.mxu0 %v663
        %695 = vmatpush1.bf16.msra.mxu0 %v662
        %696 = vmatprep.subr.bf16.mxu0 %v665
        %697 = vmatpush1.bf16.msra.mxu0 %v664
        %698 = vmatprep.subr.bf16.mxu0 %v667
        %699 = vmatpush1.bf16.msra.mxu0 %v666
        %700 = vmatprep.subr.bf16.mxu0 %v669
        %701 = vmatpush1.bf16.msra.mxu0 %v668
        %702 = vmatprep.subr.bf16.mxu0 0
        %703 = vmatpush1.bf16.msra.mxu0 0
        %704 = vmatprep.subr.bf16.mxu0 0
        %705 = vmatpush1.bf16.msra.mxu0 0
        %706 = vmatprep.subr.bf16.mxu0 0
        %707 = vmatpush1.bf16.msra.mxu0 0
        %708 = vmatprep.subr.bf16.mxu0 0
        %709 = vmatpush1.bf16.msra.mxu0 0
        %710 = vmatprep.subr.bf16.mxu0 0
        %711 = vmatpush1.bf16.msra.mxu0 0
        %712 = vmatprep.subr.bf16.mxu0 0
        %713 = vmatpush1.bf16.msra.mxu0 0
        %714 = vmatprep.subr.bf16.mxu0 0
        %715 = vmatpush1.bf16.msra.mxu0 0
        %716 = vmatprep.subr.bf16.mxu0 0
        %717 = vmatpush1.bf16.msra.mxu0 0
        %718 = vmatprep.mubr.bf16.mxu0 0
        %719 = vmatmul.mubr.bf16.gmra.mrb[0].mxu0 %v465
        %v720 = vpop.f32.mrb[0].mxu0
        %v721 = vadd.f32 %v599, %v720
        %v722 = vpop.f32.mrb[0].mxu0
        %v723 = vadd.f32 %v603, %v722
        %v724 = vpop.f32.mrb[0].mxu0
        %v725 = vadd.f32 %v599, %v724
        %v726 = vpop.f32.mrb[0].mxu0
        %v727 = vadd.f32 %v603, %v726
        %728 = vdwg.mxu0
        %v729 = vld [vmem:[%s6] sm:$0xf]
        %v730 = vld [vmem:[%s6 + $0x4] sm:$0xf]
        %v731 = vld [vmem:[%s6 + $0x8] sm:$0xf]
        %v732 = vld [vmem:[%s6 + $0xc] sm:$0xf]
        %v733 = vld [vmem:[%s6 + $0x10] sm:$0xf]
        %v734 = vld [vmem:[%s6 + $0x14] sm:$0xf]
        %v735 = vld [vmem:[%s6 + $0x18] sm:$0xf]
        %v736 = vld [vmem:[%s6 + $0x1c] sm:$0xf]
        %v737 = vld [vmem:[%s6 + $0x20] sm:$0xf]
        %v738 = vld [vmem:[%s6 + $0x24] sm:$0xf]
        %v739 = vld [vmem:[%s6 + $0x28] sm:$0xf]
        %v740 = vld [vmem:[%s6 + $0x2c] sm:$0xf]
        %v741 = vld [vmem:[%s6 + $0x30] sm:$0xf]
        %v742 = vld [vmem:[%s6 + $0x34] sm:$0xf]
        %v743 = vld [vmem:[%s6 + $0x38] sm:$0xf]
        %v744 = vld [vmem:[%s6 + $0x3c] sm:$0xf]
        %v745 = vld [vmem:[%s7] sm:$0x1]
        %v746 = vpack.c.bf16 %v575, %v572
        %v747 = vpack.c.bf16 %v725, %v721
        %v748 = vpack.c.bf16 %v727, %v723
        %vm749 = vcmask 261120
        %v751 = vsel %vm749, %v746, 0
        %v754 = vsel %vm749, %v747, 0
        %756 = vmatprep.subr.bf16.mxu0 0
        %757 = vmatpush1.bf16.xpose.msra.mxu0 %v754
        %758 = vmatprep.subr.bf16.mxu0 0
        %759 = vmatpush1.bf16.xpose.msra.mxu0 0
        %760 = vmatprep.subr.bf16.mxu0 0
        %761 = vmatpush1.bf16.xpose.msra.mxu0 0
        %762 = vmatprep.subr.bf16.mxu0 0
        %763 = vmatpush1.bf16.xpose.msra.mxu0 0
        %764 = vmatprep.subr.bf16.mxu0 0
        %765 = vmatpush1.bf16.xpose.msra.mxu0 0
        %766 = vmatprep.subr.bf16.mxu0 0
        %767 = vmatpush1.bf16.xpose.msra.mxu0 0
        %768 = vmatprep.subr.bf16.mxu0 0
        %769 = vmatpush1.bf16.xpose.msra.mxu0 0
        %770 = vmatprep.subr.bf16.mxu0 0
        %771 = vmatpush1.bf16.xpose.msra.mxu0 0
        %772 = vmatprep.subr.bf16.mxu0 0
        %773 = vmatpush1.bf16.xpose.msra.mxu0 0
        %774 = vmatprep.subr.bf16.mxu0 0
        %775 = vmatpush1.bf16.xpose.msra.mxu0 0
        %776 = vmatprep.subr.bf16.mxu0 0
        %777 = vmatpush1.bf16.xpose.msra.mxu0 0
        %778 = vmatprep.subr.bf16.mxu0 0
        %779 = vmatpush1.bf16.xpose.msra.mxu0 0
        %780 = vmatprep.subr.bf16.mxu0 0
        %781 = vmatpush1.bf16.xpose.msra.mxu0 0
        %782 = vmatprep.subr.bf16.mxu0 0
        %783 = vmatpush1.bf16.xpose.msra.mxu0 0
        %784 = vmatprep.subr.bf16.mxu0 0
        %785 = vmatpush1.bf16.xpose.msra.mxu0 0
        %786 = vmatprep.subr.bf16.mxu0 0
        %787 = vmatpush1.bf16.xpose.msra.mxu0 0
        %788 = vmatprep.mubr.bf16.mxu0 0
        %789 = vmatmul.mubr.bf16.gmra.mrb[0].mxu0 %v751
        %v790 = vpop.f32.mrb[0].mxu0
        %v791 = vadd.f32 0.0, %v790
        %v792 = vpop.f32.mrb[0].mxu0
        %v793 = vpop.f32.mrb[0].mxu0
        %v794 = vadd.f32 0.0, %v793
        %v795 = vpop.f32.mrb[0].mxu0
        %796 = vdwg.mxu0
        %vm797 = vcmask 130048
        %v798 = vsel %vm797, %v791, -inf
        %799 = vmax.xlane.f32.xlu0 %v798
        %v800 = vpop.xlane.xlu0 %799
        %v801 = vsel %vm797, %v794, -inf
        %802 = vmax.xlane.f32.xlu0 %v801
        %v803 = vpop.xlane.xlu0 %802
        %v804 = vsub.f32 %v791, %v800
        %v805 = vsub.f32 %v794, %v803
        %v806 = vmul.f32 %v804, 1.442695
        %v807 = vpow.pop %v806
        %v808 = vmul.f32 %v805, 1.442695
        %v809 = vpow.pop %v808
        %v810 = vsel %vm797, %v807, 0.0
        %811 = vadd.xlane.f32.xlu0 %v810
        %v812 = vpop.xlane.xlu0 %811
        %v813 = vsel %vm797, %v809, 0.0
        %814 = vadd.xlane.f32.xlu0 %v813
        %v815 = vpop.xlane.xlu0 %814
        %v816 = vrcp.pop %v812
        %v817 = vrcp.pop %v815
        %v818 = vmul.f32 %v807, %v816
        %v819 = vmul.f32 %v809, %v817
        %v820 = vpack.c.bf16 %v819, %v818
        %v822 = vsel %vm797, %v820, 0
        %824 = vmatprep.subr.bf16.mxu0 0
        %825 = vmatpush1.bf16.msra.mxu0 %v748
        %826 = vmatprep.subr.bf16.mxu0 0
        %827 = vmatpush1.bf16.msra.mxu0 0
        %828 = vmatprep.subr.bf16.mxu0 0
        %829 = vmatpush1.bf16.msra.mxu0 0
        %830 = vmatprep.subr.bf16.mxu0 0
        %831 = vmatpush1.bf16.msra.mxu0 0
        %832 = vmatprep.subr.bf16.mxu0 0
        %833 = vmatpush1.bf16.msra.mxu0 0
        %834 = vmatprep.subr.bf16.mxu0 0
        %835 = vmatpush1.bf16.msra.mxu0 0
        %836 = vmatprep.subr.bf16.mxu0 0
        %837 = vmatpush1.bf16.msra.mxu0 0
        %838 = vmatprep.subr.bf16.mxu0 0
        %839 = vmatpush1.bf16.msra.mxu0 0
        %840 = vmatprep.subr.bf16.mxu0 0
        %841 = vmatpush1.bf16.msra.mxu0 0
        %842 = vmatprep.subr.bf16.mxu0 0
        %843 = vmatpush1.bf16.msra.mxu0 0
        %844 = vmatprep.subr.bf16.mxu0 0
        %845 = vmatpush1.bf16.msra.mxu0 0
        %846 = vmatprep.subr.bf16.mxu0 0
        %847 = vmatpush1.bf16.msra.mxu0 0
        %848 = vmatprep.subr.bf16.mxu0 0
        %849 = vmatpush1.bf16.msra.mxu0 0
        %850 = vmatprep.subr.bf16.mxu0 0
        %851 = vmatpush1.bf16.msra.mxu0 0
        %852 = vmatprep.subr.bf16.mxu0 0
        %853 = vmatpush1.bf16.msra.mxu0 0
        %854 = vmatprep.subr.bf16.mxu0 0
        %855 = vmatpush1.bf16.msra.mxu0 0
        %856 = vmatprep.mubr.bf16.mxu0 0
        %857 = vmatmul.mubr.bf16.gmra.mrb[0].mxu0 %v822
        %v858 = vpop.f32.mrb[0].mxu0
        %v859 = vadd.f32 0.0, %v858
        %v860 = vpop.f32.mrb[0].mxu0
        %v861 = vpop.f32.mrb[0].mxu0
        %v862 = vadd.f32 0.0, %v861
        %v863 = vpop.f32.mrb[0].mxu0
        %864 = vdwg.mxu0
        %v865 = vpack.c.bf16 %v862, %v859
        %v870 = vunpack.c.l.b16 %v729
        %v871 = vunpack.c.l.b16 %v730
        %v872 = vunpack.c.l.b16 %v731
        %v873 = vunpack.c.l.b16 %v732
        %v874 = vpack.c.b16 %v871, %v870
        %v875 = vpack.c.b16 %v873, %v872
        %v879 = vsel %vm749, %v865, 0
        %881 = vmatprep.subr.bf16.mxu0 0
        %882 = vmatpush1.bf16.msra.mxu0 %v874
        %883 = vmatprep.subr.bf16.mxu0 0
        %884 = vmatpush1.bf16.msra.mxu0 %v875
        %885 = vmatprep.subr.bf16.mxu0 0
        %886 = vmatpush1.bf16.msra.mxu0 0
        %887 = vmatprep.subr.bf16.mxu0 0
        %888 = vmatpush1.bf16.msra.mxu0 0
        %889 = vmatprep.subr.bf16.mxu0 0
        %890 = vmatpush1.bf16.msra.mxu0 0
        %891 = vmatprep.subr.bf16.mxu0 0
        %892 = vmatpush1.bf16.msra.mxu0 0
        %893 = vmatprep.subr.bf16.mxu0 0
        %894 = vmatpush1.bf16.msra.mxu0 0
        %895 = vmatprep.subr.bf16.mxu0 0
        %896 = vmatpush1.bf16.msra.mxu0 0
        %897 = vmatprep.subr.bf16.mxu0 0
        %898 = vmatpush1.bf16.msra.mxu0 0
        %899 = vmatprep.subr.bf16.mxu0 0
        %900 = vmatpush1.bf16.msra.mxu0 0
        %901 = vmatprep.subr.bf16.mxu0 0
        %902 = vmatpush1.bf16.msra.mxu0 0
        %903 = vmatprep.subr.bf16.mxu0 0
        %904 = vmatpush1.bf16.msra.mxu0 0
        %905 = vmatprep.subr.bf16.mxu0 0
        %906 = vmatpush1.bf16.msra.mxu0 0
        %907 = vmatprep.subr.bf16.mxu0 0
        %908 = vmatpush1.bf16.msra.mxu0 0
        %909 = vmatprep.subr.bf16.mxu0 0
        %910 = vmatpush1.bf16.msra.mxu0 0
        %911 = vmatprep.subr.bf16.mxu0 0
        %912 = vmatpush1.bf16.msra.mxu0 0
        %913 = vmatprep.mubr.bf16.mxu0 0
        %914 = vmatmul.mubr.bf16.gmra.mrb[0].mxu0 %v879
        %v915 = vpop.f32.mrb[0].mxu0
        %v916 = vadd.f32 0.0, %v915
        %v917 = vpop.f32.mrb[0].mxu0
        %v918 = vpop.f32.mrb[0].mxu0
        %v919 = vadd.f32 0.0, %v918
        %v920 = vpop.f32.mrb[0].mxu0
        %921 = vdwg.mxu0
        %v923 = vlaneseq
        %v924 = vshrl.u32 %v923, 7
        %v925 = vsub.s32 0, %v924
        %v926 = vrot.slane %v745, %v925
        %v928 = vadd.f32 %v926, %v916
        %v929 = vadd.f32 %v926, %v919
        %931 = vrot.lane.b32.xlu0 %v746, 96
        %v932 = vpop.permute.xlu0 %931
        %934 = vrot.lane.b32.xlu0 %v747, 96
        %v935 = vpop.permute.xlu0 %934
        %v937 = vsel %vm749, %v932, 0
        %v940 = vsel %vm749, %v935, 0
        %942 = vmatprep.subr.bf16.mxu0 0
        %943 = vmatpush1.bf16.xpose.msra.mxu0 %v940
        %944 = vmatprep.subr.bf16.mxu0 0
        %945 = vmatpush1.bf16.xpose.msra.mxu0 0
        %946 = vmatprep.subr.bf16.mxu0 0
        %947 = vmatpush1.bf16.xpose.msra.mxu0 0
        %948 = vmatprep.subr.bf16.mxu0 0
        %949 = vmatpush1.bf16.xpose.msra.mxu0 0
        %950 = vmatprep.subr.bf16.mxu0 0
        %951 = vmatpush1.bf16.xpose.msra.mxu0 0
        %952 = vmatprep.subr.bf16.mxu0 0
        %953 = vmatpush1.bf16.xpose.msra.mxu0 0
        %954 = vmatprep.subr.bf16.mxu0 0
        %955 = vmatpush1.bf16.xpose.msra.mxu0 0
        %956 = vmatprep.subr.bf16.mxu0 0
        %957 = vmatpush1.bf16.xpose.msra.mxu0 0
        %958 = vmatprep.subr.bf16.mxu0 0
        %959 = vmatpush1.bf16.xpose.msra.mxu0 0
        %960 = vmatprep.subr.bf16.mxu0 0
        %961 = vmatpush1.bf16.xpose.msra.mxu0 0
        %962 = vmatprep.subr.bf16.mxu0 0
        %963 = vmatpush1.bf16.xpose.msra.mxu0 0
        %964 = vmatprep.subr.bf16.mxu0 0
        %965 = vmatpush1.bf16.xpose.msra.mxu0 0
        %966 = vmatprep.subr.bf16.mxu0 0
        %967 = vmatpush1.bf16.xpose.msra.mxu0 0
        %968 = vmatprep.subr.bf16.mxu0 0
        %969 = vmatpush1.bf16.xpose.msra.mxu0 0
        %970 = vmatprep.subr.bf16.mxu0 0
        %971 = vmatpush1.bf16.xpose.msra.mxu0 0
        %972 = vmatprep.subr.bf16.mxu0 0
        %973 = vmatpush1.bf16.xpose.msra.mxu0 0
        %974 = vmatprep.mubr.bf16.mxu0 0
        %975 = vmatmul.mubr.bf16.gmra.mrb[0].mxu0 %v937
        %v976 = vpop.f32.mrb[0].mxu0
        %v977 = vadd.f32 0.0, %v976
        %v978 = vpop.f32.mrb[0].mxu0
        %v979 = vpop.f32.mrb[0].mxu0
        %v980 = vadd.f32 0.0, %v979
        %v981 = vpop.f32.mrb[0].mxu0
        %982 = vdwg.mxu0
        %v983 = vsel %vm797, %v977, -inf
        %984 = vmax.xlane.f32.xlu0 %v983
        %v985 = vpop.xlane.xlu0 %984
        %v986 = vsel %vm797, %v980, -inf
        %987 = vmax.xlane.f32.xlu0 %v986
        %v988 = vpop.xlane.xlu0 %987
        %v989 = vsub.f32 %v977, %v985
        %v990 = vsub.f32 %v980, %v988
        %v991 = vmul.f32 %v989, 1.442695
        %v992 = vpow.pop %v991
        %v993 = vmul.f32 %v990, 1.442695
        %v994 = vpow.pop %v993
        %v995 = vsel %vm797, %v992, 0.0
        %996 = vadd.xlane.f32.xlu0 %v995
        %v997 = vpop.xlane.xlu0 %996
        %v998 = vsel %vm797, %v994, 0.0
        %999 = vadd.xlane.f32.xlu0 %v998
        %v1000 = vpop.xlane.xlu0 %999
        %v1001 = vrcp.pop %v997
        %v1002 = vrcp.pop %v1000
        %v1003 = vmul.f32 %v992, %v1001
        %v1004 = vmul.f32 %v994, %v1002
        %v1005 = vpack.c.bf16 %v1004, %v1003
        %1007 = vrot.lane.b32.xlu0 %v748, 96
        %v1008 = vpop.permute.xlu0 %1007
        %v1011 = vsel %vm797, %v1005, 0
        %1013 = vmatprep.subr.bf16.mxu0 0
        %1014 = vmatpush1.bf16.msra.mxu0 %v1008
        %1015 = vmatprep.subr.bf16.mxu0 0
        %1016 = vmatpush1.bf16.msra.mxu0 0
        %1017 = vmatprep.subr.bf16.mxu0 0
        %1018 = vmatpush1.bf16.msra.mxu0 0
        %1019 = vmatprep.subr.bf16.mxu0 0
        %1020 = vmatpush1.bf16.msra.mxu0 0
        %1021 = vmatprep.subr.bf16.mxu0 0
        %1022 = vmatpush1.bf16.msra.mxu0 0
        %1023 = vmatprep.subr.bf16.mxu0 0
        %1024 = vmatpush1.bf16.msra.mxu0 0
        %1025 = vmatprep.subr.bf16.mxu0 0
        %1026 = vmatpush1.bf16.msra.mxu0 0
        %1027 = vmatprep.subr.bf16.mxu0 0
        %1028 = vmatpush1.bf16.msra.mxu0 0
        %1029 = vmatprep.subr.bf16.mxu0 0
        %1030 = vmatpush1.bf16.msra.mxu0 0
        %1031 = vmatprep.subr.bf16.mxu0 0
        %1032 = vmatpush1.bf16.msra.mxu0 0
        %1033 = vmatprep.subr.bf16.mxu0 0
        %1034 = vmatpush1.bf16.msra.mxu0 0
        %1035 = vmatprep.subr.bf16.mxu0 0
        %1036 = vmatpush1.bf16.msra.mxu0 0
        %1037 = vmatprep.subr.bf16.mxu0 0
        %1038 = vmatpush1.bf16.msra.mxu0 0
        %1039 = vmatprep.subr.bf16.mxu0 0
        %1040 = vmatpush1.bf16.msra.mxu0 0
        %1041 = vmatprep.subr.bf16.mxu0 0
        %1042 = vmatpush1.bf16.msra.mxu0 0
        %1043 = vmatprep.subr.bf16.mxu0 0
        %1044 = vmatpush1.bf16.msra.mxu0 0
        %1045 = vmatprep.mubr.bf16.mxu0 0
        %1046 = vmatmul.mubr.bf16.gmra.mrb[0].mxu0 %v1011
        %v1047 = vpop.f32.mrb[0].mxu0
        %v1048 = vadd.f32 0.0, %v1047
        %v1049 = vpop.f32.mrb[0].mxu0
        %v1050 = vpop.f32.mrb[0].mxu0
        %v1051 = vadd.f32 0.0, %v1050
        %v1052 = vpop.f32.mrb[0].mxu0
        %1053 = vdwg.mxu0
        %v1054 = vpack.c.bf16 %v1051, %v1048
        %v1059 = vunpack.c.l.b16 %v733
        %v1060 = vunpack.c.l.b16 %v734
        %v1061 = vunpack.c.l.b16 %v735
        %v1062 = vunpack.c.l.b16 %v736
        %v1063 = vpack.c.b16 %v1060, %v1059
        %v1064 = vpack.c.b16 %v1062, %v1061
        %v1068 = vsel %vm749, %v1054, 0
        %1070 = vmatprep.subr.bf16.mxu0 0
        %1071 = vmatpush1.bf16.msra.mxu0 %v1063
        %1072 = vmatprep.subr.bf16.mxu0 0
        %1073 = vmatpush1.bf16.msra.mxu0 %v1064
        %1074 = vmatprep.subr.bf16.mxu0 0
        %1075 = vmatpush1.bf16.msra.mxu0 0
        %1076 = vmatprep.subr.bf16.mxu0 0
        %1077 = vmatpush1.bf16.msra.mxu0 0
        %1078 = vmatprep.subr.bf16.mxu0 0
        %1079 = vmatpush1.bf16.msra.mxu0 0
        %1080 = vmatprep.subr.bf16.mxu0 0
        %1081 = vmatpush1.bf16.msra.mxu0 0
        %1082 = vmatprep.subr.bf16.mxu0 0
        %1083 = vmatpush1.bf16.msra.mxu0 0
        %1084 = vmatprep.subr.bf16.mxu0 0
        %1085 = vmatpush1.bf16.msra.mxu0 0
        %1086 = vmatprep.subr.bf16.mxu0 0
        %1087 = vmatpush1.bf16.msra.mxu0 0
        %1088 = vmatprep.subr.bf16.mxu0 0
        %1089 = vmatpush1.bf16.msra.mxu0 0
        %1090 = vmatprep.subr.bf16.mxu0 0
        %1091 = vmatpush1.bf16.msra.mxu0 0
        %1092 = vmatprep.subr.bf16.mxu0 0
        %1093 = vmatpush1.bf16.msra.mxu0 0
        %1094 = vmatprep.subr.bf16.mxu0 0
        %1095 = vmatpush1.bf16.msra.mxu0 0
        %1096 = vmatprep.subr.bf16.mxu0 0
        %1097 = vmatpush1.bf16.msra.mxu0 0
        %1098 = vmatprep.subr.bf16.mxu0 0
        %1099 = vmatpush1.bf16.msra.mxu0 0
        %1100 = vmatprep.subr.bf16.mxu0 0
        %1101 = vmatpush1.bf16.msra.mxu0 0
        %1102 = vmatprep.mubr.bf16.mxu0 0
        %1103 = vmatmul.mubr.bf16.gmra.mrb[0].mxu0 %v1068
        %v1104 = vpop.f32.mrb[0].mxu0
        %v1105 = vadd.f32 0.0, %v1104
        %v1106 = vpop.f32.mrb[0].mxu0
        %v1107 = vpop.f32.mrb[0].mxu0
        %v1108 = vadd.f32 0.0, %v1107
        %v1109 = vpop.f32.mrb[0].mxu0
        %1110 = vdwg.mxu0
        %v1111 = vadd.f32 %v928, %v1105
        %v1112 = vadd.f32 %v929, %v1108
        %1113 = vrot.lane.b32.xlu0 %v746, 64
        %v1114 = vpop.permute.xlu0 %1113
        %1115 = vrot.lane.b32.xlu0 %v747, 64
        %v1116 = vpop.permute.xlu0 %1115
        %v1118 = vsel %vm749, %v1114, 0
        %v1121 = vsel %vm749, %v1116, 0
        %1123 = vmatprep.subr.bf16.mxu0 0
        %1124 = vmatpush1.bf16.xpose.msra.mxu0 %v1121
        %1125 = vmatprep.subr.bf16.mxu0 0
        %1126 = vmatpush1.bf16.xpose.msra.mxu0 0
        %1127 = vmatprep.subr.bf16.mxu0 0
        %1128 = vmatpush1.bf16.xpose.msra.mxu0 0
        %1129 = vmatprep.subr.bf16.mxu0 0
        %1130 = vmatpush1.bf16.xpose.msra.mxu0 0
        %1131 = vmatprep.subr.bf16.mxu0 0
        %1132 = vmatpush1.bf16.xpose.msra.mxu0 0
        %1133 = vmatprep.subr.bf16.mxu0 0
        %1134 = vmatpush1.bf16.xpose.msra.mxu0 0
        %1135 = vmatprep.subr.bf16.mxu0 0
        %1136 = vmatpush1.bf16.xpose.msra.mxu0 0
        %1137 = vmatprep.subr.bf16.mxu0 0
        %1138 = vmatpush1.bf16.xpose.msra.mxu0 0
        %1139 = vmatprep.subr.bf16.mxu0 0
        %1140 = vmatpush1.bf16.xpose.msra.mxu0 0
        %1141 = vmatprep.subr.bf16.mxu0 0
        %1142 = vmatpush1.bf16.xpose.msra.mxu0 0
        %1143 = vmatprep.subr.bf16.mxu0 0
        %1144 = vmatpush1.bf16.xpose.msra.mxu0 0
        %1145 = vmatprep.subr.bf16.mxu0 0
        %1146 = vmatpush1.bf16.xpose.msra.mxu0 0
        %1147 = vmatprep.subr.bf16.mxu0 0
        %1148 = vmatpush1.bf16.xpose.msra.mxu0 0
        %1149 = vmatprep.subr.bf16.mxu0 0
        %1150 = vmatpush1.bf16.xpose.msra.mxu0 0
        %1151 = vmatprep.subr.bf16.mxu0 0
        %1152 = vmatpush1.bf16.xpose.msra.mxu0 0
        %1153 = vmatprep.subr.bf16.mxu0 0
        %1154 = vmatpush1.bf16.xpose.msra.mxu0 0
        %1155 = vmatprep.mubr.bf16.mxu0 0
        %1156 = vmatmul.mubr.bf16.gmra.mrb[0].mxu0 %v1118
        %v1157 = vpop.f32.mrb[0].mxu0
        %v1158 = vadd.f32 0.0, %v1157
        %v1159 = vpop.f32.mrb[0].mxu0
        %v1160 = vpop.f32.mrb[0].mxu0
        %v1161 = vadd.f32 0.0, %v1160
        %v1162 = vpop.f32.mrb[0].mxu0
        %1163 = vdwg.mxu0
        %v1164 = vsel %vm797, %v1158, -inf
        %1165 = vmax.xlane.f32.xlu0 %v1164
        %v1166 = vpop.xlane.xlu0 %1165
        %v1167 = vsel %vm797, %v1161, -inf
        %1168 = vmax.xlane.f32.xlu0 %v1167
        %v1169 = vpop.xlane.xlu0 %1168
        %v1170 = vsub.f32 %v1158, %v1166
        %v1171 = vsub.f32 %v1161, %v1169
        %v1172 = vmul.f32 %v1170, 1.442695
        %v1173 = vpow.pop %v1172
        %v1174 = vmul.f32 %v1171, 1.442695
        %v1175 = vpow.pop %v1174
        %v1176 = vsel %vm797, %v1173, 0.0
        %1177 = vadd.xlane.f32.xlu0 %v1176
        %v1178 = vpop.xlane.xlu0 %1177
        %v1179 = vsel %vm797, %v1175, 0.0
        %1180 = vadd.xlane.f32.xlu0 %v1179
        %v1181 = vpop.xlane.xlu0 %1180
        %v1182 = vrcp.pop %v1178
        %v1183 = vrcp.pop %v1181
        %v1184 = vmul.f32 %v1173, %v1182
        %v1185 = vmul.f32 %v1175, %v1183
        %v1186 = vpack.c.bf16 %v1185, %v1184
        %1187 = vrot.lane.b32.xlu0 %v748, 64
        %v1188 = vpop.permute.xlu0 %1187
        %v1191 = vsel %vm797, %v1186, 0
        %1193 = vmatprep.subr.bf16.mxu0 0
        %1194 = vmatpush1.bf16.msra.mxu0 %v1188
        %1195 = vmatprep.subr.bf16.mxu0 0
        %1196 = vmatpush1.bf16.msra.mxu0 0
        %1197 = vmatprep.subr.bf16.mxu0 0
        %1198 = vmatpush1.bf16.msra.mxu0 0
        %1199 = vmatprep.subr.bf16.mxu0 0
        %1200 = vmatpush1.bf16.msra.mxu0 0
        %1201 = vmatprep.subr.bf16.mxu0 0
        %1202 = vmatpush1.bf16.msra.mxu0 0
        %1203 = vmatprep.subr.bf16.mxu0 0
        %1204 = vmatpush1.bf16.msra.mxu0 0
        %1205 = vmatprep.subr.bf16.mxu0 0
        %1206 = vmatpush1.bf16.msra.mxu0 0
        %1207 = vmatprep.subr.bf16.mxu0 0
        %1208 = vmatpush1.bf16.msra.mxu0 0
        %1209 = vmatprep.subr.bf16.mxu0 0
        %1210 = vmatpush1.bf16.msra.mxu0 0
        %1211 = vmatprep.subr.bf16.mxu0 0
        %1212 = vmatpush1.bf16.msra.mxu0 0
        %1213 = vmatprep.subr.bf16.mxu0 0
        %1214 = vmatpush1.bf16.msra.mxu0 0
        %1215 = vmatprep.subr.bf16.mxu0 0
        %1216 = vmatpush1.bf16.msra.mxu0 0
        %1217 = vmatprep.subr.bf16.mxu0 0
        %1218 = vmatpush1.bf16.msra.mxu0 0
        %1219 = vmatprep.subr.bf16.mxu0 0
        %1220 = vmatpush1.bf16.msra.mxu0 0
        %1221 = vmatprep.subr.bf16.mxu0 0
        %1222 = vmatpush1.bf16.msra.mxu0 0
        %1223 = vmatprep.subr.bf16.mxu0 0
        %1224 = vmatpush1.bf16.msra.mxu0 0
        %1225 = vmatprep.mubr.bf16.mxu0 0
        %1226 = vmatmul.mubr.bf16.gmra.mrb[0].mxu0 %v1191
        %v1227 = vpop.f32.mrb[0].mxu0
        %v1228 = vadd.f32 0.0, %v1227
        %v1229 = vpop.f32.mrb[0].mxu0
        %v1230 = vpop.f32.mrb[0].mxu0
        %v1231 = vadd.f32 0.0, %v1230
        %v1232 = vpop.f32.mrb[0].mxu0
        %1233 = vdwg.mxu0
        %v1234 = vpack.c.bf16 %v1231, %v1228
        %v1239 = vunpack.c.l.b16 %v737
        %v1240 = vunpack.c.l.b16 %v738
        %v1241 = vunpack.c.l.b16 %v739
        %v1242 = vunpack.c.l.b16 %v740
        %v1243 = vpack.c.b16 %v1240, %v1239
        %v1244 = vpack.c.b16 %v1242, %v1241
        %v1248 = vsel %vm749, %v1234, 0
        %1250 = vmatprep.subr.bf16.mxu0 0
        %1251 = vmatpush1.bf16.msra.mxu0 %v1243
        %1252 = vmatprep.subr.bf16.mxu0 0
        %1253 = vmatpush1.bf16.msra.mxu0 %v1244
        %1254 = vmatprep.subr.bf16.mxu0 0
        %1255 = vmatpush1.bf16.msra.mxu0 0
        %1256 = vmatprep.subr.bf16.mxu0 0
        %1257 = vmatpush1.bf16.msra.mxu0 0
        %1258 = vmatprep.subr.bf16.mxu0 0
        %1259 = vmatpush1.bf16.msra.mxu0 0
        %1260 = vmatprep.subr.bf16.mxu0 0
        %1261 = vmatpush1.bf16.msra.mxu0 0
        %1262 = vmatprep.subr.bf16.mxu0 0
        %1263 = vmatpush1.bf16.msra.mxu0 0
        %1264 = vmatprep.subr.bf16.mxu0 0
        %1265 = vmatpush1.bf16.msra.mxu0 0
        %1266 = vmatprep.subr.bf16.mxu0 0
        %1267 = vmatpush1.bf16.msra.mxu0 0
        %1268 = vmatprep.subr.bf16.mxu0 0
        %1269 = vmatpush1.bf16.msra.mxu0 0
        %1270 = vmatprep.subr.bf16.mxu0 0
        %1271 = vmatpush1.bf16.msra.mxu0 0
        %1272 = vmatprep.subr.bf16.mxu0 0
        %1273 = vmatpush1.bf16.msra.mxu0 0
        %1274 = vmatprep.subr.bf16.mxu0 0
        %1275 = vmatpush1.bf16.msra.mxu0 0
        %1276 = vmatprep.subr.bf16.mxu0 0
        %1277 = vmatpush1.bf16.msra.mxu0 0
        %1278 = vmatprep.subr.bf16.mxu0 0
        %1279 = vmatpush1.bf16.msra.mxu0 0
        %1280 = vmatprep.subr.bf16.mxu0 0
        %1281 = vmatpush1.bf16.msra.mxu0 0
        %1282 = vmatprep.mubr.bf16.mxu0 0
        %1283 = vmatmul.mubr.bf16.gmra.mrb[0].mxu0 %v1248
        %v1284 = vpop.f32.mrb[0].mxu0
        %v1285 = vadd.f32 0.0, %v1284
        %v1286 = vpop.f32.mrb[0].mxu0
        %v1287 = vpop.f32.mrb[0].mxu0
        %v1288 = vadd.f32 0.0, %v1287
        %v1289 = vpop.f32.mrb[0].mxu0
        %1290 = vdwg.mxu0
        %v1291 = vadd.f32 %v1111, %v1285
        %v1292 = vadd.f32 %v1112, %v1288
        %1293 = vrot.lane.b32.xlu0 %v746, 32
        %v1294 = vpop.permute.xlu0 %1293
        %1295 = vrot.lane.b32.xlu0 %v747, 32
        %v1296 = vpop.permute.xlu0 %1295
        %v1298 = vsel %vm749, %v1294, 0
        %v1301 = vsel %vm749, %v1296, 0
        %1303 = vmatprep.subr.bf16.mxu0 0
        %1304 = vmatpush1.bf16.xpose.msra.mxu0 %v1301
        %1305 = vmatprep.subr.bf16.mxu0 0
        %1306 = vmatpush1.bf16.xpose.msra.mxu0 0
        %1307 = vmatprep.subr.bf16.mxu0 0
        %1308 = vmatpush1.bf16.xpose.msra.mxu0 0
        %1309 = vmatprep.subr.bf16.mxu0 0
        %1310 = vmatpush1.bf16.xpose.msra.mxu0 0
        %1311 = vmatprep.subr.bf16.mxu0 0
        %1312 = vmatpush1.bf16.xpose.msra.mxu0 0
        %1313 = vmatprep.subr.bf16.mxu0 0
        %1314 = vmatpush1.bf16.xpose.msra.mxu0 0
        %1315 = vmatprep.subr.bf16.mxu0 0
        %1316 = vmatpush1.bf16.xpose.msra.mxu0 0
        %1317 = vmatprep.subr.bf16.mxu0 0
        %1318 = vmatpush1.bf16.xpose.msra.mxu0 0
        %1319 = vmatprep.subr.bf16.mxu0 0
        %1320 = vmatpush1.bf16.xpose.msra.mxu0 0
        %1321 = vmatprep.subr.bf16.mxu0 0
        %1322 = vmatpush1.bf16.xpose.msra.mxu0 0
        %1323 = vmatprep.subr.bf16.mxu0 0
        %1324 = vmatpush1.bf16.xpose.msra.mxu0 0
        %1325 = vmatprep.subr.bf16.mxu0 0
        %1326 = vmatpush1.bf16.xpose.msra.mxu0 0
        %1327 = vmatprep.subr.bf16.mxu0 0
        %1328 = vmatpush1.bf16.xpose.msra.mxu0 0
        %1329 = vmatprep.subr.bf16.mxu0 0
        %1330 = vmatpush1.bf16.xpose.msra.mxu0 0
        %1331 = vmatprep.subr.bf16.mxu0 0
        %1332 = vmatpush1.bf16.xpose.msra.mxu0 0
        %1333 = vmatprep.subr.bf16.mxu0 0
        %1334 = vmatpush1.bf16.xpose.msra.mxu0 0
        %1335 = vmatprep.mubr.bf16.mxu0 0
        %1336 = vmatmul.mubr.bf16.gmra.mrb[0].mxu0 %v1298
        %v1337 = vpop.f32.mrb[0].mxu0
        %v1338 = vadd.f32 0.0, %v1337
        %v1339 = vpop.f32.mrb[0].mxu0
        %v1340 = vpop.f32.mrb[0].mxu0
        %v1341 = vadd.f32 0.0, %v1340
        %v1342 = vpop.f32.mrb[0].mxu0
        %1343 = vdwg.mxu0
        %v1344 = vsel %vm797, %v1338, -inf
        %1345 = vmax.xlane.f32.xlu0 %v1344
        %v1346 = vpop.xlane.xlu0 %1345
        %v1347 = vsel %vm797, %v1341, -inf
        %1348 = vmax.xlane.f32.xlu0 %v1347
        %v1349 = vpop.xlane.xlu0 %1348
        %v1350 = vsub.f32 %v1338, %v1346
        %v1351 = vsub.f32 %v1341, %v1349
        %v1352 = vmul.f32 %v1350, 1.442695
        %v1353 = vpow.pop %v1352
        %v1354 = vmul.f32 %v1351, 1.442695
        %v1355 = vpow.pop %v1354
        %v1356 = vsel %vm797, %v1353, 0.0
        %1357 = vadd.xlane.f32.xlu0 %v1356
        %v1358 = vpop.xlane.xlu0 %1357
        %v1359 = vsel %vm797, %v1355, 0.0
        %1360 = vadd.xlane.f32.xlu0 %v1359
        %v1361 = vpop.xlane.xlu0 %1360
        %v1362 = vrcp.pop %v1358
        %v1363 = vrcp.pop %v1361
        %v1364 = vmul.f32 %v1353, %v1362
        %v1365 = vmul.f32 %v1355, %v1363
        %v1366 = vpack.c.bf16 %v1365, %v1364
        %1367 = vrot.lane.b32.xlu0 %v748, 32
        %v1368 = vpop.permute.xlu0 %1367
        %v1371 = vsel %vm797, %v1366, 0
        %1373 = vmatprep.subr.bf16.mxu0 0
        %1374 = vmatpush1.bf16.msra.mxu0 %v1368
        %1375 = vmatprep.subr.bf16.mxu0 0
        %1376 = vmatpush1.bf16.msra.mxu0 0
        %1377 = vmatprep.subr.bf16.mxu0 0
        %1378 = vmatpush1.bf16.msra.mxu0 0
        %1379 = vmatprep.subr.bf16.mxu0 0
        %1380 = vmatpush1.bf16.msra.mxu0 0
        %1381 = vmatprep.subr.bf16.mxu0 0
        %1382 = vmatpush1.bf16.msra.mxu0 0
        %1383 = vmatprep.subr.bf16.mxu0 0
        %1384 = vmatpush1.bf16.msra.mxu0 0
        %1385 = vmatprep.subr.bf16.mxu0 0
        %1386 = vmatpush1.bf16.msra.mxu0 0
        %1387 = vmatprep.subr.bf16.mxu0 0
        %1388 = vmatpush1.bf16.msra.mxu0 0
        %1389 = vmatprep.subr.bf16.mxu0 0
        %1390 = vmatpush1.bf16.msra.mxu0 0
        %1391 = vmatprep.subr.bf16.mxu0 0
        %1392 = vmatpush1.bf16.msra.mxu0 0
        %1393 = vmatprep.subr.bf16.mxu0 0
        %1394 = vmatpush1.bf16.msra.mxu0 0
        %1395 = vmatprep.subr.bf16.mxu0 0
        %1396 = vmatpush1.bf16.msra.mxu0 0
        %1397 = vmatprep.subr.bf16.mxu0 0
        %1398 = vmatpush1.bf16.msra.mxu0 0
        %1399 = vmatprep.subr.bf16.mxu0 0
        %1400 = vmatpush1.bf16.msra.mxu0 0
        %1401 = vmatprep.subr.bf16.mxu0 0
        %1402 = vmatpush1.bf16.msra.mxu0 0
        %1403 = vmatprep.subr.bf16.mxu0 0
        %1404 = vmatpush1.bf16.msra.mxu0 0
        %1405 = vmatprep.mubr.bf16.mxu0 0
        %1406 = vmatmul.mubr.bf16.gmra.mrb[0].mxu0 %v1371
        %v1407 = vpop.f32.mrb[0].mxu0
        %v1408 = vadd.f32 0.0, %v1407
        %v1409 = vpop.f32.mrb[0].mxu0
        %v1410 = vpop.f32.mrb[0].mxu0
        %v1411 = vadd.f32 0.0, %v1410
        %v1412 = vpop.f32.mrb[0].mxu0
        %1413 = vdwg.mxu0
        %v1414 = vpack.c.bf16 %v1411, %v1408
        %v1419 = vunpack.c.l.b16 %v741
        %v1420 = vunpack.c.l.b16 %v742
        %v1421 = vunpack.c.l.b16 %v743
        %v1422 = vunpack.c.l.b16 %v744
        %v1423 = vpack.c.b16 %v1420, %v1419
        %v1424 = vpack.c.b16 %v1422, %v1421
        %v1428 = vsel %vm749, %v1414, 0
        %1430 = vmatprep.subr.bf16.mxu0 0
        %1431 = vmatpush1.bf16.msra.mxu0 %v1423
        %1432 = vmatprep.subr.bf16.mxu0 0
        %1433 = vmatpush1.bf16.msra.mxu0 %v1424
        %1434 = vmatprep.subr.bf16.mxu0 0
        %1435 = vmatpush1.bf16.msra.mxu0 0
        %1436 = vmatprep.subr.bf16.mxu0 0
        %1437 = vmatpush1.bf16.msra.mxu0 0
        %1438 = vmatprep.subr.bf16.mxu0 0
        %1439 = vmatpush1.bf16.msra.mxu0 0
        %1440 = vmatprep.subr.bf16.mxu0 0
        %1441 = vmatpush1.bf16.msra.mxu0 0
        %1442 = vmatprep.subr.bf16.mxu0 0
        %1443 = vmatpush1.bf16.msra.mxu0 0
        %1444 = vmatprep.subr.bf16.mxu0 0
        %1445 = vmatpush1.bf16.msra.mxu0 0
        %1446 = vmatprep.subr.bf16.mxu0 0
        %1447 = vmatpush1.bf16.msra.mxu0 0
        %1448 = vmatprep.subr.bf16.mxu0 0
        %1449 = vmatpush1.bf16.msra.mxu0 0
        %1450 = vmatprep.subr.bf16.mxu0 0
        %1451 = vmatpush1.bf16.msra.mxu0 0
        %1452 = vmatprep.subr.bf16.mxu0 0
        %1453 = vmatpush1.bf16.msra.mxu0 0
        %1454 = vmatprep.subr.bf16.mxu0 0
        %1455 = vmatpush1.bf16.msra.mxu0 0
        %1456 = vmatprep.subr.bf16.mxu0 0
        %1457 = vmatpush1.bf16.msra.mxu0 0
        %1458 = vmatprep.subr.bf16.mxu0 0
        %1459 = vmatpush1.bf16.msra.mxu0 0
        %1460 = vmatprep.subr.bf16.mxu0 0
        %1461 = vmatpush1.bf16.msra.mxu0 0
        %1462 = vmatprep.mubr.bf16.mxu0 0
        %1463 = vmatmul.mubr.bf16.gmra.mrb[0].mxu0 %v1428
        %v1464 = vpop.f32.mrb[0].mxu0
        %v1465 = vadd.f32 0.0, %v1464
        %v1466 = vpop.f32.mrb[0].mxu0
        %v1467 = vpop.f32.mrb[0].mxu0
        %v1468 = vadd.f32 0.0, %v1467
        %v1469 = vpop.f32.mrb[0].mxu0
        %1470 = vdwg.mxu0
        %v1471 = vadd.f32 %v1291, %v1465
        %v1472 = vadd.f32 %v1292, %v1468
        %v1473 = vld [vmem:[%s8] sm:$0xff]
        %v1474 = vld [vmem:[%s8 + $0x8] sm:$0xff]
        %v1475 = vld [vmem:[%s8 + $0x10] sm:$0xff]
        %v1476 = vld [vmem:[%s8 + $0x18] sm:$0xff]
        %v1477 = vld [vmem:[%s8 + $0x20] sm:$0xff]
        %v1478 = vld [vmem:[%s8 + $0x28] sm:$0xff]
        %v1479 = vld [vmem:[%s8 + $0x30] sm:$0xff]
        %v1480 = vld [vmem:[%s8 + $0x38] sm:$0xff]
        %v1481 = vld [vmem:[%s8 + $0x40] sm:$0xff]
        %v1482 = vld [vmem:[%s8 + $0x48] sm:$0xff]
        %v1483 = vld [vmem:[%s8 + $0x50] sm:$0xff]
        %v1484 = vld [vmem:[%s8 + $0x58] sm:$0xff]
        %v1485 = vld [vmem:[%s8 + $0x60] sm:$0xff]
        %v1486 = vld [vmem:[%s8 + $0x68] sm:$0xff]
        %v1487 = vld [vmem:[%s8 + $0x70] sm:$0xff]
        %v1488 = vld [vmem:[%s8 + $0x78] sm:$0xff]
        %v1489 = vpack.c.bf16 %v1472, %v1471
        %v1490 = vld [vmem:[%s9] sm:$0xff]
        %v1491 = vld [vmem:[%s9 + $0x8] sm:$0xff]
        %v1492 = vld [vmem:[%s9 + $0x10] sm:$0xff]
        %v1493 = vld [vmem:[%s9 + $0x18] sm:$0xff]
        %v1494 = vld [vmem:[%s9 + $0x20] sm:$0xff]
        %v1495 = vld [vmem:[%s9 + $0x28] sm:$0xff]
        %v1496 = vld [vmem:[%s9 + $0x30] sm:$0xff]
        %v1497 = vld [vmem:[%s9 + $0x38] sm:$0xff]
        %v1498 = vld [vmem:[%s9 + $0x40] sm:$0xff]
        %v1499 = vld [vmem:[%s9 + $0x48] sm:$0xff]
        %v1500 = vld [vmem:[%s9 + $0x50] sm:$0xff]
        %v1501 = vld [vmem:[%s9 + $0x58] sm:$0xff]
        %v1502 = vld [vmem:[%s9 + $0x60] sm:$0xff]
        %v1503 = vld [vmem:[%s9 + $0x68] sm:$0xff]
        %v1504 = vld [vmem:[%s9 + $0x70] sm:$0xff]
        %v1505 = vld [vmem:[%s9 + $0x78] sm:$0xff]
        %v1522 = vunpack.c.l.b16 %v1490
        %v1523 = vunpack.c.h.b16 %v1490
        %v1524 = vunpack.c.l.b16 %v1491
        %v1525 = vunpack.c.h.b16 %v1491
        %v1526 = vunpack.c.l.b16 %v1492
        %v1527 = vunpack.c.h.b16 %v1492
        %v1528 = vunpack.c.l.b16 %v1493
        %v1529 = vunpack.c.h.b16 %v1493
        %v1530 = vunpack.c.l.b16 %v1494
        %v1531 = vunpack.c.h.b16 %v1494
        %v1532 = vunpack.c.l.b16 %v1495
        %v1533 = vunpack.c.h.b16 %v1495
        %v1534 = vunpack.c.l.b16 %v1496
        %v1535 = vunpack.c.h.b16 %v1496
        %v1536 = vunpack.c.l.b16 %v1497
        %v1537 = vunpack.c.h.b16 %v1497
        %v1538 = vunpack.c.l.b16 %v1498
        %v1539 = vunpack.c.h.b16 %v1498
        %v1540 = vunpack.c.l.b16 %v1499
        %v1541 = vunpack.c.h.b16 %v1499
        %v1542 = vunpack.c.l.b16 %v1500
        %v1543 = vunpack.c.h.b16 %v1500
        %v1544 = vunpack.c.l.b16 %v1501
        %v1545 = vunpack.c.h.b16 %v1501
        %v1546 = vunpack.c.l.b16 %v1502
        %v1547 = vunpack.c.h.b16 %v1502
        %v1548 = vunpack.c.l.b16 %v1503
        %v1549 = vunpack.c.h.b16 %v1503
        %v1550 = vunpack.c.l.b16 %v1504
        %v1551 = vunpack.c.h.b16 %v1504
        %v1552 = vunpack.c.l.b16 %v1505
        %v1553 = vunpack.c.h.b16 %v1505
        %v1554 = vpack.c.b16 %v1524, %v1522
        %v1555 = vpack.c.b16 %v1525, %v1523
        %v1556 = vpack.c.b16 %v1528, %v1526
        %v1557 = vpack.c.b16 %v1529, %v1527
        %v1558 = vpack.c.b16 %v1532, %v1530
        %v1559 = vpack.c.b16 %v1533, %v1531
        %v1560 = vpack.c.b16 %v1536, %v1534
        %v1561 = vpack.c.b16 %v1537, %v1535
        %v1562 = vpack.c.b16 %v1540, %v1538
        %v1563 = vpack.c.b16 %v1541, %v1539
        %v1564 = vpack.c.b16 %v1544, %v1542
        %v1565 = vpack.c.b16 %v1545, %v1543
        %v1566 = vpack.c.b16 %v1548, %v1546
        %v1567 = vpack.c.b16 %v1549, %v1547
        %v1568 = vpack.c.b16 %v1552, %v1550
        %v1569 = vpack.c.b16 %v1553, %v1551
        %1586 = vmatprep.subr.bf16.mxu0 %v1555
        %1587 = vmatpush1.bf16.msra.mxu0 %v1554
        %1588 = vmatprep.subr.bf16.mxu0 %v1557
        %1589 = vmatpush1.bf16.msra.mxu0 %v1556
        %1590 = vmatprep.subr.bf16.mxu0 %v1559
        %1591 = vmatpush1.bf16.msra.mxu0 %v1558
        %1592 = vmatprep.subr.bf16.mxu0 %v1561
        %1593 = vmatpush1.bf16.msra.mxu0 %v1560
        %1594 = vmatprep.subr.bf16.mxu0 %v1563
        %1595 = vmatpush1.bf16.msra.mxu0 %v1562
        %1596 = vmatprep.subr.bf16.mxu0 %v1565
        %1597 = vmatpush1.bf16.msra.mxu0 %v1564
        %1598 = vmatprep.subr.bf16.mxu0 %v1567
        %1599 = vmatpush1.bf16.msra.mxu0 %v1566
        %1600 = vmatprep.subr.bf16.mxu0 %v1569
        %1601 = vmatpush1.bf16.msra.mxu0 %v1568
        %1602 = vmatprep.subr.bf16.mxu0 0
        %1603 = vmatpush1.bf16.msra.mxu0 0
        %1604 = vmatprep.subr.bf16.mxu0 0
        %1605 = vmatpush1.bf16.msra.mxu0 0
        %1606 = vmatprep.subr.bf16.mxu0 0
        %1607 = vmatpush1.bf16.msra.mxu0 0
        %1608 = vmatprep.subr.bf16.mxu0 0
        %1609 = vmatpush1.bf16.msra.mxu0 0
        %1610 = vmatprep.subr.bf16.mxu0 0
        %1611 = vmatpush1.bf16.msra.mxu0 0
        %1612 = vmatprep.subr.bf16.mxu0 0
        %1613 = vmatpush1.bf16.msra.mxu0 0
        %1614 = vmatprep.subr.bf16.mxu0 0
        %1615 = vmatpush1.bf16.msra.mxu0 0
        %1616 = vmatprep.subr.bf16.mxu0 0
        %1617 = vmatpush1.bf16.msra.mxu0 0
        %1618 = vmatprep.mubr.bf16.mxu0 0
        %1619 = vmatmul.mubr.bf16.gmra.mrb[0].mxu0 %v1489
        %v1620 = vpop.f32.mrb[0].mxu0
        %v1621 = vadd.f32 0.0, %v1620
        %v1622 = vpop.f32.mrb[0].mxu0
        %v1623 = vadd.f32 0.0, %v1622
        %v1624 = vpop.f32.mrb[0].mxu0
        %v1625 = vadd.f32 0.0, %v1624
        %v1626 = vpop.f32.mrb[0].mxu0
        %v1627 = vadd.f32 0.0, %v1626
        %1628 = vdwg.mxu0
        %v1645 = vunpack.c.l.b16 %v1473
        %v1646 = vunpack.c.h.b16 %v1473
        %v1647 = vunpack.c.l.b16 %v1474
        %v1648 = vunpack.c.h.b16 %v1474
        %v1649 = vunpack.c.l.b16 %v1475
        %v1650 = vunpack.c.h.b16 %v1475
        %v1651 = vunpack.c.l.b16 %v1476
        %v1652 = vunpack.c.h.b16 %v1476
        %v1653 = vunpack.c.l.b16 %v1477
        %v1654 = vunpack.c.h.b16 %v1477
        %v1655 = vunpack.c.l.b16 %v1478
        %v1656 = vunpack.c.h.b16 %v1478
        %v1657 = vunpack.c.l.b16 %v1479
        %v1658 = vunpack.c.h.b16 %v1479
        %v1659 = vunpack.c.l.b16 %v1480
        %v1660 = vunpack.c.h.b16 %v1480
        %v1661 = vunpack.c.l.b16 %v1481
        %v1662 = vunpack.c.h.b16 %v1481
        %v1663 = vunpack.c.l.b16 %v1482
        %v1664 = vunpack.c.h.b16 %v1482
        %v1665 = vunpack.c.l.b16 %v1483
        %v1666 = vunpack.c.h.b16 %v1483
        %v1667 = vunpack.c.l.b16 %v1484
        %v1668 = vunpack.c.h.b16 %v1484
        %v1669 = vunpack.c.l.b16 %v1485
        %v1670 = vunpack.c.h.b16 %v1485
        %v1671 = vunpack.c.l.b16 %v1486
        %v1672 = vunpack.c.h.b16 %v1486
        %v1673 = vunpack.c.l.b16 %v1487
        %v1674 = vunpack.c.h.b16 %v1487
        %v1675 = vunpack.c.l.b16 %v1488
        %v1676 = vunpack.c.h.b16 %v1488
        %v1677 = vpack.c.b16 %v1647, %v1645
        %v1678 = vpack.c.b16 %v1648, %v1646
        %v1679 = vpack.c.b16 %v1651, %v1649
        %v1680 = vpack.c.b16 %v1652, %v1650
        %v1681 = vpack.c.b16 %v1655, %v1653
        %v1682 = vpack.c.b16 %v1656, %v1654
        %v1683 = vpack.c.b16 %v1659, %v1657
        %v1684 = vpack.c.b16 %v1660, %v1658
        %v1685 = vpack.c.b16 %v1663, %v1661
        %v1686 = vpack.c.b16 %v1664, %v1662
        %v1687 = vpack.c.b16 %v1667, %v1665
        %v1688 = vpack.c.b16 %v1668, %v1666
        %v1689 = vpack.c.b16 %v1671, %v1669
        %v1690 = vpack.c.b16 %v1672, %v1670
        %v1691 = vpack.c.b16 %v1675, %v1673
        %v1692 = vpack.c.b16 %v1676, %v1674
        %1709 = vmatprep.subr.bf16.mxu0 %v1678
        %1710 = vmatpush1.bf16.msra.mxu0 %v1677
        %1711 = vmatprep.subr.bf16.mxu0 %v1680
        %1712 = vmatpush1.bf16.msra.mxu0 %v1679
        %1713 = vmatprep.subr.bf16.mxu0 %v1682
        %1714 = vmatpush1.bf16.msra.mxu0 %v1681
        %1715 = vmatprep.subr.bf16.mxu0 %v1684
        %1716 = vmatpush1.bf16.msra.mxu0 %v1683
        %1717 = vmatprep.subr.bf16.mxu0 %v1686
        %1718 = vmatpush1.bf16.msra.mxu0 %v1685
        %1719 = vmatprep.subr.bf16.mxu0 %v1688
        %1720 = vmatpush1.bf16.msra.mxu0 %v1687
        %1721 = vmatprep.subr.bf16.mxu0 %v1690
        %1722 = vmatpush1.bf16.msra.mxu0 %v1689
        %1723 = vmatprep.subr.bf16.mxu0 %v1692
        %1724 = vmatpush1.bf16.msra.mxu0 %v1691
        %1725 = vmatprep.subr.bf16.mxu0 0
        %1726 = vmatpush1.bf16.msra.mxu0 0
        %1727 = vmatprep.subr.bf16.mxu0 0
        %1728 = vmatpush1.bf16.msra.mxu0 0
        %1729 = vmatprep.subr.bf16.mxu0 0
        %1730 = vmatpush1.bf16.msra.mxu0 0
        %1731 = vmatprep.subr.bf16.mxu0 0
        %1732 = vmatpush1.bf16.msra.mxu0 0
        %1733 = vmatprep.subr.bf16.mxu0 0
        %1734 = vmatpush1.bf16.msra.mxu0 0
        %1735 = vmatprep.subr.bf16.mxu0 0
        %1736 = vmatpush1.bf16.msra.mxu0 0
        %1737 = vmatprep.subr.bf16.mxu0 0
        %1738 = vmatpush1.bf16.msra.mxu0 0
        %1739 = vmatprep.subr.bf16.mxu0 0
        %1740 = vmatpush1.bf16.msra.mxu0 0
        %1741 = vmatprep.mubr.bf16.mxu0 0
        %1742 = vmatmul.mubr.bf16.gmra.mrb[0].mxu0 %v462
        %v1743 = vpop.f32.mrb[0].mxu0
        %v1744 = vadd.f32 %v1621, %v1743
        %v1745 = vpop.f32.mrb[0].mxu0
        %v1746 = vadd.f32 %v1623, %v1745
        %v1747 = vpop.f32.mrb[0].mxu0
        %v1748 = vadd.f32 %v1625, %v1747
        %v1749 = vpop.f32.mrb[0].mxu0
        %v1750 = vadd.f32 %v1627, %v1749
        %1751 = vdwg.mxu0
        %v1752 = vld [vmem:[%s10] sm:$0x3]
        %v1754 = vlaneseq
        %v1755 = vshrl.u32 %v1754, 7
        %v1756 = vsub.s32 0, %v1755
        %v1757 = vrot.slane %v1752, %v1756
        %v1758 = vlaneseq
        %v1759 = vshrl.u32 %v1758, 7
        %v1760 = vsub.s32 1, %v1759
        %v1761 = vrot.slane %v1752, %v1760
        %v1764 = vadd.f32 %v1744, %v1757
        %v1765 = vadd.f32 %v1746, %v1761
        %v1766 = vadd.f32 %v1748, %v1757
        %v1767 = vadd.f32 %v1750, %v1761
        %v1768 = vadd.f32 %v1764, %v1766
        %v1769 = vrot.slane %v1768, 4
        %v1770 = vadd.f32 %v1768, %v1769
        %v1771 = vrot.slane %v1770, 2
        %v1772 = vadd.f32 %v1770, %v1771
        %v1773 = vrot.slane %v1772, 1
        %v1774 = vadd.f32 %v1772, %v1773
        %v1775 = vadd.f32 %v1765, %v1767
        %v1776 = vrot.slane %v1775, 4
        %v1777 = vadd.f32 %v1775, %v1776
        %v1778 = vrot.slane %v1777, 2
        %v1779 = vadd.f32 %v1777, %v1778
        %v1780 = vrot.slane %v1779, 1
        %v1781 = vadd.f32 %v1779, %v1780
        %v1782 = vrcp.pop 16.0
        %v1783 = vmul.f32 %v1774, %v1782
        %v1784 = vmul.f32 %v1781, %v1782
        %v1785 = vsub.f32 %v1764, %v1783
        %v1786 = vsub.f32 %v1765, %v1784
        %v1787 = vsub.f32 %v1766, %v1783
        %v1788 = vsub.f32 %v1767, %v1784
        %v1789 = vmul.f32 %v1785, %v1785
        %v1790 = vmul.f32 %v1786, %v1786
        %v1791 = vmul.f32 %v1787, %v1787
        %v1792 = vmul.f32 %v1788, %v1788
        %v1793 = vadd.f32 %v1789, %v1791
        %v1794 = vrot.slane %v1793, 4
        %v1795 = vadd.f32 %v1793, %v1794
        %v1796 = vrot.slane %v1795, 2
        %v1797 = vadd.f32 %v1795, %v1796
        %v1798 = vrot.slane %v1797, 1
        %v1799 = vadd.f32 %v1797, %v1798
        %v1800 = vadd.f32 %v1790, %v1792
        %v1801 = vrot.slane %v1800, 4
        %v1802 = vadd.f32 %v1800, %v1801
        %v1803 = vrot.slane %v1802, 2
        %v1804 = vadd.f32 %v1802, %v1803
        %v1805 = vrot.slane %v1804, 1
        %v1806 = vadd.f32 %v1804, %v1805
        %v1807 = vmul.f32 %v1799, %v1782
        %v1808 = vmul.f32 %v1806, %v1782
        %v1809 = vadd.f32 %v1807, 1e-05
        %v1810 = vadd.f32 %v1808, 1e-05
        %v1811 = vrsqrt.pop %v1809
        %v1812 = vrsqrt.pop %v1810
        %v1813 = vmul.f32 %v1785, %v1811
        %v1814 = vmul.f32 %v1786, %v1812
        %v1815 = vmul.f32 %v1787, %v1811
        %v1816 = vmul.f32 %v1788, %v1812
        %v1817 = vmax.f32 %v1813, 0.0
        %v1818 = vmax.f32 %v1814, 0.0
        %v1819 = vmax.f32 %v1815, 0.0
        %v1820 = vmax.f32 %v1816, 0.0
        %v1821 = vpack.c.bf16 %v1819, %v1817
        %v1822 = vpack.c.bf16 %v1820, %v1818
        %v1823 = vld [vmem:[%s11] sm:$0xf]
        %v1824 = vld [vmem:[%s11 + $0x4] sm:$0xf]
        %v1825 = vld [vmem:[%s11 + $0x8] sm:$0xf]
        %v1826 = vld [vmem:[%s11 + $0xc] sm:$0xf]
        %v1827 = vld [vmem:[%s11 + $0x10] sm:$0xf]
        %v1828 = vld [vmem:[%s11 + $0x14] sm:$0xf]
        %v1829 = vld [vmem:[%s11 + $0x18] sm:$0xf]
        %v1830 = vld [vmem:[%s11 + $0x1c] sm:$0xf]
        %v1831 = vld [vmem:[%s11 + $0x20] sm:$0xf]
        %v1832 = vld [vmem:[%s11 + $0x24] sm:$0xf]
        %v1833 = vld [vmem:[%s11 + $0x28] sm:$0xf]
        %v1834 = vld [vmem:[%s11 + $0x2c] sm:$0xf]
        %v1835 = vld [vmem:[%s11 + $0x30] sm:$0xf]
        %v1836 = vld [vmem:[%s11 + $0x34] sm:$0xf]
        %v1837 = vld [vmem:[%s11 + $0x38] sm:$0xf]
        %v1838 = vld [vmem:[%s11 + $0x3c] sm:$0xf]
        %v1839 = vld [vmem:[%s11 + $0x40] sm:$0xf]
        %v1840 = vld [vmem:[%s11 + $0x44] sm:$0xf]
        %v1841 = vld [vmem:[%s11 + $0x48] sm:$0xf]
        %v1842 = vld [vmem:[%s11 + $0x4c] sm:$0xf]
        %v1843 = vld [vmem:[%s11 + $0x50] sm:$0xf]
        %v1844 = vld [vmem:[%s11 + $0x54] sm:$0xf]
        %v1845 = vld [vmem:[%s11 + $0x58] sm:$0xf]
        %v1846 = vld [vmem:[%s11 + $0x5c] sm:$0xf]
        %v1847 = vld [vmem:[%s11 + $0x60] sm:$0xf]
        %v1848 = vld [vmem:[%s11 + $0x64] sm:$0xf]
        %v1849 = vld [vmem:[%s11 + $0x68] sm:$0xf]
        %v1850 = vld [vmem:[%s11 + $0x6c] sm:$0xf]
        %v1851 = vld [vmem:[%s11 + $0x70] sm:$0xf]
        %v1852 = vld [vmem:[%s11 + $0x74] sm:$0xf]
        %v1853 = vld [vmem:[%s11 + $0x78] sm:$0xf]
        %v1854 = vld [vmem:[%s11 + $0x7c] sm:$0xf]
        %v1855 = vld [vmem:[%s12] sm:$0x1]
        %v1857 = vlaneseq
        %v1858 = vshrl.u32 %v1857, 7
        %v1859 = vsub.s32 0, %v1858
        %v1860 = vrot.slane %v1855, %v1859
        %v1894 = vunpack.c.l.b16 %v1823
        %v1895 = vunpack.c.l.b16 %v1824
        %v1896 = vunpack.c.l.b16 %v1825
        %v1897 = vunpack.c.l.b16 %v1826
        %v1898 = vunpack.c.l.b16 %v1827
        %v1899 = vunpack.c.l.b16 %v1828
        %v1900 = vunpack.c.l.b16 %v1829
        %v1901 = vunpack.c.l.b16 %v1830
        %v1902 = vunpack.c.l.b16 %v1831
        %v1903 = vunpack.c.l.b16 %v1832
        %v1904 = vunpack.c.l.b16 %v1833
        %v1905 = vunpack.c.l.b16 %v1834
        %v1906 = vunpack.c.l.b16 %v1835
        %v1907 = vunpack.c.l.b16 %v1836
        %v1908 = vunpack.c.l.b16 %v1837
        %v1909 = vunpack.c.l.b16 %v1838
        %v1910 = vunpack.c.l.b16 %v1839
        %v1911 = vunpack.c.l.b16 %v1840
        %v1912 = vunpack.c.l.b16 %v1841
        %v1913 = vunpack.c.l.b16 %v1842
        %v1914 = vunpack.c.l.b16 %v1843
        %v1915 = vunpack.c.l.b16 %v1844
        %v1916 = vunpack.c.l.b16 %v1845
        %v1917 = vunpack.c.l.b16 %v1846
        %v1918 = vunpack.c.l.b16 %v1847
        %v1919 = vunpack.c.l.b16 %v1848
        %v1920 = vunpack.c.l.b16 %v1849
        %v1921 = vunpack.c.l.b16 %v1850
        %v1922 = vunpack.c.l.b16 %v1851
        %v1923 = vunpack.c.l.b16 %v1852
        %v1924 = vunpack.c.l.b16 %v1853
        %v1925 = vunpack.c.l.b16 %v1854
        %v1926 = vpack.c.b16 %v1895, %v1894
        %v1927 = vpack.c.b16 %v1897, %v1896
        %v1928 = vpack.c.b16 %v1899, %v1898
        %v1929 = vpack.c.b16 %v1901, %v1900
        %v1930 = vpack.c.b16 %v1903, %v1902
        %v1931 = vpack.c.b16 %v1905, %v1904
        %v1932 = vpack.c.b16 %v1907, %v1906
        %v1933 = vpack.c.b16 %v1909, %v1908
        %v1934 = vpack.c.b16 %v1911, %v1910
        %v1935 = vpack.c.b16 %v1913, %v1912
        %v1936 = vpack.c.b16 %v1915, %v1914
        %v1937 = vpack.c.b16 %v1917, %v1916
        %v1938 = vpack.c.b16 %v1919, %v1918
        %v1939 = vpack.c.b16 %v1921, %v1920
        %v1940 = vpack.c.b16 %v1923, %v1922
        %v1941 = vpack.c.b16 %v1925, %v1924
        %1958 = vmatprep.subr.bf16.mxu0 0
        %1959 = vmatpush1.bf16.msra.mxu0 %v1926
        %1960 = vmatprep.subr.bf16.mxu0 0
        %1961 = vmatpush1.bf16.msra.mxu0 %v1927
        %1962 = vmatprep.subr.bf16.mxu0 0
        %1963 = vmatpush1.bf16.msra.mxu0 %v1928
        %1964 = vmatprep.subr.bf16.mxu0 0
        %1965 = vmatpush1.bf16.msra.mxu0 %v1929
        %1966 = vmatprep.subr.bf16.mxu0 0
        %1967 = vmatpush1.bf16.msra.mxu0 %v1930
        %1968 = vmatprep.subr.bf16.mxu0 0
        %1969 = vmatpush1.bf16.msra.mxu0 %v1931
        %1970 = vmatprep.subr.bf16.mxu0 0
        %1971 = vmatpush1.bf16.msra.mxu0 %v1932
        %1972 = vmatprep.subr.bf16.mxu0 0
        %1973 = vmatpush1.bf16.msra.mxu0 %v1933
        %1974 = vmatprep.subr.bf16.mxu0 0
        %1975 = vmatpush1.bf16.msra.mxu0 %v1934
        %1976 = vmatprep.subr.bf16.mxu0 0
        %1977 = vmatpush1.bf16.msra.mxu0 %v1935
        %1978 = vmatprep.subr.bf16.mxu0 0
        %1979 = vmatpush1.bf16.msra.mxu0 %v1936
        %1980 = vmatprep.subr.bf16.mxu0 0
        %1981 = vmatpush1.bf16.msra.mxu0 %v1937
        %1982 = vmatprep.subr.bf16.mxu0 0
        %1983 = vmatpush1.bf16.msra.mxu0 %v1938
        %1984 = vmatprep.subr.bf16.mxu0 0
        %1985 = vmatpush1.bf16.msra.mxu0 %v1939
        %1986 = vmatprep.subr.bf16.mxu0 0
        %1987 = vmatpush1.bf16.msra.mxu0 %v1940
        %1988 = vmatprep.subr.bf16.mxu0 0
        %1989 = vmatpush1.bf16.msra.mxu0 %v1941
        %1990 = vmatprep.mubr.bf16.mxu0 %v1822
        %1991 = vmatmul.mubr.bf16.gmra.mrb[0].mxu0 %v1821
        %v1992 = vpop.f32.mrb[0].mxu0
        %v1993 = vadd.f32 %v1860, %v1992
        %v1994 = vpop.f32.mrb[0].mxu0
        %v1995 = vpop.f32.mrb[0].mxu0
        %v1996 = vadd.f32 %v1860, %v1995
        %v1997 = vpop.f32.mrb[0].mxu0
        %1998 = vdwg.mxu0
        %v1999 = vadd.f32 %v460, %v1993
        %v2000 = vadd.f32 %v461, %v1996
        %2001 = vst [vmem:[%s448] sm:$0xff] %v1999
        %2002 = vst [vmem:[%s448 + $0x8] sm:$0xff] %v2000
        %s2003 = sand.u32 %s318, 1
        %s2004 = scalar_lea.sflag [#allocation3], %s2003
        %s2005 = sand.u32 %s318, 1
        %s2006 = smul.addr %s2005, 16
        %s2007 = scalar_lea.vmem [#allocation2], %s2006
        // Predicated region
        $region73: #{_lambda_.27} parent=71 // pred_check
          %p2008 = pneg %p328
        $region74: #{_lambda_.27} parent=71 // pred_check_branch
          %2010 = sbr.rel (%p2008) target = $region76
        $region75: #{_lambda_.27} parent=71 // pred_region
          %s2012 = ssub.s32 256, 256
          %2013 = vsyncadd %s2004, %s2012
          %s2014 = smul.addr %s27, 2
          %s2015 = smul.addr %s2014, 128
          %s2016 = scalar_lea.hbm %s13, %s2015
          %s2017 = sshll.u32 %s2007, 4
          %s2018 = int_to_ptr.vmem [resolvable:$true] %s2017
          %2023 = dma.vmem_to_hbm [thread:$0]  %s2018, 256, %s2016, %s2004, 128, 128, 8
        $region76: #{_lambda_.27} parent=71 // pred_fallthru
          _
      $region72: #{_lambda_.27} parent=5 // pred_fallthru
        _
      %p2024 = scmp.le.s32.totalorder 2, %s22
      // Predicated region
      $region77: #{_lambda_.27} parent=5 // pred_check
        %p2025 = pneg %p2024
      $region78: #{_lambda_.27} parent=5 // pred_check_branch
        %2027 = sbr.rel (%p2025) target = $region80
      $region79: #{_lambda_.27} parent=5 // pred_region
        %s2028 = ssub.s32 %s22, 2
        // Predicated region
        $region81: #{_lambda_.27} parent=79 // pred_check
          %p2029 = pneg %p334
        $region82: #{_lambda_.27} parent=79 // pred_check_branch
          %2031 = sbr.rel (%p2029) target = $region84
        $region83: #{_lambda_.27} parent=79 // pred_region
          %s2032 = sand.u32 %s319, 1
          %s2033 = scalar_lea.sflag [#allocation3], %s2032
          %s2034 = sand.u32 %s319, 1
          %s2035 = smul.addr %s2034, 16
          %s2036 = scalar_lea.vmem [#allocation2], %s2035
          %2037 = dma.done %s2033, 256
        $region84: #{_lambda_.27} parent=79 // pred_fallthru
          _
      $region80: #{_lambda_.27} parent=5 // pred_fallthru
        _
    $region6: #{_lambda_.27} parent=1 // loop_footer
      %s26 = sadd.s32 1, %s22
    $region7: #{_lambda_.27} parent=1 // loop_footer_branch
      %21 = sbr.rel target = $region3
    $region8: #{_lambda_.27} parent=1 // loop_exit
      _
    %2038 = vsyncpa [#allocation3], 1
    %s2039 = scalar_lea.sflag [#allocation3], 1
    %2040 = vsyncpa %s2039, 1

</llo_original>
